<compile_context>
chip_gen: v7x
topology: tpu7x:2x2x1
jax: 0.10.0
libtpu: 0.0.40
codegen_flags: <defaults>
</compile_context>

<pallas_src>
import math
import functools

import jax
import jax.numpy as jnp
from jax import lax
from jax.experimental import pallas as pl
from jax.experimental.pallas import tpu as pltpu


# ----------------------------- in-kernel helpers -----------------------------

def _gelu_exact(x):
    # Matches torch.nn.GELU() default (erf-based).  erf is evaluated with the
    # Abramowitz-Stegun 7.1.26 polynomial (|err| <= 1.5e-7) so the kernel only
    # relies on exp / mul / add / where lowerings (no erf primitive needed).
    z = x * (1.0 / math.sqrt(2.0))
    a = jnp.abs(z)
    t = 1.0 / (1.0 + 0.3275911 * a)
    poly = t * (0.254829592 + t * (-0.284496736 + t * (1.421413741
             + t * (-1.453152027 + t * 1.061405429))))
    erf_abs = 1.0 - poly * jnp.exp(-a * a)
    erf_z = jnp.where(z >= 0, erf_abs, -erf_abs)
    return 0.5 * x * (1.0 + erf_z)


# --------------------------------- kernel ------------------------------------

def attention_kernel(x_ref, wdw_ref, cmask_ref, wpw_ref, b_ref, o_ref, xpad_ref,
                     *, stage_dims, width, guard, pw_max):
    """One image per grid step.

    x_ref     : (1, C, P)           input, P = H*W on lanes
    wdw_ref   : (C, T)              per-tap depthwise scalar weights (T = 67)
    cmask_ref : (2*pw_max+1, 1, P)  column-validity masks indexed by rw+pw_max
    wpw_ref   : (3, C, C)           1x1-conv weights [proj_1, conv1, proj_2]
    b_ref     : (C, 6)              biases [proj_1, conv0, strip1, strip2, conv1, proj_2]
    o_ref     : (1, C, P)           output
    xpad_ref  : (C, P + 2*guard)    zero-guarded scratch for shifted depthwise reads
    """
    C, P = x_ref.shape[1], x_ref.shape[2]
    G = guard
    x = x_ref[0]                                    # (C, P); also the residual

    # Zero only the guard bands (interior is fully overwritten each stage).
    zero_band = jnp.zeros((C, G), dtype=xpad_ref.dtype)
    xpad_ref[:, 0:G] = zero_band
    xpad_ref[:, G + P:G + P + G] = zero_band

    # proj_1 (1x1 conv == (C,C)@(C,P) matmul, N lane-dense) + exact GELU.
    y = jnp.dot(wpw_ref[0], x, preferred_element_type=jnp.float32) + b_ref[:, 0:1]
    y = _gelu_exact(y)

    # StripBlock depthwise chain: 5x5 -> (k1,k2) -> (k2,k1).
    # Taps are grouped by horizontal offset rw: within a group we accumulate
    # static lane-offset reads from the zero-guarded scratch scaled by per-tap
    # (C,1) scalar weights, then apply the (1,P) column mask once per group.
    # Vertical out-of-range reads land in the guard bands (zeros) for free.
    attn = y
    tap_base = 0
    for stage, (kh, kw) in enumerate(stage_dims):
        ph, pw = kh // 2, kw // 2
        xpad_ref[:, G:G + P] = attn                 # aligned interior write
        acc = None
        for j in range(kw):                         # group taps by column offset rw
            rw = j - pw
            gsum = None
            for i in range(kh):                     # sum over row offsets rh
                rh = i - ph
                off = rh * width + rw
                t_idx = tap_base + i * kw + j
                term = (xpad_ref[:, G + off:G + off + P]
                        * wdw_ref[:, t_idx:t_idx + 1])
                gsum = term if gsum is None else gsum + term
            if rw != 0:                             # column mask, once per rw group
                gsum = gsum * cmask_ref[pw_max + rw]
            acc = gsum if acc is None else acc + gsum
        tap_base += kh * kw
        attn = acc + b_ref[:, 1 + stage:2 + stage]

    # conv1 (1x1), spatial gating, proj_2 (1x1), residual.
    attn = jnp.dot(wpw_ref[1], attn, preferred_element_type=jnp.float32) + b_ref[:, 4:5]
    y = y * attn
    y = jnp.dot(wpw_ref[2], y, preferred_element_type=jnp.float32) + b_ref[:, 5:6]
    o_ref[0] = (y + x).astype(o_ref.dtype)


# -------------------------------- wrapper ------------------------------------

def _tap_weight_matrix(params):
    """Depthwise tap weights flattened to (C, T); taps are stage-ordered and
    (dh, dw) row-major within each stage."""
    cols = [params[name].reshape(params[name].shape[0], -1)
            for name in ("w_c0", "w_s1", "w_s2")]
    return jnp.concatenate(cols, axis=1)


def _column_masks(W, P, pw_max, dtype):
    """(2*pw_max+1, 1, P) masks; row rw+pw_max is 1 where 0 <= (p % W)+rw < W."""
    col = jnp.arange(P, dtype=jnp.int32) % W
    rows = [((col + rw >= 0) & (col + rw < W)).astype(dtype)[None, :]
            for rw in range(-pw_max, pw_max + 1)]
    return jnp.stack(rows, axis=0)


def attention_forward(x_nchw, params, k1, k2):
    B, C, H, W = x_nchw.shape
    P = H * W
    assert k1 % 2 == 1 and k2 % 2 == 1, "'same' strip convs require odd k1, k2"
    stage_dims = ((5, 5), (k1, k2), (k2, k1))
    pw_max = max(kw // 2 for _, kw in stage_dims)

    # Guard band (lanes) covering the largest flattened tap offset, rounded up
    # to a 128-lane multiple so interior/guard writes stay vreg-aligned.
    max_off = max((kh // 2) * W + kw // 2 for kh, kw in stage_dims)
    G = max(128, ((max_off + 127) // 128) * 128)
    assert G >= max_off

    wdw = _tap_weight_matrix(params).astype(jnp.float32)         # (C, 67)   ~8.6 KB
    cmask = _column_masks(W, P, pw_max, jnp.float32)             # (7, 1, P) ~7 KB
    wpw = jnp.stack([params["w_p1"], params["w_c1"], params["w_p2"]], axis=0)
    b_all = jnp.stack([params["b_p1"], params["b_c0"], params["b_s1"],
                       params["b_s2"], params["b_c1"], params["b_p2"]],
                      axis=1)                                    # (C, 6)

    # NCHW -> (B, C, H*W): pure reshape, no transpose needed for this layout.
    x_flat = x_nchw.reshape(B, C, P)

    kernel = functools.partial(attention_kernel, stage_dims=stage_dims,
                               width=W, guard=G, pw_max=pw_max)

    # TODO(synk): at production resolutions, tile over H with a halo (lane block
    # a multiple of 128) and set vmem_limit_bytes explicitly so x/out/scratch
    # fit v7x's 64 MiB VMEM; the weights/masks are now resolution-independent.
    out = pl.pallas_call(
        kernel,
        out_shape=jax.ShapeDtypeStruct((B, C, P), x_nchw.dtype),
        grid=(B,),
        in_specs=[
            pl.BlockSpec((1, C, P), lambda b: (b, 0, 0)),
            # Constant-index whole-array weight/mask blocks (fetched once).
            pl.BlockSpec(wdw.shape, lambda b: (0, 0)),
            pl.BlockSpec(cmask.shape, lambda b: (0, 0, 0)),
            pl.BlockSpec(wpw.shape, lambda b: (0, 0, 0)),
            pl.BlockSpec(b_all.shape, lambda b: (0, 0)),
        ],
        out_specs=pl.BlockSpec((1, C, P), lambda b: (b, 0, 0)),
        scratch_shapes=[pltpu.VMEM((C, P + 2 * G), jnp.float32)],
        compiler_params=pltpu.CompilerParams(
            dimension_semantics=("parallel",)),
    )(x_flat, wdw, cmask, wpw, b_all)
    return out.reshape(B, C, H, W)


# ----------------------------- pure-JAX reference -----------------------------

def _ref_dw(x, w_ckk, b):
    C, kh, kw = w_ckk.shape
    y = lax.conv_general_dilated(
        x, w_ckk[:, None], window_strides=(1, 1),
        padding=[(kh // 2, kh // 2), (kw // 2, kw // 2)],
        dimension_numbers=("NCHW", "OIHW", "NCHW"), feature_group_count=C,
        precision=lax.Precision.HIGHEST)
    return y + b[None, :, None, None]


def _ref_pw(x, w, b):
    y = lax.conv_general_dilated(
        x, w[:, :, None, None], window_strides=(1, 1), padding=[(0, 0), (0, 0)],
        dimension_numbers=("NCHW", "OIHW", "NCHW"),
        precision=lax.Precision.HIGHEST)
    return y + b[None, :, None, None]


def attention_reference(x, p, k1, k2):
    shortcut = x
    y = _ref_pw(x, p["w_p1"], p["b_p1"])
    y = jax.nn.gelu(y, approximate=False)
    a = _ref_dw(y, p["w_c0"], p["b_c0"])
    a = _ref_dw(a, p["w_s1"], p["b_s1"])
    a = _ref_dw(a, p["w_s2"], p["b_s2"])
    a = _ref_pw(a, p["w_c1"], p["b_c1"])
    y = y * a
    y = _ref_pw(y, p["w_p2"], p["b_p2"])
    return y + shortcut


# ----------------------------------- main -------------------------------------

if __name__ == "__main__":
    B, C, H, W = 2, 32, 16, 16          # d_model = 32
    k1, k2 = 3, 7                       # strip kernel sizes (odd => 'same' conv)

    key = jax.random.PRNGKey(0)
    keys = jax.random.split(key, 16)
    dt = jnp.float32

    def rnd(k, shape, scale=0.1):
        return (scale * jax.random.normal(k, shape)).astype(dt)

    params = {
        "w_p1": rnd(keys[0], (C, C)),        "b_p1": rnd(keys[1], (C,)),
        "w_c0": rnd(keys[2], (C, 5, 5)),     "b_c0": rnd(keys[3], (C,)),
        "w_s1": rnd(keys[4], (C, k1, k2)),   "b_s1": rnd(keys[5], (C,)),
        "w_s2": rnd(keys[6], (C, k2, k1)),   "b_s2": rnd(keys[7], (C,)),
        "w_c1": rnd(keys[8], (C, C)),        "b_c1": rnd(keys[9], (C,)),
        "w_p2": rnd(keys[10], (C, C)),       "b_p2": rnd(keys[11], (C,)),
    }

    # Input in the PyTorch module's NCHW convention.
    x = jax.random.normal(keys[12], (B, C, H, W), dtype=dt)

    out = attention_forward(x, params, k1, k2)
    out = jax.block_until_ready(out)

    ref = attention_reference(x, params, k1, k2)
    assert out.shape == (B, C, H, W)
    err = jnp.max(jnp.abs(out - ref))
    assert jnp.allclose(out, ref, atol=5e-4, rtol=5e-4), f"max err {err}"

    print("KERNEL_OK")
</pallas_src>

<mosaic_0001>
module attributes {stable_mosaic.version = 11 : i64} {
  func.func @attention_kernel(%arg0: i32, %arg1: memref<1x32x256xf32, #tpu.memory_space<vmem>>, %arg2: memref<32x67xf32, #tpu.memory_space<vmem>>, %arg3: memref<7x1x256xf32, #tpu.memory_space<vmem>>, %arg4: memref<3x32x32xf32, #tpu.memory_space<vmem>>, %arg5: memref<32x6xf32, #tpu.memory_space<vmem>>, %arg6: memref<1x32x256xf32, #tpu.memory_space<vmem>>, %arg7: memref<32x512xf32, #tpu.memory_space<vmem>>) attributes {dimension_semantics = [#tpu.dimension_semantics<parallel>], iteration_bounds = array<i64: 2>, scalar_prefetch = 0 : i64, scratch_operands = 1 : i64, tpu.core_type = #tpu.core_type<tc>, window_params = [{transform_indices = @transform_0, window_bounds = array<i64: 1, 32, 256>}, {pipeline_mode = #tpu.pipeline_mode<synchronous>, transform_indices = @transform_1, window_bounds = array<i64: 32, 67>}, {pipeline_mode = #tpu.pipeline_mode<synchronous>, transform_indices = @transform_2, window_bounds = array<i64: 7, 1, 256>}, {pipeline_mode = #tpu.pipeline_mode<synchronous>, transform_indices = @transform_3, window_bounds = array<i64: 3, 32, 32>}, {pipeline_mode = #tpu.pipeline_mode<synchronous>, transform_indices = @transform_4, window_bounds = array<i64: 32, 6>}, {transform_indices = @transform_5, window_bounds = array<i64: 1, 32, 256>}]} {
    %c0 = arith.constant 0 : index
    %c0_0 = arith.constant 0 : index
    %c0_1 = arith.constant 0 : index
    %0 = vector.load %arg1[%c0, %c0_0, %c0_1] : memref<1x32x256xf32, #tpu.memory_space<vmem>>, vector<1x32x256xf32>
    %1 = vector.shape_cast %0 : vector<1x32x256xf32> to vector<32x256xf32>
    %cst = arith.constant 0.000000e+00 : f32
    %2 = vector.broadcast %cst : f32 to vector<32x128xf32>
    %c0_2 = arith.constant 0 : index
    %c0_3 = arith.constant 0 : index
    %3 = vector.load %arg7[%c0_2, %c0_3] : memref<32x512xf32, #tpu.memory_space<vmem>>, vector<32x128xf32>
    tpu.vector_store %arg7[%c0_2, %c0_3], %2 {strides = array<i32>} : memref<32x512xf32, #tpu.memory_space<vmem>>, vector<32x128xf32>,
    %c0_4 = arith.constant 0 : index
    %c384 = arith.constant 384 : index
    %4 = vector.load %arg7[%c0_4, %c384] : memref<32x512xf32, #tpu.memory_space<vmem>>, vector<32x128xf32>
    tpu.vector_store %arg7[%c0_4, %c384], %2 {strides = array<i32>} : memref<32x512xf32, #tpu.memory_space<vmem>>, vector<32x128xf32>,
    %c0_5 = arith.constant 0 : index
    %c0_6 = arith.constant 0 : index
    %c0_7 = arith.constant 0 : index
    %5 = vector.load %arg4[%c0_5, %c0_6, %c0_7] : memref<3x32x32xf32, #tpu.memory_space<vmem>>, vector<1x32x32xf32>
    %6 = vector.shape_cast %5 : vector<1x32x32xf32> to vector<32x32xf32>
    %cst_8 = arith.constant dense<0.000000e+00> : vector<32x256xf32>
    %7 = tpu.matmul %6, %1, %cst_8 {dimension_numbers = #tpu.dot_dimension_numbers<[1], [0], [0], [1], [0, 0, 1, 1], [], []>} : vector<32x32xf32>, vector<32x256xf32>, vector<32x256xf32> -> vector<32x256xf32>
    %c0_9 = arith.constant 0 : index
    %c0_10 = arith.constant 0 : index
    %8 = vector.load %arg5[%c0_9, %c0_10] : memref<32x6xf32, #tpu.memory_space<vmem>>, vector<32x1xf32>
    %9 = vector.broadcast %8 : vector<32x1xf32> to vector<32x256xf32>
    %10 = arith.addf %7, %9 : vector<32x256xf32>
    %cst_11 = arith.constant 0.707106769 : f32
    %11 = vector.broadcast %cst_11 : f32 to vector<32x256xf32>
    %12 = arith.mulf %10, %11 : vector<32x256xf32>
    %13 = math.absf %12 : vector<32x256xf32>
    %cst_12 = arith.constant 0.327591091 : f32
    %14 = vector.broadcast %cst_12 : f32 to vector<32x256xf32>
    %15 = arith.mulf %14, %13 : vector<32x256xf32>
    %cst_13 = arith.constant 1.000000e+00 : f32
    %16 = vector.broadcast %cst_13 : f32 to vector<32x256xf32>
    %17 = arith.addf %16, %15 : vector<32x256xf32>
    %cst_14 = arith.constant 1.000000e+00 : f32
    %18 = vector.broadcast %cst_14 : f32 to vector<32x256xf32>
    %19 = arith.divf %18, %17 : vector<32x256xf32>
    %cst_15 = arith.constant 1.06140542 : f32
    %20 = vector.broadcast %cst_15 : f32 to vector<32x256xf32>
    %21 = arith.mulf %19, %20 : vector<32x256xf32>
    %cst_16 = arith.constant -1.45315206 : f32
    %22 = vector.broadcast %cst_16 : f32 to vector<32x256xf32>
    %23 = arith.addf %22, %21 : vector<32x256xf32>
    %24 = arith.mulf %19, %23 : vector<32x256xf32>
    %cst_17 = arith.constant 1.42141378 : f32
    %25 = vector.broadcast %cst_17 : f32 to vector<32x256xf32>
    %26 = arith.addf %25, %24 : vector<32x256xf32>
    %27 = arith.mulf %19, %26 : vector<32x256xf32>
    %cst_18 = arith.constant -0.284496725 : f32
    %28 = vector.broadcast %cst_18 : f32 to vector<32x256xf32>
    %29 = arith.addf %28, %27 : vector<32x256xf32>
    %30 = arith.mulf %19, %29 : vector<32x256xf32>
    %cst_19 = arith.constant 0.254829586 : f32
    %31 = vector.broadcast %cst_19 : f32 to vector<32x256xf32>
    %32 = arith.addf %31, %30 : vector<32x256xf32>
    %33 = arith.mulf %19, %32 : vector<32x256xf32>
    %cst_20 = arith.constant 0.000000e+00 : f32
    %34 = vector.broadcast %cst_20 : f32 to vector<32x256xf32>
    %35 = arith.subf %34, %13 : vector<32x256xf32>
    %36 = arith.mulf %35, %13 : vector<32x256xf32>
    %37 = math.exp %36 : vector<32x256xf32>
    %38 = arith.mulf %33, %37 : vector<32x256xf32>
    %cst_21 = arith.constant 1.000000e+00 : f32
    %39 = vector.broadcast %cst_21 : f32 to vector<32x256xf32>
    %40 = arith.subf %39, %38 : vector<32x256xf32>
    %cst_22 = arith.constant 0.000000e+00 : f32
    %41 = vector.broadcast %cst_22 : f32 to vector<32x256xf32>
    %42 = arith.cmpf oge, %12, %41 : vector<32x256xf32>
    %cst_23 = arith.constant 0.000000e+00 : f32
    %43 = vector.broadcast %cst_23 : f32 to vector<32x256xf32>
    %44 = arith.subf %43, %40 : vector<32x256xf32>
    %45 = arith.select %42, %40, %44 : vector<32x256xi1>, vector<32x256xf32>
    %cst_24 = arith.constant 5.000000e-01 : f32
    %46 = vector.broadcast %cst_24 : f32 to vector<32x256xf32>
    %47 = arith.mulf %46, %10 : vector<32x256xf32>
    %cst_25 = arith.constant 1.000000e+00 : f32
    %48 = vector.broadcast %cst_25 : f32 to vector<32x256xf32>
    %49 = arith.addf %48, %45 : vector<32x256xf32>
    %50 = arith.mulf %47, %49 : vector<32x256xf32>
    %c0_26 = arith.constant 0 : index
    %c128 = arith.constant 128 : index
    %51 = vector.load %arg7[%c0_26, %c128] : memref<32x512xf32, #tpu.memory_space<vmem>>, vector<32x256xf32>
    tpu.vector_store %arg7[%c0_26, %c128], %50 {strides = array<i32>} : memref<32x512xf32, #tpu.memory_space<vmem>>, vector<32x256xf32>,
    %c0_27 = arith.constant 0 : index
    %c94 = arith.constant 94 : index
    %52 = vector.load %arg7[%c0_27, %c94] : memref<32x512xf32, #tpu.memory_space<vmem>>, vector<32x256xf32>
    %c0_28 = arith.constant 0 : index
    %c0_29 = arith.constant 0 : index
    %53 = vector.load %arg2[%c0_28, %c0_29] : memref<32x67xf32, #tpu.memory_space<vmem>>, vector<32x1xf32>
    %54 = vector.broadcast %53 : vector<32x1xf32> to vector<32x256xf32>
    %55 = arith.mulf %52, %54 : vector<32x256xf32>
    %c0_30 = arith.constant 0 : index
    %c110 = arith.constant 110 : index
    %56 = vector.load %arg7[%c0_30, %c110] : memref<32x512xf32, #tpu.memory_space<vmem>>, vector<32x256xf32>
    %c0_31 = arith.constant 0 : index
    %c5 = arith.constant 5 : index
    %57 = vector.load %arg2[%c0_31, %c5] : memref<32x67xf32, #tpu.memory_space<vmem>>, vector<32x1xf32>
    %58 = vector.broadcast %57 : vector<32x1xf32> to vector<32x256xf32>
    %59 = arith.mulf %56, %58 : vector<32x256xf32>
    %60 = arith.addf %55, %59 : vector<32x256xf32>
    %c0_32 = arith.constant 0 : index
    %c126 = arith.constant 126 : index
    %61 = vector.load %arg7[%c0_32, %c126] : memref<32x512xf32, #tpu.memory_space<vmem>>, vector<32x256xf32>
    %c0_33 = arith.constant 0 : index
    %c10 = arith.constant 10 : index
    %62 = vector.load %arg2[%c0_33, %c10] : memref<32x67xf32, #tpu.memory_space<vmem>>, vector<32x1xf32>
    %63 = vector.broadcast %62 : vector<32x1xf32> to vector<32x256xf32>
    %64 = arith.mulf %61, %63 : vector<32x256xf32>
    %65 = arith.addf %60, %64 : vector<32x256xf32>
    %c0_34 = arith.constant 0 : index
    %c142 = arith.constant 142 : index
    %66 = vector.load %arg7[%c0_34, %c142] : memref<32x512xf32, #tpu.memory_space<vmem>>, vector<32x256xf32>
    %c0_35 = arith.constant 0 : index
    %c15 = arith.constant 15 : index
    %67 = vector.load %arg2[%c0_35, %c15] : memref<32x67xf32, #tpu.memory_space<vmem>>, vector<32x1xf32>
    %68 = vector.broadcast %67 : vector<32x1xf32> to vector<32x256xf32>
    %69 = arith.mulf %66, %68 : vector<32x256xf32>
    %70 = arith.addf %65, %69 : vector<32x256xf32>
    %c0_36 = arith.constant 0 : index
    %c158 = arith.constant 158 : index
    %71 = vector.load %arg7[%c0_36, %c158] : memref<32x512xf32, #tpu.memory_space<vmem>>, vector<32x256xf32>
    %c0_37 = arith.constant 0 : index
    %c20 = arith.constant 20 : index
    %72 = vector.load %arg2[%c0_37, %c20] : memref<32x67xf32, #tpu.memory_space<vmem>>, vector<32x1xf32>
    %73 = vector.broadcast %72 : vector<32x1xf32> to vector<32x256xf32>
    %74 = arith.mulf %71, %73 : vector<32x256xf32>
    %75 = arith.addf %70, %74 : vector<32x256xf32>
    %c1 = arith.constant 1 : index
    %c0_38 = arith.constant 0 : index
    %c0_39 = arith.constant 0 : index
    %76 = vector.load %arg3[%c1, %c0_38, %c0_39] : memref<7x1x256xf32, #tpu.memory_space<vmem>>, vector<1x1x256xf32>
    %77 = vector.shape_cast %76 : vector<1x1x256xf32> to vector<1x256xf32>
    %78 = vector.broadcast %77 : vector<1x256xf32> to vector<32x256xf32>
    %79 = arith.mulf %75, %78 : vector<32x256xf32>
    %c0_40 = arith.constant 0 : index
    %c95 = arith.constant 95 : index
    %80 = vector.load %arg7[%c0_40, %c95] : memref<32x512xf32, #tpu.memory_space<vmem>>, vector<32x256xf32>
    %c0_41 = arith.constant 0 : index
    %c1_42 = arith.constant 1 : index
    %81 = vector.load %arg2[%c0_41, %c1_42] : memref<32x67xf32, #tpu.memory_space<vmem>>, vector<32x1xf32>
    %82 = vector.broadcast %81 : vector<32x1xf32> to vector<32x256xf32>
    %83 = arith.mulf %80, %82 : vector<32x256xf32>
    %c0_43 = arith.constant 0 : index
    %c111 = arith.constant 111 : index
    %84 = vector.load %arg7[%c0_43, %c111] : memref<32x512xf32, #tpu.memory_space<vmem>>, vector<32x256xf32>
    %c0_44 = arith.constant 0 : index
    %c6 = arith.constant 6 : index
    %85 = vector.load %arg2[%c0_44, %c6] : memref<32x67xf32, #tpu.memory_space<vmem>>, vector<32x1xf32>
    %86 = vector.broadcast %85 : vector<32x1xf32> to vector<32x256xf32>
    %87 = arith.mulf %84, %86 : vector<32x256xf32>
    %88 = arith.addf %83, %87 : vector<32x256xf32>
    %c0_45 = arith.constant 0 : index
    %c127 = arith.constant 127 : index
    %89 = vector.load %arg7[%c0_45, %c127] : memref<32x512xf32, #tpu.memory_space<vmem>>, vector<32x256xf32>
    %c0_46 = arith.constant 0 : index
    %c11 = arith.constant 11 : index
    %90 = vector.load %arg2[%c0_46, %c11] : memref<32x67xf32, #tpu.memory_space<vmem>>, vector<32x1xf32>
    %91 = vector.broadcast %90 : vector<32x1xf32> to vector<32x256xf32>
    %92 = arith.mulf %89, %91 : vector<32x256xf32>
    %93 = arith.addf %88, %92 : vector<32x256xf32>
    %c0_47 = arith.constant 0 : index
    %c143 = arith.constant 143 : index
    %94 = vector.load %arg7[%c0_47, %c143] : memref<32x512xf32, #tpu.memory_space<vmem>>, vector<32x256xf32>
    %c0_48 = arith.constant 0 : index
    %c16 = arith.constant 16 : index
    %95 = vector.load %arg2[%c0_48, %c16] : memref<32x67xf32, #tpu.memory_space<vmem>>, vector<32x1xf32>
    %96 = vector.broadcast %95 : vector<32x1xf32> to vector<32x256xf32>
    %97 = arith.mulf %94, %96 : vector<32x256xf32>
    %98 = arith.addf %93, %97 : vector<32x256xf32>
    %c0_49 = arith.constant 0 : index
    %c159 = arith.constant 159 : index
    %99 = vector.load %arg7[%c0_49, %c159] : memref<32x512xf32, #tpu.memory_space<vmem>>, vector<32x256xf32>
    %c0_50 = arith.constant 0 : index
    %c21 = arith.constant 21 : index
    %100 = vector.load %arg2[%c0_50, %c21] : memref<32x67xf32, #tpu.memory_space<vmem>>, vector<32x1xf32>
    %101 = vector.broadcast %100 : vector<32x1xf32> to vector<32x256xf32>
    %102 = arith.mulf %99, %101 : vector<32x256xf32>
    %103 = arith.addf %98, %102 : vector<32x256xf32>
    %c2 = arith.constant 2 : index
    %c0_51 = arith.constant 0 : index
    %c0_52 = arith.constant 0 : index
    %104 = vector.load %arg3[%c2, %c0_51, %c0_52] : memref<7x1x256xf32, #tpu.memory_space<vmem>>, vector<1x1x256xf32>
    %105 = vector.shape_cast %104 : vector<1x1x256xf32> to vector<1x256xf32>
    %106 = vector.broadcast %105 : vector<1x256xf32> to vector<32x256xf32>
    %107 = arith.mulf %103, %106 : vector<32x256xf32>
    %108 = arith.addf %79, %107 : vector<32x256xf32>
    %c0_53 = arith.constant 0 : index
    %c96 = arith.constant 96 : index
    %109 = vector.load %arg7[%c0_53, %c96] : memref<32x512xf32, #tpu.memory_space<vmem>>, vector<32x256xf32>
    %c0_54 = arith.constant 0 : index
    %c2_55 = arith.constant 2 : index
    %110 = vector.load %arg2[%c0_54, %c2_55] : memref<32x67xf32, #tpu.memory_space<vmem>>, vector<32x1xf32>
    %111 = vector.broadcast %110 : vector<32x1xf32> to vector<32x256xf32>
    %112 = arith.mulf %109, %111 : vector<32x256xf32>
    %c0_56 = arith.constant 0 : index
    %c112 = arith.constant 112 : index
    %113 = vector.load %arg7[%c0_56, %c112] : memref<32x512xf32, #tpu.memory_space<vmem>>, vector<32x256xf32>
    %c0_57 = arith.constant 0 : index
    %c7 = arith.constant 7 : index
    %114 = vector.load %arg2[%c0_57, %c7] : memref<32x67xf32, #tpu.memory_space<vmem>>, vector<32x1xf32>
    %115 = vector.broadcast %114 : vector<32x1xf32> to vector<32x256xf32>
    %116 = arith.mulf %113, %115 : vector<32x256xf32>
    %117 = arith.addf %112, %116 : vector<32x256xf32>
    %c0_58 = arith.constant 0 : index
    %c128_59 = arith.constant 128 : index
    %118 = vector.load %arg7[%c0_58, %c128_59] : memref<32x512xf32, #tpu.memory_space<vmem>>, vector<32x256xf32>
    %c0_60 = arith.constant 0 : index
    %c12 = arith.constant 12 : index
    %119 = vector.load %arg2[%c0_60, %c12] : memref<32x67xf32, #tpu.memory_space<vmem>>, vector<32x1xf32>
    %120 = vector.broadcast %119 : vector<32x1xf32> to vector<32x256xf32>
    %121 = arith.mulf %118, %120 : vector<32x256xf32>
    %122 = arith.addf %117, %121 : vector<32x256xf32>
    %c0_61 = arith.constant 0 : index
    %c144 = arith.constant 144 : index
    %123 = vector.load %arg7[%c0_61, %c144] : memref<32x512xf32, #tpu.memory_space<vmem>>, vector<32x256xf32>
    %c0_62 = arith.constant 0 : index
    %c17 = arith.constant 17 : index
    %124 = vector.load %arg2[%c0_62, %c17] : memref<32x67xf32, #tpu.memory_space<vmem>>, vector<32x1xf32>
    %125 = vector.broadcast %124 : vector<32x1xf32> to vector<32x256xf32>
    %126 = arith.mulf %123, %125 : vector<32x256xf32>
    %127 = arith.addf %122, %126 : vector<32x256xf32>
    %c0_63 = arith.constant 0 : index
    %c160 = arith.constant 160 : index
    %128 = vector.load %arg7[%c0_63, %c160] : memref<32x512xf32, #tpu.memory_space<vmem>>, vector<32x256xf32>
    %c0_64 = arith.constant 0 : index
    %c22 = arith.constant 22 : index
    %129 = vector.load %arg2[%c0_64, %c22] : memref<32x67xf32, #tpu.memory_space<vmem>>, vector<32x1xf32>
    %130 = vector.broadcast %129 : vector<32x1xf32> to vector<32x256xf32>
    %131 = arith.mulf %128, %130 : vector<32x256xf32>
    %132 = arith.addf %127, %131 : vector<32x256xf32>
    %133 = arith.addf %108, %132 : vector<32x256xf32>
    %c0_65 = arith.constant 0 : index
    %c97 = arith.constant 97 : index
    %134 = vector.load %arg7[%c0_65, %c97] : memref<32x512xf32, #tpu.memory_space<vmem>>, vector<32x256xf32>
    %c0_66 = arith.constant 0 : index
    %c3 = arith.constant 3 : index
    %135 = vector.load %arg2[%c0_66, %c3] : memref<32x67xf32, #tpu.memory_space<vmem>>, vector<32x1xf32>
    %136 = vector.broadcast %135 : vector<32x1xf32> to vector<32x256xf32>
    %137 = arith.mulf %134, %136 : vector<32x256xf32>
    %c0_67 = arith.constant 0 : index
    %c113 = arith.constant 113 : index
    %138 = vector.load %arg7[%c0_67, %c113] : memref<32x512xf32, #tpu.memory_space<vmem>>, vector<32x256xf32>
    %c0_68 = arith.constant 0 : index
    %c8 = arith.constant 8 : index
    %139 = vector.load %arg2[%c0_68, %c8] : memref<32x67xf32, #tpu.memory_space<vmem>>, vector<32x1xf32>
    %140 = vector.broadcast %139 : vector<32x1xf32> to vector<32x256xf32>
    %141 = arith.mulf %138, %140 : vector<32x256xf32>
    %142 = arith.addf %137, %141 : vector<32x256xf32>
    %c0_69 = arith.constant 0 : index
    %c129 = arith.constant 129 : index
    %143 = vector.load %arg7[%c0_69, %c129] : memref<32x512xf32, #tpu.memory_space<vmem>>, vector<32x256xf32>
    %c0_70 = arith.constant 0 : index
    %c13 = arith.constant 13 : index
    %144 = vector.load %arg2[%c0_70, %c13] : memref<32x67xf32, #tpu.memory_space<vmem>>, vector<32x1xf32>
    %145 = vector.broadcast %144 : vector<32x1xf32> to vector<32x256xf32>
    %146 = arith.mulf %143, %145 : vector<32x256xf32>
    %147 = arith.addf %142, %146 : vector<32x256xf32>
    %c0_71 = arith.constant 0 : index
    %c145 = arith.constant 145 : index
    %148 = vector.load %arg7[%c0_71, %c145] : memref<32x512xf32, #tpu.memory_space<vmem>>, vector<32x256xf32>
    %c0_72 = arith.constant 0 : index
    %c18 = arith.constant 18 : index
    %149 = vector.load %arg2[%c0_72, %c18] : memref<32x67xf32, #tpu.memory_space<vmem>>, vector<32x1xf32>
    %150 = vector.broadcast %149 : vector<32x1xf32> to vector<32x256xf32>
    %151 = arith.mulf %148, %150 : vector<32x256xf32>
    %152 = arith.addf %147, %151 : vector<32x256xf32>
    %c0_73 = arith.constant 0 : index
    %c161 = arith.constant 161 : index
    %153 = vector.load %arg7[%c0_73, %c161] : memref<32x512xf32, #tpu.memory_space<vmem>>, vector<32x256xf32>
    %c0_74 = arith.constant 0 : index
    %c23 = arith.constant 23 : index
    %154 = vector.load %arg2[%c0_74, %c23] : memref<32x67xf32, #tpu.memory_space<vmem>>, vector<32x1xf32>
    %155 = vector.broadcast %154 : vector<32x1xf32> to vector<32x256xf32>
    %156 = arith.mulf %153, %155 : vector<32x256xf32>
    %157 = arith.addf %152, %156 : vector<32x256xf32>
    %c4 = arith.constant 4 : index
    %c0_75 = arith.constant 0 : index
    %c0_76 = arith.constant 0 : index
    %158 = vector.load %arg3[%c4, %c0_75, %c0_76] : memref<7x1x256xf32, #tpu.memory_space<vmem>>, vector<1x1x256xf32>
    %159 = vector.shape_cast %158 : vector<1x1x256xf32> to vector<1x256xf32>
    %160 = vector.broadcast %159 : vector<1x256xf32> to vector<32x256xf32>
    %161 = arith.mulf %157, %160 : vector<32x256xf32>
    %162 = arith.addf %133, %161 : vector<32x256xf32>
    %c0_77 = arith.constant 0 : index
    %c98 = arith.constant 98 : index
    %163 = vector.load %arg7[%c0_77, %c98] : memref<32x512xf32, #tpu.memory_space<vmem>>, vector<32x256xf32>
    %c0_78 = arith.constant 0 : index
    %c4_79 = arith.constant 4 : index
    %164 = vector.load %arg2[%c0_78, %c4_79] : memref<32x67xf32, #tpu.memory_space<vmem>>, vector<32x1xf32>
    %165 = vector.broadcast %164 : vector<32x1xf32> to vector<32x256xf32>
    %166 = arith.mulf %163, %165 : vector<32x256xf32>
    %c0_80 = arith.constant 0 : index
    %c114 = arith.constant 114 : index
    %167 = vector.load %arg7[%c0_80, %c114] : memref<32x512xf32, #tpu.memory_space<vmem>>, vector<32x256xf32>
    %c0_81 = arith.constant 0 : index
    %c9 = arith.constant 9 : index
    %168 = vector.load %arg2[%c0_81, %c9] : memref<32x67xf32, #tpu.memory_space<vmem>>, vector<32x1xf32>
    %169 = vector.broadcast %168 : vector<32x1xf32> to vector<32x256xf32>
    %170 = arith.mulf %167, %169 : vector<32x256xf32>
    %171 = arith.addf %166, %170 : vector<32x256xf32>
    %c0_82 = arith.constant 0 : index
    %c130 = arith.constant 130 : index
    %172 = vector.load %arg7[%c0_82, %c130] : memref<32x512xf32, #tpu.memory_space<vmem>>, vector<32x256xf32>
    %c0_83 = arith.constant 0 : index
    %c14 = arith.constant 14 : index
    %173 = vector.load %arg2[%c0_83, %c14] : memref<32x67xf32, #tpu.memory_space<vmem>>, vector<32x1xf32>
    %174 = vector.broadcast %173 : vector<32x1xf32> to vector<32x256xf32>
    %175 = arith.mulf %172, %174 : vector<32x256xf32>
    %176 = arith.addf %171, %175 : vector<32x256xf32>
    %c0_84 = arith.constant 0 : index
    %c146 = arith.constant 146 : index
    %177 = vector.load %arg7[%c0_84, %c146] : memref<32x512xf32, #tpu.memory_space<vmem>>, vector<32x256xf32>
    %c0_85 = arith.constant 0 : index
    %c19 = arith.constant 19 : index
    %178 = vector.load %arg2[%c0_85, %c19] : memref<32x67xf32, #tpu.memory_space<vmem>>, vector<32x1xf32>
    %179 = vector.broadcast %178 : vector<32x1xf32> to vector<32x256xf32>
    %180 = arith.mulf %177, %179 : vector<32x256xf32>
    %181 = arith.addf %176, %180 : vector<32x256xf32>
    %c0_86 = arith.constant 0 : index
    %c162 = arith.constant 162 : index
    %182 = vector.load %arg7[%c0_86, %c162] : memref<32x512xf32, #tpu.memory_space<vmem>>, vector<32x256xf32>
    %c0_87 = arith.constant 0 : index
    %c24 = arith.constant 24 : index
    %183 = vector.load %arg2[%c0_87, %c24] : memref<32x67xf32, #tpu.memory_space<vmem>>, vector<32x1xf32>
    %184 = vector.broadcast %183 : vector<32x1xf32> to vector<32x256xf32>
    %185 = arith.mulf %182, %184 : vector<32x256xf32>
    %186 = arith.addf %181, %185 : vector<32x256xf32>
    %c5_88 = arith.constant 5 : index
    %c0_89 = arith.constant 0 : index
    %c0_90 = arith.constant 0 : index
    %187 = vector.load %arg3[%c5_88, %c0_89, %c0_90] : memref<7x1x256xf32, #tpu.memory_space<vmem>>, vector<1x1x256xf32>
    %188 = vector.shape_cast %187 : vector<1x1x256xf32> to vector<1x256xf32>
    %189 = vector.broadcast %188 : vector<1x256xf32> to vector<32x256xf32>
    %190 = arith.mulf %186, %189 : vector<32x256xf32>
    %191 = arith.addf %162, %190 : vector<32x256xf32>
    %c0_91 = arith.constant 0 : index
    %c1_92 = arith.constant 1 : index
    %192 = vector.load %arg5[%c0_91, %c1_92] : memref<32x6xf32, #tpu.memory_space<vmem>>, vector<32x1xf32>
    %193 = vector.broadcast %192 : vector<32x1xf32> to vector<32x256xf32>
    %194 = arith.addf %191, %193 : vector<32x256xf32>
    %c0_93 = arith.constant 0 : index
    %c128_94 = arith.constant 128 : index
    %195 = vector.load %arg7[%c0_93, %c128_94] : memref<32x512xf32, #tpu.memory_space<vmem>>, vector<32x256xf32>
    tpu.vector_store %arg7[%c0_93, %c128_94], %194 {strides = array<i32>} : memref<32x512xf32, #tpu.memory_space<vmem>>, vector<32x256xf32>,
    %c0_95 = arith.constant 0 : index
    %c109 = arith.constant 109 : index
    %196 = vector.load %arg7[%c0_95, %c109] : memref<32x512xf32, #tpu.memory_space<vmem>>, vector<32x256xf32>
    %c0_96 = arith.constant 0 : index
    %c25 = arith.constant 25 : index
    %197 = vector.load %arg2[%c0_96, %c25] : memref<32x67xf32, #tpu.memory_space<vmem>>, vector<32x1xf32>
    %198 = vector.broadcast %197 : vector<32x1xf32> to vector<32x256xf32>
    %199 = arith.mulf %196, %198 : vector<32x256xf32>
    %c0_97 = arith.constant 0 : index
    %c125 = arith.constant 125 : index
    %200 = vector.load %arg7[%c0_97, %c125] : memref<32x512xf32, #tpu.memory_space<vmem>>, vector<32x256xf32>
    %c0_98 = arith.constant 0 : index
    %c32 = arith.constant 32 : index
    %201 = vector.load %arg2[%c0_98, %c32] : memref<32x67xf32, #tpu.memory_space<vmem>>, vector<32x1xf32>
    %202 = vector.broadcast %201 : vector<32x1xf32> to vector<32x256xf32>
    %203 = arith.mulf %200, %202 : vector<32x256xf32>
    %204 = arith.addf %199, %203 : vector<32x256xf32>
    %c0_99 = arith.constant 0 : index
    %c141 = arith.constant 141 : index
    %205 = vector.load %arg7[%c0_99, %c141] : memref<32x512xf32, #tpu.memory_space<vmem>>, vector<32x256xf32>
    %c0_100 = arith.constant 0 : index
    %c39 = arith.constant 39 : index
    %206 = vector.load %arg2[%c0_100, %c39] : memref<32x67xf32, #tpu.memory_space<vmem>>, vector<32x1xf32>
    %207 = vector.broadcast %206 : vector<32x1xf32> to vector<32x256xf32>
    %208 = arith.mulf %205, %207 : vector<32x256xf32>
    %209 = arith.addf %204, %208 : vector<32x256xf32>
    %c0_101 = arith.constant 0 : index
    %c0_102 = arith.constant 0 : index
    %c0_103 = arith.constant 0 : index
    %210 = vector.load %arg3[%c0_101, %c0_102, %c0_103] : memref<7x1x256xf32, #tpu.memory_space<vmem>>, vector<1x1x256xf32>
    %211 = vector.shape_cast %210 : vector<1x1x256xf32> to vector<1x256xf32>
    %212 = vector.broadcast %211 : vector<1x256xf32> to vector<32x256xf32>
    %213 = arith.mulf %209, %212 : vector<32x256xf32>
    %c0_104 = arith.constant 0 : index
    %c110_105 = arith.constant 110 : index
    %214 = vector.load %arg7[%c0_104, %c110_105] : memref<32x512xf32, #tpu.memory_space<vmem>>, vector<32x256xf32>
    %c0_106 = arith.constant 0 : index
    %c26 = arith.constant 26 : index
    %215 = vector.load %arg2[%c0_106, %c26] : memref<32x67xf32, #tpu.memory_space<vmem>>, vector<32x1xf32>
    %216 = vector.broadcast %215 : vector<32x1xf32> to vector<32x256xf32>
    %217 = arith.mulf %214, %216 : vector<32x256xf32>
    %c0_107 = arith.constant 0 : index
    %c126_108 = arith.constant 126 : index
    %218 = vector.load %arg7[%c0_107, %c126_108] : memref<32x512xf32, #tpu.memory_space<vmem>>, vector<32x256xf32>
    %c0_109 = arith.constant 0 : index
    %c33 = arith.constant 33 : index
    %219 = vector.load %arg2[%c0_109, %c33] : memref<32x67xf32, #tpu.memory_space<vmem>>, vector<32x1xf32>
    %220 = vector.broadcast %219 : vector<32x1xf32> to vector<32x256xf32>
    %221 = arith.mulf %218, %220 : vector<32x256xf32>
    %222 = arith.addf %217, %221 : vector<32x256xf32>
    %c0_110 = arith.constant 0 : index
    %c142_111 = arith.constant 142 : index
    %223 = vector.load %arg7[%c0_110, %c142_111] : memref<32x512xf32, #tpu.memory_space<vmem>>, vector<32x256xf32>
    %c0_112 = arith.constant 0 : index
    %c40 = arith.constant 40 : index
    %224 = vector.load %arg2[%c0_112, %c40] : memref<32x67xf32, #tpu.memory_space<vmem>>, vector<32x1xf32>
    %225 = vector.broadcast %224 : vector<32x1xf32> to vector<32x256xf32>
    %226 = arith.mulf %223, %225 : vector<32x256xf32>
    %227 = arith.addf %222, %226 : vector<32x256xf32>
    %c1_113 = arith.constant 1 : index
    %c0_114 = arith.constant 0 : index
    %c0_115 = arith.constant 0 : index
    %228 = vector.load %arg3[%c1_113, %c0_114, %c0_115] : memref<7x1x256xf32, #tpu.memory_space<vmem>>, vector<1x1x256xf32>
    %229 = vector.shape_cast %228 : vector<1x1x256xf32> to vector<1x256xf32>
    %230 = vector.broadcast %229 : vector<1x256xf32> to vector<32x256xf32>
    %231 = arith.mulf %227, %230 : vector<32x256xf32>
    %232 = arith.addf %213, %231 : vector<32x256xf32>
    %c0_116 = arith.constant 0 : index
    %c111_117 = arith.constant 111 : index
    %233 = vector.load %arg7[%c0_116, %c111_117] : memref<32x512xf32, #tpu.memory_space<vmem>>, vector<32x256xf32>
    %c0_118 = arith.constant 0 : index
    %c27 = arith.constant 27 : index
    %234 = vector.load %arg2[%c0_118, %c27] : memref<32x67xf32, #tpu.memory_space<vmem>>, vector<32x1xf32>
    %235 = vector.broadcast %234 : vector<32x1xf32> to vector<32x256xf32>
    %236 = arith.mulf %233, %235 : vector<32x256xf32>
    %c0_119 = arith.constant 0 : index
    %c127_120 = arith.constant 127 : index
    %237 = vector.load %arg7[%c0_119, %c127_120] : memref<32x512xf32, #tpu.memory_space<vmem>>, vector<32x256xf32>
    %c0_121 = arith.constant 0 : index
    %c34 = arith.constant 34 : index
    %238 = vector.load %arg2[%c0_121, %c34] : memref<32x67xf32, #tpu.memory_space<vmem>>, vector<32x1xf32>
    %239 = vector.broadcast %238 : vector<32x1xf32> to vector<32x256xf32>
    %240 = arith.mulf %237, %239 : vector<32x256xf32>
    %241 = arith.addf %236, %240 : vector<32x256xf32>
    %c0_122 = arith.constant 0 : index
    %c143_123 = arith.constant 143 : index
    %242 = vector.load %arg7[%c0_122, %c143_123] : memref<32x512xf32, #tpu.memory_space<vmem>>, vector<32x256xf32>
    %c0_124 = arith.constant 0 : index
    %c41 = arith.constant 41 : index
    %243 = vector.load %arg2[%c0_124, %c41] : memref<32x67xf32, #tpu.memory_space<vmem>>, vector<32x1xf32>
    %244 = vector.broadcast %243 : vector<32x1xf32> to vector<32x256xf32>
    %245 = arith.mulf %242, %244 : vector<32x256xf32>
    %246 = arith.addf %241, %245 : vector<32x256xf32>
    %c2_125 = arith.constant 2 : index
    %c0_126 = arith.constant 0 : index
    %c0_127 = arith.constant 0 : index
    %247 = vector.load %arg3[%c2_125, %c0_126, %c0_127] : memref<7x1x256xf32, #tpu.memory_space<vmem>>, vector<1x1x256xf32>
    %248 = vector.shape_cast %247 : vector<1x1x256xf32> to vector<1x256xf32>
    %249 = vector.broadcast %248 : vector<1x256xf32> to vector<32x256xf32>
    %250 = arith.mulf %246, %249 : vector<32x256xf32>
    %251 = arith.addf %232, %250 : vector<32x256xf32>
    %c0_128 = arith.constant 0 : index
    %c112_129 = arith.constant 112 : index
    %252 = vector.load %arg7[%c0_128, %c112_129] : memref<32x512xf32, #tpu.memory_space<vmem>>, vector<32x256xf32>
    %c0_130 = arith.constant 0 : index
    %c28 = arith.constant 28 : index
    %253 = vector.load %arg2[%c0_130, %c28] : memref<32x67xf32, #tpu.memory_space<vmem>>, vector<32x1xf32>
    %254 = vector.broadcast %253 : vector<32x1xf32> to vector<32x256xf32>
    %255 = arith.mulf %252, %254 : vector<32x256xf32>
    %c0_131 = arith.constant 0 : index
    %c128_132 = arith.constant 128 : index
    %256 = vector.load %arg7[%c0_131, %c128_132] : memref<32x512xf32, #tpu.memory_space<vmem>>, vector<32x256xf32>
    %c0_133 = arith.constant 0 : index
    %c35 = arith.constant 35 : index
    %257 = vector.load %arg2[%c0_133, %c35] : memref<32x67xf32, #tpu.memory_space<vmem>>, vector<32x1xf32>
    %258 = vector.broadcast %257 : vector<32x1xf32> to vector<32x256xf32>
    %259 = arith.mulf %256, %258 : vector<32x256xf32>
    %260 = arith.addf %255, %259 : vector<32x256xf32>
    %c0_134 = arith.constant 0 : index
    %c144_135 = arith.constant 144 : index
    %261 = vector.load %arg7[%c0_134, %c144_135] : memref<32x512xf32, #tpu.memory_space<vmem>>, vector<32x256xf32>
    %c0_136 = arith.constant 0 : index
    %c42 = arith.constant 42 : index
    %262 = vector.load %arg2[%c0_136, %c42] : memref<32x67xf32, #tpu.memory_space<vmem>>, vector<32x1xf32>
    %263 = vector.broadcast %262 : vector<32x1xf32> to vector<32x256xf32>
    %264 = arith.mulf %261, %263 : vector<32x256xf32>
    %265 = arith.addf %260, %264 : vector<32x256xf32>
    %266 = arith.addf %251, %265 : vector<32x256xf32>
    %c0_137 = arith.constant 0 : index
    %c113_138 = arith.constant 113 : index
    %267 = vector.load %arg7[%c0_137, %c113_138] : memref<32x512xf32, #tpu.memory_space<vmem>>, vector<32x256xf32>
    %c0_139 = arith.constant 0 : index
    %c29 = arith.constant 29 : index
    %268 = vector.load %arg2[%c0_139, %c29] : memref<32x67xf32, #tpu.memory_space<vmem>>, vector<32x1xf32>
    %269 = vector.broadcast %268 : vector<32x1xf32> to vector<32x256xf32>
    %270 = arith.mulf %267, %269 : vector<32x256xf32>
    %c0_140 = arith.constant 0 : index
    %c129_141 = arith.constant 129 : index
    %271 = vector.load %arg7[%c0_140, %c129_141] : memref<32x512xf32, #tpu.memory_space<vmem>>, vector<32x256xf32>
    %c0_142 = arith.constant 0 : index
    %c36 = arith.constant 36 : index
    %272 = vector.load %arg2[%c0_142, %c36] : memref<32x67xf32, #tpu.memory_space<vmem>>, vector<32x1xf32>
    %273 = vector.broadcast %272 : vector<32x1xf32> to vector<32x256xf32>
    %274 = arith.mulf %271, %273 : vector<32x256xf32>
    %275 = arith.addf %270, %274 : vector<32x256xf32>
    %c0_143 = arith.constant 0 : index
    %c145_144 = arith.constant 145 : index
    %276 = vector.load %arg7[%c0_143, %c145_144] : memref<32x512xf32, #tpu.memory_space<vmem>>, vector<32x256xf32>
    %c0_145 = arith.constant 0 : index
    %c43 = arith.constant 43 : index
    %277 = vector.load %arg2[%c0_145, %c43] : memref<32x67xf32, #tpu.memory_space<vmem>>, vector<32x1xf32>
    %278 = vector.broadcast %277 : vector<32x1xf32> to vector<32x256xf32>
    %279 = arith.mulf %276, %278 : vector<32x256xf32>
    %280 = arith.addf %275, %279 : vector<32x256xf32>
    %c4_146 = arith.constant 4 : index
    %c0_147 = arith.constant 0 : index
    %c0_148 = arith.constant 0 : index
    %281 = vector.load %arg3[%c4_146, %c0_147, %c0_148] : memref<7x1x256xf32, #tpu.memory_space<vmem>>, vector<1x1x256xf32>
    %282 = vector.shape_cast %281 : vector<1x1x256xf32> to vector<1x256xf32>
    %283 = vector.broadcast %282 : vector<1x256xf32> to vector<32x256xf32>
    %284 = arith.mulf %280, %283 : vector<32x256xf32>
    %285 = arith.addf %266, %284 : vector<32x256xf32>
    %c0_149 = arith.constant 0 : index
    %c114_150 = arith.constant 114 : index
    %286 = vector.load %arg7[%c0_149, %c114_150] : memref<32x512xf32, #tpu.memory_space<vmem>>, vector<32x256xf32>
    %c0_151 = arith.constant 0 : index
    %c30 = arith.constant 30 : index
    %287 = vector.load %arg2[%c0_151, %c30] : memref<32x67xf32, #tpu.memory_space<vmem>>, vector<32x1xf32>
    %288 = vector.broadcast %287 : vector<32x1xf32> to vector<32x256xf32>
    %289 = arith.mulf %286, %288 : vector<32x256xf32>
    %c0_152 = arith.constant 0 : index
    %c130_153 = arith.constant 130 : index
    %290 = vector.load %arg7[%c0_152, %c130_153] : memref<32x512xf32, #tpu.memory_space<vmem>>, vector<32x256xf32>
    %c0_154 = arith.constant 0 : index
    %c37 = arith.constant 37 : index
    %291 = vector.load %arg2[%c0_154, %c37] : memref<32x67xf32, #tpu.memory_space<vmem>>, vector<32x1xf32>
    %292 = vector.broadcast %291 : vector<32x1xf32> to vector<32x256xf32>
    %293 = arith.mulf %290, %292 : vector<32x256xf32>
    %294 = arith.addf %289, %293 : vector<32x256xf32>
    %c0_155 = arith.constant 0 : index
    %c146_156 = arith.constant 146 : index
    %295 = vector.load %arg7[%c0_155, %c146_156] : memref<32x512xf32, #tpu.memory_space<vmem>>, vector<32x256xf32>
    %c0_157 = arith.constant 0 : index
    %c44 = arith.constant 44 : index
    %296 = vector.load %arg2[%c0_157, %c44] : memref<32x67xf32, #tpu.memory_space<vmem>>, vector<32x1xf32>
    %297 = vector.broadcast %296 : vector<32x1xf32> to vector<32x256xf32>
    %298 = arith.mulf %295, %297 : vector<32x256xf32>
    %299 = arith.addf %294, %298 : vector<32x256xf32>
    %c5_158 = arith.constant 5 : index
    %c0_159 = arith.constant 0 : index
    %c0_160 = arith.constant 0 : index
    %300 = vector.load %arg3[%c5_158, %c0_159, %c0_160] : memref<7x1x256xf32, #tpu.memory_space<vmem>>, vector<1x1x256xf32>
    %301 = vector.shape_cast %300 : vector<1x1x256xf32> to vector<1x256xf32>
    %302 = vector.broadcast %301 : vector<1x256xf32> to vector<32x256xf32>
    %303 = arith.mulf %299, %302 : vector<32x256xf32>
    %304 = arith.addf %285, %303 : vector<32x256xf32>
    %c0_161 = arith.constant 0 : index
    %c115 = arith.constant 115 : index
    %305 = vector.load %arg7[%c0_161, %c115] : memref<32x512xf32, #tpu.memory_space<vmem>>, vector<32x256xf32>
    %c0_162 = arith.constant 0 : index
    %c31 = arith.constant 31 : index
    %306 = vector.load %arg2[%c0_162, %c31] : memref<32x67xf32, #tpu.memory_space<vmem>>, vector<32x1xf32>
    %307 = vector.broadcast %306 : vector<32x1xf32> to vector<32x256xf32>
    %308 = arith.mulf %305, %307 : vector<32x256xf32>
    %c0_163 = arith.constant 0 : index
    %c131 = arith.constant 131 : index
    %309 = vector.load %arg7[%c0_163, %c131] : memref<32x512xf32, #tpu.memory_space<vmem>>, vector<32x256xf32>
    %c0_164 = arith.constant 0 : index
    %c38 = arith.constant 38 : index
    %310 = vector.load %arg2[%c0_164, %c38] : memref<32x67xf32, #tpu.memory_space<vmem>>, vector<32x1xf32>
    %311 = vector.broadcast %310 : vector<32x1xf32> to vector<32x256xf32>
    %312 = arith.mulf %309, %311 : vector<32x256xf32>
    %313 = arith.addf %308, %312 : vector<32x256xf32>
    %c0_165 = arith.constant 0 : index
    %c147 = arith.constant 147 : index
    %314 = vector.load %arg7[%c0_165, %c147] : memref<32x512xf32, #tpu.memory_space<vmem>>, vector<32x256xf32>
    %c0_166 = arith.constant 0 : index
    %c45 = arith.constant 45 : index
    %315 = vector.load %arg2[%c0_166, %c45] : memref<32x67xf32, #tpu.memory_space<vmem>>, vector<32x1xf32>
    %316 = vector.broadcast %315 : vector<32x1xf32> to vector<32x256xf32>
    %317 = arith.mulf %314, %316 : vector<32x256xf32>
    %318 = arith.addf %313, %317 : vector<32x256xf32>
    %c6_167 = arith.constant 6 : index
    %c0_168 = arith.constant 0 : index
    %c0_169 = arith.constant 0 : index
    %319 = vector.load %arg3[%c6_167, %c0_168, %c0_169] : memref<7x1x256xf32, #tpu.memory_space<vmem>>, vector<1x1x256xf32>
    %320 = vector.shape_cast %319 : vector<1x1x256xf32> to vector<1x256xf32>
    %321 = vector.broadcast %320 : vector<1x256xf32> to vector<32x256xf32>
    %322 = arith.mulf %318, %321 : vector<32x256xf32>
    %323 = arith.addf %304, %322 : vector<32x256xf32>
    %c0_170 = arith.constant 0 : index
    %c2_171 = arith.constant 2 : index
    %324 = vector.load %arg5[%c0_170, %c2_171] : memref<32x6xf32, #tpu.memory_space<vmem>>, vector<32x1xf32>
    %325 = vector.broadcast %324 : vector<32x1xf32> to vector<32x256xf32>
    %326 = arith.addf %323, %325 : vector<32x256xf32>
    %c0_172 = arith.constant 0 : index
    %c128_173 = arith.constant 128 : index
    %327 = vector.load %arg7[%c0_172, %c128_173] : memref<32x512xf32, #tpu.memory_space<vmem>>, vector<32x256xf32>
    tpu.vector_store %arg7[%c0_172, %c128_173], %326 {strides = array<i32>} : memref<32x512xf32, #tpu.memory_space<vmem>>, vector<32x256xf32>,
    %c0_174 = arith.constant 0 : index
    %c79 = arith.constant 79 : index
    %328 = vector.load %arg7[%c0_174, %c79] : memref<32x512xf32, #tpu.memory_space<vmem>>, vector<32x256xf32>
    %c0_175 = arith.constant 0 : index
    %c46 = arith.constant 46 : index
    %329 = vector.load %arg2[%c0_175, %c46] : memref<32x67xf32, #tpu.memory_space<vmem>>, vector<32x1xf32>
    %330 = vector.broadcast %329 : vector<32x1xf32> to vector<32x256xf32>
    %331 = arith.mulf %328, %330 : vector<32x256xf32>
    %c0_176 = arith.constant 0 : index
    %c95_177 = arith.constant 95 : index
    %332 = vector.load %arg7[%c0_176, %c95_177] : memref<32x512xf32, #tpu.memory_space<vmem>>, vector<32x256xf32>
    %c0_178 = arith.constant 0 : index
    %c49 = arith.constant 49 : index
    %333 = vector.load %arg2[%c0_178, %c49] : memref<32x67xf32, #tpu.memory_space<vmem>>, vector<32x1xf32>
    %334 = vector.broadcast %333 : vector<32x1xf32> to vector<32x256xf32>
    %335 = arith.mulf %332, %334 : vector<32x256xf32>
    %336 = arith.addf %331, %335 : vector<32x256xf32>
    %c0_179 = arith.constant 0 : index
    %c111_180 = arith.constant 111 : index
    %337 = vector.load %arg7[%c0_179, %c111_180] : memref<32x512xf32, #tpu.memory_space<vmem>>, vector<32x256xf32>
    %c0_181 = arith.constant 0 : index
    %c52 = arith.constant 52 : index
    %338 = vector.load %arg2[%c0_181, %c52] : memref<32x67xf32, #tpu.memory_space<vmem>>, vector<32x1xf32>
    %339 = vector.broadcast %338 : vector<32x1xf32> to vector<32x256xf32>
    %340 = arith.mulf %337, %339 : vector<32x256xf32>
    %341 = arith.addf %336, %340 : vector<32x256xf32>
    %c0_182 = arith.constant 0 : index
    %c127_183 = arith.constant 127 : index
    %342 = vector.load %arg7[%c0_182, %c127_183] : memref<32x512xf32, #tpu.memory_space<vmem>>, vector<32x256xf32>
    %c0_184 = arith.constant 0 : index
    %c55 = arith.constant 55 : index
    %343 = vector.load %arg2[%c0_184, %c55] : memref<32x67xf32, #tpu.memory_space<vmem>>, vector<32x1xf32>
    %344 = vector.broadcast %343 : vector<32x1xf32> to vector<32x256xf32>
    %345 = arith.mulf %342, %344 : vector<32x256xf32>
    %346 = arith.addf %341, %345 : vector<32x256xf32>
    %c0_185 = arith.constant 0 : index
    %c143_186 = arith.constant 143 : index
    %347 = vector.load %arg7[%c0_185, %c143_186] : memref<32x512xf32, #tpu.memory_space<vmem>>, vector<32x256xf32>
    %c0_187 = arith.constant 0 : index
    %c58 = arith.constant 58 : index
    %348 = vector.load %arg2[%c0_187, %c58] : memref<32x67xf32, #tpu.memory_space<vmem>>, vector<32x1xf32>
    %349 = vector.broadcast %348 : vector<32x1xf32> to vector<32x256xf32>
    %350 = arith.mulf %347, %349 : vector<32x256xf32>
    %351 = arith.addf %346, %350 : vector<32x256xf32>
    %c0_188 = arith.constant 0 : index
    %c159_189 = arith.constant 159 : index
    %352 = vector.load %arg7[%c0_188, %c159_189] : memref<32x512xf32, #tpu.memory_space<vmem>>, vector<32x256xf32>
    %c0_190 = arith.constant 0 : index
    %c61 = arith.constant 61 : index
    %353 = vector.load %arg2[%c0_190, %c61] : memref<32x67xf32, #tpu.memory_space<vmem>>, vector<32x1xf32>
    %354 = vector.broadcast %353 : vector<32x1xf32> to vector<32x256xf32>
    %355 = arith.mulf %352, %354 : vector<32x256xf32>
    %356 = arith.addf %351, %355 : vector<32x256xf32>
    %c0_191 = arith.constant 0 : index
    %c175 = arith.constant 175 : index
    %357 = vector.load %arg7[%c0_191, %c175] : memref<32x512xf32, #tpu.memory_space<vmem>>, vector<32x256xf32>
    %c0_192 = arith.constant 0 : index
    %c64 = arith.constant 64 : index
    %358 = vector.load %arg2[%c0_192, %c64] : memref<32x67xf32, #tpu.memory_space<vmem>>, vector<32x1xf32>
    %359 = vector.broadcast %358 : vector<32x1xf32> to vector<32x256xf32>
    %360 = arith.mulf %357, %359 : vector<32x256xf32>
    %361 = arith.addf %356, %360 : vector<32x256xf32>
    %c2_193 = arith.constant 2 : index
    %c0_194 = arith.constant 0 : index
    %c0_195 = arith.constant 0 : index
    %362 = vector.load %arg3[%c2_193, %c0_194, %c0_195] : memref<7x1x256xf32, #tpu.memory_space<vmem>>, vector<1x1x256xf32>
    %363 = vector.shape_cast %362 : vector<1x1x256xf32> to vector<1x256xf32>
    %364 = vector.broadcast %363 : vector<1x256xf32> to vector<32x256xf32>
    %365 = arith.mulf %361, %364 : vector<32x256xf32>
    %c0_196 = arith.constant 0 : index
    %c80 = arith.constant 80 : index
    %366 = vector.load %arg7[%c0_196, %c80] : memref<32x512xf32, #tpu.memory_space<vmem>>, vector<32x256xf32>
    %c0_197 = arith.constant 0 : index
    %c47 = arith.constant 47 : index
    %367 = vector.load %arg2[%c0_197, %c47] : memref<32x67xf32, #tpu.memory_space<vmem>>, vector<32x1xf32>
    %368 = vector.broadcast %367 : vector<32x1xf32> to vector<32x256xf32>
    %369 = arith.mulf %366, %368 : vector<32x256xf32>
    %c0_198 = arith.constant 0 : index
    %c96_199 = arith.constant 96 : index
    %370 = vector.load %arg7[%c0_198, %c96_199] : memref<32x512xf32, #tpu.memory_space<vmem>>, vector<32x256xf32>
    %c0_200 = arith.constant 0 : index
    %c50 = arith.constant 50 : index
    %371 = vector.load %arg2[%c0_200, %c50] : memref<32x67xf32, #tpu.memory_space<vmem>>, vector<32x1xf32>
    %372 = vector.broadcast %371 : vector<32x1xf32> to vector<32x256xf32>
    %373 = arith.mulf %370, %372 : vector<32x256xf32>
    %374 = arith.addf %369, %373 : vector<32x256xf32>
    %c0_201 = arith.constant 0 : index
    %c112_202 = arith.constant 112 : index
    %375 = vector.load %arg7[%c0_201, %c112_202] : memref<32x512xf32, #tpu.memory_space<vmem>>, vector<32x256xf32>
    %c0_203 = arith.constant 0 : index
    %c53 = arith.constant 53 : index
    %376 = vector.load %arg2[%c0_203, %c53] : memref<32x67xf32, #tpu.memory_space<vmem>>, vector<32x1xf32>
    %377 = vector.broadcast %376 : vector<32x1xf32> to vector<32x256xf32>
    %378 = arith.mulf %375, %377 : vector<32x256xf32>
    %379 = arith.addf %374, %378 : vector<32x256xf32>
    %c0_204 = arith.constant 0 : index
    %c128_205 = arith.constant 128 : index
    %380 = vector.load %arg7[%c0_204, %c128_205] : memref<32x512xf32, #tpu.memory_space<vmem>>, vector<32x256xf32>
    %c0_206 = arith.constant 0 : index
    %c56 = arith.constant 56 : index
    %381 = vector.load %arg2[%c0_206, %c56] : memref<32x67xf32, #tpu.memory_space<vmem>>, vector<32x1xf32>
    %382 = vector.broadcast %381 : vector<32x1xf32> to vector<32x256xf32>
    %383 = arith.mulf %380, %382 : vector<32x256xf32>
    %384 = arith.addf %379, %383 : vector<32x256xf32>
    %c0_207 = arith.constant 0 : index
    %c144_208 = arith.constant 144 : index
    %385 = vector.load %arg7[%c0_207, %c144_208] : memref<32x512xf32, #tpu.memory_space<vmem>>, vector<32x256xf32>
    %c0_209 = arith.constant 0 : index
    %c59 = arith.constant 59 : index
    %386 = vector.load %arg2[%c0_209, %c59] : memref<32x67xf32, #tpu.memory_space<vmem>>, vector<32x1xf32>
    %387 = vector.broadcast %386 : vector<32x1xf32> to vector<32x256xf32>
    %388 = arith.mulf %385, %387 : vector<32x256xf32>
    %389 = arith.addf %384, %388 : vector<32x256xf32>
    %c0_210 = arith.constant 0 : index
    %c160_211 = arith.constant 160 : index
    %390 = vector.load %arg7[%c0_210, %c160_211] : memref<32x512xf32, #tpu.memory_space<vmem>>, vector<32x256xf32>
    %c0_212 = arith.constant 0 : index
    %c62 = arith.constant 62 : index
    %391 = vector.load %arg2[%c0_212, %c62] : memref<32x67xf32, #tpu.memory_space<vmem>>, vector<32x1xf32>
    %392 = vector.broadcast %391 : vector<32x1xf32> to vector<32x256xf32>
    %393 = arith.mulf %390, %392 : vector<32x256xf32>
    %394 = arith.addf %389, %393 : vector<32x256xf32>
    %c0_213 = arith.constant 0 : index
    %c176 = arith.constant 176 : index
    %395 = vector.load %arg7[%c0_213, %c176] : memref<32x512xf32, #tpu.memory_space<vmem>>, vector<32x256xf32>
    %c0_214 = arith.constant 0 : index
    %c65 = arith.constant 65 : index
    %396 = vector.load %arg2[%c0_214, %c65] : memref<32x67xf32, #tpu.memory_space<vmem>>, vector<32x1xf32>
    %397 = vector.broadcast %396 : vector<32x1xf32> to vector<32x256xf32>
    %398 = arith.mulf %395, %397 : vector<32x256xf32>
    %399 = arith.addf %394, %398 : vector<32x256xf32>
    %400 = arith.addf %365, %399 : vector<32x256xf32>
    %c0_215 = arith.constant 0 : index
    %c81 = arith.constant 81 : index
    %401 = vector.load %arg7[%c0_215, %c81] : memref<32x512xf32, #tpu.memory_space<vmem>>, vector<32x256xf32>
    %c0_216 = arith.constant 0 : index
    %c48 = arith.constant 48 : index
    %402 = vector.load %arg2[%c0_216, %c48] : memref<32x67xf32, #tpu.memory_space<vmem>>, vector<32x1xf32>
    %403 = vector.broadcast %402 : vector<32x1xf32> to vector<32x256xf32>
    %404 = arith.mulf %401, %403 : vector<32x256xf32>
    %c0_217 = arith.constant 0 : index
    %c97_218 = arith.constant 97 : index
    %405 = vector.load %arg7[%c0_217, %c97_218] : memref<32x512xf32, #tpu.memory_space<vmem>>, vector<32x256xf32>
    %c0_219 = arith.constant 0 : index
    %c51 = arith.constant 51 : index
    %406 = vector.load %arg2[%c0_219, %c51] : memref<32x67xf32, #tpu.memory_space<vmem>>, vector<32x1xf32>
    %407 = vector.broadcast %406 : vector<32x1xf32> to vector<32x256xf32>
    %408 = arith.mulf %405, %407 : vector<32x256xf32>
    %409 = arith.addf %404, %408 : vector<32x256xf32>
    %c0_220 = arith.constant 0 : index
    %c113_221 = arith.constant 113 : index
    %410 = vector.load %arg7[%c0_220, %c113_221] : memref<32x512xf32, #tpu.memory_space<vmem>>, vector<32x256xf32>
    %c0_222 = arith.constant 0 : index
    %c54 = arith.constant 54 : index
    %411 = vector.load %arg2[%c0_222, %c54] : memref<32x67xf32, #tpu.memory_space<vmem>>, vector<32x1xf32>
    %412 = vector.broadcast %411 : vector<32x1xf32> to vector<32x256xf32>
    %413 = arith.mulf %410, %412 : vector<32x256xf32>
    %414 = arith.addf %409, %413 : vector<32x256xf32>
    %c0_223 = arith.constant 0 : index
    %c129_224 = arith.constant 129 : index
    %415 = vector.load %arg7[%c0_223, %c129_224] : memref<32x512xf32, #tpu.memory_space<vmem>>, vector<32x256xf32>
    %c0_225 = arith.constant 0 : index
    %c57 = arith.constant 57 : index
    %416 = vector.load %arg2[%c0_225, %c57] : memref<32x67xf32, #tpu.memory_space<vmem>>, vector<32x1xf32>
    %417 = vector.broadcast %416 : vector<32x1xf32> to vector<32x256xf32>
    %418 = arith.mulf %415, %417 : vector<32x256xf32>
    %419 = arith.addf %414, %418 : vector<32x256xf32>
    %c0_226 = arith.constant 0 : index
    %c145_227 = arith.constant 145 : index
    %420 = vector.load %arg7[%c0_226, %c145_227] : memref<32x512xf32, #tpu.memory_space<vmem>>, vector<32x256xf32>
    %c0_228 = arith.constant 0 : index
    %c60 = arith.constant 60 : index
    %421 = vector.load %arg2[%c0_228, %c60] : memref<32x67xf32, #tpu.memory_space<vmem>>, vector<32x1xf32>
    %422 = vector.broadcast %421 : vector<32x1xf32> to vector<32x256xf32>
    %423 = arith.mulf %420, %422 : vector<32x256xf32>
    %424 = arith.addf %419, %423 : vector<32x256xf32>
    %c0_229 = arith.constant 0 : index
    %c161_230 = arith.constant 161 : index
    %425 = vector.load %arg7[%c0_229, %c161_230] : memref<32x512xf32, #tpu.memory_space<vmem>>, vector<32x256xf32>
    %c0_231 = arith.constant 0 : index
    %c63 = arith.constant 63 : index
    %426 = vector.load %arg2[%c0_231, %c63] : memref<32x67xf32, #tpu.memory_space<vmem>>, vector<32x1xf32>
    %427 = vector.broadcast %426 : vector<32x1xf32> to vector<32x256xf32>
    %428 = arith.mulf %425, %427 : vector<32x256xf32>
    %429 = arith.addf %424, %428 : vector<32x256xf32>
    %c0_232 = arith.constant 0 : index
    %c177 = arith.constant 177 : index
    %430 = vector.load %arg7[%c0_232, %c177] : memref<32x512xf32, #tpu.memory_space<vmem>>, vector<32x256xf32>
    %c0_233 = arith.constant 0 : index
    %c66 = arith.constant 66 : index
    %431 = vector.load %arg2[%c0_233, %c66] : memref<32x67xf32, #tpu.memory_space<vmem>>, vector<32x1xf32>
    %432 = vector.broadcast %431 : vector<32x1xf32> to vector<32x256xf32>
    %433 = arith.mulf %430, %432 : vector<32x256xf32>
    %434 = arith.addf %429, %433 : vector<32x256xf32>
    %c4_234 = arith.constant 4 : index
    %c0_235 = arith.constant 0 : index
    %c0_236 = arith.constant 0 : index
    %435 = vector.load %arg3[%c4_234, %c0_235, %c0_236] : memref<7x1x256xf32, #tpu.memory_space<vmem>>, vector<1x1x256xf32>
    %436 = vector.shape_cast %435 : vector<1x1x256xf32> to vector<1x256xf32>
    %437 = vector.broadcast %436 : vector<1x256xf32> to vector<32x256xf32>
    %438 = arith.mulf %434, %437 : vector<32x256xf32>
    %439 = arith.addf %400, %438 : vector<32x256xf32>
    %c0_237 = arith.constant 0 : index
    %c3_238 = arith.constant 3 : index
    %440 = vector.load %arg5[%c0_237, %c3_238] : memref<32x6xf32, #tpu.memory_space<vmem>>, vector<32x1xf32>
    %441 = vector.broadcast %440 : vector<32x1xf32> to vector<32x256xf32>
    %442 = arith.addf %439, %441 : vector<32x256xf32>
    %c1_239 = arith.constant 1 : index
    %c0_240 = arith.constant 0 : index
    %c0_241 = arith.constant 0 : index
    %443 = vector.load %arg4[%c1_239, %c0_240, %c0_241] : memref<3x32x32xf32, #tpu.memory_space<vmem>>, vector<1x32x32xf32>
    %444 = vector.shape_cast %443 : vector<1x32x32xf32> to vector<32x32xf32>
    %cst_242 = arith.constant dense<0.000000e+00> : vector<32x256xf32>
    %445 = tpu.matmul %444, %442, %cst_242 {dimension_numbers = #tpu.dot_dimension_numbers<[1], [0], [0], [1], [0, 0, 1, 1], [], []>} : vector<32x32xf32>, vector<32x256xf32>, vector<32x256xf32> -> vector<32x256xf32>
    %c0_243 = arith.constant 0 : index
    %c4_244 = arith.constant 4 : index
    %446 = vector.load %arg5[%c0_243, %c4_244] : memref<32x6xf32, #tpu.memory_space<vmem>>, vector<32x1xf32>
    %447 = vector.broadcast %446 : vector<32x1xf32> to vector<32x256xf32>
    %448 = arith.addf %445, %447 : vector<32x256xf32>
    %449 = arith.mulf %50, %448 : vector<32x256xf32>
    %c2_245 = arith.constant 2 : index
    %c0_246 = arith.constant 0 : index
    %c0_247 = arith.constant 0 : index
    %450 = vector.load %arg4[%c2_245, %c0_246, %c0_247] : memref<3x32x32xf32, #tpu.memory_space<vmem>>, vector<1x32x32xf32>
    %451 = vector.shape_cast %450 : vector<1x32x32xf32> to vector<32x32xf32>
    %cst_248 = arith.constant dense<0.000000e+00> : vector<32x256xf32>
    %452 = tpu.matmul %451, %449, %cst_248 {dimension_numbers = #tpu.dot_dimension_numbers<[1], [0], [0], [1], [0, 0, 1, 1], [], []>} : vector<32x32xf32>, vector<32x256xf32>, vector<32x256xf32> -> vector<32x256xf32>
    %c0_249 = arith.constant 0 : index
    %c5_250 = arith.constant 5 : index
    %453 = vector.load %arg5[%c0_249, %c5_250] : memref<32x6xf32, #tpu.memory_space<vmem>>, vector<32x1xf32>
    %454 = vector.broadcast %453 : vector<32x1xf32> to vector<32x256xf32>
    %455 = arith.addf %452, %454 : vector<32x256xf32>
    %456 = arith.addf %455, %1 : vector<32x256xf32>
    %c0_251 = arith.constant 0 : index
    %c0_252 = arith.constant 0 : index
    %c0_253 = arith.constant 0 : index
    %457 = vector.load %arg6[%c0_251, %c0_252, %c0_253] : memref<1x32x256xf32, #tpu.memory_space<vmem>>, vector<1x32x256xf32>
    %458 = vector.shape_cast %457 : vector<1x32x256xf32> to vector<32x256xf32>
    %459 = vector.shape_cast %456 : vector<32x256xf32> to vector<1x32x256xf32>
    tpu.vector_store %arg6[%c0_251, %c0_252, %c0_253], %459 {strides = array<i32>} : memref<1x32x256xf32, #tpu.memory_space<vmem>>, vector<1x32x256xf32>,
    return
  }
  func.func @transform_0(%arg0: i32) -> (i32, i32, i32) {
    %c0_i32 = arith.constant 0 : i32
    %c0_i32_0 = arith.constant 0 : i32
    %c0_i32_1 = arith.constant 0 : i32
    return %arg0, %c0_i32, %c0_i32_0 : i32, i32, i32
  }
  func.func @transform_1(%arg0: i32) -> (i32, i32) {
    %c0_i32 = arith.constant 0 : i32
    %c0_i32_0 = arith.constant 0 : i32
    %c0_i32_1 = arith.constant 0 : i32
    return %c0_i32, %c0_i32_0 : i32, i32
  }
  func.func @transform_2(%arg0: i32) -> (i32, i32, i32) {
    %c0_i32 = arith.constant 0 : i32
    %c0_i32_0 = arith.constant 0 : i32
    %c0_i32_1 = arith.constant 0 : i32
    %c0_i32_2 = arith.constant 0 : i32
    return %c0_i32, %c0_i32_0, %c0_i32_1 : i32, i32, i32
  }
  func.func @transform_3(%arg0: i32) -> (i32, i32, i32) {
    %c0_i32 = arith.constant 0 : i32
    %c0_i32_0 = arith.constant 0 : i32
    %c0_i32_1 = arith.constant 0 : i32
    %c0_i32_2 = arith.constant 0 : i32
    return %c0_i32, %c0_i32_0, %c0_i32_1 : i32, i32, i32
  }
  func.func @transform_4(%arg0: i32) -> (i32, i32) {
    %c0_i32 = arith.constant 0 : i32
    %c0_i32_0 = arith.constant 0 : i32
    %c0_i32_1 = arith.constant 0 : i32
    return %c0_i32, %c0_i32_0 : i32, i32
  }
  func.func @transform_5(%arg0: i32) -> (i32, i32, i32) {
    %c0_i32 = arith.constant 0 : i32
    %c0_i32_0 = arith.constant 0 : i32
    %c0_i32_1 = arith.constant 0 : i32
    return %arg0, %c0_i32, %c0_i32_0 : i32, i32, i32
  }
}

</mosaic_0001>

<llo_original>
// kernel: tpu_custom_call.1
$region0: #{tpu_custom_call.1}
  #allocation0 [shape = 'u32[]', space=smem, size = 0x4, offset = 0x4, fixed_abs, tag = 'smem constant byte address 0x4 - core index']
  #allocation1 [shape = 'u32[144,128]{1,0:T(1,128)}', space=vmem, size = 0x12000, scoped, tag = 'internal scratch']
  #allocation2 [shape = 'f32[32,512]{1,0:T(8,128)}', space=vmem, size = 0x10000, scoped, tag = 'scratch operand']
  %s0 = inlined_call_operand.hbm [shape: f32[2,32,256], index: 0, kind: input, shape index: {}]
  %s1 = inlined_call_operand.vmem [shape: f32[32,67], index: 1, kind: input, shape index: {}]
  %s2 = inlined_call_operand.vmem [shape: f32[7,1,256], index: 2, kind: input, shape index: {}]
  %s3 = inlined_call_operand.hbm [shape: f32[3,32,32], index: 3, kind: input, shape index: {}]
  %s4 = inlined_call_operand.vmem [shape: f32[32,6], index: 4, kind: input, shape index: {}]
  %s5 = inlined_call_operand.hbm [shape: f32[2,32,256], index: 5, kind: output, shape index: {}]
  %s6 = sld [smem:[#allocation0]]
  $region61: #{tpu_custom_call.1} parent=0
    _
  %s8 = ssub.s32 1, %s6
  %s9 = scalar_select 0, %s8, %s6
  $region1: #{tpu_custom_call.1} parent=0
    #allocation3 [shape = 'u8[65536]{0}', space=vmem, size = 0x10000, scoped, tag = 'input window, operand 0']
    #allocation4 [shape = 's32[2]{0}', space=sflag, size = 0x8, scoped, tag = 'scoped memory for tpu_custom_call.1']
    #allocation5 [shape = 's32[2]{0}', space=sflag, size = 0x8, scoped, tag = 'scoped memory for tpu_custom_call.1']
    #allocation6 [shape = 'u8[49152]{0}', space=vmem, size = 0xc000, scoped, tag = 'input window, operand 3, single buffered']
    #allocation7 [shape = 's32[1]{0}', space=sflag, size = 0x4, scoped, tag = 'scoped memory for tpu_custom_call.1']
    #allocation8 [shape = 'u8[65536]{0}', space=vmem, size = 0x10000, scoped, tag = 'output window, operand 0']
    %10 = vsyncpa [#allocation4], 0
    %s11 = scalar_lea.sflag [#allocation4], 1
    %12 = vsyncpa %s11, 0
    %13 = vsyncpa [#allocation7], 0
    %14 = vsyncpa [#allocation5], 0
    %s15 = scalar_lea.sflag [#allocation5], 1
    %16 = vsyncpa %s15, 0
    loop: start=0, step=1, limit=4
    $region2: #{tpu_custom_call.1} parent=1 // loop_pre_header
      _
    $region3: #{tpu_custom_call.1} parent=1 // loop_header
      %s18 = sphi 0, %s22
      %p19 = scmp.ge.s32.totalorder %s18, 4
      %s28 = sphi 0, %s30
      %s31 = sphi 0, %s28
      %s32 = sphi 0, %s31
      %s48 = sphi 0, %s32
      %s52 = sphi 0, %s52
      %s54 = sphi 0, %s52
      %s55 = sphi 0, %s54
      %s69 = sphi 0, %s55
      %s73 = sphi 0, %s73
      %s75 = sphi 0, %s73
      %s76 = sphi 0, %s75
      %s90 = sphi 0, %s76
      %s94 = sphi 0, %s94
      %s96 = sphi 0, %s94
      %s97 = sphi 0, %s96
      %s111 = sphi 0, %s97
      %s115 = sphi 0, %s115
      %s117 = sphi 0, %s115
      %s118 = sphi 0, %s117
      %s132 = sphi 0, %s118
      %s138 = sphi 0, %s140
      %s141 = sphi 0, %s138
      %s142 = sphi 0, %s141
      %s158 = sphi 0, %s142
    $region4: #{tpu_custom_call.1} parent=1 // loop_header_branch
      %21 = sbr.rel (%p19) target = $region8
    $region5: #{tpu_custom_call.1} parent=1 // loop_body
      %s23 = ssub.s32 %s18, 1
      %s24 = ssub.s32 %s18, 2
      %s25 = sadd.s32 %s18, 1
      %s26 = ssub.s32 %s18, %s25
      %p27 = scmp.eq.s32.totalorder %s26, 0
      %s29 = sadd.s32 %s28, 1
      %s30 = scalar_select %p27, %s28, %s29
      %p33 = pneg %p27
      %p34 = scmp.eq.s32.totalorder %s18, 1
      %p35 = por %p33, %p34
      %p36 = scmp.ne.s32.totalorder %s28, %s31
      %p37 = scmp.eq.s32.totalorder %s18, 0
      %p38 = por %p36, %p37
      %p39 = scmp.ne.s32.totalorder %s28, %s31
      %p40 = scmp.eq.s32.totalorder %s23, 1
      %p41 = por %p39, %p40
      %p42 = scmp.ne.s32.totalorder %s31, %s32
      %p43 = scmp.eq.s32.totalorder %s23, 0
      %p44 = por %p42, %p43
      %p45 = scmp.ne.s32.totalorder %s31, %s32
      %p46 = scmp.eq.s32.totalorder %s24, 1
      %p47 = por %p45, %p46
      %p49 = scmp.ne.s32.totalorder %s32, %s48
      %p50 = scmp.eq.s32.totalorder %s24, 0
      %p51 = por %p49, %p50
      %s53 = sadd.s32 %s52, 1
      %p56 = scmp.eq.s32.totalorder %s18, 1
      %p57 = scmp.ne.s32.totalorder %s52, %s54
      %p58 = scmp.eq.s32.totalorder %s18, 0
      %p59 = por %p57, %p58
      %p60 = scmp.ne.s32.totalorder %s52, %s54
      %p61 = scmp.eq.s32.totalorder %s23, 1
      %p62 = por %p60, %p61
      %p63 = scmp.ne.s32.totalorder %s54, %s55
      %p64 = scmp.eq.s32.totalorder %s23, 0
      %p65 = por %p63, %p64
      %p66 = scmp.ne.s32.totalorder %s54, %s55
      %p67 = scmp.eq.s32.totalorder %s24, 1
      %p68 = por %p66, %p67
      %p70 = scmp.ne.s32.totalorder %s55, %s69
      %p71 = scmp.eq.s32.totalorder %s24, 0
      %p72 = por %p70, %p71
      %s74 = sadd.s32 %s73, 1
      %p77 = scmp.eq.s32.totalorder %s18, 1
      %p78 = scmp.ne.s32.totalorder %s73, %s75
      %p79 = scmp.eq.s32.totalorder %s18, 0
      %p80 = por %p78, %p79
      %p81 = scmp.ne.s32.totalorder %s73, %s75
      %p82 = scmp.eq.s32.totalorder %s23, 1
      %p83 = por %p81, %p82
      %p84 = scmp.ne.s32.totalorder %s75, %s76
      %p85 = scmp.eq.s32.totalorder %s23, 0
      %p86 = por %p84, %p85
      %p87 = scmp.ne.s32.totalorder %s75, %s76
      %p88 = scmp.eq.s32.totalorder %s24, 1
      %p89 = por %p87, %p88
      %p91 = scmp.ne.s32.totalorder %s76, %s90
      %p92 = scmp.eq.s32.totalorder %s24, 0
      %p93 = por %p91, %p92
      %s95 = sadd.s32 %s94, 1
      %p98 = scmp.eq.s32.totalorder %s18, 1
      %p99 = scmp.ne.s32.totalorder %s94, %s96
      %p100 = scmp.eq.s32.totalorder %s18, 0
      %p101 = por %p99, %p100
      %p102 = scmp.ne.s32.totalorder %s94, %s96
      %p103 = scmp.eq.s32.totalorder %s23, 1
      %p104 = por %p102, %p103
      %p105 = scmp.ne.s32.totalorder %s96, %s97
      %p106 = scmp.eq.s32.totalorder %s23, 0
      %p107 = por %p105, %p106
      %p108 = scmp.ne.s32.totalorder %s96, %s97
      %p109 = scmp.eq.s32.totalorder %s24, 1
      %p110 = por %p108, %p109
      %p112 = scmp.ne.s32.totalorder %s97, %s111
      %p113 = scmp.eq.s32.totalorder %s24, 0
      %p114 = por %p112, %p113
      %s116 = sadd.s32 %s115, 1
      %p119 = scmp.eq.s32.totalorder %s18, 1
      %p120 = scmp.ne.s32.totalorder %s115, %s117
      %p121 = scmp.eq.s32.totalorder %s18, 0
      %p122 = por %p120, %p121
      %p123 = scmp.ne.s32.totalorder %s115, %s117
      %p124 = scmp.eq.s32.totalorder %s23, 1
      %p125 = por %p123, %p124
      %p126 = scmp.ne.s32.totalorder %s117, %s118
      %p127 = scmp.eq.s32.totalorder %s23, 0
      %p128 = por %p126, %p127
      %p129 = scmp.ne.s32.totalorder %s117, %s118
      %p130 = scmp.eq.s32.totalorder %s24, 1
      %p131 = por %p129, %p130
      %p133 = scmp.ne.s32.totalorder %s118, %s132
      %p134 = scmp.eq.s32.totalorder %s24, 0
      %p135 = por %p133, %p134
      %s136 = ssub.s32 %s18, %s25
      %p137 = scmp.eq.s32.totalorder %s136, 0
      %s139 = sadd.s32 %s138, 1
      %s140 = scalar_select %p137, %s138, %s139
      %p143 = pneg %p137
      %p144 = scmp.eq.s32.totalorder %s18, 1
      %p145 = por %p143, %p144
      %p146 = scmp.ne.s32.totalorder %s138, %s141
      %p147 = scmp.eq.s32.totalorder %s18, 0
      %p148 = por %p146, %p147
      %p149 = scmp.ne.s32.totalorder %s138, %s141
      %p150 = scmp.eq.s32.totalorder %s23, 1
      %p151 = por %p149, %p150
      %p152 = scmp.ne.s32.totalorder %s141, %s142
      %p153 = scmp.eq.s32.totalorder %s23, 0
      %p154 = por %p152, %p153
      %p155 = scmp.ne.s32.totalorder %s141, %s142
      %p156 = scmp.eq.s32.totalorder %s24, 1
      %p157 = por %p155, %p156
      %p159 = scmp.ne.s32.totalorder %s142, %s158
      %p160 = scmp.eq.s32.totalorder %s24, 0
      %p161 = por %p159, %p160
      %p162 = scmp.le.s32.totalorder 1, %s18
      %p163 = scmp.lt.s32.totalorder %s18, 3
      %p164 = pnand %p162, %p163
      %p165 = pneg %p164
      // Predicated region
      $region9: #{tpu_custom_call.1} parent=5 // pred_check
        _
      $region10: #{tpu_custom_call.1} parent=5 // pred_check_branch
        %167 = sbr.rel (%p164) target = $region12
      $region11: #{tpu_custom_call.1} parent=5 // pred_region
        %s168 = ssub.s32 %s18, 1
        // Predicated region
        $region13: #{tpu_custom_call.1} parent=11 // pred_check
          %p169 = pneg %p65
        $region14: #{tpu_custom_call.1} parent=11 // pred_check_branch
          %171 = sbr.rel (%p169) target = $region16
        $region15: #{tpu_custom_call.1} parent=11 // pred_region
          _
        $region16: #{tpu_custom_call.1} parent=11 // pred_fallthru
          _
        // Predicated region
        $region17: #{tpu_custom_call.1} parent=11 // pred_check
          %p172 = pneg %p86
        $region18: #{tpu_custom_call.1} parent=11 // pred_check_branch
          %174 = sbr.rel (%p172) target = $region20
        $region19: #{tpu_custom_call.1} parent=11 // pred_region
          _
        $region20: #{tpu_custom_call.1} parent=11 // pred_fallthru
          _
        // Predicated region
        $region21: #{tpu_custom_call.1} parent=11 // pred_check
          %p175 = pneg %p107
        $region22: #{tpu_custom_call.1} parent=11 // pred_check_branch
          %177 = sbr.rel (%p175) target = $region24
        $region23: #{tpu_custom_call.1} parent=11 // pred_region
          %s179 = ssub.s32 1536, 1536
          %180 = vsyncadd [#allocation7], %s179
          %s181 = sshll.u32 [#allocation6], 4
          %s182 = int_to_ptr.vmem [resolvable:$true] %s181
          %187 = dma.hbm_to_vmem [thread:$0]  %s3, 1536, %s182, [#allocation7], 128, 128, 8
        $region24: #{tpu_custom_call.1} parent=11 // pred_fallthru
          _
        // Predicated region
        $region25: #{tpu_custom_call.1} parent=11 // pred_check
          %p188 = pneg %p128
        $region26: #{tpu_custom_call.1} parent=11 // pred_check_branch
          %190 = sbr.rel (%p188) target = $region28
        $region27: #{tpu_custom_call.1} parent=11 // pred_region
          _
        $region28: #{tpu_custom_call.1} parent=11 // pred_fallthru
          _
      $region12: #{tpu_custom_call.1} parent=5 // pred_fallthru
        _
      %p191 = scmp.lt.s32.totalorder %s18, 2
      // Predicated region
      $region29: #{tpu_custom_call.1} parent=5 // pred_check
        %p192 = pneg %p191
      $region30: #{tpu_custom_call.1} parent=5 // pred_check_branch
        %194 = sbr.rel (%p192) target = $region32
      $region31: #{tpu_custom_call.1} parent=5 // pred_region
        // Predicated region
        $region33: #{tpu_custom_call.1} parent=31 // pred_check
          %p195 = pneg %p38
        $region34: #{tpu_custom_call.1} parent=31 // pred_check_branch
          %197 = sbr.rel (%p195) target = $region36
        $region35: #{tpu_custom_call.1} parent=31 // pred_region
          %s198 = sand.u32 %s28, 1
          %s199 = scalar_lea.sflag [#allocation4], %s198
          %s200 = sand.u32 %s28, 1
          %s201 = smul.addr %s200, 64
          %s202 = scalar_lea.vmem [#allocation3], %s201
          %s204 = ssub.s32 1024, 1024
          %205 = vsyncadd %s199, %s204
          %s206 = smul.addr %s18, 8
          %s207 = smul.addr %s206, 128
          %s208 = scalar_lea.hbm %s0, %s207
          %s209 = sshll.u32 %s202, 4
          %s210 = int_to_ptr.vmem [resolvable:$true] %s209
          %215 = dma.hbm_to_vmem [thread:$0]  %s208, 1024, %s210, %s199, 256, 256, 16
        $region36: #{tpu_custom_call.1} parent=31 // pred_fallthru
          _
      $region32: #{tpu_custom_call.1} parent=5 // pred_fallthru
        _
      %p216 = scmp.le.s32.totalorder 1, %s18
      %p217 = scmp.lt.s32.totalorder %s18, 3
      %p218 = pnand %p216, %p217
      %p219 = pneg %p218
      // Predicated region
      $region37: #{tpu_custom_call.1} parent=5 // pred_check
        _
      $region38: #{tpu_custom_call.1} parent=5 // pred_check_branch
        %221 = sbr.rel (%p218) target = $region40
      $region39: #{tpu_custom_call.1} parent=5 // pred_region
        %s222 = ssub.s32 %s18, 1
        %s223 = sand.u32 %s31, 1
        %s224 = scalar_lea.sflag [#allocation4], %s223
        %s225 = sand.u32 %s31, 1
        %s226 = smul.addr %s225, 64
        %s227 = scalar_lea.vmem [#allocation3], %s226
        // Predicated region
        $region41: #{tpu_custom_call.1} parent=39 // pred_check
          %p228 = pneg %p44
        $region42: #{tpu_custom_call.1} parent=39 // pred_check_branch
          %230 = sbr.rel (%p228) target = $region44
        $region43: #{tpu_custom_call.1} parent=39 // pred_region
          %231 = dma.done %s224, 1024
        $region44: #{tpu_custom_call.1} parent=39 // pred_fallthru
          _
        // Predicated region
        $region45: #{tpu_custom_call.1} parent=39 // pred_check
          %p232 = pneg %p107
        $region46: #{tpu_custom_call.1} parent=39 // pred_check_branch
          %234 = sbr.rel (%p232) target = $region48
        $region47: #{tpu_custom_call.1} parent=39 // pred_region
          %235 = dma.done [#allocation7], 1536
        $region48: #{tpu_custom_call.1} parent=39 // pred_fallthru
          _
        %s236 = sand.u32 %s31, 1
        %s237 = scalar_lea.sflag [#allocation4], %s236
        %s238 = sand.u32 %s31, 1
        %s239 = smul.addr %s238, 64
        %s240 = scalar_lea.vmem [#allocation3], %s239
        %p241 = pneg %p44
        %p242 = pneg %p41
        %p243 = pneg %p65
        %p244 = pneg %p62
        %p245 = pneg %p86
        %p246 = pneg %p83
        %p247 = pneg %p107
        %p248 = pneg %p104
        %p249 = pneg %p128
        %p250 = pneg %p125
        %p251 = pneg %p154
        %p252 = pneg %p151
        %s253 = sand.u32 %s141, 1
        %s254 = scalar_lea.sflag [#allocation5], %s253
        %s255 = sand.u32 %s141, 1
        %s256 = smul.addr %s255, 64
        %s257 = scalar_lea.vmem [#allocation8], %s256
        %v258 = vld [vmem:[%s227] sm:$0xff]
        %v259 = vld [vmem:[%s227 + $0x8] sm:$0xff]
        %v260 = vld [vmem:[%s227 + $0x10] sm:$0xff]
        %v261 = vld [vmem:[%s227 + $0x18] sm:$0xff]
        %v262 = vld [vmem:[%s227 + $0x20] sm:$0xff]
        %v263 = vld [vmem:[%s227 + $0x28] sm:$0xff]
        %v264 = vld [vmem:[%s227 + $0x30] sm:$0xff]
        %v265 = vld [vmem:[%s227 + $0x38] sm:$0xff]
        %266 = vst [vmem:[#allocation2] sm:$0xff] 0.0
        %267 = vst [vmem:[#allocation2 + $0x20] sm:$0xff] 0.0
        %268 = vst [vmem:[#allocation2 + $0x40] sm:$0xff] 0.0
        %269 = vst [vmem:[#allocation2 + $0x60] sm:$0xff] 0.0
        %270 = vst [vmem:[#allocation2 + $0x18] sm:$0xff] 0.0
        %271 = vst [vmem:[#allocation2 + $0x38] sm:$0xff] 0.0
        %272 = vst [vmem:[#allocation2 + $0x58] sm:$0xff] 0.0
        %273 = vst [vmem:[#allocation2 + $0x78] sm:$0xff] 0.0
        %v274 = vld [vmem:[#allocation6] sm:$0xff]
        %v275 = vld [vmem:[#allocation6 + $0x8] sm:$0xff]
        %v276 = vld [vmem:[#allocation6 + $0x10] sm:$0xff]
        %v277 = vld [vmem:[#allocation6 + $0x18] sm:$0xff]
        %v278 = vld [vmem:[%s4] sm:$0xff]
        %v279 = vld [vmem:[%s4 + $0x8] sm:$0xff]
        %v280 = vld [vmem:[%s4 + $0x10] sm:$0xff]
        %v281 = vld [vmem:[%s4 + $0x18] sm:$0xff]
        %283 = vset.pattern.permute.xlu0 0
        %284 = vperm.xlu0 %283, %v278
        %v285 = vpop.permute.xlu0 %284
        %288 = vset.pattern.permute.xlu0 0
        %289 = vperm.xlu0 %288, %v279
        %v290 = vpop.permute.xlu0 %289
        %293 = vset.pattern.permute.xlu0 0
        %294 = vperm.xlu0 %293, %v280
        %v295 = vpop.permute.xlu0 %294
        %298 = vset.pattern.permute.xlu0 0
        %299 = vperm.xlu0 %298, %v281
        %v300 = vpop.permute.xlu0 %299
        %vm302 = vcmask 261120
        %v304 = vsel %vm302, %v274, 0
        %v307 = vsel %vm302, %v275, 0
        %v310 = vsel %vm302, %v276, 0
        %v313 = vsel %vm302, %v277, 0
        %315 = vmatprep.subr.mxu0 %v259
        %316 = vmatpush1.msra.mxu0 %v258
        %317 = vmatprep.subr.mxu0 %v261
        %318 = vmatpush1.msra.mxu0 %v260
        %319 = vmatprep.subr.mxu0 %v263
        %320 = vmatpush1.msra.mxu0 %v262
        %321 = vmatprep.subr.mxu0 %v265
        %322 = vmatpush1.msra.mxu0 %v264
        %323 = vmatprep.subr.mxu0 0.0
        %324 = vmatpush1.msra.mxu0 0.0
        %325 = vmatprep.subr.mxu0 0.0
        %326 = vmatpush1.msra.mxu0 0.0
        %327 = vmatprep.subr.mxu0 0.0
        %328 = vmatpush1.msra.mxu0 0.0
        %329 = vmatprep.subr.mxu0 0.0
        %330 = vmatpush1.msra.mxu0 0.0
        %331 = vmatprep.subr.mxu0 0.0
        %332 = vmatpush1.msra.mxu0 0.0
        %333 = vmatprep.subr.mxu0 0.0
        %334 = vmatpush1.msra.mxu0 0.0
        %335 = vmatprep.subr.mxu0 0.0
        %336 = vmatpush1.msra.mxu0 0.0
        %337 = vmatprep.subr.mxu0 0.0
        %338 = vmatpush1.msra.mxu0 0.0
        %339 = vmatprep.subr.mxu0 0.0
        %340 = vmatpush1.msra.mxu0 0.0
        %341 = vmatprep.subr.mxu0 0.0
        %342 = vmatpush1.msra.mxu0 0.0
        %343 = vmatprep.subr.mxu0 0.0
        %344 = vmatpush1.msra.mxu0 0.0
        %345 = vmatprep.subr.mxu0 0.0
        %346 = vmatpush1.msra.mxu0 0.0
        %347 = vmatprep.subr.mxu0 0.0
        %348 = vmatpush1.msra.mxu0 0.0
        %349 = vmatprep.subr.mxu0 0.0
        %350 = vmatpush1.msra.mxu0 0.0
        %351 = vmatprep.subr.mxu0 0.0
        %352 = vmatpush1.msra.mxu0 0.0
        %353 = vmatprep.subr.mxu0 0.0
        %354 = vmatpush1.msra.mxu0 0.0
        %355 = vmatprep.subr.mxu0 0.0
        %356 = vmatpush1.msra.mxu0 0.0
        %357 = vmatprep.subr.mxu0 0.0
        %358 = vmatpush1.msra.mxu0 0.0
        %359 = vmatprep.subr.mxu0 0.0
        %360 = vmatpush1.msra.mxu0 0.0
        %361 = vmatprep.subr.mxu0 0.0
        %362 = vmatpush1.msra.mxu0 0.0
        %363 = vmatprep.subr.mxu0 0.0
        %364 = vmatpush1.msra.mxu0 0.0
        %365 = vmatprep.subr.mxu0 0.0
        %366 = vmatpush1.msra.mxu0 0.0
        %367 = vmatprep.subr.mxu0 0.0
        %368 = vmatpush1.msra.mxu0 0.0
        %369 = vmatprep.subr.mxu0 0.0
        %370 = vmatpush1.msra.mxu0 0.0
        %371 = vmatprep.subr.mxu0 0.0
        %372 = vmatpush1.msra.mxu0 0.0
        %373 = vmatprep.subr.mxu0 0.0
        %374 = vmatpush1.msra.mxu0 0.0
        %375 = vmatprep.subr.mxu0 0.0
        %376 = vmatpush1.msra.mxu0 0.0
        %377 = vmatprep.subr.mxu0 0.0
        %378 = vmatpush1.msra.mxu0 0.0
        %379 = vmatprep.mubr.f32.mxu0 0.0
        %380 = vmatmul.mubr.f32.gmra.mrb[0].mxu0 %v304
        %v381 = vpop.f32.mrb[0].mxu0
        %v382 = vadd.f32 %v285, %v381
        %v383 = vpop.f32.mrb[0].mxu0
        %v384 = vadd.f32 %v285, %v383
        %385 = vmatprep.mubr.f32.mxu0 0.0
        %386 = vmatmul.mubr.f32.gmra.mrb[0].mxu0 %v307
        %v387 = vpop.f32.mrb[0].mxu0
        %v388 = vadd.f32 %v290, %v387
        %v389 = vpop.f32.mrb[0].mxu0
        %v390 = vadd.f32 %v290, %v389
        %391 = vmatprep.mubr.f32.mxu0 0.0
        %392 = vmatmul.mubr.f32.gmra.mrb[0].mxu0 %v310
        %v393 = vpop.f32.mrb[0].mxu0
        %v394 = vadd.f32 %v295, %v393
        %v395 = vpop.f32.mrb[0].mxu0
        %v396 = vadd.f32 %v295, %v395
        %397 = vmatprep.mubr.f32.mxu0 0.0
        %398 = vmatmul.mubr.f32.gmra.mrb[0].mxu0 %v313
        %v399 = vpop.f32.mrb[0].mxu0
        %v400 = vadd.f32 %v300, %v399
        %v401 = vpop.f32.mrb[0].mxu0
        %v402 = vadd.f32 %v300, %v401
        %403 = vdwg.mxu0
        %v404 = vmul.f32 %v382, 0.70710677
        %v405 = vmul.f32 %v384, 0.70710677
        %v406 = vmul.f32 %v388, 0.70710677
        %v407 = vmul.f32 %v390, 0.70710677
        %v408 = vmul.f32 %v394, 0.70710677
        %v409 = vmul.f32 %v396, 0.70710677
        %v410 = vmul.f32 %v400, 0.70710677
        %v411 = vmul.f32 %v402, 0.70710677
        %v412 = vand.u32 2147483647, %v404
        %v413 = vand.u32 2147483647, %v405
        %v414 = vand.u32 2147483647, %v406
        %v415 = vand.u32 2147483647, %v407
        %v416 = vand.u32 2147483647, %v408
        %v417 = vand.u32 2147483647, %v409
        %v418 = vand.u32 2147483647, %v410
        %v419 = vand.u32 2147483647, %v411
        %v420 = vmul.f32 %v412, 0.3275911
        %v421 = vmul.f32 %v413, 0.3275911
        %v422 = vmul.f32 %v414, 0.3275911
        %v423 = vmul.f32 %v415, 0.3275911
        %v424 = vmul.f32 %v416, 0.3275911
        %v425 = vmul.f32 %v417, 0.3275911
        %v426 = vmul.f32 %v418, 0.3275911
        %v427 = vmul.f32 %v419, 0.3275911
        %v428 = vadd.f32 %v420, 1.0
        %v429 = vadd.f32 %v421, 1.0
        %v430 = vadd.f32 %v422, 1.0
        %v431 = vadd.f32 %v423, 1.0
        %v432 = vadd.f32 %v424, 1.0
        %v433 = vadd.f32 %v425, 1.0
        %v434 = vadd.f32 %v426, 1.0
        %v435 = vadd.f32 %v427, 1.0
        %v436 = vrcp.pop %v428
        %v437 = vmul.f32 1.0, %v436
        %v438 = vrcp.pop %v429
        %v439 = vmul.f32 1.0, %v438
        %v440 = vrcp.pop %v430
        %v441 = vmul.f32 1.0, %v440
        %v442 = vrcp.pop %v431
        %v443 = vmul.f32 1.0, %v442
        %v444 = vrcp.pop %v432
        %v445 = vmul.f32 1.0, %v444
        %v446 = vrcp.pop %v433
        %v447 = vmul.f32 1.0, %v446
        %v448 = vrcp.pop %v434
        %v449 = vmul.f32 1.0, %v448
        %v450 = vrcp.pop %v435
        %v451 = vmul.f32 1.0, %v450
        %v452 = vmul.f32 %v437, 1.0614054
        %v453 = vmul.f32 %v439, 1.0614054
        %v454 = vmul.f32 %v441, 1.0614054
        %v455 = vmul.f32 %v443, 1.0614054
        %v456 = vmul.f32 %v445, 1.0614054
        %v457 = vmul.f32 %v447, 1.0614054
        %v458 = vmul.f32 %v449, 1.0614054
        %v459 = vmul.f32 %v451, 1.0614054
        %v460 = vadd.f32 %v452, -1.4531521
        %v461 = vadd.f32 %v453, -1.4531521
        %v462 = vadd.f32 %v454, -1.4531521
        %v463 = vadd.f32 %v455, -1.4531521
        %v464 = vadd.f32 %v456, -1.4531521
        %v465 = vadd.f32 %v457, -1.4531521
        %v466 = vadd.f32 %v458, -1.4531521
        %v467 = vadd.f32 %v459, -1.4531521
        %v468 = vmul.f32 %v437, %v460
        %v469 = vmul.f32 %v439, %v461
        %v470 = vmul.f32 %v441, %v462
        %v471 = vmul.f32 %v443, %v463
        %v472 = vmul.f32 %v445, %v464
        %v473 = vmul.f32 %v447, %v465
        %v474 = vmul.f32 %v449, %v466
        %v475 = vmul.f32 %v451, %v467
        %v476 = vadd.f32 %v468, 1.4214138
        %v477 = vadd.f32 %v469, 1.4214138
        %v478 = vadd.f32 %v470, 1.4214138
        %v479 = vadd.f32 %v471, 1.4214138
        %v480 = vadd.f32 %v472, 1.4214138
        %v481 = vadd.f32 %v473, 1.4214138
        %v482 = vadd.f32 %v474, 1.4214138
        %v483 = vadd.f32 %v475, 1.4214138
        %v484 = vmul.f32 %v437, %v476
        %v485 = vmul.f32 %v439, %v477
        %v486 = vmul.f32 %v441, %v478
        %v487 = vmul.f32 %v443, %v479
        %v488 = vmul.f32 %v445, %v480
        %v489 = vmul.f32 %v447, %v481
        %v490 = vmul.f32 %v449, %v482
        %v491 = vmul.f32 %v451, %v483
        %v492 = vadd.f32 %v484, -0.28449672
        %v493 = vadd.f32 %v485, -0.28449672
        %v494 = vadd.f32 %v486, -0.28449672
        %v495 = vadd.f32 %v487, -0.28449672
        %v496 = vadd.f32 %v488, -0.28449672
        %v497 = vadd.f32 %v489, -0.28449672
        %v498 = vadd.f32 %v490, -0.28449672
        %v499 = vadd.f32 %v491, -0.28449672
        %v500 = vmul.f32 %v437, %v492
        %v501 = vmul.f32 %v439, %v493
        %v502 = vmul.f32 %v441, %v494
        %v503 = vmul.f32 %v443, %v495
        %v504 = vmul.f32 %v445, %v496
        %v505 = vmul.f32 %v447, %v497
        %v506 = vmul.f32 %v449, %v498
        %v507 = vmul.f32 %v451, %v499
        %v508 = vadd.f32 %v500, 0.2548296
        %v509 = vadd.f32 %v501, 0.2548296
        %v510 = vadd.f32 %v502, 0.2548296
        %v511 = vadd.f32 %v503, 0.2548296
        %v512 = vadd.f32 %v504, 0.2548296
        %v513 = vadd.f32 %v505, 0.2548296
        %v514 = vadd.f32 %v506, 0.2548296
        %v515 = vadd.f32 %v507, 0.2548296
        %v516 = vmul.f32 %v437, %v508
        %v517 = vmul.f32 %v439, %v509
        %v518 = vmul.f32 %v441, %v510
        %v519 = vmul.f32 %v443, %v511
        %v520 = vmul.f32 %v445, %v512
        %v521 = vmul.f32 %v447, %v513
        %v522 = vmul.f32 %v449, %v514
        %v523 = vmul.f32 %v451, %v515
        %v524 = vsub.f32 0.0, %v412
        %v525 = vsub.f32 0.0, %v413
        %v526 = vsub.f32 0.0, %v414
        %v527 = vsub.f32 0.0, %v415
        %v528 = vsub.f32 0.0, %v416
        %v529 = vsub.f32 0.0, %v417
        %v530 = vsub.f32 0.0, %v418
        %v531 = vsub.f32 0.0, %v419
        %v532 = vmul.f32 %v524, %v412
        %v533 = vmul.f32 %v525, %v413
        %v534 = vmul.f32 %v526, %v414
        %v535 = vmul.f32 %v527, %v415
        %v536 = vmul.f32 %v528, %v416
        %v537 = vmul.f32 %v529, %v417
        %v538 = vmul.f32 %v530, %v418
        %v539 = vmul.f32 %v531, %v419
        %v540 = vmul.f32 %v532, 1.442695
        %v541 = vpow.pop %v540
        %v542 = vmul.f32 %v533, 1.442695
        %v543 = vpow.pop %v542
        %v544 = vmul.f32 %v534, 1.442695
        %v545 = vpow.pop %v544
        %v546 = vmul.f32 %v535, 1.442695
        %v547 = vpow.pop %v546
        %v548 = vmul.f32 %v536, 1.442695
        %v549 = vpow.pop %v548
        %v550 = vmul.f32 %v537, 1.442695
        %v551 = vpow.pop %v550
        %v552 = vmul.f32 %v538, 1.442695
        %v553 = vpow.pop %v552
        %v554 = vmul.f32 %v539, 1.442695
        %v555 = vpow.pop %v554
        %v556 = vmul.f32 %v516, %v541
        %v557 = vmul.f32 %v517, %v543
        %v558 = vmul.f32 %v518, %v545
        %v559 = vmul.f32 %v519, %v547
        %v560 = vmul.f32 %v520, %v549
        %v561 = vmul.f32 %v521, %v551
        %v562 = vmul.f32 %v522, %v553
        %v563 = vmul.f32 %v523, %v555
        %v564 = vsub.f32 1.0, %v556
        %v565 = vsub.f32 1.0, %v557
        %v566 = vsub.f32 1.0, %v558
        %v567 = vsub.f32 1.0, %v559
        %v568 = vsub.f32 1.0, %v560
        %v569 = vsub.f32 1.0, %v561
        %v570 = vsub.f32 1.0, %v562
        %v571 = vsub.f32 1.0, %v563
        %vm572 = vcmp.ge.f32.partialorder %v404, 0.0
        %vm573 = vcmp.ge.f32.partialorder %v405, 0.0
        %vm574 = vcmp.ge.f32.partialorder %v406, 0.0
        %vm575 = vcmp.ge.f32.partialorder %v407, 0.0
        %vm576 = vcmp.ge.f32.partialorder %v408, 0.0
        %vm577 = vcmp.ge.f32.partialorder %v409, 0.0
        %vm578 = vcmp.ge.f32.partialorder %v410, 0.0
        %vm579 = vcmp.ge.f32.partialorder %v411, 0.0
        %v580 = vsub.f32 0.0, %v564
        %v581 = vsub.f32 0.0, %v565
        %v582 = vsub.f32 0.0, %v566
        %v583 = vsub.f32 0.0, %v567
        %v584 = vsub.f32 0.0, %v568
        %v585 = vsub.f32 0.0, %v569
        %v586 = vsub.f32 0.0, %v570
        %v587 = vsub.f32 0.0, %v571
        %v588 = vsel %vm572, %v564, %v580
        %v589 = vsel %vm573, %v565, %v581
        %v590 = vsel %vm574, %v566, %v582
        %v591 = vsel %vm575, %v567, %v583
        %v592 = vsel %vm576, %v568, %v584
        %v593 = vsel %vm577, %v569, %v585
        %v594 = vsel %vm578, %v570, %v586
        %v595 = vsel %vm579, %v571, %v587
        %v596 = vmul.f32 %v382, 0.5
        %v597 = vmul.f32 %v384, 0.5
        %v598 = vmul.f32 %v388, 0.5
        %v599 = vmul.f32 %v390, 0.5
        %v600 = vmul.f32 %v394, 0.5
        %v601 = vmul.f32 %v396, 0.5
        %v602 = vmul.f32 %v400, 0.5
        %v603 = vmul.f32 %v402, 0.5
        %v604 = vadd.f32 %v588, 1.0
        %v605 = vadd.f32 %v589, 1.0
        %v606 = vadd.f32 %v590, 1.0
        %v607 = vadd.f32 %v591, 1.0
        %v608 = vadd.f32 %v592, 1.0
        %v609 = vadd.f32 %v593, 1.0
        %v610 = vadd.f32 %v594, 1.0
        %v611 = vadd.f32 %v595, 1.0
        %v612 = vmul.f32 %v596, %v604
        %v613 = vmul.f32 %v597, %v605
        %v614 = vmul.f32 %v598, %v606
        %v615 = vmul.f32 %v599, %v607
        %v616 = vmul.f32 %v600, %v608
        %v617 = vmul.f32 %v601, %v609
        %v618 = vmul.f32 %v602, %v610
        %v619 = vmul.f32 %v603, %v611
        %620 = vst [vmem:[#allocation2 + $0x8] sm:$0xff] %v612
        %621 = vst [vmem:[#allocation2 + $0x10] sm:$0xff] %v613
        %622 = vst [vmem:[#allocation2 + $0x28] sm:$0xff] %v614
        %623 = vst [vmem:[#allocation2 + $0x30] sm:$0xff] %v615
        %624 = vst [vmem:[#allocation2 + $0x48] sm:$0xff] %v616
        %625 = vst [vmem:[#allocation2 + $0x50] sm:$0xff] %v617
        %626 = vst [vmem:[#allocation2 + $0x68] sm:$0xff] %v618
        %627 = vst [vmem:[#allocation2 + $0x70] sm:$0xff] %v619
        %v628 = vld [vmem:[#allocation2] sm:$0xff]
        %v629 = vld [vmem:[#allocation2 + $0x8] sm:$0xff]
        %v630 = vld [vmem:[#allocation2 + $0x10] sm:$0xff]
        %v631 = vld [vmem:[#allocation2 + $0x20] sm:$0xff]
        %v632 = vld [vmem:[#allocation2 + $0x28] sm:$0xff]
        %v633 = vld [vmem:[#allocation2 + $0x30] sm:$0xff]
        %v634 = vld [vmem:[#allocation2 + $0x40] sm:$0xff]
        %v635 = vld [vmem:[#allocation2 + $0x48] sm:$0xff]
        %v636 = vld [vmem:[#allocation2 + $0x50] sm:$0xff]
        %v637 = vld [vmem:[#allocation2 + $0x60] sm:$0xff]
        %v638 = vld [vmem:[#allocation2 + $0x68] sm:$0xff]
        %v639 = vld [vmem:[#allocation2 + $0x70] sm:$0xff]
        %v640 = vld [vmem:[%s1] sm:$0xff]
        %v641 = vld [vmem:[%s1 + $0x8] sm:$0xff]
        %v642 = vld [vmem:[%s1 + $0x10] sm:$0xff]
        %v643 = vld [vmem:[%s1 + $0x18] sm:$0xff]
        %645 = vset.pattern.permute.xlu0 0
        %646 = vperm.xlu0 %645, %v640
        %v647 = vpop.permute.xlu0 %646
        %650 = vset.pattern.permute.xlu0 0
        %651 = vperm.xlu0 %650, %v641
        %v652 = vpop.permute.xlu0 %651
        %655 = vset.pattern.permute.xlu0 0
        %656 = vperm.xlu0 %655, %v642
        %v657 = vpop.permute.xlu0 %656
        %660 = vset.pattern.permute.xlu0 0
        %661 = vperm.xlu0 %660, %v643
        %v662 = vpop.permute.xlu0 %661
        %v664 = vmul.f32 %v628, %v647
        %v665 = vmul.f32 %v629, %v647
        %v666 = vmul.f32 %v630, %v647
        %v667 = vmul.f32 %v631, %v652
        %v668 = vmul.f32 %v632, %v652
        %v669 = vmul.f32 %v633, %v652
        %v670 = vmul.f32 %v634, %v657
        %v671 = vmul.f32 %v635, %v657
        %v672 = vmul.f32 %v636, %v657
        %v673 = vmul.f32 %v637, %v662
        %v674 = vmul.f32 %v638, %v662
        %v675 = vmul.f32 %v639, %v662
        %676 = vset.pattern.permute.xlu0 5
        %677 = vperm.xlu0 %676, %v640
        %v678 = vpop.permute.xlu0 %677
        %680 = vset.pattern.permute.xlu0 5
        %681 = vperm.xlu0 %680, %v641
        %v682 = vpop.permute.xlu0 %681
        %684 = vset.pattern.permute.xlu0 5
        %685 = vperm.xlu0 %684, %v642
        %v686 = vpop.permute.xlu0 %685
        %688 = vset.pattern.permute.xlu0 5
        %689 = vperm.xlu0 %688, %v643
        %v690 = vpop.permute.xlu0 %689
        %v692 = vmul.f32 %v628, %v678
        %v693 = vmul.f32 %v629, %v678
        %v694 = vmul.f32 %v630, %v678
        %v695 = vmul.f32 %v631, %v682
        %v696 = vmul.f32 %v632, %v682
        %v697 = vmul.f32 %v633, %v682
        %v698 = vmul.f32 %v634, %v686
        %v699 = vmul.f32 %v635, %v686
        %v700 = vmul.f32 %v636, %v686
        %v701 = vmul.f32 %v637, %v690
        %v702 = vmul.f32 %v638, %v690
        %v703 = vmul.f32 %v639, %v690
        %716 = vrot.lane.b32.xlu0 %v692, 112
        %v717 = vpop.permute.xlu0 %716
        %718 = vrot.lane.b32.xlu0 %v693, 112
        %v719 = vpop.permute.xlu0 %718
        %720 = vrot.lane.b32.xlu0 %v694, 112
        %v721 = vpop.permute.xlu0 %720
        %722 = vrot.lane.b32.xlu0 %v695, 112
        %v723 = vpop.permute.xlu0 %722
        %724 = vrot.lane.b32.xlu0 %v696, 112
        %v725 = vpop.permute.xlu0 %724
        %726 = vrot.lane.b32.xlu0 %v697, 112
        %v727 = vpop.permute.xlu0 %726
        %728 = vrot.lane.b32.xlu0 %v698, 112
        %v729 = vpop.permute.xlu0 %728
        %730 = vrot.lane.b32.xlu0 %v699, 112
        %v731 = vpop.permute.xlu0 %730
        %732 = vrot.lane.b32.xlu0 %v700, 112
        %v733 = vpop.permute.xlu0 %732
        %734 = vrot.lane.b32.xlu0 %v701, 112
        %v735 = vpop.permute.xlu0 %734
        %736 = vrot.lane.b32.xlu0 %v702, 112
        %v737 = vpop.permute.xlu0 %736
        %738 = vrot.lane.b32.xlu0 %v703, 112
        %v739 = vpop.permute.xlu0 %738
        %vm740 = vcmask 916480
        %v741 = vsel %vm740, %v717, %v719
        %v742 = vsel %vm740, %v719, %v721
        %v743 = vsel %vm740, %v723, %v725
        %v744 = vsel %vm740, %v725, %v727
        %v745 = vsel %vm740, %v729, %v731
        %v746 = vsel %vm740, %v731, %v733
        %v747 = vsel %vm740, %v735, %v737
        %v748 = vsel %vm740, %v737, %v739
        %v761 = vadd.f32 %v664, %v741
        %v762 = vadd.f32 %v665, %v742
        %v763 = vadd.f32 %v666, %v721
        %v764 = vadd.f32 %v667, %v743
        %v765 = vadd.f32 %v668, %v744
        %v766 = vadd.f32 %v669, %v727
        %v767 = vadd.f32 %v670, %v745
        %v768 = vadd.f32 %v671, %v746
        %v769 = vadd.f32 %v672, %v733
        %v770 = vadd.f32 %v673, %v747
        %v771 = vadd.f32 %v674, %v748
        %v772 = vadd.f32 %v675, %v739
        %773 = vset.pattern.permute.xlu0 10
        %774 = vperm.xlu0 %773, %v640
        %v775 = vpop.permute.xlu0 %774
        %777 = vset.pattern.permute.xlu0 10
        %778 = vperm.xlu0 %777, %v641
        %v779 = vpop.permute.xlu0 %778
        %781 = vset.pattern.permute.xlu0 10
        %782 = vperm.xlu0 %781, %v642
        %v783 = vpop.permute.xlu0 %782
        %785 = vset.pattern.permute.xlu0 10
        %786 = vperm.xlu0 %785, %v643
        %v787 = vpop.permute.xlu0 %786
        %v789 = vmul.f32 %v628, %v775
        %v790 = vmul.f32 %v629, %v775
        %v791 = vmul.f32 %v630, %v775
        %v792 = vmul.f32 %v631, %v779
        %v793 = vmul.f32 %v632, %v779
        %v794 = vmul.f32 %v633, %v779
        %v795 = vmul.f32 %v634, %v783
        %v796 = vmul.f32 %v635, %v783
        %v797 = vmul.f32 %v636, %v783
        %v798 = vmul.f32 %v637, %v787
        %v799 = vmul.f32 %v638, %v787
        %v800 = vmul.f32 %v639, %v787
        %813 = vrot.lane.b32.xlu0 %v789, 96
        %v814 = vpop.permute.xlu0 %813
        %815 = vrot.lane.b32.xlu0 %v790, 96
        %v816 = vpop.permute.xlu0 %815
        %817 = vrot.lane.b32.xlu0 %v791, 96
        %v818 = vpop.permute.xlu0 %817
        %819 = vrot.lane.b32.xlu0 %v792, 96
        %v820 = vpop.permute.xlu0 %819
        %821 = vrot.lane.b32.xlu0 %v793, 96
        %v822 = vpop.permute.xlu0 %821
        %823 = vrot.lane.b32.xlu0 %v794, 96
        %v824 = vpop.permute.xlu0 %823
        %825 = vrot.lane.b32.xlu0 %v795, 96
        %v826 = vpop.permute.xlu0 %825
        %827 = vrot.lane.b32.xlu0 %v796, 96
        %v828 = vpop.permute.xlu0 %827
        %829 = vrot.lane.b32.xlu0 %v797, 96
        %v830 = vpop.permute.xlu0 %829
        %831 = vrot.lane.b32.xlu0 %v798, 96
        %v832 = vpop.permute.xlu0 %831
        %833 = vrot.lane.b32.xlu0 %v799, 96
        %v834 = vpop.permute.xlu0 %833
        %835 = vrot.lane.b32.xlu0 %v800, 96
        %v836 = vpop.permute.xlu0 %835
        %vm837 = vcmask 785408
        %v838 = vsel %vm837, %v814, %v816
        %v839 = vsel %vm837, %v816, %v818
        %v840 = vsel %vm837, %v820, %v822
        %v841 = vsel %vm837, %v822, %v824
        %v842 = vsel %vm837, %v826, %v828
        %v843 = vsel %vm837, %v828, %v830
        %v844 = vsel %vm837, %v832, %v834
        %v845 = vsel %vm837, %v834, %v836
        %v858 = vadd.f32 %v761, %v838
        %v859 = vadd.f32 %v762, %v839
        %v860 = vadd.f32 %v763, %v818
        %v861 = vadd.f32 %v764, %v840
        %v862 = vadd.f32 %v765, %v841
        %v863 = vadd.f32 %v766, %v824
        %v864 = vadd.f32 %v767, %v842
        %v865 = vadd.f32 %v768, %v843
        %v866 = vadd.f32 %v769, %v830
        %v867 = vadd.f32 %v770, %v844
        %v868 = vadd.f32 %v771, %v845
        %v869 = vadd.f32 %v772, %v836
        %v870 = vld [vmem:[#allocation2 + $0x8] sm:$0xff]
        %v871 = vld [vmem:[#allocation2 + $0x10] sm:$0xff]
        %v872 = vld [vmem:[#allocation2 + $0x18] sm:$0xff]
        %v873 = vld [vmem:[#allocation2 + $0x28] sm:$0xff]
        %v874 = vld [vmem:[#allocation2 + $0x30] sm:$0xff]
        %v875 = vld [vmem:[#allocation2 + $0x38] sm:$0xff]
        %v876 = vld [vmem:[#allocation2 + $0x48] sm:$0xff]
        %v877 = vld [vmem:[#allocation2 + $0x50] sm:$0xff]
        %v878 = vld [vmem:[#allocation2 + $0x58] sm:$0xff]
        %v879 = vld [vmem:[#allocation2 + $0x68] sm:$0xff]
        %v880 = vld [vmem:[#allocation2 + $0x70] sm:$0xff]
        %v881 = vld [vmem:[#allocation2 + $0x78] sm:$0xff]
        %882 = vset.pattern.permute.xlu0 15
        %883 = vperm.xlu0 %882, %v640
        %v884 = vpop.permute.xlu0 %883
        %886 = vset.pattern.permute.xlu0 15
        %887 = vperm.xlu0 %886, %v641
        %v888 = vpop.permute.xlu0 %887
        %890 = vset.pattern.permute.xlu0 15
        %891 = vperm.xlu0 %890, %v642
        %v892 = vpop.permute.xlu0 %891
        %894 = vset.pattern.permute.xlu0 15
        %895 = vperm.xlu0 %894, %v643
        %v896 = vpop.permute.xlu0 %895
        %v898 = vmul.f32 %v870, %v884
        %v899 = vmul.f32 %v871, %v884
        %v900 = vmul.f32 %v872, %v884
        %v901 = vmul.f32 %v873, %v888
        %v902 = vmul.f32 %v874, %v888
        %v903 = vmul.f32 %v875, %v888
        %v904 = vmul.f32 %v876, %v892
        %v905 = vmul.f32 %v877, %v892
        %v906 = vmul.f32 %v878, %v892
        %v907 = vmul.f32 %v879, %v896
        %v908 = vmul.f32 %v880, %v896
        %v909 = vmul.f32 %v881, %v896
        %922 = vrot.lane.b32.xlu0 %v898, 80
        %v923 = vpop.permute.xlu0 %922
        %924 = vrot.lane.b32.xlu0 %v899, 80
        %v925 = vpop.permute.xlu0 %924
        %926 = vrot.lane.b32.xlu0 %v900, 80
        %v927 = vpop.permute.xlu0 %926
        %928 = vrot.lane.b32.xlu0 %v901, 80
        %v929 = vpop.permute.xlu0 %928
        %930 = vrot.lane.b32.xlu0 %v902, 80
        %v931 = vpop.permute.xlu0 %930
        %932 = vrot.lane.b32.xlu0 %v903, 80
        %v933 = vpop.permute.xlu0 %932
        %934 = vrot.lane.b32.xlu0 %v904, 80
        %v935 = vpop.permute.xlu0 %934
        %936 = vrot.lane.b32.xlu0 %v905, 80
        %v937 = vpop.permute.xlu0 %936
        %938 = vrot.lane.b32.xlu0 %v906, 80
        %v939 = vpop.permute.xlu0 %938
        %940 = vrot.lane.b32.xlu0 %v907, 80
        %v941 = vpop.permute.xlu0 %940
        %942 = vrot.lane.b32.xlu0 %v908, 80
        %v943 = vpop.permute.xlu0 %942
        %944 = vrot.lane.b32.xlu0 %v909, 80
        %v945 = vpop.permute.xlu0 %944
        %vm946 = vcmask 654336
        %v947 = vsel %vm946, %v923, %v925
        %v948 = vsel %vm946, %v925, %v927
        %v949 = vsel %vm946, %v929, %v931
        %v950 = vsel %vm946, %v931, %v933
        %v951 = vsel %vm946, %v935, %v937
        %v952 = vsel %vm946, %v937, %v939
        %v953 = vsel %vm946, %v941, %v943
        %v954 = vsel %vm946, %v943, %v945
        %v967 = vadd.f32 %v858, %v923
        %v968 = vadd.f32 %v859, %v947
        %v969 = vadd.f32 %v860, %v948
        %v970 = vadd.f32 %v861, %v929
        %v971 = vadd.f32 %v862, %v949
        %v972 = vadd.f32 %v863, %v950
        %v973 = vadd.f32 %v864, %v935
        %v974 = vadd.f32 %v865, %v951
        %v975 = vadd.f32 %v866, %v952
        %v976 = vadd.f32 %v867, %v941
        %v977 = vadd.f32 %v868, %v953
        %v978 = vadd.f32 %v869, %v954
        %979 = vset.pattern.permute.xlu0 20
        %980 = vperm.xlu0 %979, %v640
        %v981 = vpop.permute.xlu0 %980
        %983 = vset.pattern.permute.xlu0 20
        %984 = vperm.xlu0 %983, %v641
        %v985 = vpop.permute.xlu0 %984
        %987 = vset.pattern.permute.xlu0 20
        %988 = vperm.xlu0 %987, %v642
        %v989 = vpop.permute.xlu0 %988
        %991 = vset.pattern.permute.xlu0 20
        %992 = vperm.xlu0 %991, %v643
        %v993 = vpop.permute.xlu0 %992
        %v995 = vmul.f32 %v870, %v981
        %v996 = vmul.f32 %v871, %v981
        %v997 = vmul.f32 %v872, %v981
        %v998 = vmul.f32 %v873, %v985
        %v999 = vmul.f32 %v874, %v985
        %v1000 = vmul.f32 %v875, %v985
        %v1001 = vmul.f32 %v876, %v989
        %v1002 = vmul.f32 %v877, %v989
        %v1003 = vmul.f32 %v878, %v989
        %v1004 = vmul.f32 %v879, %v993
        %v1005 = vmul.f32 %v880, %v993
        %v1006 = vmul.f32 %v881, %v993
        %1019 = vrot.lane.b32.xlu0 %v995, 64
        %v1020 = vpop.permute.xlu0 %1019
        %1021 = vrot.lane.b32.xlu0 %v996, 64
        %v1022 = vpop.permute.xlu0 %1021
        %1023 = vrot.lane.b32.xlu0 %v997, 64
        %v1024 = vpop.permute.xlu0 %1023
        %1025 = vrot.lane.b32.xlu0 %v998, 64
        %v1026 = vpop.permute.xlu0 %1025
        %1027 = vrot.lane.b32.xlu0 %v999, 64
        %v1028 = vpop.permute.xlu0 %1027
        %1029 = vrot.lane.b32.xlu0 %v1000, 64
        %v1030 = vpop.permute.xlu0 %1029
        %1031 = vrot.lane.b32.xlu0 %v1001, 64
        %v1032 = vpop.permute.xlu0 %1031
        %1033 = vrot.lane.b32.xlu0 %v1002, 64
        %v1034 = vpop.permute.xlu0 %1033
        %1035 = vrot.lane.b32.xlu0 %v1003, 64
        %v1036 = vpop.permute.xlu0 %1035
        %1037 = vrot.lane.b32.xlu0 %v1004, 64
        %v1038 = vpop.permute.xlu0 %1037
        %1039 = vrot.lane.b32.xlu0 %v1005, 64
        %v1040 = vpop.permute.xlu0 %1039
        %1041 = vrot.lane.b32.xlu0 %v1006, 64
        %v1042 = vpop.permute.xlu0 %1041
        %vm1043 = vcmask 523264
        %v1044 = vsel %vm1043, %v1020, %v1022
        %v1045 = vsel %vm1043, %v1022, %v1024
        %v1046 = vsel %vm1043, %v1026, %v1028
        %v1047 = vsel %vm1043, %v1028, %v1030
        %v1048 = vsel %vm1043, %v1032, %v1034
        %v1049 = vsel %vm1043, %v1034, %v1036
        %v1050 = vsel %vm1043, %v1038, %v1040
        %v1051 = vsel %vm1043, %v1040, %v1042
        %v1064 = vadd.f32 %v967, %v1020
        %v1065 = vadd.f32 %v968, %v1044
        %v1066 = vadd.f32 %v969, %v1045
        %v1067 = vadd.f32 %v970, %v1026
        %v1068 = vadd.f32 %v971, %v1046
        %v1069 = vadd.f32 %v972, %v1047
        %v1070 = vadd.f32 %v973, %v1032
        %v1071 = vadd.f32 %v974, %v1048
        %v1072 = vadd.f32 %v975, %v1049
        %v1073 = vadd.f32 %v976, %v1038
        %v1074 = vadd.f32 %v977, %v1050
        %v1075 = vadd.f32 %v978, %v1051
        %s1076 = scalar_lea.vmem %s2, 2
        %v1077 = vld [vmem:[%s1076] sm:$0x3]
        %v1079 = vlaneseq
        %v1080 = vshrl.u32 %v1079, 7
        %v1081 = vsub.s32 0, %v1080
        %v1082 = vrot.slane %v1077, %v1081
        %v1083 = vlaneseq
        %v1084 = vshrl.u32 %v1083, 7
        %v1085 = vsub.s32 1, %v1084
        %v1086 = vrot.slane %v1077, %v1085
        %1087 = vrot.lane.b32.xlu0 %v1082, 94
        %v1088 = vpop.permute.xlu0 %1087
        %1089 = vrot.lane.b32.xlu0 %v1086, 94
        %v1090 = vpop.permute.xlu0 %1089
        %vm1091 = vcmask 769024
        %v1092 = vsel %vm1091, %v1088, %v1090
        %v1096 = vmul.f32 %v1064, %v1088
        %v1097 = vmul.f32 %v1065, %v1092
        %v1098 = vmul.f32 %v1066, %v1090
        %v1099 = vmul.f32 %v1067, %v1088
        %v1100 = vmul.f32 %v1068, %v1092
        %v1101 = vmul.f32 %v1069, %v1090
        %v1102 = vmul.f32 %v1070, %v1088
        %v1103 = vmul.f32 %v1071, %v1092
        %v1104 = vmul.f32 %v1072, %v1090
        %v1105 = vmul.f32 %v1073, %v1088
        %v1106 = vmul.f32 %v1074, %v1092
        %v1107 = vmul.f32 %v1075, %v1090
        %1108 = vset.pattern.permute.xlu0 1
        %1109 = vperm.xlu0 %1108, %v640
        %v1110 = vpop.permute.xlu0 %1109
        %1112 = vset.pattern.permute.xlu0 1
        %1113 = vperm.xlu0 %1112, %v641
        %v1114 = vpop.permute.xlu0 %1113
        %1116 = vset.pattern.permute.xlu0 1
        %1117 = vperm.xlu0 %1116, %v642
        %v1118 = vpop.permute.xlu0 %1117
        %1120 = vset.pattern.permute.xlu0 1
        %1121 = vperm.xlu0 %1120, %v643
        %v1122 = vpop.permute.xlu0 %1121
        %v1124 = vmul.f32 %v628, %v1110
        %v1125 = vmul.f32 %v629, %v1110
        %v1126 = vmul.f32 %v630, %v1110
        %v1127 = vmul.f32 %v631, %v1114
        %v1128 = vmul.f32 %v632, %v1114
        %v1129 = vmul.f32 %v633, %v1114
        %v1130 = vmul.f32 %v634, %v1118
        %v1131 = vmul.f32 %v635, %v1118
        %v1132 = vmul.f32 %v636, %v1118
        %v1133 = vmul.f32 %v637, %v1122
        %v1134 = vmul.f32 %v638, %v1122
        %v1135 = vmul.f32 %v639, %v1122
        %1136 = vset.pattern.permute.xlu0 6
        %1137 = vperm.xlu0 %1136, %v640
        %v1138 = vpop.permute.xlu0 %1137
        %1140 = vset.pattern.permute.xlu0 6
        %1141 = vperm.xlu0 %1140, %v641
        %v1142 = vpop.permute.xlu0 %1141
        %1144 = vset.pattern.permute.xlu0 6
        %1145 = vperm.xlu0 %1144, %v642
        %v1146 = vpop.permute.xlu0 %1145
        %1148 = vset.pattern.permute.xlu0 6
        %1149 = vperm.xlu0 %1148, %v643
        %v1150 = vpop.permute.xlu0 %1149
        %v1152 = vmul.f32 %v628, %v1138
        %v1153 = vmul.f32 %v629, %v1138
        %v1154 = vmul.f32 %v630, %v1138
        %v1155 = vmul.f32 %v631, %v1142
        %v1156 = vmul.f32 %v632, %v1142
        %v1157 = vmul.f32 %v633, %v1142
        %v1158 = vmul.f32 %v634, %v1146
        %v1159 = vmul.f32 %v635, %v1146
        %v1160 = vmul.f32 %v636, %v1146
        %v1161 = vmul.f32 %v637, %v1150
        %v1162 = vmul.f32 %v638, %v1150
        %v1163 = vmul.f32 %v639, %v1150
        %1176 = vrot.lane.b32.xlu0 %v1152, 112
        %v1177 = vpop.permute.xlu0 %1176
        %1178 = vrot.lane.b32.xlu0 %v1153, 112
        %v1179 = vpop.permute.xlu0 %1178
        %1180 = vrot.lane.b32.xlu0 %v1154, 112
        %v1181 = vpop.permute.xlu0 %1180
        %1182 = vrot.lane.b32.xlu0 %v1155, 112
        %v1183 = vpop.permute.xlu0 %1182
        %1184 = vrot.lane.b32.xlu0 %v1156, 112
        %v1185 = vpop.permute.xlu0 %1184
        %1186 = vrot.lane.b32.xlu0 %v1157, 112
        %v1187 = vpop.permute.xlu0 %1186
        %1188 = vrot.lane.b32.xlu0 %v1158, 112
        %v1189 = vpop.permute.xlu0 %1188
        %1190 = vrot.lane.b32.xlu0 %v1159, 112
        %v1191 = vpop.permute.xlu0 %1190
        %1192 = vrot.lane.b32.xlu0 %v1160, 112
        %v1193 = vpop.permute.xlu0 %1192
        %1194 = vrot.lane.b32.xlu0 %v1161, 112
        %v1195 = vpop.permute.xlu0 %1194
        %1196 = vrot.lane.b32.xlu0 %v1162, 112
        %v1197 = vpop.permute.xlu0 %1196
        %1198 = vrot.lane.b32.xlu0 %v1163, 112
        %v1199 = vpop.permute.xlu0 %1198
        %v1200 = vsel %vm740, %v1177, %v1179
        %v1201 = vsel %vm740, %v1179, %v1181
        %v1202 = vsel %vm740, %v1183, %v1185
        %v1203 = vsel %vm740, %v1185, %v1187
        %v1204 = vsel %vm740, %v1189, %v1191
        %v1205 = vsel %vm740, %v1191, %v1193
        %v1206 = vsel %vm740, %v1195, %v1197
        %v1207 = vsel %vm740, %v1197, %v1199
        %v1220 = vadd.f32 %v1124, %v1200
        %v1221 = vadd.f32 %v1125, %v1201
        %v1222 = vadd.f32 %v1126, %v1181
        %v1223 = vadd.f32 %v1127, %v1202
        %v1224 = vadd.f32 %v1128, %v1203
        %v1225 = vadd.f32 %v1129, %v1187
        %v1226 = vadd.f32 %v1130, %v1204
        %v1227 = vadd.f32 %v1131, %v1205
        %v1228 = vadd.f32 %v1132, %v1193
        %v1229 = vadd.f32 %v1133, %v1206
        %v1230 = vadd.f32 %v1134, %v1207
        %v1231 = vadd.f32 %v1135, %v1199
        %1232 = vset.pattern.permute.xlu0 11
        %1233 = vperm.xlu0 %1232, %v640
        %v1234 = vpop.permute.xlu0 %1233
        %1236 = vset.pattern.permute.xlu0 11
        %1237 = vperm.xlu0 %1236, %v641
        %v1238 = vpop.permute.xlu0 %1237
        %1240 = vset.pattern.permute.xlu0 11
        %1241 = vperm.xlu0 %1240, %v642
        %v1242 = vpop.permute.xlu0 %1241
        %1244 = vset.pattern.permute.xlu0 11
        %1245 = vperm.xlu0 %1244, %v643
        %v1246 = vpop.permute.xlu0 %1245
        %v1248 = vmul.f32 %v628, %v1234
        %v1249 = vmul.f32 %v629, %v1234
        %v1250 = vmul.f32 %v630, %v1234
        %v1251 = vmul.f32 %v631, %v1238
        %v1252 = vmul.f32 %v632, %v1238
        %v1253 = vmul.f32 %v633, %v1238
        %v1254 = vmul.f32 %v634, %v1242
        %v1255 = vmul.f32 %v635, %v1242
        %v1256 = vmul.f32 %v636, %v1242
        %v1257 = vmul.f32 %v637, %v1246
        %v1258 = vmul.f32 %v638, %v1246
        %v1259 = vmul.f32 %v639, %v1246
        %1272 = vrot.lane.b32.xlu0 %v1248, 96
        %v1273 = vpop.permute.xlu0 %1272
        %1274 = vrot.lane.b32.xlu0 %v1249, 96
        %v1275 = vpop.permute.xlu0 %1274
        %1276 = vrot.lane.b32.xlu0 %v1250, 96
        %v1277 = vpop.permute.xlu0 %1276
        %1278 = vrot.lane.b32.xlu0 %v1251, 96
        %v1279 = vpop.permute.xlu0 %1278
        %1280 = vrot.lane.b32.xlu0 %v1252, 96
        %v1281 = vpop.permute.xlu0 %1280
        %1282 = vrot.lane.b32.xlu0 %v1253, 96
        %v1283 = vpop.permute.xlu0 %1282
        %1284 = vrot.lane.b32.xlu0 %v1254, 96
        %v1285 = vpop.permute.xlu0 %1284
        %1286 = vrot.lane.b32.xlu0 %v1255, 96
        %v1287 = vpop.permute.xlu0 %1286
        %1288 = vrot.lane.b32.xlu0 %v1256, 96
        %v1289 = vpop.permute.xlu0 %1288
        %1290 = vrot.lane.b32.xlu0 %v1257, 96
        %v1291 = vpop.permute.xlu0 %1290
        %1292 = vrot.lane.b32.xlu0 %v1258, 96
        %v1293 = vpop.permute.xlu0 %1292
        %1294 = vrot.lane.b32.xlu0 %v1259, 96
        %v1295 = vpop.permute.xlu0 %1294
        %v1296 = vsel %vm837, %v1273, %v1275
        %v1297 = vsel %vm837, %v1275, %v1277
        %v1298 = vsel %vm837, %v1279, %v1281
        %v1299 = vsel %vm837, %v1281, %v1283
        %v1300 = vsel %vm837, %v1285, %v1287
        %v1301 = vsel %vm837, %v1287, %v1289
        %v1302 = vsel %vm837, %v1291, %v1293
        %v1303 = vsel %vm837, %v1293, %v1295
        %v1316 = vadd.f32 %v1220, %v1296
        %v1317 = vadd.f32 %v1221, %v1297
        %v1318 = vadd.f32 %v1222, %v1277
        %v1319 = vadd.f32 %v1223, %v1298
        %v1320 = vadd.f32 %v1224, %v1299
        %v1321 = vadd.f32 %v1225, %v1283
        %v1322 = vadd.f32 %v1226, %v1300
        %v1323 = vadd.f32 %v1227, %v1301
        %v1324 = vadd.f32 %v1228, %v1289
        %v1325 = vadd.f32 %v1229, %v1302
        %v1326 = vadd.f32 %v1230, %v1303
        %v1327 = vadd.f32 %v1231, %v1295
        %1328 = vset.pattern.permute.xlu0 16
        %1329 = vperm.xlu0 %1328, %v640
        %v1330 = vpop.permute.xlu0 %1329
        %1332 = vset.pattern.permute.xlu0 16
        %1333 = vperm.xlu0 %1332, %v641
        %v1334 = vpop.permute.xlu0 %1333
        %1336 = vset.pattern.permute.xlu0 16
        %1337 = vperm.xlu0 %1336, %v642
        %v1338 = vpop.permute.xlu0 %1337
        %1340 = vset.pattern.permute.xlu0 16
        %1341 = vperm.xlu0 %1340, %v643
        %v1342 = vpop.permute.xlu0 %1341
        %v1344 = vmul.f32 %v870, %v1330
        %v1345 = vmul.f32 %v871, %v1330
        %v1346 = vmul.f32 %v872, %v1330
        %v1347 = vmul.f32 %v873, %v1334
        %v1348 = vmul.f32 %v874, %v1334
        %v1349 = vmul.f32 %v875, %v1334
        %v1350 = vmul.f32 %v876, %v1338
        %v1351 = vmul.f32 %v877, %v1338
        %v1352 = vmul.f32 %v878, %v1338
        %v1353 = vmul.f32 %v879, %v1342
        %v1354 = vmul.f32 %v880, %v1342
        %v1355 = vmul.f32 %v881, %v1342
        %1368 = vrot.lane.b32.xlu0 %v1344, 80
        %v1369 = vpop.permute.xlu0 %1368
        %1370 = vrot.lane.b32.xlu0 %v1345, 80
        %v1371 = vpop.permute.xlu0 %1370
        %1372 = vrot.lane.b32.xlu0 %v1346, 80
        %v1373 = vpop.permute.xlu0 %1372
        %1374 = vrot.lane.b32.xlu0 %v1347, 80
        %v1375 = vpop.permute.xlu0 %1374
        %1376 = vrot.lane.b32.xlu0 %v1348, 80
        %v1377 = vpop.permute.xlu0 %1376
        %1378 = vrot.lane.b32.xlu0 %v1349, 80
        %v1379 = vpop.permute.xlu0 %1378
        %1380 = vrot.lane.b32.xlu0 %v1350, 80
        %v1381 = vpop.permute.xlu0 %1380
        %1382 = vrot.lane.b32.xlu0 %v1351, 80
        %v1383 = vpop.permute.xlu0 %1382
        %1384 = vrot.lane.b32.xlu0 %v1352, 80
        %v1385 = vpop.permute.xlu0 %1384
        %1386 = vrot.lane.b32.xlu0 %v1353, 80
        %v1387 = vpop.permute.xlu0 %1386
        %1388 = vrot.lane.b32.xlu0 %v1354, 80
        %v1389 = vpop.permute.xlu0 %1388
        %1390 = vrot.lane.b32.xlu0 %v1355, 80
        %v1391 = vpop.permute.xlu0 %1390
        %v1392 = vsel %vm946, %v1369, %v1371
        %v1393 = vsel %vm946, %v1371, %v1373
        %v1394 = vsel %vm946, %v1375, %v1377
        %v1395 = vsel %vm946, %v1377, %v1379
        %v1396 = vsel %vm946, %v1381, %v1383
        %v1397 = vsel %vm946, %v1383, %v1385
        %v1398 = vsel %vm946, %v1387, %v1389
        %v1399 = vsel %vm946, %v1389, %v1391
        %v1412 = vadd.f32 %v1316, %v1369
        %v1413 = vadd.f32 %v1317, %v1392
        %v1414 = vadd.f32 %v1318, %v1393
        %v1415 = vadd.f32 %v1319, %v1375
        %v1416 = vadd.f32 %v1320, %v1394
        %v1417 = vadd.f32 %v1321, %v1395
        %v1418 = vadd.f32 %v1322, %v1381
        %v1419 = vadd.f32 %v1323, %v1396
        %v1420 = vadd.f32 %v1324, %v1397
        %v1421 = vadd.f32 %v1325, %v1387
        %v1422 = vadd.f32 %v1326, %v1398
        %v1423 = vadd.f32 %v1327, %v1399
        %1424 = vset.pattern.permute.xlu0 21
        %1425 = vperm.xlu0 %1424, %v640
        %v1426 = vpop.permute.xlu0 %1425
        %1428 = vset.pattern.permute.xlu0 21
        %1429 = vperm.xlu0 %1428, %v641
        %v1430 = vpop.permute.xlu0 %1429
        %1432 = vset.pattern.permute.xlu0 21
        %1433 = vperm.xlu0 %1432, %v642
        %v1434 = vpop.permute.xlu0 %1433
        %1436 = vset.pattern.permute.xlu0 21
        %1437 = vperm.xlu0 %1436, %v643
        %v1438 = vpop.permute.xlu0 %1437
        %v1440 = vmul.f32 %v870, %v1426
        %v1441 = vmul.f32 %v871, %v1426
        %v1442 = vmul.f32 %v872, %v1426
        %v1443 = vmul.f32 %v873, %v1430
        %v1444 = vmul.f32 %v874, %v1430
        %v1445 = vmul.f32 %v875, %v1430
        %v1446 = vmul.f32 %v876, %v1434
        %v1447 = vmul.f32 %v877, %v1434
        %v1448 = vmul.f32 %v878, %v1434
        %v1449 = vmul.f32 %v879, %v1438
        %v1450 = vmul.f32 %v880, %v1438
        %v1451 = vmul.f32 %v881, %v1438
        %1464 = vrot.lane.b32.xlu0 %v1440, 64
        %v1465 = vpop.permute.xlu0 %1464
        %1466 = vrot.lane.b32.xlu0 %v1441, 64
        %v1467 = vpop.permute.xlu0 %1466
        %1468 = vrot.lane.b32.xlu0 %v1442, 64
        %v1469 = vpop.permute.xlu0 %1468
        %1470 = vrot.lane.b32.xlu0 %v1443, 64
        %v1471 = vpop.permute.xlu0 %1470
        %1472 = vrot.lane.b32.xlu0 %v1444, 64
        %v1473 = vpop.permute.xlu0 %1472
        %1474 = vrot.lane.b32.xlu0 %v1445, 64
        %v1475 = vpop.permute.xlu0 %1474
        %1476 = vrot.lane.b32.xlu0 %v1446, 64
        %v1477 = vpop.permute.xlu0 %1476
        %1478 = vrot.lane.b32.xlu0 %v1447, 64
        %v1479 = vpop.permute.xlu0 %1478
        %1480 = vrot.lane.b32.xlu0 %v1448, 64
        %v1481 = vpop.permute.xlu0 %1480
        %1482 = vrot.lane.b32.xlu0 %v1449, 64
        %v1483 = vpop.permute.xlu0 %1482
        %1484 = vrot.lane.b32.xlu0 %v1450, 64
        %v1485 = vpop.permute.xlu0 %1484
        %1486 = vrot.lane.b32.xlu0 %v1451, 64
        %v1487 = vpop.permute.xlu0 %1486
        %v1488 = vsel %vm1043, %v1465, %v1467
        %v1489 = vsel %vm1043, %v1467, %v1469
        %v1490 = vsel %vm1043, %v1471, %v1473
        %v1491 = vsel %vm1043, %v1473, %v1475
        %v1492 = vsel %vm1043, %v1477, %v1479
        %v1493 = vsel %vm1043, %v1479, %v1481
        %v1494 = vsel %vm1043, %v1483, %v1485
        %v1495 = vsel %vm1043, %v1485, %v1487
        %v1508 = vadd.f32 %v1412, %v1465
        %v1509 = vadd.f32 %v1413, %v1488
        %v1510 = vadd.f32 %v1414, %v1489
        %v1511 = vadd.f32 %v1415, %v1471
        %v1512 = vadd.f32 %v1416, %v1490
        %v1513 = vadd.f32 %v1417, %v1491
        %v1514 = vadd.f32 %v1418, %v1477
        %v1515 = vadd.f32 %v1419, %v1492
        %v1516 = vadd.f32 %v1420, %v1493
        %v1517 = vadd.f32 %v1421, %v1483
        %v1518 = vadd.f32 %v1422, %v1494
        %v1519 = vadd.f32 %v1423, %v1495
        %s1520 = scalar_lea.vmem %s2, 4
        %v1521 = vld [vmem:[%s1520] sm:$0x3]
        %v1523 = vlaneseq
        %v1524 = vshrl.u32 %v1523, 7
        %v1525 = vsub.s32 0, %v1524
        %v1526 = vrot.slane %v1521, %v1525
        %v1527 = vlaneseq
        %v1528 = vshrl.u32 %v1527, 7
        %v1529 = vsub.s32 1, %v1528
        %v1530 = vrot.slane %v1521, %v1529
        %1531 = vrot.lane.b32.xlu0 %v1526, 95
        %v1532 = vpop.permute.xlu0 %1531
        %1533 = vrot.lane.b32.xlu0 %v1530, 95
        %v1534 = vpop.permute.xlu0 %1533
        %vm1535 = vcmask 777216
        %v1536 = vsel %vm1535, %v1532, %v1534
        %v1540 = vmul.f32 %v1508, %v1532
        %v1541 = vmul.f32 %v1509, %v1536
        %v1542 = vmul.f32 %v1510, %v1534
        %v1543 = vmul.f32 %v1511, %v1532
        %v1544 = vmul.f32 %v1512, %v1536
        %v1545 = vmul.f32 %v1513, %v1534
        %v1546 = vmul.f32 %v1514, %v1532
        %v1547 = vmul.f32 %v1515, %v1536
        %v1548 = vmul.f32 %v1516, %v1534
        %v1549 = vmul.f32 %v1517, %v1532
        %v1550 = vmul.f32 %v1518, %v1536
        %v1551 = vmul.f32 %v1519, %v1534
        %1564 = vrot.lane.b32.xlu0 %v1540, 127
        %v1565 = vpop.permute.xlu0 %1564
        %1566 = vrot.lane.b32.xlu0 %v1541, 127
        %v1567 = vpop.permute.xlu0 %1566
        %1568 = vrot.lane.b32.xlu0 %v1542, 127
        %v1569 = vpop.permute.xlu0 %1568
        %1570 = vrot.lane.b32.xlu0 %v1543, 127
        %v1571 = vpop.permute.xlu0 %1570
        %1572 = vrot.lane.b32.xlu0 %v1544, 127
        %v1573 = vpop.permute.xlu0 %1572
        %1574 = vrot.lane.b32.xlu0 %v1545, 127
        %v1575 = vpop.permute.xlu0 %1574
        %1576 = vrot.lane.b32.xlu0 %v1546, 127
        %v1577 = vpop.permute.xlu0 %1576
        %1578 = vrot.lane.b32.xlu0 %v1547, 127
        %v1579 = vpop.permute.xlu0 %1578
        %1580 = vrot.lane.b32.xlu0 %v1548, 127
        %v1581 = vpop.permute.xlu0 %1580
        %1582 = vrot.lane.b32.xlu0 %v1549, 127
        %v1583 = vpop.permute.xlu0 %1582
        %1584 = vrot.lane.b32.xlu0 %v1550, 127
        %v1585 = vpop.permute.xlu0 %1584
        %1586 = vrot.lane.b32.xlu0 %v1551, 127
        %v1587 = vpop.permute.xlu0 %1586
        %vm1588 = vcmask 1039360
        %v1589 = vsel %vm1588, %v1565, %v1567
        %v1590 = vsel %vm1588, %v1567, %v1569
        %v1591 = vsel %vm1588, %v1571, %v1573
        %v1592 = vsel %vm1588, %v1573, %v1575
        %v1593 = vsel %vm1588, %v1577, %v1579
        %v1594 = vsel %vm1588, %v1579, %v1581
        %v1595 = vsel %vm1588, %v1583, %v1585
        %v1596 = vsel %vm1588, %v1585, %v1587
        %v1609 = vadd.f32 %v1096, %v1589
        %v1610 = vadd.f32 %v1097, %v1590
        %v1611 = vadd.f32 %v1098, %v1569
        %v1612 = vadd.f32 %v1099, %v1591
        %v1613 = vadd.f32 %v1100, %v1592
        %v1614 = vadd.f32 %v1101, %v1575
        %v1615 = vadd.f32 %v1102, %v1593
        %v1616 = vadd.f32 %v1103, %v1594
        %v1617 = vadd.f32 %v1104, %v1581
        %v1618 = vadd.f32 %v1105, %v1595
        %v1619 = vadd.f32 %v1106, %v1596
        %v1620 = vadd.f32 %v1107, %v1587
        %1621 = vset.pattern.permute.xlu0 2
        %1622 = vperm.xlu0 %1621, %v640
        %v1623 = vpop.permute.xlu0 %1622
        %1625 = vset.pattern.permute.xlu0 2
        %1626 = vperm.xlu0 %1625, %v641
        %v1627 = vpop.permute.xlu0 %1626
        %1629 = vset.pattern.permute.xlu0 2
        %1630 = vperm.xlu0 %1629, %v642
        %v1631 = vpop.permute.xlu0 %1630
        %1633 = vset.pattern.permute.xlu0 2
        %1634 = vperm.xlu0 %1633, %v643
        %v1635 = vpop.permute.xlu0 %1634
        %v1637 = vmul.f32 %v628, %v1623
        %v1638 = vmul.f32 %v629, %v1623
        %v1639 = vmul.f32 %v630, %v1623
        %v1640 = vmul.f32 %v631, %v1627
        %v1641 = vmul.f32 %v632, %v1627
        %v1642 = vmul.f32 %v633, %v1627
        %v1643 = vmul.f32 %v634, %v1631
        %v1644 = vmul.f32 %v635, %v1631
        %v1645 = vmul.f32 %v636, %v1631
        %v1646 = vmul.f32 %v637, %v1635
        %v1647 = vmul.f32 %v638, %v1635
        %v1648 = vmul.f32 %v639, %v1635
        %1649 = vset.pattern.permute.xlu0 7
        %1650 = vperm.xlu0 %1649, %v640
        %v1651 = vpop.permute.xlu0 %1650
        %1653 = vset.pattern.permute.xlu0 7
        %1654 = vperm.xlu0 %1653, %v641
        %v1655 = vpop.permute.xlu0 %1654
        %1657 = vset.pattern.permute.xlu0 7
        %1658 = vperm.xlu0 %1657, %v642
        %v1659 = vpop.permute.xlu0 %1658
        %1661 = vset.pattern.permute.xlu0 7
        %1662 = vperm.xlu0 %1661, %v643
        %v1663 = vpop.permute.xlu0 %1662
        %v1665 = vmul.f32 %v628, %v1651
        %v1666 = vmul.f32 %v629, %v1651
        %v1667 = vmul.f32 %v630, %v1651
        %v1668 = vmul.f32 %v631, %v1655
        %v1669 = vmul.f32 %v632, %v1655
        %v1670 = vmul.f32 %v633, %v1655
        %v1671 = vmul.f32 %v634, %v1659
        %v1672 = vmul.f32 %v635, %v1659
        %v1673 = vmul.f32 %v636, %v1659
        %v1674 = vmul.f32 %v637, %v1663
        %v1675 = vmul.f32 %v638, %v1663
        %v1676 = vmul.f32 %v639, %v1663
        %1689 = vrot.lane.b32.xlu0 %v1665, 112
        %v1690 = vpop.permute.xlu0 %1689
        %1691 = vrot.lane.b32.xlu0 %v1666, 112
        %v1692 = vpop.permute.xlu0 %1691
        %1693 = vrot.lane.b32.xlu0 %v1667, 112
        %v1694 = vpop.permute.xlu0 %1693
        %1695 = vrot.lane.b32.xlu0 %v1668, 112
        %v1696 = vpop.permute.xlu0 %1695
        %1697 = vrot.lane.b32.xlu0 %v1669, 112
        %v1698 = vpop.permute.xlu0 %1697
        %1699 = vrot.lane.b32.xlu0 %v1670, 112
        %v1700 = vpop.permute.xlu0 %1699
        %1701 = vrot.lane.b32.xlu0 %v1671, 112
        %v1702 = vpop.permute.xlu0 %1701
        %1703 = vrot.lane.b32.xlu0 %v1672, 112
        %v1704 = vpop.permute.xlu0 %1703
        %1705 = vrot.lane.b32.xlu0 %v1673, 112
        %v1706 = vpop.permute.xlu0 %1705
        %1707 = vrot.lane.b32.xlu0 %v1674, 112
        %v1708 = vpop.permute.xlu0 %1707
        %1709 = vrot.lane.b32.xlu0 %v1675, 112
        %v1710 = vpop.permute.xlu0 %1709
        %1711 = vrot.lane.b32.xlu0 %v1676, 112
        %v1712 = vpop.permute.xlu0 %1711
        %v1713 = vsel %vm740, %v1690, %v1692
        %v1714 = vsel %vm740, %v1692, %v1694
        %v1715 = vsel %vm740, %v1696, %v1698
        %v1716 = vsel %vm740, %v1698, %v1700
        %v1717 = vsel %vm740, %v1702, %v1704
        %v1718 = vsel %vm740, %v1704, %v1706
        %v1719 = vsel %vm740, %v1708, %v1710
        %v1720 = vsel %vm740, %v1710, %v1712
        %v1733 = vadd.f32 %v1637, %v1713
        %v1734 = vadd.f32 %v1638, %v1714
        %v1735 = vadd.f32 %v1639, %v1694
        %v1736 = vadd.f32 %v1640, %v1715
        %v1737 = vadd.f32 %v1641, %v1716
        %v1738 = vadd.f32 %v1642, %v1700
        %v1739 = vadd.f32 %v1643, %v1717
        %v1740 = vadd.f32 %v1644, %v1718
        %v1741 = vadd.f32 %v1645, %v1706
        %v1742 = vadd.f32 %v1646, %v1719
        %v1743 = vadd.f32 %v1647, %v1720
        %v1744 = vadd.f32 %v1648, %v1712
        %1745 = vset.pattern.permute.xlu0 12
        %1746 = vperm.xlu0 %1745, %v640
        %v1747 = vpop.permute.xlu0 %1746
        %1749 = vset.pattern.permute.xlu0 12
        %1750 = vperm.xlu0 %1749, %v641
        %v1751 = vpop.permute.xlu0 %1750
        %1753 = vset.pattern.permute.xlu0 12
        %1754 = vperm.xlu0 %1753, %v642
        %v1755 = vpop.permute.xlu0 %1754
        %1757 = vset.pattern.permute.xlu0 12
        %1758 = vperm.xlu0 %1757, %v643
        %v1759 = vpop.permute.xlu0 %1758
        %v1761 = vmul.f32 %v629, %v1747
        %v1762 = vmul.f32 %v630, %v1747
        %v1763 = vmul.f32 %v632, %v1751
        %v1764 = vmul.f32 %v633, %v1751
        %v1765 = vmul.f32 %v635, %v1755
        %v1766 = vmul.f32 %v636, %v1755
        %v1767 = vmul.f32 %v638, %v1759
        %v1768 = vmul.f32 %v639, %v1759
        %1777 = vrot.lane.b32.xlu0 %v1761, 96
        %v1778 = vpop.permute.xlu0 %1777
        %1779 = vrot.lane.b32.xlu0 %v1762, 96
        %v1780 = vpop.permute.xlu0 %1779
        %1781 = vrot.lane.b32.xlu0 %v1763, 96
        %v1782 = vpop.permute.xlu0 %1781
        %1783 = vrot.lane.b32.xlu0 %v1764, 96
        %v1784 = vpop.permute.xlu0 %1783
        %1785 = vrot.lane.b32.xlu0 %v1765, 96
        %v1786 = vpop.permute.xlu0 %1785
        %1787 = vrot.lane.b32.xlu0 %v1766, 96
        %v1788 = vpop.permute.xlu0 %1787
        %1789 = vrot.lane.b32.xlu0 %v1767, 96
        %v1790 = vpop.permute.xlu0 %1789
        %1791 = vrot.lane.b32.xlu0 %v1768, 96
        %v1792 = vpop.permute.xlu0 %1791
        %v1793 = vsel %vm837, %v1778, %v1780
        %v1794 = vsel %vm837, %v1782, %v1784
        %v1795 = vsel %vm837, %v1786, %v1788
        %v1796 = vsel %vm837, %v1790, %v1792
        %v1809 = vadd.f32 %v1733, %v1778
        %v1810 = vadd.f32 %v1734, %v1793
        %v1811 = vadd.f32 %v1735, %v1780
        %v1812 = vadd.f32 %v1736, %v1782
        %v1813 = vadd.f32 %v1737, %v1794
        %v1814 = vadd.f32 %v1738, %v1784
        %v1815 = vadd.f32 %v1739, %v1786
        %v1816 = vadd.f32 %v1740, %v1795
        %v1817 = vadd.f32 %v1741, %v1788
        %v1818 = vadd.f32 %v1742, %v1790
        %v1819 = vadd.f32 %v1743, %v1796
        %v1820 = vadd.f32 %v1744, %v1792
        %1821 = vset.pattern.permute.xlu0 17
        %1822 = vperm.xlu0 %1821, %v640
        %v1823 = vpop.permute.xlu0 %1822
        %1825 = vset.pattern.permute.xlu0 17
        %1826 = vperm.xlu0 %1825, %v641
        %v1827 = vpop.permute.xlu0 %1826
        %1829 = vset.pattern.permute.xlu0 17
        %1830 = vperm.xlu0 %1829, %v642
        %v1831 = vpop.permute.xlu0 %1830
        %1833 = vset.pattern.permute.xlu0 17
        %1834 = vperm.xlu0 %1833, %v643
        %v1835 = vpop.permute.xlu0 %1834
        %v1837 = vmul.f32 %v870, %v1823
        %v1838 = vmul.f32 %v871, %v1823
        %v1839 = vmul.f32 %v872, %v1823
        %v1840 = vmul.f32 %v873, %v1827
        %v1841 = vmul.f32 %v874, %v1827
        %v1842 = vmul.f32 %v875, %v1827
        %v1843 = vmul.f32 %v876, %v1831
        %v1844 = vmul.f32 %v877, %v1831
        %v1845 = vmul.f32 %v878, %v1831
        %v1846 = vmul.f32 %v879, %v1835
        %v1847 = vmul.f32 %v880, %v1835
        %v1848 = vmul.f32 %v881, %v1835
        %1861 = vrot.lane.b32.xlu0 %v1837, 80
        %v1862 = vpop.permute.xlu0 %1861
        %1863 = vrot.lane.b32.xlu0 %v1838, 80
        %v1864 = vpop.permute.xlu0 %1863
        %1865 = vrot.lane.b32.xlu0 %v1839, 80
        %v1866 = vpop.permute.xlu0 %1865
        %1867 = vrot.lane.b32.xlu0 %v1840, 80
        %v1868 = vpop.permute.xlu0 %1867
        %1869 = vrot.lane.b32.xlu0 %v1841, 80
        %v1870 = vpop.permute.xlu0 %1869
        %1871 = vrot.lane.b32.xlu0 %v1842, 80
        %v1872 = vpop.permute.xlu0 %1871
        %1873 = vrot.lane.b32.xlu0 %v1843, 80
        %v1874 = vpop.permute.xlu0 %1873
        %1875 = vrot.lane.b32.xlu0 %v1844, 80
        %v1876 = vpop.permute.xlu0 %1875
        %1877 = vrot.lane.b32.xlu0 %v1845, 80
        %v1878 = vpop.permute.xlu0 %1877
        %1879 = vrot.lane.b32.xlu0 %v1846, 80
        %v1880 = vpop.permute.xlu0 %1879
        %1881 = vrot.lane.b32.xlu0 %v1847, 80
        %v1882 = vpop.permute.xlu0 %1881
        %1883 = vrot.lane.b32.xlu0 %v1848, 80
        %v1884 = vpop.permute.xlu0 %1883
        %v1885 = vsel %vm946, %v1862, %v1864
        %v1886 = vsel %vm946, %v1864, %v1866
        %v1887 = vsel %vm946, %v1868, %v1870
        %v1888 = vsel %vm946, %v1870, %v1872
        %v1889 = vsel %vm946, %v1874, %v1876
        %v1890 = vsel %vm946, %v1876, %v1878
        %v1891 = vsel %vm946, %v1880, %v1882
        %v1892 = vsel %vm946, %v1882, %v1884
        %v1905 = vadd.f32 %v1809, %v1862
        %v1906 = vadd.f32 %v1810, %v1885
        %v1907 = vadd.f32 %v1811, %v1886
        %v1908 = vadd.f32 %v1812, %v1868
        %v1909 = vadd.f32 %v1813, %v1887
        %v1910 = vadd.f32 %v1814, %v1888
        %v1911 = vadd.f32 %v1815, %v1874
        %v1912 = vadd.f32 %v1816, %v1889
        %v1913 = vadd.f32 %v1817, %v1890
        %v1914 = vadd.f32 %v1818, %v1880
        %v1915 = vadd.f32 %v1819, %v1891
        %v1916 = vadd.f32 %v1820, %v1892
        %1917 = vset.pattern.permute.xlu0 22
        %1918 = vperm.xlu0 %1917, %v640
        %v1919 = vpop.permute.xlu0 %1918
        %1921 = vset.pattern.permute.xlu0 22
        %1922 = vperm.xlu0 %1921, %v641
        %v1923 = vpop.permute.xlu0 %1922
        %1925 = vset.pattern.permute.xlu0 22
        %1926 = vperm.xlu0 %1925, %v642
        %v1927 = vpop.permute.xlu0 %1926
        %1929 = vset.pattern.permute.xlu0 22
        %1930 = vperm.xlu0 %1929, %v643
        %v1931 = vpop.permute.xlu0 %1930
        %v1933 = vmul.f32 %v870, %v1919
        %v1934 = vmul.f32 %v871, %v1919
        %v1935 = vmul.f32 %v872, %v1919
        %v1936 = vmul.f32 %v873, %v1923
        %v1937 = vmul.f32 %v874, %v1923
        %v1938 = vmul.f32 %v875, %v1923
        %v1939 = vmul.f32 %v876, %v1927
        %v1940 = vmul.f32 %v877, %v1927
        %v1941 = vmul.f32 %v878, %v1927
        %v1942 = vmul.f32 %v879, %v1931
        %v1943 = vmul.f32 %v880, %v1931
        %v1944 = vmul.f32 %v881, %v1931
        %1957 = vrot.lane.b32.xlu0 %v1933, 64
        %v1958 = vpop.permute.xlu0 %1957
        %1959 = vrot.lane.b32.xlu0 %v1934, 64
        %v1960 = vpop.permute.xlu0 %1959
        %1961 = vrot.lane.b32.xlu0 %v1935, 64
        %v1962 = vpop.permute.xlu0 %1961
        %1963 = vrot.lane.b32.xlu0 %v1936, 64
        %v1964 = vpop.permute.xlu0 %1963
        %1965 = vrot.lane.b32.xlu0 %v1937, 64
        %v1966 = vpop.permute.xlu0 %1965
        %1967 = vrot.lane.b32.xlu0 %v1938, 64
        %v1968 = vpop.permute.xlu0 %1967
        %1969 = vrot.lane.b32.xlu0 %v1939, 64
        %v1970 = vpop.permute.xlu0 %1969
        %1971 = vrot.lane.b32.xlu0 %v1940, 64
        %v1972 = vpop.permute.xlu0 %1971
        %1973 = vrot.lane.b32.xlu0 %v1941, 64
        %v1974 = vpop.permute.xlu0 %1973
        %1975 = vrot.lane.b32.xlu0 %v1942, 64
        %v1976 = vpop.permute.xlu0 %1975
        %1977 = vrot.lane.b32.xlu0 %v1943, 64
        %v1978 = vpop.permute.xlu0 %1977
        %1979 = vrot.lane.b32.xlu0 %v1944, 64
        %v1980 = vpop.permute.xlu0 %1979
        %v1981 = vsel %vm1043, %v1958, %v1960
        %v1982 = vsel %vm1043, %v1960, %v1962
        %v1983 = vsel %vm1043, %v1964, %v1966
        %v1984 = vsel %vm1043, %v1966, %v1968
        %v1985 = vsel %vm1043, %v1970, %v1972
        %v1986 = vsel %vm1043, %v1972, %v1974
        %v1987 = vsel %vm1043, %v1976, %v1978
        %v1988 = vsel %vm1043, %v1978, %v1980
        %v2001 = vadd.f32 %v1905, %v1958
        %v2002 = vadd.f32 %v1906, %v1981
        %v2003 = vadd.f32 %v1907, %v1982
        %v2004 = vadd.f32 %v1908, %v1964
        %v2005 = vadd.f32 %v1909, %v1983
        %v2006 = vadd.f32 %v1910, %v1984
        %v2007 = vadd.f32 %v1911, %v1970
        %v2008 = vadd.f32 %v1912, %v1985
        %v2009 = vadd.f32 %v1913, %v1986
        %v2010 = vadd.f32 %v1914, %v1976
        %v2011 = vadd.f32 %v1915, %v1987
        %v2012 = vadd.f32 %v1916, %v1988
        %2025 = vrot.lane.b32.xlu0 %v2001, 126
        %v2026 = vpop.permute.xlu0 %2025
        %2027 = vrot.lane.b32.xlu0 %v2002, 126
        %v2028 = vpop.permute.xlu0 %2027
        %2029 = vrot.lane.b32.xlu0 %v2003, 126
        %v2030 = vpop.permute.xlu0 %2029
        %2031 = vrot.lane.b32.xlu0 %v2004, 126
        %v2032 = vpop.permute.xlu0 %2031
        %2033 = vrot.lane.b32.xlu0 %v2005, 126
        %v2034 = vpop.permute.xlu0 %2033
        %2035 = vrot.lane.b32.xlu0 %v2006, 126
        %v2036 = vpop.permute.xlu0 %2035
        %2037 = vrot.lane.b32.xlu0 %v2007, 126
        %v2038 = vpop.permute.xlu0 %2037
        %2039 = vrot.lane.b32.xlu0 %v2008, 126
        %v2040 = vpop.permute.xlu0 %2039
        %2041 = vrot.lane.b32.xlu0 %v2009, 126
        %v2042 = vpop.permute.xlu0 %2041
        %2043 = vrot.lane.b32.xlu0 %v2010, 126
        %v2044 = vpop.permute.xlu0 %2043
        %2045 = vrot.lane.b32.xlu0 %v2011, 126
        %v2046 = vpop.permute.xlu0 %2045
        %2047 = vrot.lane.b32.xlu0 %v2012, 126
        %v2048 = vpop.permute.xlu0 %2047
        %vm2049 = vcmask 1031168
        %v2050 = vsel %vm2049, %v2026, %v2028
        %v2051 = vsel %vm2049, %v2028, %v2030
        %v2052 = vsel %vm2049, %v2032, %v2034
        %v2053 = vsel %vm2049, %v2034, %v2036
        %v2054 = vsel %vm2049, %v2038, %v2040
        %v2055 = vsel %vm2049, %v2040, %v2042
        %v2056 = vsel %vm2049, %v2044, %v2046
        %v2057 = vsel %vm2049, %v2046, %v2048
        %v2070 = vadd.f32 %v1609, %v2050
        %v2071 = vadd.f32 %v1610, %v2051
        %v2072 = vadd.f32 %v1611, %v2030
        %v2073 = vadd.f32 %v1612, %v2052
        %v2074 = vadd.f32 %v1613, %v2053
        %v2075 = vadd.f32 %v1614, %v2036
        %v2076 = vadd.f32 %v1615, %v2054
        %v2077 = vadd.f32 %v1616, %v2055
        %v2078 = vadd.f32 %v1617, %v2042
        %v2079 = vadd.f32 %v1618, %v2056
        %v2080 = vadd.f32 %v1619, %v2057
        %v2081 = vadd.f32 %v1620, %v2048
        %2082 = vset.pattern.permute.xlu0 3
        %2083 = vperm.xlu0 %2082, %v640
        %v2084 = vpop.permute.xlu0 %2083
        %2086 = vset.pattern.permute.xlu0 3
        %2087 = vperm.xlu0 %2086, %v641
        %v2088 = vpop.permute.xlu0 %2087
        %2090 = vset.pattern.permute.xlu0 3
        %2091 = vperm.xlu0 %2090, %v642
        %v2092 = vpop.permute.xlu0 %2091
        %2094 = vset.pattern.permute.xlu0 3
        %2095 = vperm.xlu0 %2094, %v643
        %v2096 = vpop.permute.xlu0 %2095
        %v2098 = vmul.f32 %v628, %v2084
        %v2099 = vmul.f32 %v629, %v2084
        %v2100 = vmul.f32 %v630, %v2084
        %v2101 = vmul.f32 %v631, %v2088
        %v2102 = vmul.f32 %v632, %v2088
        %v2103 = vmul.f32 %v633, %v2088
        %v2104 = vmul.f32 %v634, %v2092
        %v2105 = vmul.f32 %v635, %v2092
        %v2106 = vmul.f32 %v636, %v2092
        %v2107 = vmul.f32 %v637, %v2096
        %v2108 = vmul.f32 %v638, %v2096
        %v2109 = vmul.f32 %v639, %v2096
        %2110 = vset.pattern.permute.xlu0 8
        %2111 = vperm.xlu0 %2110, %v640
        %v2112 = vpop.permute.xlu0 %2111
        %2114 = vset.pattern.permute.xlu0 8
        %2115 = vperm.xlu0 %2114, %v641
        %v2116 = vpop.permute.xlu0 %2115
        %2118 = vset.pattern.permute.xlu0 8
        %2119 = vperm.xlu0 %2118, %v642
        %v2120 = vpop.permute.xlu0 %2119
        %2122 = vset.pattern.permute.xlu0 8
        %2123 = vperm.xlu0 %2122, %v643
        %v2124 = vpop.permute.xlu0 %2123
        %v2126 = vmul.f32 %v628, %v2112
        %v2127 = vmul.f32 %v629, %v2112
        %v2128 = vmul.f32 %v630, %v2112
        %v2129 = vmul.f32 %v631, %v2116
        %v2130 = vmul.f32 %v632, %v2116
        %v2131 = vmul.f32 %v633, %v2116
        %v2132 = vmul.f32 %v634, %v2120
        %v2133 = vmul.f32 %v635, %v2120
        %v2134 = vmul.f32 %v636, %v2120
        %v2135 = vmul.f32 %v637, %v2124
        %v2136 = vmul.f32 %v638, %v2124
        %v2137 = vmul.f32 %v639, %v2124
        %2150 = vrot.lane.b32.xlu0 %v2126, 112
        %v2151 = vpop.permute.xlu0 %2150
        %2152 = vrot.lane.b32.xlu0 %v2127, 112
        %v2153 = vpop.permute.xlu0 %2152
        %2154 = vrot.lane.b32.xlu0 %v2128, 112
        %v2155 = vpop.permute.xlu0 %2154
        %2156 = vrot.lane.b32.xlu0 %v2129, 112
        %v2157 = vpop.permute.xlu0 %2156
        %2158 = vrot.lane.b32.xlu0 %v2130, 112
        %v2159 = vpop.permute.xlu0 %2158
        %2160 = vrot.lane.b32.xlu0 %v2131, 112
        %v2161 = vpop.permute.xlu0 %2160
        %2162 = vrot.lane.b32.xlu0 %v2132, 112
        %v2163 = vpop.permute.xlu0 %2162
        %2164 = vrot.lane.b32.xlu0 %v2133, 112
        %v2165 = vpop.permute.xlu0 %2164
        %2166 = vrot.lane.b32.xlu0 %v2134, 112
        %v2167 = vpop.permute.xlu0 %2166
        %2168 = vrot.lane.b32.xlu0 %v2135, 112
        %v2169 = vpop.permute.xlu0 %2168
        %2170 = vrot.lane.b32.xlu0 %v2136, 112
        %v2171 = vpop.permute.xlu0 %2170
        %2172 = vrot.lane.b32.xlu0 %v2137, 112
        %v2173 = vpop.permute.xlu0 %2172
        %v2174 = vsel %vm740, %v2151, %v2153
        %v2175 = vsel %vm740, %v2153, %v2155
        %v2176 = vsel %vm740, %v2157, %v2159
        %v2177 = vsel %vm740, %v2159, %v2161
        %v2178 = vsel %vm740, %v2163, %v2165
        %v2179 = vsel %vm740, %v2165, %v2167
        %v2180 = vsel %vm740, %v2169, %v2171
        %v2181 = vsel %vm740, %v2171, %v2173
        %v2194 = vadd.f32 %v2098, %v2174
        %v2195 = vadd.f32 %v2099, %v2175
        %v2196 = vadd.f32 %v2100, %v2155
        %v2197 = vadd.f32 %v2101, %v2176
        %v2198 = vadd.f32 %v2102, %v2177
        %v2199 = vadd.f32 %v2103, %v2161
        %v2200 = vadd.f32 %v2104, %v2178
        %v2201 = vadd.f32 %v2105, %v2179
        %v2202 = vadd.f32 %v2106, %v2167
        %v2203 = vadd.f32 %v2107, %v2180
        %v2204 = vadd.f32 %v2108, %v2181
        %v2205 = vadd.f32 %v2109, %v2173
        %2206 = vset.pattern.permute.xlu0 13
        %2207 = vperm.xlu0 %2206, %v640
        %v2208 = vpop.permute.xlu0 %2207
        %2210 = vset.pattern.permute.xlu0 13
        %2211 = vperm.xlu0 %2210, %v641
        %v2212 = vpop.permute.xlu0 %2211
        %2214 = vset.pattern.permute.xlu0 13
        %2215 = vperm.xlu0 %2214, %v642
        %v2216 = vpop.permute.xlu0 %2215
        %2218 = vset.pattern.permute.xlu0 13
        %2219 = vperm.xlu0 %2218, %v643
        %v2220 = vpop.permute.xlu0 %2219
        %v2222 = vmul.f32 %v870, %v2208
        %v2223 = vmul.f32 %v871, %v2208
        %v2224 = vmul.f32 %v872, %v2208
        %v2225 = vmul.f32 %v873, %v2212
        %v2226 = vmul.f32 %v874, %v2212
        %v2227 = vmul.f32 %v875, %v2212
        %v2228 = vmul.f32 %v876, %v2216
        %v2229 = vmul.f32 %v877, %v2216
        %v2230 = vmul.f32 %v878, %v2216
        %v2231 = vmul.f32 %v879, %v2220
        %v2232 = vmul.f32 %v880, %v2220
        %v2233 = vmul.f32 %v881, %v2220
        %2246 = vrot.lane.b32.xlu0 %v2222, 96
        %v2247 = vpop.permute.xlu0 %2246
        %2248 = vrot.lane.b32.xlu0 %v2223, 96
        %v2249 = vpop.permute.xlu0 %2248
        %2250 = vrot.lane.b32.xlu0 %v2224, 96
        %v2251 = vpop.permute.xlu0 %2250
        %2252 = vrot.lane.b32.xlu0 %v2225, 96
        %v2253 = vpop.permute.xlu0 %2252
        %2254 = vrot.lane.b32.xlu0 %v2226, 96
        %v2255 = vpop.permute.xlu0 %2254
        %2256 = vrot.lane.b32.xlu0 %v2227, 96
        %v2257 = vpop.permute.xlu0 %2256
        %2258 = vrot.lane.b32.xlu0 %v2228, 96
        %v2259 = vpop.permute.xlu0 %2258
        %2260 = vrot.lane.b32.xlu0 %v2229, 96
        %v2261 = vpop.permute.xlu0 %2260
        %2262 = vrot.lane.b32.xlu0 %v2230, 96
        %v2263 = vpop.permute.xlu0 %2262
        %2264 = vrot.lane.b32.xlu0 %v2231, 96
        %v2265 = vpop.permute.xlu0 %2264
        %2266 = vrot.lane.b32.xlu0 %v2232, 96
        %v2267 = vpop.permute.xlu0 %2266
        %2268 = vrot.lane.b32.xlu0 %v2233, 96
        %v2269 = vpop.permute.xlu0 %2268
        %v2270 = vsel %vm837, %v2247, %v2249
        %v2271 = vsel %vm837, %v2249, %v2251
        %v2272 = vsel %vm837, %v2253, %v2255
        %v2273 = vsel %vm837, %v2255, %v2257
        %v2274 = vsel %vm837, %v2259, %v2261
        %v2275 = vsel %vm837, %v2261, %v2263
        %v2276 = vsel %vm837, %v2265, %v2267
        %v2277 = vsel %vm837, %v2267, %v2269
        %v2290 = vadd.f32 %v2194, %v2247
        %v2291 = vadd.f32 %v2195, %v2270
        %v2292 = vadd.f32 %v2196, %v2271
        %v2293 = vadd.f32 %v2197, %v2253
        %v2294 = vadd.f32 %v2198, %v2272
        %v2295 = vadd.f32 %v2199, %v2273
        %v2296 = vadd.f32 %v2200, %v2259
        %v2297 = vadd.f32 %v2201, %v2274
        %v2298 = vadd.f32 %v2202, %v2275
        %v2299 = vadd.f32 %v2203, %v2265
        %v2300 = vadd.f32 %v2204, %v2276
        %v2301 = vadd.f32 %v2205, %v2277
        %2302 = vset.pattern.permute.xlu0 18
        %2303 = vperm.xlu0 %2302, %v640
        %v2304 = vpop.permute.xlu0 %2303
        %2306 = vset.pattern.permute.xlu0 18
        %2307 = vperm.xlu0 %2306, %v641
        %v2308 = vpop.permute.xlu0 %2307
        %2310 = vset.pattern.permute.xlu0 18
        %2311 = vperm.xlu0 %2310, %v642
        %v2312 = vpop.permute.xlu0 %2311
        %2314 = vset.pattern.permute.xlu0 18
        %2315 = vperm.xlu0 %2314, %v643
        %v2316 = vpop.permute.xlu0 %2315
        %v2318 = vmul.f32 %v870, %v2304
        %v2319 = vmul.f32 %v871, %v2304
        %v2320 = vmul.f32 %v872, %v2304
        %v2321 = vmul.f32 %v873, %v2308
        %v2322 = vmul.f32 %v874, %v2308
        %v2323 = vmul.f32 %v875, %v2308
        %v2324 = vmul.f32 %v876, %v2312
        %v2325 = vmul.f32 %v877, %v2312
        %v2326 = vmul.f32 %v878, %v2312
        %v2327 = vmul.f32 %v879, %v2316
        %v2328 = vmul.f32 %v880, %v2316
        %v2329 = vmul.f32 %v881, %v2316
        %2342 = vrot.lane.b32.xlu0 %v2318, 80
        %v2343 = vpop.permute.xlu0 %2342
        %2344 = vrot.lane.b32.xlu0 %v2319, 80
        %v2345 = vpop.permute.xlu0 %2344
        %2346 = vrot.lane.b32.xlu0 %v2320, 80
        %v2347 = vpop.permute.xlu0 %2346
        %2348 = vrot.lane.b32.xlu0 %v2321, 80
        %v2349 = vpop.permute.xlu0 %2348
        %2350 = vrot.lane.b32.xlu0 %v2322, 80
        %v2351 = vpop.permute.xlu0 %2350
        %2352 = vrot.lane.b32.xlu0 %v2323, 80
        %v2353 = vpop.permute.xlu0 %2352
        %2354 = vrot.lane.b32.xlu0 %v2324, 80
        %v2355 = vpop.permute.xlu0 %2354
        %2356 = vrot.lane.b32.xlu0 %v2325, 80
        %v2357 = vpop.permute.xlu0 %2356
        %2358 = vrot.lane.b32.xlu0 %v2326, 80
        %v2359 = vpop.permute.xlu0 %2358
        %2360 = vrot.lane.b32.xlu0 %v2327, 80
        %v2361 = vpop.permute.xlu0 %2360
        %2362 = vrot.lane.b32.xlu0 %v2328, 80
        %v2363 = vpop.permute.xlu0 %2362
        %2364 = vrot.lane.b32.xlu0 %v2329, 80
        %v2365 = vpop.permute.xlu0 %2364
        %v2366 = vsel %vm946, %v2343, %v2345
        %v2367 = vsel %vm946, %v2345, %v2347
        %v2368 = vsel %vm946, %v2349, %v2351
        %v2369 = vsel %vm946, %v2351, %v2353
        %v2370 = vsel %vm946, %v2355, %v2357
        %v2371 = vsel %vm946, %v2357, %v2359
        %v2372 = vsel %vm946, %v2361, %v2363
        %v2373 = vsel %vm946, %v2363, %v2365
        %v2386 = vadd.f32 %v2290, %v2343
        %v2387 = vadd.f32 %v2291, %v2366
        %v2388 = vadd.f32 %v2292, %v2367
        %v2389 = vadd.f32 %v2293, %v2349
        %v2390 = vadd.f32 %v2294, %v2368
        %v2391 = vadd.f32 %v2295, %v2369
        %v2392 = vadd.f32 %v2296, %v2355
        %v2393 = vadd.f32 %v2297, %v2370
        %v2394 = vadd.f32 %v2298, %v2371
        %v2395 = vadd.f32 %v2299, %v2361
        %v2396 = vadd.f32 %v2300, %v2372
        %v2397 = vadd.f32 %v2301, %v2373
        %2398 = vset.pattern.permute.xlu0 23
        %2399 = vperm.xlu0 %2398, %v640
        %v2400 = vpop.permute.xlu0 %2399
        %2402 = vset.pattern.permute.xlu0 23
        %2403 = vperm.xlu0 %2402, %v641
        %v2404 = vpop.permute.xlu0 %2403
        %2406 = vset.pattern.permute.xlu0 23
        %2407 = vperm.xlu0 %2406, %v642
        %v2408 = vpop.permute.xlu0 %2407
        %2410 = vset.pattern.permute.xlu0 23
        %2411 = vperm.xlu0 %2410, %v643
        %v2412 = vpop.permute.xlu0 %2411
        %v2414 = vmul.f32 %v870, %v2400
        %v2415 = vmul.f32 %v871, %v2400
        %v2416 = vmul.f32 %v872, %v2400
        %v2417 = vmul.f32 %v873, %v2404
        %v2418 = vmul.f32 %v874, %v2404
        %v2419 = vmul.f32 %v875, %v2404
        %v2420 = vmul.f32 %v876, %v2408
        %v2421 = vmul.f32 %v877, %v2408
        %v2422 = vmul.f32 %v878, %v2408
        %v2423 = vmul.f32 %v879, %v2412
        %v2424 = vmul.f32 %v880, %v2412
        %v2425 = vmul.f32 %v881, %v2412
        %2438 = vrot.lane.b32.xlu0 %v2414, 64
        %v2439 = vpop.permute.xlu0 %2438
        %2440 = vrot.lane.b32.xlu0 %v2415, 64
        %v2441 = vpop.permute.xlu0 %2440
        %2442 = vrot.lane.b32.xlu0 %v2416, 64
        %v2443 = vpop.permute.xlu0 %2442
        %2444 = vrot.lane.b32.xlu0 %v2417, 64
        %v2445 = vpop.permute.xlu0 %2444
        %2446 = vrot.lane.b32.xlu0 %v2418, 64
        %v2447 = vpop.permute.xlu0 %2446
        %2448 = vrot.lane.b32.xlu0 %v2419, 64
        %v2449 = vpop.permute.xlu0 %2448
        %2450 = vrot.lane.b32.xlu0 %v2420, 64
        %v2451 = vpop.permute.xlu0 %2450
        %2452 = vrot.lane.b32.xlu0 %v2421, 64
        %v2453 = vpop.permute.xlu0 %2452
        %2454 = vrot.lane.b32.xlu0 %v2422, 64
        %v2455 = vpop.permute.xlu0 %2454
        %2456 = vrot.lane.b32.xlu0 %v2423, 64
        %v2457 = vpop.permute.xlu0 %2456
        %2458 = vrot.lane.b32.xlu0 %v2424, 64
        %v2459 = vpop.permute.xlu0 %2458
        %2460 = vrot.lane.b32.xlu0 %v2425, 64
        %v2461 = vpop.permute.xlu0 %2460
        %v2462 = vsel %vm1043, %v2439, %v2441
        %v2463 = vsel %vm1043, %v2441, %v2443
        %v2464 = vsel %vm1043, %v2445, %v2447
        %v2465 = vsel %vm1043, %v2447, %v2449
        %v2466 = vsel %vm1043, %v2451, %v2453
        %v2467 = vsel %vm1043, %v2453, %v2455
        %v2468 = vsel %vm1043, %v2457, %v2459
        %v2469 = vsel %vm1043, %v2459, %v2461
        %v2482 = vadd.f32 %v2386, %v2439
        %v2483 = vadd.f32 %v2387, %v2462
        %v2484 = vadd.f32 %v2388, %v2463
        %v2485 = vadd.f32 %v2389, %v2445
        %v2486 = vadd.f32 %v2390, %v2464
        %v2487 = vadd.f32 %v2391, %v2465
        %v2488 = vadd.f32 %v2392, %v2451
        %v2489 = vadd.f32 %v2393, %v2466
        %v2490 = vadd.f32 %v2394, %v2467
        %v2491 = vadd.f32 %v2395, %v2457
        %v2492 = vadd.f32 %v2396, %v2468
        %v2493 = vadd.f32 %v2397, %v2469
        %s2494 = scalar_lea.vmem %s2, 8
        %v2495 = vld [vmem:[%s2494] sm:$0x3]
        %v2497 = vlaneseq
        %v2498 = vshrl.u32 %v2497, 7
        %v2499 = vsub.s32 0, %v2498
        %v2500 = vrot.slane %v2495, %v2499
        %v2501 = vlaneseq
        %v2502 = vshrl.u32 %v2501, 7
        %v2503 = vsub.s32 1, %v2502
        %v2504 = vrot.slane %v2495, %v2503
        %2505 = vrot.lane.b32.xlu0 %v2500, 97
        %v2506 = vpop.permute.xlu0 %2505
        %2507 = vrot.lane.b32.xlu0 %v2504, 97
        %v2508 = vpop.permute.xlu0 %2507
        %vm2509 = vcmask 793600
        %v2510 = vsel %vm2509, %v2506, %v2508
        %v2514 = vmul.f32 %v2482, %v2506
        %v2515 = vmul.f32 %v2483, %v2510
        %v2516 = vmul.f32 %v2484, %v2508
        %v2517 = vmul.f32 %v2485, %v2506
        %v2518 = vmul.f32 %v2486, %v2510
        %v2519 = vmul.f32 %v2487, %v2508
        %v2520 = vmul.f32 %v2488, %v2506
        %v2521 = vmul.f32 %v2489, %v2510
        %v2522 = vmul.f32 %v2490, %v2508
        %v2523 = vmul.f32 %v2491, %v2506
        %v2524 = vmul.f32 %v2492, %v2510
        %v2525 = vmul.f32 %v2493, %v2508
        %2538 = vrot.lane.b32.xlu0 %v2514, 125
        %v2539 = vpop.permute.xlu0 %2538
        %2540 = vrot.lane.b32.xlu0 %v2515, 125
        %v2541 = vpop.permute.xlu0 %2540
        %2542 = vrot.lane.b32.xlu0 %v2516, 125
        %v2543 = vpop.permute.xlu0 %2542
        %2544 = vrot.lane.b32.xlu0 %v2517, 125
        %v2545 = vpop.permute.xlu0 %2544
        %2546 = vrot.lane.b32.xlu0 %v2518, 125
        %v2547 = vpop.permute.xlu0 %2546
        %2548 = vrot.lane.b32.xlu0 %v2519, 125
        %v2549 = vpop.permute.xlu0 %2548
        %2550 = vrot.lane.b32.xlu0 %v2520, 125
        %v2551 = vpop.permute.xlu0 %2550
        %2552 = vrot.lane.b32.xlu0 %v2521, 125
        %v2553 = vpop.permute.xlu0 %2552
        %2554 = vrot.lane.b32.xlu0 %v2522, 125
        %v2555 = vpop.permute.xlu0 %2554
        %2556 = vrot.lane.b32.xlu0 %v2523, 125
        %v2557 = vpop.permute.xlu0 %2556
        %2558 = vrot.lane.b32.xlu0 %v2524, 125
        %v2559 = vpop.permute.xlu0 %2558
        %2560 = vrot.lane.b32.xlu0 %v2525, 125
        %v2561 = vpop.permute.xlu0 %2560
        %vm2562 = vcmask 1022976
        %v2563 = vsel %vm2562, %v2539, %v2541
        %v2564 = vsel %vm2562, %v2541, %v2543
        %v2565 = vsel %vm2562, %v2545, %v2547
        %v2566 = vsel %vm2562, %v2547, %v2549
        %v2567 = vsel %vm2562, %v2551, %v2553
        %v2568 = vsel %vm2562, %v2553, %v2555
        %v2569 = vsel %vm2562, %v2557, %v2559
        %v2570 = vsel %vm2562, %v2559, %v2561
        %v2583 = vadd.f32 %v2070, %v2563
        %v2584 = vadd.f32 %v2071, %v2564
        %v2585 = vadd.f32 %v2072, %v2543
        %v2586 = vadd.f32 %v2073, %v2565
        %v2587 = vadd.f32 %v2074, %v2566
        %v2588 = vadd.f32 %v2075, %v2549
        %v2589 = vadd.f32 %v2076, %v2567
        %v2590 = vadd.f32 %v2077, %v2568
        %v2591 = vadd.f32 %v2078, %v2555
        %v2592 = vadd.f32 %v2079, %v2569
        %v2593 = vadd.f32 %v2080, %v2570
        %v2594 = vadd.f32 %v2081, %v2561
        %2595 = vset.pattern.permute.xlu0 4
        %2596 = vperm.xlu0 %2595, %v640
        %v2597 = vpop.permute.xlu0 %2596
        %2599 = vset.pattern.permute.xlu0 4
        %2600 = vperm.xlu0 %2599, %v641
        %v2601 = vpop.permute.xlu0 %2600
        %2603 = vset.pattern.permute.xlu0 4
        %2604 = vperm.xlu0 %2603, %v642
        %v2605 = vpop.permute.xlu0 %2604
        %2607 = vset.pattern.permute.xlu0 4
        %2608 = vperm.xlu0 %2607, %v643
        %v2609 = vpop.permute.xlu0 %2608
        %v2611 = vmul.f32 %v628, %v2597
        %v2612 = vmul.f32 %v629, %v2597
        %v2613 = vmul.f32 %v630, %v2597
        %v2614 = vmul.f32 %v631, %v2601
        %v2615 = vmul.f32 %v632, %v2601
        %v2616 = vmul.f32 %v633, %v2601
        %v2617 = vmul.f32 %v634, %v2605
        %v2618 = vmul.f32 %v635, %v2605
        %v2619 = vmul.f32 %v636, %v2605
        %v2620 = vmul.f32 %v637, %v2609
        %v2621 = vmul.f32 %v638, %v2609
        %v2622 = vmul.f32 %v639, %v2609
        %2623 = vset.pattern.permute.xlu0 9
        %2624 = vperm.xlu0 %2623, %v640
        %v2625 = vpop.permute.xlu0 %2624
        %2627 = vset.pattern.permute.xlu0 9
        %2628 = vperm.xlu0 %2627, %v641
        %v2629 = vpop.permute.xlu0 %2628
        %2631 = vset.pattern.permute.xlu0 9
        %2632 = vperm.xlu0 %2631, %v642
        %v2633 = vpop.permute.xlu0 %2632
        %2635 = vset.pattern.permute.xlu0 9
        %2636 = vperm.xlu0 %2635, %v643
        %v2637 = vpop.permute.xlu0 %2636
        %v2639 = vmul.f32 %v628, %v2625
        %v2640 = vmul.f32 %v629, %v2625
        %v2641 = vmul.f32 %v630, %v2625
        %v2642 = vmul.f32 %v631, %v2629
        %v2643 = vmul.f32 %v632, %v2629
        %v2644 = vmul.f32 %v633, %v2629
        %v2645 = vmul.f32 %v634, %v2633
        %v2646 = vmul.f32 %v635, %v2633
        %v2647 = vmul.f32 %v636, %v2633
        %v2648 = vmul.f32 %v637, %v2637
        %v2649 = vmul.f32 %v638, %v2637
        %v2650 = vmul.f32 %v639, %v2637
        %2663 = vrot.lane.b32.xlu0 %v2639, 112
        %v2664 = vpop.permute.xlu0 %2663
        %2665 = vrot.lane.b32.xlu0 %v2640, 112
        %v2666 = vpop.permute.xlu0 %2665
        %2667 = vrot.lane.b32.xlu0 %v2641, 112
        %v2668 = vpop.permute.xlu0 %2667
        %2669 = vrot.lane.b32.xlu0 %v2642, 112
        %v2670 = vpop.permute.xlu0 %2669
        %2671 = vrot.lane.b32.xlu0 %v2643, 112
        %v2672 = vpop.permute.xlu0 %2671
        %2673 = vrot.lane.b32.xlu0 %v2644, 112
        %v2674 = vpop.permute.xlu0 %2673
        %2675 = vrot.lane.b32.xlu0 %v2645, 112
        %v2676 = vpop.permute.xlu0 %2675
        %2677 = vrot.lane.b32.xlu0 %v2646, 112
        %v2678 = vpop.permute.xlu0 %2677
        %2679 = vrot.lane.b32.xlu0 %v2647, 112
        %v2680 = vpop.permute.xlu0 %2679
        %2681 = vrot.lane.b32.xlu0 %v2648, 112
        %v2682 = vpop.permute.xlu0 %2681
        %2683 = vrot.lane.b32.xlu0 %v2649, 112
        %v2684 = vpop.permute.xlu0 %2683
        %2685 = vrot.lane.b32.xlu0 %v2650, 112
        %v2686 = vpop.permute.xlu0 %2685
        %v2687 = vsel %vm740, %v2664, %v2666
        %v2688 = vsel %vm740, %v2666, %v2668
        %v2689 = vsel %vm740, %v2670, %v2672
        %v2690 = vsel %vm740, %v2672, %v2674
        %v2691 = vsel %vm740, %v2676, %v2678
        %v2692 = vsel %vm740, %v2678, %v2680
        %v2693 = vsel %vm740, %v2682, %v2684
        %v2694 = vsel %vm740, %v2684, %v2686
        %v2707 = vadd.f32 %v2611, %v2687
        %v2708 = vadd.f32 %v2612, %v2688
        %v2709 = vadd.f32 %v2613, %v2668
        %v2710 = vadd.f32 %v2614, %v2689
        %v2711 = vadd.f32 %v2615, %v2690
        %v2712 = vadd.f32 %v2616, %v2674
        %v2713 = vadd.f32 %v2617, %v2691
        %v2714 = vadd.f32 %v2618, %v2692
        %v2715 = vadd.f32 %v2619, %v2680
        %v2716 = vadd.f32 %v2620, %v2693
        %v2717 = vadd.f32 %v2621, %v2694
        %v2718 = vadd.f32 %v2622, %v2686
        %2719 = vset.pattern.permute.xlu0 14
        %2720 = vperm.xlu0 %2719, %v640
        %v2721 = vpop.permute.xlu0 %2720
        %2723 = vset.pattern.permute.xlu0 14
        %2724 = vperm.xlu0 %2723, %v641
        %v2725 = vpop.permute.xlu0 %2724
        %2727 = vset.pattern.permute.xlu0 14
        %2728 = vperm.xlu0 %2727, %v642
        %v2729 = vpop.permute.xlu0 %2728
        %2731 = vset.pattern.permute.xlu0 14
        %2732 = vperm.xlu0 %2731, %v643
        %v2733 = vpop.permute.xlu0 %2732
        %v2735 = vmul.f32 %v870, %v2721
        %v2736 = vmul.f32 %v871, %v2721
        %v2737 = vmul.f32 %v872, %v2721
        %v2738 = vmul.f32 %v873, %v2725
        %v2739 = vmul.f32 %v874, %v2725
        %v2740 = vmul.f32 %v875, %v2725
        %v2741 = vmul.f32 %v876, %v2729
        %v2742 = vmul.f32 %v877, %v2729
        %v2743 = vmul.f32 %v878, %v2729
        %v2744 = vmul.f32 %v879, %v2733
        %v2745 = vmul.f32 %v880, %v2733
        %v2746 = vmul.f32 %v881, %v2733
        %2759 = vrot.lane.b32.xlu0 %v2735, 96
        %v2760 = vpop.permute.xlu0 %2759
        %2761 = vrot.lane.b32.xlu0 %v2736, 96
        %v2762 = vpop.permute.xlu0 %2761
        %2763 = vrot.lane.b32.xlu0 %v2737, 96
        %v2764 = vpop.permute.xlu0 %2763
        %2765 = vrot.lane.b32.xlu0 %v2738, 96
        %v2766 = vpop.permute.xlu0 %2765
        %2767 = vrot.lane.b32.xlu0 %v2739, 96
        %v2768 = vpop.permute.xlu0 %2767
        %2769 = vrot.lane.b32.xlu0 %v2740, 96
        %v2770 = vpop.permute.xlu0 %2769
        %2771 = vrot.lane.b32.xlu0 %v2741, 96
        %v2772 = vpop.permute.xlu0 %2771
        %2773 = vrot.lane.b32.xlu0 %v2742, 96
        %v2774 = vpop.permute.xlu0 %2773
        %2775 = vrot.lane.b32.xlu0 %v2743, 96
        %v2776 = vpop.permute.xlu0 %2775
        %2777 = vrot.lane.b32.xlu0 %v2744, 96
        %v2778 = vpop.permute.xlu0 %2777
        %2779 = vrot.lane.b32.xlu0 %v2745, 96
        %v2780 = vpop.permute.xlu0 %2779
        %2781 = vrot.lane.b32.xlu0 %v2746, 96
        %v2782 = vpop.permute.xlu0 %2781
        %v2783 = vsel %vm837, %v2760, %v2762
        %v2784 = vsel %vm837, %v2762, %v2764
        %v2785 = vsel %vm837, %v2766, %v2768
        %v2786 = vsel %vm837, %v2768, %v2770
        %v2787 = vsel %vm837, %v2772, %v2774
        %v2788 = vsel %vm837, %v2774, %v2776
        %v2789 = vsel %vm837, %v2778, %v2780
        %v2790 = vsel %vm837, %v2780, %v2782
        %v2803 = vadd.f32 %v2707, %v2760
        %v2804 = vadd.f32 %v2708, %v2783
        %v2805 = vadd.f32 %v2709, %v2784
        %v2806 = vadd.f32 %v2710, %v2766
        %v2807 = vadd.f32 %v2711, %v2785
        %v2808 = vadd.f32 %v2712, %v2786
        %v2809 = vadd.f32 %v2713, %v2772
        %v2810 = vadd.f32 %v2714, %v2787
        %v2811 = vadd.f32 %v2715, %v2788
        %v2812 = vadd.f32 %v2716, %v2778
        %v2813 = vadd.f32 %v2717, %v2789
        %v2814 = vadd.f32 %v2718, %v2790
        %2815 = vset.pattern.permute.xlu0 19
        %2816 = vperm.xlu0 %2815, %v640
        %v2817 = vpop.permute.xlu0 %2816
        %2819 = vset.pattern.permute.xlu0 19
        %2820 = vperm.xlu0 %2819, %v641
        %v2821 = vpop.permute.xlu0 %2820
        %2823 = vset.pattern.permute.xlu0 19
        %2824 = vperm.xlu0 %2823, %v642
        %v2825 = vpop.permute.xlu0 %2824
        %2827 = vset.pattern.permute.xlu0 19
        %2828 = vperm.xlu0 %2827, %v643
        %v2829 = vpop.permute.xlu0 %2828
        %v2831 = vmul.f32 %v870, %v2817
        %v2832 = vmul.f32 %v871, %v2817
        %v2833 = vmul.f32 %v872, %v2817
        %v2834 = vmul.f32 %v873, %v2821
        %v2835 = vmul.f32 %v874, %v2821
        %v2836 = vmul.f32 %v875, %v2821
        %v2837 = vmul.f32 %v876, %v2825
        %v2838 = vmul.f32 %v877, %v2825
        %v2839 = vmul.f32 %v878, %v2825
        %v2840 = vmul.f32 %v879, %v2829
        %v2841 = vmul.f32 %v880, %v2829
        %v2842 = vmul.f32 %v881, %v2829
        %2855 = vrot.lane.b32.xlu0 %v2831, 80
        %v2856 = vpop.permute.xlu0 %2855
        %2857 = vrot.lane.b32.xlu0 %v2832, 80
        %v2858 = vpop.permute.xlu0 %2857
        %2859 = vrot.lane.b32.xlu0 %v2833, 80
        %v2860 = vpop.permute.xlu0 %2859
        %2861 = vrot.lane.b32.xlu0 %v2834, 80
        %v2862 = vpop.permute.xlu0 %2861
        %2863 = vrot.lane.b32.xlu0 %v2835, 80
        %v2864 = vpop.permute.xlu0 %2863
        %2865 = vrot.lane.b32.xlu0 %v2836, 80
        %v2866 = vpop.permute.xlu0 %2865
        %2867 = vrot.lane.b32.xlu0 %v2837, 80
        %v2868 = vpop.permute.xlu0 %2867
        %2869 = vrot.lane.b32.xlu0 %v2838, 80
        %v2870 = vpop.permute.xlu0 %2869
        %2871 = vrot.lane.b32.xlu0 %v2839, 80
        %v2872 = vpop.permute.xlu0 %2871
        %2873 = vrot.lane.b32.xlu0 %v2840, 80
        %v2874 = vpop.permute.xlu0 %2873
        %2875 = vrot.lane.b32.xlu0 %v2841, 80
        %v2876 = vpop.permute.xlu0 %2875
        %2877 = vrot.lane.b32.xlu0 %v2842, 80
        %v2878 = vpop.permute.xlu0 %2877
        %v2879 = vsel %vm946, %v2856, %v2858
        %v2880 = vsel %vm946, %v2858, %v2860
        %v2881 = vsel %vm946, %v2862, %v2864
        %v2882 = vsel %vm946, %v2864, %v2866
        %v2883 = vsel %vm946, %v2868, %v2870
        %v2884 = vsel %vm946, %v2870, %v2872
        %v2885 = vsel %vm946, %v2874, %v2876
        %v2886 = vsel %vm946, %v2876, %v2878
        %v2899 = vadd.f32 %v2803, %v2856
        %v2900 = vadd.f32 %v2804, %v2879
        %v2901 = vadd.f32 %v2805, %v2880
        %v2902 = vadd.f32 %v2806, %v2862
        %v2903 = vadd.f32 %v2807, %v2881
        %v2904 = vadd.f32 %v2808, %v2882
        %v2905 = vadd.f32 %v2809, %v2868
        %v2906 = vadd.f32 %v2810, %v2883
        %v2907 = vadd.f32 %v2811, %v2884
        %v2908 = vadd.f32 %v2812, %v2874
        %v2909 = vadd.f32 %v2813, %v2885
        %v2910 = vadd.f32 %v2814, %v2886
        %2911 = vset.pattern.permute.xlu0 24
        %2912 = vperm.xlu0 %2911, %v640
        %v2913 = vpop.permute.xlu0 %2912
        %2915 = vset.pattern.permute.xlu0 24
        %2916 = vperm.xlu0 %2915, %v641
        %v2917 = vpop.permute.xlu0 %2916
        %2919 = vset.pattern.permute.xlu0 24
        %2920 = vperm.xlu0 %2919, %v642
        %v2921 = vpop.permute.xlu0 %2920
        %2923 = vset.pattern.permute.xlu0 24
        %2924 = vperm.xlu0 %2923, %v643
        %v2925 = vpop.permute.xlu0 %2924
        %v2927 = vmul.f32 %v870, %v2913
        %v2928 = vmul.f32 %v871, %v2913
        %v2929 = vmul.f32 %v872, %v2913
        %v2930 = vmul.f32 %v873, %v2917
        %v2931 = vmul.f32 %v874, %v2917
        %v2932 = vmul.f32 %v875, %v2917
        %v2933 = vmul.f32 %v876, %v2921
        %v2934 = vmul.f32 %v877, %v2921
        %v2935 = vmul.f32 %v878, %v2921
        %v2936 = vmul.f32 %v879, %v2925
        %v2937 = vmul.f32 %v880, %v2925
        %v2938 = vmul.f32 %v881, %v2925
        %2951 = vrot.lane.b32.xlu0 %v2927, 64
        %v2952 = vpop.permute.xlu0 %2951
        %2953 = vrot.lane.b32.xlu0 %v2928, 64
        %v2954 = vpop.permute.xlu0 %2953
        %2955 = vrot.lane.b32.xlu0 %v2929, 64
        %v2956 = vpop.permute.xlu0 %2955
        %2957 = vrot.lane.b32.xlu0 %v2930, 64
        %v2958 = vpop.permute.xlu0 %2957
        %2959 = vrot.lane.b32.xlu0 %v2931, 64
        %v2960 = vpop.permute.xlu0 %2959
        %2961 = vrot.lane.b32.xlu0 %v2932, 64
        %v2962 = vpop.permute.xlu0 %2961
        %2963 = vrot.lane.b32.xlu0 %v2933, 64
        %v2964 = vpop.permute.xlu0 %2963
        %2965 = vrot.lane.b32.xlu0 %v2934, 64
        %v2966 = vpop.permute.xlu0 %2965
        %2967 = vrot.lane.b32.xlu0 %v2935, 64
        %v2968 = vpop.permute.xlu0 %2967
        %2969 = vrot.lane.b32.xlu0 %v2936, 64
        %v2970 = vpop.permute.xlu0 %2969
        %2971 = vrot.lane.b32.xlu0 %v2937, 64
        %v2972 = vpop.permute.xlu0 %2971
        %2973 = vrot.lane.b32.xlu0 %v2938, 64
        %v2974 = vpop.permute.xlu0 %2973
        %v2975 = vsel %vm1043, %v2952, %v2954
        %v2976 = vsel %vm1043, %v2954, %v2956
        %v2977 = vsel %vm1043, %v2958, %v2960
        %v2978 = vsel %vm1043, %v2960, %v2962
        %v2979 = vsel %vm1043, %v2964, %v2966
        %v2980 = vsel %vm1043, %v2966, %v2968
        %v2981 = vsel %vm1043, %v2970, %v2972
        %v2982 = vsel %vm1043, %v2972, %v2974
        %v2995 = vadd.f32 %v2899, %v2952
        %v2996 = vadd.f32 %v2900, %v2975
        %v2997 = vadd.f32 %v2901, %v2976
        %v2998 = vadd.f32 %v2902, %v2958
        %v2999 = vadd.f32 %v2903, %v2977
        %v3000 = vadd.f32 %v2904, %v2978
        %v3001 = vadd.f32 %v2905, %v2964
        %v3002 = vadd.f32 %v2906, %v2979
        %v3003 = vadd.f32 %v2907, %v2980
        %v3004 = vadd.f32 %v2908, %v2970
        %v3005 = vadd.f32 %v2909, %v2981
        %v3006 = vadd.f32 %v2910, %v2982
        %s3007 = scalar_lea.vmem %s2, 10
        %v3008 = vld [vmem:[%s3007] sm:$0x3]
        %v3010 = vlaneseq
        %v3011 = vshrl.u32 %v3010, 7
        %v3012 = vsub.s32 0, %v3011
        %v3013 = vrot.slane %v3008, %v3012
        %v3014 = vlaneseq
        %v3015 = vshrl.u32 %v3014, 7
        %v3016 = vsub.s32 1, %v3015
        %v3017 = vrot.slane %v3008, %v3016
        %3018 = vrot.lane.b32.xlu0 %v3013, 98
        %v3019 = vpop.permute.xlu0 %3018
        %3020 = vrot.lane.b32.xlu0 %v3017, 98
        %v3021 = vpop.permute.xlu0 %3020
        %vm3022 = vcmask 801792
        %v3023 = vsel %vm3022, %v3019, %v3021
        %v3027 = vmul.f32 %v2995, %v3019
        %v3028 = vmul.f32 %v2996, %v3023
        %v3029 = vmul.f32 %v2997, %v3021
        %v3030 = vmul.f32 %v2998, %v3019
        %v3031 = vmul.f32 %v2999, %v3023
        %v3032 = vmul.f32 %v3000, %v3021
        %v3033 = vmul.f32 %v3001, %v3019
        %v3034 = vmul.f32 %v3002, %v3023
        %v3035 = vmul.f32 %v3003, %v3021
        %v3036 = vmul.f32 %v3004, %v3019
        %v3037 = vmul.f32 %v3005, %v3023
        %v3038 = vmul.f32 %v3006, %v3021
        %3051 = vrot.lane.b32.xlu0 %v3027, 124
        %v3052 = vpop.permute.xlu0 %3051
        %3053 = vrot.lane.b32.xlu0 %v3028, 124
        %v3054 = vpop.permute.xlu0 %3053
        %3055 = vrot.lane.b32.xlu0 %v3029, 124
        %v3056 = vpop.permute.xlu0 %3055
        %3057 = vrot.lane.b32.xlu0 %v3030, 124
        %v3058 = vpop.permute.xlu0 %3057
        %3059 = vrot.lane.b32.xlu0 %v3031, 124
        %v3060 = vpop.permute.xlu0 %3059
        %3061 = vrot.lane.b32.xlu0 %v3032, 124
        %v3062 = vpop.permute.xlu0 %3061
        %3063 = vrot.lane.b32.xlu0 %v3033, 124
        %v3064 = vpop.permute.xlu0 %3063
        %3065 = vrot.lane.b32.xlu0 %v3034, 124
        %v3066 = vpop.permute.xlu0 %3065
        %3067 = vrot.lane.b32.xlu0 %v3035, 124
        %v3068 = vpop.permute.xlu0 %3067
        %3069 = vrot.lane.b32.xlu0 %v3036, 124
        %v3070 = vpop.permute.xlu0 %3069
        %3071 = vrot.lane.b32.xlu0 %v3037, 124
        %v3072 = vpop.permute.xlu0 %3071
        %3073 = vrot.lane.b32.xlu0 %v3038, 124
        %v3074 = vpop.permute.xlu0 %3073
        %vm3075 = vcmask 1014784
        %v3076 = vsel %vm3075, %v3052, %v3054
        %v3077 = vsel %vm3075, %v3054, %v3056
        %v3078 = vsel %vm3075, %v3058, %v3060
        %v3079 = vsel %vm3075, %v3060, %v3062
        %v3080 = vsel %vm3075, %v3064, %v3066
        %v3081 = vsel %vm3075, %v3066, %v3068
        %v3082 = vsel %vm3075, %v3070, %v3072
        %v3083 = vsel %vm3075, %v3072, %v3074
        %v3096 = vadd.f32 %v2583, %v3076
        %v3097 = vadd.f32 %v2584, %v3077
        %v3098 = vadd.f32 %v2585, %v3056
        %v3099 = vadd.f32 %v2586, %v3078
        %v3100 = vadd.f32 %v2587, %v3079
        %v3101 = vadd.f32 %v2588, %v3062
        %v3102 = vadd.f32 %v2589, %v3080
        %v3103 = vadd.f32 %v2590, %v3081
        %v3104 = vadd.f32 %v2591, %v3068
        %v3105 = vadd.f32 %v2592, %v3082
        %v3106 = vadd.f32 %v2593, %v3083
        %v3107 = vadd.f32 %v2594, %v3074
        %v3108 = vld [vmem:[%s4] sm:$0xff]
        %v3109 = vld [vmem:[%s4 + $0x8] sm:$0xff]
        %v3110 = vld [vmem:[%s4 + $0x10] sm:$0xff]
        %v3111 = vld [vmem:[%s4 + $0x18] sm:$0xff]
        %3113 = vset.pattern.permute.xlu0 1
        %3114 = vperm.xlu0 %3113, %v3108
        %v3115 = vpop.permute.xlu0 %3114
        %3118 = vset.pattern.permute.xlu0 1
        %3119 = vperm.xlu0 %3118, %v3109
        %v3120 = vpop.permute.xlu0 %3119
        %3123 = vset.pattern.permute.xlu0 1
        %3124 = vperm.xlu0 %3123, %v3110
        %v3125 = vpop.permute.xlu0 %3124
        %3128 = vset.pattern.permute.xlu0 1
        %3129 = vperm.xlu0 %3128, %v3111
        %v3130 = vpop.permute.xlu0 %3129
        %v3132 = vadd.f32 %v3096, %v3115
        %v3133 = vadd.f32 %v3097, %v3115
        %v3134 = vadd.f32 %v3098, %v3115
        %v3135 = vadd.f32 %v3099, %v3120
        %v3136 = vadd.f32 %v3100, %v3120
        %v3137 = vadd.f32 %v3101, %v3120
        %v3138 = vadd.f32 %v3102, %v3125
        %v3139 = vadd.f32 %v3103, %v3125
        %v3140 = vadd.f32 %v3104, %v3125
        %v3141 = vadd.f32 %v3105, %v3130
        %v3142 = vadd.f32 %v3106, %v3130
        %v3143 = vadd.f32 %v3107, %v3130
        %3156 = vrot.lane.b32.xlu0 %v3132, 34
        %v3157 = vpop.permute.xlu0 %3156
        %3158 = vrot.lane.b32.xlu0 %v3133, 34
        %v3159 = vpop.permute.xlu0 %3158
        %3160 = vrot.lane.b32.xlu0 %v3134, 34
        %v3161 = vpop.permute.xlu0 %3160
        %3162 = vrot.lane.b32.xlu0 %v3135, 34
        %v3163 = vpop.permute.xlu0 %3162
        %3164 = vrot.lane.b32.xlu0 %v3136, 34
        %v3165 = vpop.permute.xlu0 %3164
        %3166 = vrot.lane.b32.xlu0 %v3137, 34
        %v3167 = vpop.permute.xlu0 %3166
        %3168 = vrot.lane.b32.xlu0 %v3138, 34
        %v3169 = vpop.permute.xlu0 %3168
        %3170 = vrot.lane.b32.xlu0 %v3139, 34
        %v3171 = vpop.permute.xlu0 %3170
        %3172 = vrot.lane.b32.xlu0 %v3140, 34
        %v3173 = vpop.permute.xlu0 %3172
        %3174 = vrot.lane.b32.xlu0 %v3141, 34
        %v3175 = vpop.permute.xlu0 %3174
        %3176 = vrot.lane.b32.xlu0 %v3142, 34
        %v3177 = vpop.permute.xlu0 %3176
        %3178 = vrot.lane.b32.xlu0 %v3143, 34
        %v3179 = vpop.permute.xlu0 %3178
        %vm3180 = vcmask 277504
        %v3181 = vsel %vm3180, %v3157, %v3159
        %v3182 = vsel %vm3180, %v3159, %v3161
        %v3183 = vsel %vm3180, %v3163, %v3165
        %v3184 = vsel %vm3180, %v3165, %v3167
        %v3185 = vsel %vm3180, %v3169, %v3171
        %v3186 = vsel %vm3180, %v3171, %v3173
        %v3187 = vsel %vm3180, %v3175, %v3177
        %v3188 = vsel %vm3180, %v3177, %v3179
        %3197 = vst [vmem:[#allocation2 + $0x8] sm:$0xff] %v3181
        %3198 = vst [vmem:[#allocation2 + $0x10] sm:$0xff] %v3182
        %3199 = vst [vmem:[#allocation2 + $0x28] sm:$0xff] %v3183
        %3200 = vst [vmem:[#allocation2 + $0x30] sm:$0xff] %v3184
        %3201 = vst [vmem:[#allocation2 + $0x48] sm:$0xff] %v3185
        %3202 = vst [vmem:[#allocation2 + $0x50] sm:$0xff] %v3186
        %3203 = vst [vmem:[#allocation2 + $0x68] sm:$0xff] %v3187
        %3204 = vst [vmem:[#allocation2 + $0x70] sm:$0xff] %v3188
        %v3205 = vld [vmem:[#allocation2] sm:$0xff]
        %v3206 = vld [vmem:[#allocation2 + $0x8] sm:$0xff]
        %v3207 = vld [vmem:[#allocation2 + $0x10] sm:$0xff]
        %v3208 = vld [vmem:[#allocation2 + $0x20] sm:$0xff]
        %v3209 = vld [vmem:[#allocation2 + $0x28] sm:$0xff]
        %v3210 = vld [vmem:[#allocation2 + $0x30] sm:$0xff]
        %v3211 = vld [vmem:[#allocation2 + $0x40] sm:$0xff]
        %v3212 = vld [vmem:[#allocation2 + $0x48] sm:$0xff]
        %v3213 = vld [vmem:[#allocation2 + $0x50] sm:$0xff]
        %v3214 = vld [vmem:[#allocation2 + $0x60] sm:$0xff]
        %v3215 = vld [vmem:[#allocation2 + $0x68] sm:$0xff]
        %v3216 = vld [vmem:[#allocation2 + $0x70] sm:$0xff]
        %v3217 = vld [vmem:[%s1] sm:$0xff]
        %v3218 = vld [vmem:[%s1 + $0x8] sm:$0xff]
        %v3219 = vld [vmem:[%s1 + $0x10] sm:$0xff]
        %v3220 = vld [vmem:[%s1 + $0x18] sm:$0xff]
        %3222 = vset.pattern.permute.xlu0 25
        %3223 = vperm.xlu0 %3222, %v3217
        %v3224 = vpop.permute.xlu0 %3223
        %3227 = vset.pattern.permute.xlu0 25
        %3228 = vperm.xlu0 %3227, %v3218
        %v3229 = vpop.permute.xlu0 %3228
        %3232 = vset.pattern.permute.xlu0 25
        %3233 = vperm.xlu0 %3232, %v3219
        %v3234 = vpop.permute.xlu0 %3233
        %3237 = vset.pattern.permute.xlu0 25
        %3238 = vperm.xlu0 %3237, %v3220
        %v3239 = vpop.permute.xlu0 %3238
        %v3241 = vmul.f32 %v3205, %v3224
        %v3242 = vmul.f32 %v3206, %v3224
        %v3243 = vmul.f32 %v3207, %v3224
        %v3244 = vmul.f32 %v3208, %v3229
        %v3245 = vmul.f32 %v3209, %v3229
        %v3246 = vmul.f32 %v3210, %v3229
        %v3247 = vmul.f32 %v3211, %v3234
        %v3248 = vmul.f32 %v3212, %v3234
        %v3249 = vmul.f32 %v3213, %v3234
        %v3250 = vmul.f32 %v3214, %v3239
        %v3251 = vmul.f32 %v3215, %v3239
        %v3252 = vmul.f32 %v3216, %v3239
        %3253 = vset.pattern.permute.xlu0 32
        %3254 = vperm.xlu0 %3253, %v3217
        %v3255 = vpop.permute.xlu0 %3254
        %3257 = vset.pattern.permute.xlu0 32
        %3258 = vperm.xlu0 %3257, %v3218
        %v3259 = vpop.permute.xlu0 %3258
        %3261 = vset.pattern.permute.xlu0 32
        %3262 = vperm.xlu0 %3261, %v3219
        %v3263 = vpop.permute.xlu0 %3262
        %3265 = vset.pattern.permute.xlu0 32
        %3266 = vperm.xlu0 %3265, %v3220
        %v3267 = vpop.permute.xlu0 %3266
        %v3269 = vmul.f32 %v3205, %v3255
        %v3270 = vmul.f32 %v3206, %v3255
        %v3271 = vmul.f32 %v3207, %v3255
        %v3272 = vmul.f32 %v3208, %v3259
        %v3273 = vmul.f32 %v3209, %v3259
        %v3274 = vmul.f32 %v3210, %v3259
        %v3275 = vmul.f32 %v3211, %v3263
        %v3276 = vmul.f32 %v3212, %v3263
        %v3277 = vmul.f32 %v3213, %v3263
        %v3278 = vmul.f32 %v3214, %v3267
        %v3279 = vmul.f32 %v3215, %v3267
        %v3280 = vmul.f32 %v3216, %v3267
        %3293 = vrot.lane.b32.xlu0 %v3269, 112
        %v3294 = vpop.permute.xlu0 %3293
        %3295 = vrot.lane.b32.xlu0 %v3270, 112
        %v3296 = vpop.permute.xlu0 %3295
        %3297 = vrot.lane.b32.xlu0 %v3271, 112
        %v3298 = vpop.permute.xlu0 %3297
        %3299 = vrot.lane.b32.xlu0 %v3272, 112
        %v3300 = vpop.permute.xlu0 %3299
        %3301 = vrot.lane.b32.xlu0 %v3273, 112
        %v3302 = vpop.permute.xlu0 %3301
        %3303 = vrot.lane.b32.xlu0 %v3274, 112
        %v3304 = vpop.permute.xlu0 %3303
        %3305 = vrot.lane.b32.xlu0 %v3275, 112
        %v3306 = vpop.permute.xlu0 %3305
        %3307 = vrot.lane.b32.xlu0 %v3276, 112
        %v3308 = vpop.permute.xlu0 %3307
        %3309 = vrot.lane.b32.xlu0 %v3277, 112
        %v3310 = vpop.permute.xlu0 %3309
        %3311 = vrot.lane.b32.xlu0 %v3278, 112
        %v3312 = vpop.permute.xlu0 %3311
        %3313 = vrot.lane.b32.xlu0 %v3279, 112
        %v3314 = vpop.permute.xlu0 %3313
        %3315 = vrot.lane.b32.xlu0 %v3280, 112
        %v3316 = vpop.permute.xlu0 %3315
        %v3317 = vsel %vm740, %v3294, %v3296
        %v3318 = vsel %vm740, %v3296, %v3298
        %v3319 = vsel %vm740, %v3300, %v3302
        %v3320 = vsel %vm740, %v3302, %v3304
        %v3321 = vsel %vm740, %v3306, %v3308
        %v3322 = vsel %vm740, %v3308, %v3310
        %v3323 = vsel %vm740, %v3312, %v3314
        %v3324 = vsel %vm740, %v3314, %v3316
        %v3337 = vadd.f32 %v3241, %v3317
        %v3338 = vadd.f32 %v3242, %v3318
        %v3339 = vadd.f32 %v3243, %v3298
        %v3340 = vadd.f32 %v3244, %v3319
        %v3341 = vadd.f32 %v3245, %v3320
        %v3342 = vadd.f32 %v3246, %v3304
        %v3343 = vadd.f32 %v3247, %v3321
        %v3344 = vadd.f32 %v3248, %v3322
        %v3345 = vadd.f32 %v3249, %v3310
        %v3346 = vadd.f32 %v3250, %v3323
        %v3347 = vadd.f32 %v3251, %v3324
        %v3348 = vadd.f32 %v3252, %v3316
        %v3349 = vld [vmem:[#allocation2 + $0x8] sm:$0xff]
        %v3350 = vld [vmem:[#allocation2 + $0x10] sm:$0xff]
        %v3351 = vld [vmem:[#allocation2 + $0x18] sm:$0xff]
        %v3352 = vld [vmem:[#allocation2 + $0x28] sm:$0xff]
        %v3353 = vld [vmem:[#allocation2 + $0x30] sm:$0xff]
        %v3354 = vld [vmem:[#allocation2 + $0x38] sm:$0xff]
        %v3355 = vld [vmem:[#allocation2 + $0x48] sm:$0xff]
        %v3356 = vld [vmem:[#allocation2 + $0x50] sm:$0xff]
        %v3357 = vld [vmem:[#allocation2 + $0x58] sm:$0xff]
        %v3358 = vld [vmem:[#allocation2 + $0x68] sm:$0xff]
        %v3359 = vld [vmem:[#allocation2 + $0x70] sm:$0xff]
        %v3360 = vld [vmem:[#allocation2 + $0x78] sm:$0xff]
        %3361 = vset.pattern.permute.xlu0 39
        %3362 = vperm.xlu0 %3361, %v3217
        %v3363 = vpop.permute.xlu0 %3362
        %3365 = vset.pattern.permute.xlu0 39
        %3366 = vperm.xlu0 %3365, %v3218
        %v3367 = vpop.permute.xlu0 %3366
        %3369 = vset.pattern.permute.xlu0 39
        %3370 = vperm.xlu0 %3369, %v3219
        %v3371 = vpop.permute.xlu0 %3370
        %3373 = vset.pattern.permute.xlu0 39
        %3374 = vperm.xlu0 %3373, %v3220
        %v3375 = vpop.permute.xlu0 %3374
        %v3377 = vmul.f32 %v3349, %v3363
        %v3378 = vmul.f32 %v3350, %v3363
        %v3379 = vmul.f32 %v3351, %v3363
        %v3380 = vmul.f32 %v3352, %v3367
        %v3381 = vmul.f32 %v3353, %v3367
        %v3382 = vmul.f32 %v3354, %v3367
        %v3383 = vmul.f32 %v3355, %v3371
        %v3384 = vmul.f32 %v3356, %v3371
        %v3385 = vmul.f32 %v3357, %v3371
        %v3386 = vmul.f32 %v3358, %v3375
        %v3387 = vmul.f32 %v3359, %v3375
        %v3388 = vmul.f32 %v3360, %v3375
        %3401 = vrot.lane.b32.xlu0 %v3377, 96
        %v3402 = vpop.permute.xlu0 %3401
        %3403 = vrot.lane.b32.xlu0 %v3378, 96
        %v3404 = vpop.permute.xlu0 %3403
        %3405 = vrot.lane.b32.xlu0 %v3379, 96
        %v3406 = vpop.permute.xlu0 %3405
        %3407 = vrot.lane.b32.xlu0 %v3380, 96
        %v3408 = vpop.permute.xlu0 %3407
        %3409 = vrot.lane.b32.xlu0 %v3381, 96
        %v3410 = vpop.permute.xlu0 %3409
        %3411 = vrot.lane.b32.xlu0 %v3382, 96
        %v3412 = vpop.permute.xlu0 %3411
        %3413 = vrot.lane.b32.xlu0 %v3383, 96
        %v3414 = vpop.permute.xlu0 %3413
        %3415 = vrot.lane.b32.xlu0 %v3384, 96
        %v3416 = vpop.permute.xlu0 %3415
        %3417 = vrot.lane.b32.xlu0 %v3385, 96
        %v3418 = vpop.permute.xlu0 %3417
        %3419 = vrot.lane.b32.xlu0 %v3386, 96
        %v3420 = vpop.permute.xlu0 %3419
        %3421 = vrot.lane.b32.xlu0 %v3387, 96
        %v3422 = vpop.permute.xlu0 %3421
        %3423 = vrot.lane.b32.xlu0 %v3388, 96
        %v3424 = vpop.permute.xlu0 %3423
        %v3425 = vsel %vm837, %v3402, %v3404
        %v3426 = vsel %vm837, %v3404, %v3406
        %v3427 = vsel %vm837, %v3408, %v3410
        %v3428 = vsel %vm837, %v3410, %v3412
        %v3429 = vsel %vm837, %v3414, %v3416
        %v3430 = vsel %vm837, %v3416, %v3418
        %v3431 = vsel %vm837, %v3420, %v3422
        %v3432 = vsel %vm837, %v3422, %v3424
        %v3445 = vadd.f32 %v3337, %v3402
        %v3446 = vadd.f32 %v3338, %v3425
        %v3447 = vadd.f32 %v3339, %v3426
        %v3448 = vadd.f32 %v3340, %v3408
        %v3449 = vadd.f32 %v3341, %v3427
        %v3450 = vadd.f32 %v3342, %v3428
        %v3451 = vadd.f32 %v3343, %v3414
        %v3452 = vadd.f32 %v3344, %v3429
        %v3453 = vadd.f32 %v3345, %v3430
        %v3454 = vadd.f32 %v3346, %v3420
        %v3455 = vadd.f32 %v3347, %v3431
        %v3456 = vadd.f32 %v3348, %v3432
        %v3457 = vld [vmem:[%s2] sm:$0x3]
        %v3459 = vlaneseq
        %v3460 = vshrl.u32 %v3459, 7
        %v3461 = vsub.s32 0, %v3460
        %v3462 = vrot.slane %v3457, %v3461
        %v3463 = vlaneseq
        %v3464 = vshrl.u32 %v3463, 7
        %v3465 = vsub.s32 1, %v3464
        %v3466 = vrot.slane %v3457, %v3465
        %3467 = vrot.lane.b32.xlu0 %v3462, 109
        %v3468 = vpop.permute.xlu0 %3467
        %3469 = vrot.lane.b32.xlu0 %v3466, 109
        %v3470 = vpop.permute.xlu0 %3469
        %vm3471 = vcmask 891904
        %v3472 = vsel %vm3471, %v3468, %v3470
        %v3476 = vmul.f32 %v3445, %v3468
        %v3477 = vmul.f32 %v3446, %v3472
        %v3478 = vmul.f32 %v3447, %v3470
        %v3479 = vmul.f32 %v3448, %v3468
        %v3480 = vmul.f32 %v3449, %v3472
        %v3481 = vmul.f32 %v3450, %v3470
        %v3482 = vmul.f32 %v3451, %v3468
        %v3483 = vmul.f32 %v3452, %v3472
        %v3484 = vmul.f32 %v3453, %v3470
        %v3485 = vmul.f32 %v3454, %v3468
        %v3486 = vmul.f32 %v3455, %v3472
        %v3487 = vmul.f32 %v3456, %v3470
        %3488 = vset.pattern.permute.xlu0 26
        %3489 = vperm.xlu0 %3488, %v3217
        %v3490 = vpop.permute.xlu0 %3489
        %3492 = vset.pattern.permute.xlu0 26
        %3493 = vperm.xlu0 %3492, %v3218
        %v3494 = vpop.permute.xlu0 %3493
        %3496 = vset.pattern.permute.xlu0 26
        %3497 = vperm.xlu0 %3496, %v3219
        %v3498 = vpop.permute.xlu0 %3497
        %3500 = vset.pattern.permute.xlu0 26
        %3501 = vperm.xlu0 %3500, %v3220
        %v3502 = vpop.permute.xlu0 %3501
        %v3504 = vmul.f32 %v3205, %v3490
        %v3505 = vmul.f32 %v3206, %v3490
        %v3506 = vmul.f32 %v3207, %v3490
        %v3507 = vmul.f32 %v3208, %v3494
        %v3508 = vmul.f32 %v3209, %v3494
        %v3509 = vmul.f32 %v3210, %v3494
        %v3510 = vmul.f32 %v3211, %v3498
        %v3511 = vmul.f32 %v3212, %v3498
        %v3512 = vmul.f32 %v3213, %v3498
        %v3513 = vmul.f32 %v3214, %v3502
        %v3514 = vmul.f32 %v3215, %v3502
        %v3515 = vmul.f32 %v3216, %v3502
        %3516 = vset.pattern.permute.xlu0 33
        %3517 = vperm.xlu0 %3516, %v3217
        %v3518 = vpop.permute.xlu0 %3517
        %3520 = vset.pattern.permute.xlu0 33
        %3521 = vperm.xlu0 %3520, %v3218
        %v3522 = vpop.permute.xlu0 %3521
        %3524 = vset.pattern.permute.xlu0 33
        %3525 = vperm.xlu0 %3524, %v3219
        %v3526 = vpop.permute.xlu0 %3525
        %3528 = vset.pattern.permute.xlu0 33
        %3529 = vperm.xlu0 %3528, %v3220
        %v3530 = vpop.permute.xlu0 %3529
        %v3532 = vmul.f32 %v3205, %v3518
        %v3533 = vmul.f32 %v3206, %v3518
        %v3534 = vmul.f32 %v3207, %v3518
        %v3535 = vmul.f32 %v3208, %v3522
        %v3536 = vmul.f32 %v3209, %v3522
        %v3537 = vmul.f32 %v3210, %v3522
        %v3538 = vmul.f32 %v3211, %v3526
        %v3539 = vmul.f32 %v3212, %v3526
        %v3540 = vmul.f32 %v3213, %v3526
        %v3541 = vmul.f32 %v3214, %v3530
        %v3542 = vmul.f32 %v3215, %v3530
        %v3543 = vmul.f32 %v3216, %v3530
        %3556 = vrot.lane.b32.xlu0 %v3532, 112
        %v3557 = vpop.permute.xlu0 %3556
        %3558 = vrot.lane.b32.xlu0 %v3533, 112
        %v3559 = vpop.permute.xlu0 %3558
        %3560 = vrot.lane.b32.xlu0 %v3534, 112
        %v3561 = vpop.permute.xlu0 %3560
        %3562 = vrot.lane.b32.xlu0 %v3535, 112
        %v3563 = vpop.permute.xlu0 %3562
        %3564 = vrot.lane.b32.xlu0 %v3536, 112
        %v3565 = vpop.permute.xlu0 %3564
        %3566 = vrot.lane.b32.xlu0 %v3537, 112
        %v3567 = vpop.permute.xlu0 %3566
        %3568 = vrot.lane.b32.xlu0 %v3538, 112
        %v3569 = vpop.permute.xlu0 %3568
        %3570 = vrot.lane.b32.xlu0 %v3539, 112
        %v3571 = vpop.permute.xlu0 %3570
        %3572 = vrot.lane.b32.xlu0 %v3540, 112
        %v3573 = vpop.permute.xlu0 %3572
        %3574 = vrot.lane.b32.xlu0 %v3541, 112
        %v3575 = vpop.permute.xlu0 %3574
        %3576 = vrot.lane.b32.xlu0 %v3542, 112
        %v3577 = vpop.permute.xlu0 %3576
        %3578 = vrot.lane.b32.xlu0 %v3543, 112
        %v3579 = vpop.permute.xlu0 %3578
        %v3580 = vsel %vm740, %v3557, %v3559
        %v3581 = vsel %vm740, %v3559, %v3561
        %v3582 = vsel %vm740, %v3563, %v3565
        %v3583 = vsel %vm740, %v3565, %v3567
        %v3584 = vsel %vm740, %v3569, %v3571
        %v3585 = vsel %vm740, %v3571, %v3573
        %v3586 = vsel %vm740, %v3575, %v3577
        %v3587 = vsel %vm740, %v3577, %v3579
        %v3600 = vadd.f32 %v3504, %v3580
        %v3601 = vadd.f32 %v3505, %v3581
        %v3602 = vadd.f32 %v3506, %v3561
        %v3603 = vadd.f32 %v3507, %v3582
        %v3604 = vadd.f32 %v3508, %v3583
        %v3605 = vadd.f32 %v3509, %v3567
        %v3606 = vadd.f32 %v3510, %v3584
        %v3607 = vadd.f32 %v3511, %v3585
        %v3608 = vadd.f32 %v3512, %v3573
        %v3609 = vadd.f32 %v3513, %v3586
        %v3610 = vadd.f32 %v3514, %v3587
        %v3611 = vadd.f32 %v3515, %v3579
        %3612 = vset.pattern.permute.xlu0 40
        %3613 = vperm.xlu0 %3612, %v3217
        %v3614 = vpop.permute.xlu0 %3613
        %3616 = vset.pattern.permute.xlu0 40
        %3617 = vperm.xlu0 %3616, %v3218
        %v3618 = vpop.permute.xlu0 %3617
        %3620 = vset.pattern.permute.xlu0 40
        %3621 = vperm.xlu0 %3620, %v3219
        %v3622 = vpop.permute.xlu0 %3621
        %3624 = vset.pattern.permute.xlu0 40
        %3625 = vperm.xlu0 %3624, %v3220
        %v3626 = vpop.permute.xlu0 %3625
        %v3628 = vmul.f32 %v3349, %v3614
        %v3629 = vmul.f32 %v3350, %v3614
        %v3630 = vmul.f32 %v3351, %v3614
        %v3631 = vmul.f32 %v3352, %v3618
        %v3632 = vmul.f32 %v3353, %v3618
        %v3633 = vmul.f32 %v3354, %v3618
        %v3634 = vmul.f32 %v3355, %v3622
        %v3635 = vmul.f32 %v3356, %v3622
        %v3636 = vmul.f32 %v3357, %v3622
        %v3637 = vmul.f32 %v3358, %v3626
        %v3638 = vmul.f32 %v3359, %v3626
        %v3639 = vmul.f32 %v3360, %v3626
        %3652 = vrot.lane.b32.xlu0 %v3628, 96
        %v3653 = vpop.permute.xlu0 %3652
        %3654 = vrot.lane.b32.xlu0 %v3629, 96
        %v3655 = vpop.permute.xlu0 %3654
        %3656 = vrot.lane.b32.xlu0 %v3630, 96
        %v3657 = vpop.permute.xlu0 %3656
        %3658 = vrot.lane.b32.xlu0 %v3631, 96
        %v3659 = vpop.permute.xlu0 %3658
        %3660 = vrot.lane.b32.xlu0 %v3632, 96
        %v3661 = vpop.permute.xlu0 %3660
        %3662 = vrot.lane.b32.xlu0 %v3633, 96
        %v3663 = vpop.permute.xlu0 %3662
        %3664 = vrot.lane.b32.xlu0 %v3634, 96
        %v3665 = vpop.permute.xlu0 %3664
        %3666 = vrot.lane.b32.xlu0 %v3635, 96
        %v3667 = vpop.permute.xlu0 %3666
        %3668 = vrot.lane.b32.xlu0 %v3636, 96
        %v3669 = vpop.permute.xlu0 %3668
        %3670 = vrot.lane.b32.xlu0 %v3637, 96
        %v3671 = vpop.permute.xlu0 %3670
        %3672 = vrot.lane.b32.xlu0 %v3638, 96
        %v3673 = vpop.permute.xlu0 %3672
        %3674 = vrot.lane.b32.xlu0 %v3639, 96
        %v3675 = vpop.permute.xlu0 %3674
        %v3676 = vsel %vm837, %v3653, %v3655
        %v3677 = vsel %vm837, %v3655, %v3657
        %v3678 = vsel %vm837, %v3659, %v3661
        %v3679 = vsel %vm837, %v3661, %v3663
        %v3680 = vsel %vm837, %v3665, %v3667
        %v3681 = vsel %vm837, %v3667, %v3669
        %v3682 = vsel %vm837, %v3671, %v3673
        %v3683 = vsel %vm837, %v3673, %v3675
        %v3696 = vadd.f32 %v3600, %v3653
        %v3697 = vadd.f32 %v3601, %v3676
        %v3698 = vadd.f32 %v3602, %v3677
        %v3699 = vadd.f32 %v3603, %v3659
        %v3700 = vadd.f32 %v3604, %v3678
        %v3701 = vadd.f32 %v3605, %v3679
        %v3702 = vadd.f32 %v3606, %v3665
        %v3703 = vadd.f32 %v3607, %v3680
        %v3704 = vadd.f32 %v3608, %v3681
        %v3705 = vadd.f32 %v3609, %v3671
        %v3706 = vadd.f32 %v3610, %v3682
        %v3707 = vadd.f32 %v3611, %v3683
        %v3708 = vld [vmem:[%s1076] sm:$0x3]
        %v3710 = vlaneseq
        %v3711 = vshrl.u32 %v3710, 7
        %v3712 = vsub.s32 0, %v3711
        %v3713 = vrot.slane %v3708, %v3712
        %v3714 = vlaneseq
        %v3715 = vshrl.u32 %v3714, 7
        %v3716 = vsub.s32 1, %v3715
        %v3717 = vrot.slane %v3708, %v3716
        %3718 = vrot.lane.b32.xlu0 %v3713, 110
        %v3719 = vpop.permute.xlu0 %3718
        %3720 = vrot.lane.b32.xlu0 %v3717, 110
        %v3721 = vpop.permute.xlu0 %3720
        %vm3722 = vcmask 900096
        %v3723 = vsel %vm3722, %v3719, %v3721
        %v3727 = vmul.f32 %v3696, %v3719
        %v3728 = vmul.f32 %v3697, %v3723
        %v3729 = vmul.f32 %v3698, %v3721
        %v3730 = vmul.f32 %v3699, %v3719
        %v3731 = vmul.f32 %v3700, %v3723
        %v3732 = vmul.f32 %v3701, %v3721
        %v3733 = vmul.f32 %v3702, %v3719
        %v3734 = vmul.f32 %v3703, %v3723
        %v3735 = vmul.f32 %v3704, %v3721
        %v3736 = vmul.f32 %v3705, %v3719
        %v3737 = vmul.f32 %v3706, %v3723
        %v3738 = vmul.f32 %v3707, %v3721
        %3751 = vrot.lane.b32.xlu0 %v3727, 127
        %v3752 = vpop.permute.xlu0 %3751
        %3753 = vrot.lane.b32.xlu0 %v3728, 127
        %v3754 = vpop.permute.xlu0 %3753
        %3755 = vrot.lane.b32.xlu0 %v3729, 127
        %v3756 = vpop.permute.xlu0 %3755
        %3757 = vrot.lane.b32.xlu0 %v3730, 127
        %v3758 = vpop.permute.xlu0 %3757
        %3759 = vrot.lane.b32.xlu0 %v3731, 127
        %v3760 = vpop.permute.xlu0 %3759
        %3761 = vrot.lane.b32.xlu0 %v3732, 127
        %v3762 = vpop.permute.xlu0 %3761
        %3763 = vrot.lane.b32.xlu0 %v3733, 127
        %v3764 = vpop.permute.xlu0 %3763
        %3765 = vrot.lane.b32.xlu0 %v3734, 127
        %v3766 = vpop.permute.xlu0 %3765
        %3767 = vrot.lane.b32.xlu0 %v3735, 127
        %v3768 = vpop.permute.xlu0 %3767
        %3769 = vrot.lane.b32.xlu0 %v3736, 127
        %v3770 = vpop.permute.xlu0 %3769
        %3771 = vrot.lane.b32.xlu0 %v3737, 127
        %v3772 = vpop.permute.xlu0 %3771
        %3773 = vrot.lane.b32.xlu0 %v3738, 127
        %v3774 = vpop.permute.xlu0 %3773
        %v3775 = vsel %vm1588, %v3752, %v3754
        %v3776 = vsel %vm1588, %v3754, %v3756
        %v3777 = vsel %vm1588, %v3758, %v3760
        %v3778 = vsel %vm1588, %v3760, %v3762
        %v3779 = vsel %vm1588, %v3764, %v3766
        %v3780 = vsel %vm1588, %v3766, %v3768
        %v3781 = vsel %vm1588, %v3770, %v3772
        %v3782 = vsel %vm1588, %v3772, %v3774
        %v3795 = vadd.f32 %v3476, %v3775
        %v3796 = vadd.f32 %v3477, %v3776
        %v3797 = vadd.f32 %v3478, %v3756
        %v3798 = vadd.f32 %v3479, %v3777
        %v3799 = vadd.f32 %v3480, %v3778
        %v3800 = vadd.f32 %v3481, %v3762
        %v3801 = vadd.f32 %v3482, %v3779
        %v3802 = vadd.f32 %v3483, %v3780
        %v3803 = vadd.f32 %v3484, %v3768
        %v3804 = vadd.f32 %v3485, %v3781
        %v3805 = vadd.f32 %v3486, %v3782
        %v3806 = vadd.f32 %v3487, %v3774
        %3807 = vset.pattern.permute.xlu0 27
        %3808 = vperm.xlu0 %3807, %v3217
        %v3809 = vpop.permute.xlu0 %3808
        %3811 = vset.pattern.permute.xlu0 27
        %3812 = vperm.xlu0 %3811, %v3218
        %v3813 = vpop.permute.xlu0 %3812
        %3815 = vset.pattern.permute.xlu0 27
        %3816 = vperm.xlu0 %3815, %v3219
        %v3817 = vpop.permute.xlu0 %3816
        %3819 = vset.pattern.permute.xlu0 27
        %3820 = vperm.xlu0 %3819, %v3220
        %v3821 = vpop.permute.xlu0 %3820
        %v3823 = vmul.f32 %v3205, %v3809
        %v3824 = vmul.f32 %v3206, %v3809
        %v3825 = vmul.f32 %v3207, %v3809
        %v3826 = vmul.f32 %v3208, %v3813
        %v3827 = vmul.f32 %v3209, %v3813
        %v3828 = vmul.f32 %v3210, %v3813
        %v3829 = vmul.f32 %v3211, %v3817
        %v3830 = vmul.f32 %v3212, %v3817
        %v3831 = vmul.f32 %v3213, %v3817
        %v3832 = vmul.f32 %v3214, %v3821
        %v3833 = vmul.f32 %v3215, %v3821
        %v3834 = vmul.f32 %v3216, %v3821
        %3835 = vset.pattern.permute.xlu0 34
        %3836 = vperm.xlu0 %3835, %v3217
        %v3837 = vpop.permute.xlu0 %3836
        %3839 = vset.pattern.permute.xlu0 34
        %3840 = vperm.xlu0 %3839, %v3218
        %v3841 = vpop.permute.xlu0 %3840
        %3843 = vset.pattern.permute.xlu0 34
        %3844 = vperm.xlu0 %3843, %v3219
        %v3845 = vpop.permute.xlu0 %3844
        %3847 = vset.pattern.permute.xlu0 34
        %3848 = vperm.xlu0 %3847, %v3220
        %v3849 = vpop.permute.xlu0 %3848
        %v3851 = vmul.f32 %v3205, %v3837
        %v3852 = vmul.f32 %v3206, %v3837
        %v3853 = vmul.f32 %v3207, %v3837
        %v3854 = vmul.f32 %v3208, %v3841
        %v3855 = vmul.f32 %v3209, %v3841
        %v3856 = vmul.f32 %v3210, %v3841
        %v3857 = vmul.f32 %v3211, %v3845
        %v3858 = vmul.f32 %v3212, %v3845
        %v3859 = vmul.f32 %v3213, %v3845
        %v3860 = vmul.f32 %v3214, %v3849
        %v3861 = vmul.f32 %v3215, %v3849
        %v3862 = vmul.f32 %v3216, %v3849
        %3875 = vrot.lane.b32.xlu0 %v3851, 112
        %v3876 = vpop.permute.xlu0 %3875
        %3877 = vrot.lane.b32.xlu0 %v3852, 112
        %v3878 = vpop.permute.xlu0 %3877
        %3879 = vrot.lane.b32.xlu0 %v3853, 112
        %v3880 = vpop.permute.xlu0 %3879
        %3881 = vrot.lane.b32.xlu0 %v3854, 112
        %v3882 = vpop.permute.xlu0 %3881
        %3883 = vrot.lane.b32.xlu0 %v3855, 112
        %v3884 = vpop.permute.xlu0 %3883
        %3885 = vrot.lane.b32.xlu0 %v3856, 112
        %v3886 = vpop.permute.xlu0 %3885
        %3887 = vrot.lane.b32.xlu0 %v3857, 112
        %v3888 = vpop.permute.xlu0 %3887
        %3889 = vrot.lane.b32.xlu0 %v3858, 112
        %v3890 = vpop.permute.xlu0 %3889
        %3891 = vrot.lane.b32.xlu0 %v3859, 112
        %v3892 = vpop.permute.xlu0 %3891
        %3893 = vrot.lane.b32.xlu0 %v3860, 112
        %v3894 = vpop.permute.xlu0 %3893
        %3895 = vrot.lane.b32.xlu0 %v3861, 112
        %v3896 = vpop.permute.xlu0 %3895
        %3897 = vrot.lane.b32.xlu0 %v3862, 112
        %v3898 = vpop.permute.xlu0 %3897
        %v3899 = vsel %vm740, %v3876, %v3878
        %v3900 = vsel %vm740, %v3878, %v3880
        %v3901 = vsel %vm740, %v3882, %v3884
        %v3902 = vsel %vm740, %v3884, %v3886
        %v3903 = vsel %vm740, %v3888, %v3890
        %v3904 = vsel %vm740, %v3890, %v3892
        %v3905 = vsel %vm740, %v3894, %v3896
        %v3906 = vsel %vm740, %v3896, %v3898
        %v3919 = vadd.f32 %v3823, %v3899
        %v3920 = vadd.f32 %v3824, %v3900
        %v3921 = vadd.f32 %v3825, %v3880
        %v3922 = vadd.f32 %v3826, %v3901
        %v3923 = vadd.f32 %v3827, %v3902
        %v3924 = vadd.f32 %v3828, %v3886
        %v3925 = vadd.f32 %v3829, %v3903
        %v3926 = vadd.f32 %v3830, %v3904
        %v3927 = vadd.f32 %v3831, %v3892
        %v3928 = vadd.f32 %v3832, %v3905
        %v3929 = vadd.f32 %v3833, %v3906
        %v3930 = vadd.f32 %v3834, %v3898
        %3931 = vset.pattern.permute.xlu0 41
        %3932 = vperm.xlu0 %3931, %v3217
        %v3933 = vpop.permute.xlu0 %3932
        %3935 = vset.pattern.permute.xlu0 41
        %3936 = vperm.xlu0 %3935, %v3218
        %v3937 = vpop.permute.xlu0 %3936
        %3939 = vset.pattern.permute.xlu0 41
        %3940 = vperm.xlu0 %3939, %v3219
        %v3941 = vpop.permute.xlu0 %3940
        %3943 = vset.pattern.permute.xlu0 41
        %3944 = vperm.xlu0 %3943, %v3220
        %v3945 = vpop.permute.xlu0 %3944
        %v3947 = vmul.f32 %v3349, %v3933
        %v3948 = vmul.f32 %v3350, %v3933
        %v3949 = vmul.f32 %v3351, %v3933
        %v3950 = vmul.f32 %v3352, %v3937
        %v3951 = vmul.f32 %v3353, %v3937
        %v3952 = vmul.f32 %v3354, %v3937
        %v3953 = vmul.f32 %v3355, %v3941
        %v3954 = vmul.f32 %v3356, %v3941
        %v3955 = vmul.f32 %v3357, %v3941
        %v3956 = vmul.f32 %v3358, %v3945
        %v3957 = vmul.f32 %v3359, %v3945
        %v3958 = vmul.f32 %v3360, %v3945
        %3971 = vrot.lane.b32.xlu0 %v3947, 96
        %v3972 = vpop.permute.xlu0 %3971
        %3973 = vrot.lane.b32.xlu0 %v3948, 96
        %v3974 = vpop.permute.xlu0 %3973
        %3975 = vrot.lane.b32.xlu0 %v3949, 96
        %v3976 = vpop.permute.xlu0 %3975
        %3977 = vrot.lane.b32.xlu0 %v3950, 96
        %v3978 = vpop.permute.xlu0 %3977
        %3979 = vrot.lane.b32.xlu0 %v3951, 96
        %v3980 = vpop.permute.xlu0 %3979
        %3981 = vrot.lane.b32.xlu0 %v3952, 96
        %v3982 = vpop.permute.xlu0 %3981
        %3983 = vrot.lane.b32.xlu0 %v3953, 96
        %v3984 = vpop.permute.xlu0 %3983
        %3985 = vrot.lane.b32.xlu0 %v3954, 96
        %v3986 = vpop.permute.xlu0 %3985
        %3987 = vrot.lane.b32.xlu0 %v3955, 96
        %v3988 = vpop.permute.xlu0 %3987
        %3989 = vrot.lane.b32.xlu0 %v3956, 96
        %v3990 = vpop.permute.xlu0 %3989
        %3991 = vrot.lane.b32.xlu0 %v3957, 96
        %v3992 = vpop.permute.xlu0 %3991
        %3993 = vrot.lane.b32.xlu0 %v3958, 96
        %v3994 = vpop.permute.xlu0 %3993
        %v3995 = vsel %vm837, %v3972, %v3974
        %v3996 = vsel %vm837, %v3974, %v3976
        %v3997 = vsel %vm837, %v3978, %v3980
        %v3998 = vsel %vm837, %v3980, %v3982
        %v3999 = vsel %vm837, %v3984, %v3986
        %v4000 = vsel %vm837, %v3986, %v3988
        %v4001 = vsel %vm837, %v3990, %v3992
        %v4002 = vsel %vm837, %v3992, %v3994
        %v4015 = vadd.f32 %v3919, %v3972
        %v4016 = vadd.f32 %v3920, %v3995
        %v4017 = vadd.f32 %v3921, %v3996
        %v4018 = vadd.f32 %v3922, %v3978
        %v4019 = vadd.f32 %v3923, %v3997
        %v4020 = vadd.f32 %v3924, %v3998
        %v4021 = vadd.f32 %v3925, %v3984
        %v4022 = vadd.f32 %v3926, %v3999
        %v4023 = vadd.f32 %v3927, %v4000
        %v4024 = vadd.f32 %v3928, %v3990
        %v4025 = vadd.f32 %v3929, %v4001
        %v4026 = vadd.f32 %v3930, %v4002
        %v4027 = vld [vmem:[%s1520] sm:$0x3]
        %v4029 = vlaneseq
        %v4030 = vshrl.u32 %v4029, 7
        %v4031 = vsub.s32 0, %v4030
        %v4032 = vrot.slane %v4027, %v4031
        %v4033 = vlaneseq
        %v4034 = vshrl.u32 %v4033, 7
        %v4035 = vsub.s32 1, %v4034
        %v4036 = vrot.slane %v4027, %v4035
        %4037 = vrot.lane.b32.xlu0 %v4032, 111
        %v4038 = vpop.permute.xlu0 %4037
        %4039 = vrot.lane.b32.xlu0 %v4036, 111
        %v4040 = vpop.permute.xlu0 %4039
        %vm4041 = vcmask 908288
        %v4042 = vsel %vm4041, %v4038, %v4040
        %v4046 = vmul.f32 %v4015, %v4038
        %v4047 = vmul.f32 %v4016, %v4042
        %v4048 = vmul.f32 %v4017, %v4040
        %v4049 = vmul.f32 %v4018, %v4038
        %v4050 = vmul.f32 %v4019, %v4042
        %v4051 = vmul.f32 %v4020, %v4040
        %v4052 = vmul.f32 %v4021, %v4038
        %v4053 = vmul.f32 %v4022, %v4042
        %v4054 = vmul.f32 %v4023, %v4040
        %v4055 = vmul.f32 %v4024, %v4038
        %v4056 = vmul.f32 %v4025, %v4042
        %v4057 = vmul.f32 %v4026, %v4040
        %4070 = vrot.lane.b32.xlu0 %v4046, 126
        %v4071 = vpop.permute.xlu0 %4070
        %4072 = vrot.lane.b32.xlu0 %v4047, 126
        %v4073 = vpop.permute.xlu0 %4072
        %4074 = vrot.lane.b32.xlu0 %v4048, 126
        %v4075 = vpop.permute.xlu0 %4074
        %4076 = vrot.lane.b32.xlu0 %v4049, 126
        %v4077 = vpop.permute.xlu0 %4076
        %4078 = vrot.lane.b32.xlu0 %v4050, 126
        %v4079 = vpop.permute.xlu0 %4078
        %4080 = vrot.lane.b32.xlu0 %v4051, 126
        %v4081 = vpop.permute.xlu0 %4080
        %4082 = vrot.lane.b32.xlu0 %v4052, 126
        %v4083 = vpop.permute.xlu0 %4082
        %4084 = vrot.lane.b32.xlu0 %v4053, 126
        %v4085 = vpop.permute.xlu0 %4084
        %4086 = vrot.lane.b32.xlu0 %v4054, 126
        %v4087 = vpop.permute.xlu0 %4086
        %4088 = vrot.lane.b32.xlu0 %v4055, 126
        %v4089 = vpop.permute.xlu0 %4088
        %4090 = vrot.lane.b32.xlu0 %v4056, 126
        %v4091 = vpop.permute.xlu0 %4090
        %4092 = vrot.lane.b32.xlu0 %v4057, 126
        %v4093 = vpop.permute.xlu0 %4092
        %v4094 = vsel %vm2049, %v4071, %v4073
        %v4095 = vsel %vm2049, %v4073, %v4075
        %v4096 = vsel %vm2049, %v4077, %v4079
        %v4097 = vsel %vm2049, %v4079, %v4081
        %v4098 = vsel %vm2049, %v4083, %v4085
        %v4099 = vsel %vm2049, %v4085, %v4087
        %v4100 = vsel %vm2049, %v4089, %v4091
        %v4101 = vsel %vm2049, %v4091, %v4093
        %v4114 = vadd.f32 %v3795, %v4094
        %v4115 = vadd.f32 %v3796, %v4095
        %v4116 = vadd.f32 %v3797, %v4075
        %v4117 = vadd.f32 %v3798, %v4096
        %v4118 = vadd.f32 %v3799, %v4097
        %v4119 = vadd.f32 %v3800, %v4081
        %v4120 = vadd.f32 %v3801, %v4098
        %v4121 = vadd.f32 %v3802, %v4099
        %v4122 = vadd.f32 %v3803, %v4087
        %v4123 = vadd.f32 %v3804, %v4100
        %v4124 = vadd.f32 %v3805, %v4101
        %v4125 = vadd.f32 %v3806, %v4093
        %4126 = vset.pattern.permute.xlu0 28
        %4127 = vperm.xlu0 %4126, %v3217
        %v4128 = vpop.permute.xlu0 %4127
        %4130 = vset.pattern.permute.xlu0 28
        %4131 = vperm.xlu0 %4130, %v3218
        %v4132 = vpop.permute.xlu0 %4131
        %4134 = vset.pattern.permute.xlu0 28
        %4135 = vperm.xlu0 %4134, %v3219
        %v4136 = vpop.permute.xlu0 %4135
        %4138 = vset.pattern.permute.xlu0 28
        %4139 = vperm.xlu0 %4138, %v3220
        %v4140 = vpop.permute.xlu0 %4139
        %v4142 = vmul.f32 %v3205, %v4128
        %v4143 = vmul.f32 %v3206, %v4128
        %v4144 = vmul.f32 %v3207, %v4128
        %v4145 = vmul.f32 %v3208, %v4132
        %v4146 = vmul.f32 %v3209, %v4132
        %v4147 = vmul.f32 %v3210, %v4132
        %v4148 = vmul.f32 %v3211, %v4136
        %v4149 = vmul.f32 %v3212, %v4136
        %v4150 = vmul.f32 %v3213, %v4136
        %v4151 = vmul.f32 %v3214, %v4140
        %v4152 = vmul.f32 %v3215, %v4140
        %v4153 = vmul.f32 %v3216, %v4140
        %4154 = vset.pattern.permute.xlu0 35
        %4155 = vperm.xlu0 %4154, %v3217
        %v4156 = vpop.permute.xlu0 %4155
        %4158 = vset.pattern.permute.xlu0 35
        %4159 = vperm.xlu0 %4158, %v3218
        %v4160 = vpop.permute.xlu0 %4159
        %4162 = vset.pattern.permute.xlu0 35
        %4163 = vperm.xlu0 %4162, %v3219
        %v4164 = vpop.permute.xlu0 %4163
        %4166 = vset.pattern.permute.xlu0 35
        %4167 = vperm.xlu0 %4166, %v3220
        %v4168 = vpop.permute.xlu0 %4167
        %v4170 = vmul.f32 %v3206, %v4156
        %v4171 = vmul.f32 %v3207, %v4156
        %v4172 = vmul.f32 %v3209, %v4160
        %v4173 = vmul.f32 %v3210, %v4160
        %v4174 = vmul.f32 %v3212, %v4164
        %v4175 = vmul.f32 %v3213, %v4164
        %v4176 = vmul.f32 %v3215, %v4168
        %v4177 = vmul.f32 %v3216, %v4168
        %4186 = vrot.lane.b32.xlu0 %v4170, 112
        %v4187 = vpop.permute.xlu0 %4186
        %4188 = vrot.lane.b32.xlu0 %v4171, 112
        %v4189 = vpop.permute.xlu0 %4188
        %4190 = vrot.lane.b32.xlu0 %v4172, 112
        %v4191 = vpop.permute.xlu0 %4190
        %4192 = vrot.lane.b32.xlu0 %v4173, 112
        %v4193 = vpop.permute.xlu0 %4192
        %4194 = vrot.lane.b32.xlu0 %v4174, 112
        %v4195 = vpop.permute.xlu0 %4194
        %4196 = vrot.lane.b32.xlu0 %v4175, 112
        %v4197 = vpop.permute.xlu0 %4196
        %4198 = vrot.lane.b32.xlu0 %v4176, 112
        %v4199 = vpop.permute.xlu0 %4198
        %4200 = vrot.lane.b32.xlu0 %v4177, 112
        %v4201 = vpop.permute.xlu0 %4200
        %v4202 = vsel %vm740, %v4187, %v4189
        %v4203 = vsel %vm740, %v4191, %v4193
        %v4204 = vsel %vm740, %v4195, %v4197
        %v4205 = vsel %vm740, %v4199, %v4201
        %v4218 = vadd.f32 %v4142, %v4187
        %v4219 = vadd.f32 %v4143, %v4202
        %v4220 = vadd.f32 %v4144, %v4189
        %v4221 = vadd.f32 %v4145, %v4191
        %v4222 = vadd.f32 %v4146, %v4203
        %v4223 = vadd.f32 %v4147, %v4193
        %v4224 = vadd.f32 %v4148, %v4195
        %v4225 = vadd.f32 %v4149, %v4204
        %v4226 = vadd.f32 %v4150, %v4197
        %v4227 = vadd.f32 %v4151, %v4199
        %v4228 = vadd.f32 %v4152, %v4205
        %v4229 = vadd.f32 %v4153, %v4201
        %4230 = vset.pattern.permute.xlu0 42
        %4231 = vperm.xlu0 %4230, %v3217
        %v4232 = vpop.permute.xlu0 %4231
        %4234 = vset.pattern.permute.xlu0 42
        %4235 = vperm.xlu0 %4234, %v3218
        %v4236 = vpop.permute.xlu0 %4235
        %4238 = vset.pattern.permute.xlu0 42
        %4239 = vperm.xlu0 %4238, %v3219
        %v4240 = vpop.permute.xlu0 %4239
        %4242 = vset.pattern.permute.xlu0 42
        %4243 = vperm.xlu0 %4242, %v3220
        %v4244 = vpop.permute.xlu0 %4243
        %v4246 = vmul.f32 %v3349, %v4232
        %v4247 = vmul.f32 %v3350, %v4232
        %v4248 = vmul.f32 %v3351, %v4232
        %v4249 = vmul.f32 %v3352, %v4236
        %v4250 = vmul.f32 %v3353, %v4236
        %v4251 = vmul.f32 %v3354, %v4236
        %v4252 = vmul.f32 %v3355, %v4240
        %v4253 = vmul.f32 %v3356, %v4240
        %v4254 = vmul.f32 %v3357, %v4240
        %v4255 = vmul.f32 %v3358, %v4244
        %v4256 = vmul.f32 %v3359, %v4244
        %v4257 = vmul.f32 %v3360, %v4244
        %4270 = vrot.lane.b32.xlu0 %v4246, 96
        %v4271 = vpop.permute.xlu0 %4270
        %4272 = vrot.lane.b32.xlu0 %v4247, 96
        %v4273 = vpop.permute.xlu0 %4272
        %4274 = vrot.lane.b32.xlu0 %v4248, 96
        %v4275 = vpop.permute.xlu0 %4274
        %4276 = vrot.lane.b32.xlu0 %v4249, 96
        %v4277 = vpop.permute.xlu0 %4276
        %4278 = vrot.lane.b32.xlu0 %v4250, 96
        %v4279 = vpop.permute.xlu0 %4278
        %4280 = vrot.lane.b32.xlu0 %v4251, 96
        %v4281 = vpop.permute.xlu0 %4280
        %4282 = vrot.lane.b32.xlu0 %v4252, 96
        %v4283 = vpop.permute.xlu0 %4282
        %4284 = vrot.lane.b32.xlu0 %v4253, 96
        %v4285 = vpop.permute.xlu0 %4284
        %4286 = vrot.lane.b32.xlu0 %v4254, 96
        %v4287 = vpop.permute.xlu0 %4286
        %4288 = vrot.lane.b32.xlu0 %v4255, 96
        %v4289 = vpop.permute.xlu0 %4288
        %4290 = vrot.lane.b32.xlu0 %v4256, 96
        %v4291 = vpop.permute.xlu0 %4290
        %4292 = vrot.lane.b32.xlu0 %v4257, 96
        %v4293 = vpop.permute.xlu0 %4292
        %v4294 = vsel %vm837, %v4271, %v4273
        %v4295 = vsel %vm837, %v4273, %v4275
        %v4296 = vsel %vm837, %v4277, %v4279
        %v4297 = vsel %vm837, %v4279, %v4281
        %v4298 = vsel %vm837, %v4283, %v4285
        %v4299 = vsel %vm837, %v4285, %v4287
        %v4300 = vsel %vm837, %v4289, %v4291
        %v4301 = vsel %vm837, %v4291, %v4293
        %v4314 = vadd.f32 %v4218, %v4271
        %v4315 = vadd.f32 %v4219, %v4294
        %v4316 = vadd.f32 %v4220, %v4295
        %v4317 = vadd.f32 %v4221, %v4277
        %v4318 = vadd.f32 %v4222, %v4296
        %v4319 = vadd.f32 %v4223, %v4297
        %v4320 = vadd.f32 %v4224, %v4283
        %v4321 = vadd.f32 %v4225, %v4298
        %v4322 = vadd.f32 %v4226, %v4299
        %v4323 = vadd.f32 %v4227, %v4289
        %v4324 = vadd.f32 %v4228, %v4300
        %v4325 = vadd.f32 %v4229, %v4301
        %4338 = vrot.lane.b32.xlu0 %v4314, 125
        %v4339 = vpop.permute.xlu0 %4338
        %4340 = vrot.lane.b32.xlu0 %v4315, 125
        %v4341 = vpop.permute.xlu0 %4340
        %4342 = vrot.lane.b32.xlu0 %v4316, 125
        %v4343 = vpop.permute.xlu0 %4342
        %4344 = vrot.lane.b32.xlu0 %v4317, 125
        %v4345 = vpop.permute.xlu0 %4344
        %4346 = vrot.lane.b32.xlu0 %v4318, 125
        %v4347 = vpop.permute.xlu0 %4346
        %4348 = vrot.lane.b32.xlu0 %v4319, 125
        %v4349 = vpop.permute.xlu0 %4348
        %4350 = vrot.lane.b32.xlu0 %v4320, 125
        %v4351 = vpop.permute.xlu0 %4350
        %4352 = vrot.lane.b32.xlu0 %v4321, 125
        %v4353 = vpop.permute.xlu0 %4352
        %4354 = vrot.lane.b32.xlu0 %v4322, 125
        %v4355 = vpop.permute.xlu0 %4354
        %4356 = vrot.lane.b32.xlu0 %v4323, 125
        %v4357 = vpop.permute.xlu0 %4356
        %4358 = vrot.lane.b32.xlu0 %v4324, 125
        %v4359 = vpop.permute.xlu0 %4358
        %4360 = vrot.lane.b32.xlu0 %v4325, 125
        %v4361 = vpop.permute.xlu0 %4360
        %v4362 = vsel %vm2562, %v4339, %v4341
        %v4363 = vsel %vm2562, %v4341, %v4343
        %v4364 = vsel %vm2562, %v4345, %v4347
        %v4365 = vsel %vm2562, %v4347, %v4349
        %v4366 = vsel %vm2562, %v4351, %v4353
        %v4367 = vsel %vm2562, %v4353, %v4355
        %v4368 = vsel %vm2562, %v4357, %v4359
        %v4369 = vsel %vm2562, %v4359, %v4361
        %v4382 = vadd.f32 %v4114, %v4362
        %v4383 = vadd.f32 %v4115, %v4363
        %v4384 = vadd.f32 %v4116, %v4343
        %v4385 = vadd.f32 %v4117, %v4364
        %v4386 = vadd.f32 %v4118, %v4365
        %v4387 = vadd.f32 %v4119, %v4349
        %v4388 = vadd.f32 %v4120, %v4366
        %v4389 = vadd.f32 %v4121, %v4367
        %v4390 = vadd.f32 %v4122, %v4355
        %v4391 = vadd.f32 %v4123, %v4368
        %v4392 = vadd.f32 %v4124, %v4369
        %v4393 = vadd.f32 %v4125, %v4361
        %4394 = vset.pattern.permute.xlu0 29
        %4395 = vperm.xlu0 %4394, %v3217
        %v4396 = vpop.permute.xlu0 %4395
        %4398 = vset.pattern.permute.xlu0 29
        %4399 = vperm.xlu0 %4398, %v3218
        %v4400 = vpop.permute.xlu0 %4399
        %4402 = vset.pattern.permute.xlu0 29
        %4403 = vperm.xlu0 %4402, %v3219
        %v4404 = vpop.permute.xlu0 %4403
        %4406 = vset.pattern.permute.xlu0 29
        %4407 = vperm.xlu0 %4406, %v3220
        %v4408 = vpop.permute.xlu0 %4407
        %v4410 = vmul.f32 %v3205, %v4396
        %v4411 = vmul.f32 %v3206, %v4396
        %v4412 = vmul.f32 %v3207, %v4396
        %v4413 = vmul.f32 %v3208, %v4400
        %v4414 = vmul.f32 %v3209, %v4400
        %v4415 = vmul.f32 %v3210, %v4400
        %v4416 = vmul.f32 %v3211, %v4404
        %v4417 = vmul.f32 %v3212, %v4404
        %v4418 = vmul.f32 %v3213, %v4404
        %v4419 = vmul.f32 %v3214, %v4408
        %v4420 = vmul.f32 %v3215, %v4408
        %v4421 = vmul.f32 %v3216, %v4408
        %4422 = vset.pattern.permute.xlu0 36
        %4423 = vperm.xlu0 %4422, %v3217
        %v4424 = vpop.permute.xlu0 %4423
        %4426 = vset.pattern.permute.xlu0 36
        %4427 = vperm.xlu0 %4426, %v3218
        %v4428 = vpop.permute.xlu0 %4427
        %4430 = vset.pattern.permute.xlu0 36
        %4431 = vperm.xlu0 %4430, %v3219
        %v4432 = vpop.permute.xlu0 %4431
        %4434 = vset.pattern.permute.xlu0 36
        %4435 = vperm.xlu0 %4434, %v3220
        %v4436 = vpop.permute.xlu0 %4435
        %v4438 = vmul.f32 %v3349, %v4424
        %v4439 = vmul.f32 %v3350, %v4424
        %v4440 = vmul.f32 %v3351, %v4424
        %v4441 = vmul.f32 %v3352, %v4428
        %v4442 = vmul.f32 %v3353, %v4428
        %v4443 = vmul.f32 %v3354, %v4428
        %v4444 = vmul.f32 %v3355, %v4432
        %v4445 = vmul.f32 %v3356, %v4432
        %v4446 = vmul.f32 %v3357, %v4432
        %v4447 = vmul.f32 %v3358, %v4436
        %v4448 = vmul.f32 %v3359, %v4436
        %v4449 = vmul.f32 %v3360, %v4436
        %4462 = vrot.lane.b32.xlu0 %v4438, 112
        %v4463 = vpop.permute.xlu0 %4462
        %4464 = vrot.lane.b32.xlu0 %v4439, 112
        %v4465 = vpop.permute.xlu0 %4464
        %4466 = vrot.lane.b32.xlu0 %v4440, 112
        %v4467 = vpop.permute.xlu0 %4466
        %4468 = vrot.lane.b32.xlu0 %v4441, 112
        %v4469 = vpop.permute.xlu0 %4468
        %4470 = vrot.lane.b32.xlu0 %v4442, 112
        %v4471 = vpop.permute.xlu0 %4470
        %4472 = vrot.lane.b32.xlu0 %v4443, 112
        %v4473 = vpop.permute.xlu0 %4472
        %4474 = vrot.lane.b32.xlu0 %v4444, 112
        %v4475 = vpop.permute.xlu0 %4474
        %4476 = vrot.lane.b32.xlu0 %v4445, 112
        %v4477 = vpop.permute.xlu0 %4476
        %4478 = vrot.lane.b32.xlu0 %v4446, 112
        %v4479 = vpop.permute.xlu0 %4478
        %4480 = vrot.lane.b32.xlu0 %v4447, 112
        %v4481 = vpop.permute.xlu0 %4480
        %4482 = vrot.lane.b32.xlu0 %v4448, 112
        %v4483 = vpop.permute.xlu0 %4482
        %4484 = vrot.lane.b32.xlu0 %v4449, 112
        %v4485 = vpop.permute.xlu0 %4484
        %v4486 = vsel %vm740, %v4463, %v4465
        %v4487 = vsel %vm740, %v4465, %v4467
        %v4488 = vsel %vm740, %v4469, %v4471
        %v4489 = vsel %vm740, %v4471, %v4473
        %v4490 = vsel %vm740, %v4475, %v4477
        %v4491 = vsel %vm740, %v4477, %v4479
        %v4492 = vsel %vm740, %v4481, %v4483
        %v4493 = vsel %vm740, %v4483, %v4485
        %v4506 = vadd.f32 %v4410, %v4463
        %v4507 = vadd.f32 %v4411, %v4486
        %v4508 = vadd.f32 %v4412, %v4487
        %v4509 = vadd.f32 %v4413, %v4469
        %v4510 = vadd.f32 %v4414, %v4488
        %v4511 = vadd.f32 %v4415, %v4489
        %v4512 = vadd.f32 %v4416, %v4475
        %v4513 = vadd.f32 %v4417, %v4490
        %v4514 = vadd.f32 %v4418, %v4491
        %v4515 = vadd.f32 %v4419, %v4481
        %v4516 = vadd.f32 %v4420, %v4492
        %v4517 = vadd.f32 %v4421, %v4493
        %4518 = vset.pattern.permute.xlu0 43
        %4519 = vperm.xlu0 %4518, %v3217
        %v4520 = vpop.permute.xlu0 %4519
        %4522 = vset.pattern.permute.xlu0 43
        %4523 = vperm.xlu0 %4522, %v3218
        %v4524 = vpop.permute.xlu0 %4523
        %4526 = vset.pattern.permute.xlu0 43
        %4527 = vperm.xlu0 %4526, %v3219
        %v4528 = vpop.permute.xlu0 %4527
        %4530 = vset.pattern.permute.xlu0 43
        %4531 = vperm.xlu0 %4530, %v3220
        %v4532 = vpop.permute.xlu0 %4531
        %v4534 = vmul.f32 %v3349, %v4520
        %v4535 = vmul.f32 %v3350, %v4520
        %v4536 = vmul.f32 %v3351, %v4520
        %v4537 = vmul.f32 %v3352, %v4524
        %v4538 = vmul.f32 %v3353, %v4524
        %v4539 = vmul.f32 %v3354, %v4524
        %v4540 = vmul.f32 %v3355, %v4528
        %v4541 = vmul.f32 %v3356, %v4528
        %v4542 = vmul.f32 %v3357, %v4528
        %v4543 = vmul.f32 %v3358, %v4532
        %v4544 = vmul.f32 %v3359, %v4532
        %v4545 = vmul.f32 %v3360, %v4532
        %4558 = vrot.lane.b32.xlu0 %v4534, 96
        %v4559 = vpop.permute.xlu0 %4558
        %4560 = vrot.lane.b32.xlu0 %v4535, 96
        %v4561 = vpop.permute.xlu0 %4560
        %4562 = vrot.lane.b32.xlu0 %v4536, 96
        %v4563 = vpop.permute.xlu0 %4562
        %4564 = vrot.lane.b32.xlu0 %v4537, 96
        %v4565 = vpop.permute.xlu0 %4564
        %4566 = vrot.lane.b32.xlu0 %v4538, 96
        %v4567 = vpop.permute.xlu0 %4566
        %4568 = vrot.lane.b32.xlu0 %v4539, 96
        %v4569 = vpop.permute.xlu0 %4568
        %4570 = vrot.lane.b32.xlu0 %v4540, 96
        %v4571 = vpop.permute.xlu0 %4570
        %4572 = vrot.lane.b32.xlu0 %v4541, 96
        %v4573 = vpop.permute.xlu0 %4572
        %4574 = vrot.lane.b32.xlu0 %v4542, 96
        %v4575 = vpop.permute.xlu0 %4574
        %4576 = vrot.lane.b32.xlu0 %v4543, 96
        %v4577 = vpop.permute.xlu0 %4576
        %4578 = vrot.lane.b32.xlu0 %v4544, 96
        %v4579 = vpop.permute.xlu0 %4578
        %4580 = vrot.lane.b32.xlu0 %v4545, 96
        %v4581 = vpop.permute.xlu0 %4580
        %v4582 = vsel %vm837, %v4559, %v4561
        %v4583 = vsel %vm837, %v4561, %v4563
        %v4584 = vsel %vm837, %v4565, %v4567
        %v4585 = vsel %vm837, %v4567, %v4569
        %v4586 = vsel %vm837, %v4571, %v4573
        %v4587 = vsel %vm837, %v4573, %v4575
        %v4588 = vsel %vm837, %v4577, %v4579
        %v4589 = vsel %vm837, %v4579, %v4581
        %v4602 = vadd.f32 %v4506, %v4559
        %v4603 = vadd.f32 %v4507, %v4582
        %v4604 = vadd.f32 %v4508, %v4583
        %v4605 = vadd.f32 %v4509, %v4565
        %v4606 = vadd.f32 %v4510, %v4584
        %v4607 = vadd.f32 %v4511, %v4585
        %v4608 = vadd.f32 %v4512, %v4571
        %v4609 = vadd.f32 %v4513, %v4586
        %v4610 = vadd.f32 %v4514, %v4587
        %v4611 = vadd.f32 %v4515, %v4577
        %v4612 = vadd.f32 %v4516, %v4588
        %v4613 = vadd.f32 %v4517, %v4589
        %v4614 = vld [vmem:[%s2494] sm:$0x3]
        %v4616 = vlaneseq
        %v4617 = vshrl.u32 %v4616, 7
        %v4618 = vsub.s32 0, %v4617
        %v4619 = vrot.slane %v4614, %v4618
        %v4620 = vlaneseq
        %v4621 = vshrl.u32 %v4620, 7
        %v4622 = vsub.s32 1, %v4621
        %v4623 = vrot.slane %v4614, %v4622
        %4624 = vrot.lane.b32.xlu0 %v4619, 113
        %v4625 = vpop.permute.xlu0 %4624
        %4626 = vrot.lane.b32.xlu0 %v4623, 113
        %v4627 = vpop.permute.xlu0 %4626
        %vm4628 = vcmask 924672
        %v4629 = vsel %vm4628, %v4625, %v4627
        %v4633 = vmul.f32 %v4602, %v4625
        %v4634 = vmul.f32 %v4603, %v4629
        %v4635 = vmul.f32 %v4604, %v4627
        %v4636 = vmul.f32 %v4605, %v4625
        %v4637 = vmul.f32 %v4606, %v4629
        %v4638 = vmul.f32 %v4607, %v4627
        %v4639 = vmul.f32 %v4608, %v4625
        %v4640 = vmul.f32 %v4609, %v4629
        %v4641 = vmul.f32 %v4610, %v4627
        %v4642 = vmul.f32 %v4611, %v4625
        %v4643 = vmul.f32 %v4612, %v4629
        %v4644 = vmul.f32 %v4613, %v4627
        %4657 = vrot.lane.b32.xlu0 %v4633, 124
        %v4658 = vpop.permute.xlu0 %4657
        %4659 = vrot.lane.b32.xlu0 %v4634, 124
        %v4660 = vpop.permute.xlu0 %4659
        %4661 = vrot.lane.b32.xlu0 %v4635, 124
        %v4662 = vpop.permute.xlu0 %4661
        %4663 = vrot.lane.b32.xlu0 %v4636, 124
        %v4664 = vpop.permute.xlu0 %4663
        %4665 = vrot.lane.b32.xlu0 %v4637, 124
        %v4666 = vpop.permute.xlu0 %4665
        %4667 = vrot.lane.b32.xlu0 %v4638, 124
        %v4668 = vpop.permute.xlu0 %4667
        %4669 = vrot.lane.b32.xlu0 %v4639, 124
        %v4670 = vpop.permute.xlu0 %4669
        %4671 = vrot.lane.b32.xlu0 %v4640, 124
        %v4672 = vpop.permute.xlu0 %4671
        %4673 = vrot.lane.b32.xlu0 %v4641, 124
        %v4674 = vpop.permute.xlu0 %4673
        %4675 = vrot.lane.b32.xlu0 %v4642, 124
        %v4676 = vpop.permute.xlu0 %4675
        %4677 = vrot.lane.b32.xlu0 %v4643, 124
        %v4678 = vpop.permute.xlu0 %4677
        %4679 = vrot.lane.b32.xlu0 %v4644, 124
        %v4680 = vpop.permute.xlu0 %4679
        %v4681 = vsel %vm3075, %v4658, %v4660
        %v4682 = vsel %vm3075, %v4660, %v4662
        %v4683 = vsel %vm3075, %v4664, %v4666
        %v4684 = vsel %vm3075, %v4666, %v4668
        %v4685 = vsel %vm3075, %v4670, %v4672
        %v4686 = vsel %vm3075, %v4672, %v4674
        %v4687 = vsel %vm3075, %v4676, %v4678
        %v4688 = vsel %vm3075, %v4678, %v4680
        %v4701 = vadd.f32 %v4382, %v4681
        %v4702 = vadd.f32 %v4383, %v4682
        %v4703 = vadd.f32 %v4384, %v4662
        %v4704 = vadd.f32 %v4385, %v4683
        %v4705 = vadd.f32 %v4386, %v4684
        %v4706 = vadd.f32 %v4387, %v4668
        %v4707 = vadd.f32 %v4388, %v4685
        %v4708 = vadd.f32 %v4389, %v4686
        %v4709 = vadd.f32 %v4390, %v4674
        %v4710 = vadd.f32 %v4391, %v4687
        %v4711 = vadd.f32 %v4392, %v4688
        %v4712 = vadd.f32 %v4393, %v4680
        %4713 = vset.pattern.permute.xlu0 30
        %4714 = vperm.xlu0 %4713, %v3217
        %v4715 = vpop.permute.xlu0 %4714
        %4717 = vset.pattern.permute.xlu0 30
        %4718 = vperm.xlu0 %4717, %v3218
        %v4719 = vpop.permute.xlu0 %4718
        %4721 = vset.pattern.permute.xlu0 30
        %4722 = vperm.xlu0 %4721, %v3219
        %v4723 = vpop.permute.xlu0 %4722
        %4725 = vset.pattern.permute.xlu0 30
        %4726 = vperm.xlu0 %4725, %v3220
        %v4727 = vpop.permute.xlu0 %4726
        %v4729 = vmul.f32 %v3205, %v4715
        %v4730 = vmul.f32 %v3206, %v4715
        %v4731 = vmul.f32 %v3207, %v4715
        %v4732 = vmul.f32 %v3208, %v4719
        %v4733 = vmul.f32 %v3209, %v4719
        %v4734 = vmul.f32 %v3210, %v4719
        %v4735 = vmul.f32 %v3211, %v4723
        %v4736 = vmul.f32 %v3212, %v4723
        %v4737 = vmul.f32 %v3213, %v4723
        %v4738 = vmul.f32 %v3214, %v4727
        %v4739 = vmul.f32 %v3215, %v4727
        %v4740 = vmul.f32 %v3216, %v4727
        %4741 = vset.pattern.permute.xlu0 37
        %4742 = vperm.xlu0 %4741, %v3217
        %v4743 = vpop.permute.xlu0 %4742
        %4745 = vset.pattern.permute.xlu0 37
        %4746 = vperm.xlu0 %4745, %v3218
        %v4747 = vpop.permute.xlu0 %4746
        %4749 = vset.pattern.permute.xlu0 37
        %4750 = vperm.xlu0 %4749, %v3219
        %v4751 = vpop.permute.xlu0 %4750
        %4753 = vset.pattern.permute.xlu0 37
        %4754 = vperm.xlu0 %4753, %v3220
        %v4755 = vpop.permute.xlu0 %4754
        %v4757 = vmul.f32 %v3349, %v4743
        %v4758 = vmul.f32 %v3350, %v4743
        %v4759 = vmul.f32 %v3351, %v4743
        %v4760 = vmul.f32 %v3352, %v4747
        %v4761 = vmul.f32 %v3353, %v4747
        %v4762 = vmul.f32 %v3354, %v4747
        %v4763 = vmul.f32 %v3355, %v4751
        %v4764 = vmul.f32 %v3356, %v4751
        %v4765 = vmul.f32 %v3357, %v4751
        %v4766 = vmul.f32 %v3358, %v4755
        %v4767 = vmul.f32 %v3359, %v4755
        %v4768 = vmul.f32 %v3360, %v4755
        %4781 = vrot.lane.b32.xlu0 %v4757, 112
        %v4782 = vpop.permute.xlu0 %4781
        %4783 = vrot.lane.b32.xlu0 %v4758, 112
        %v4784 = vpop.permute.xlu0 %4783
        %4785 = vrot.lane.b32.xlu0 %v4759, 112
        %v4786 = vpop.permute.xlu0 %4785
        %4787 = vrot.lane.b32.xlu0 %v4760, 112
        %v4788 = vpop.permute.xlu0 %4787
        %4789 = vrot.lane.b32.xlu0 %v4761, 112
        %v4790 = vpop.permute.xlu0 %4789
        %4791 = vrot.lane.b32.xlu0 %v4762, 112
        %v4792 = vpop.permute.xlu0 %4791
        %4793 = vrot.lane.b32.xlu0 %v4763, 112
        %v4794 = vpop.permute.xlu0 %4793
        %4795 = vrot.lane.b32.xlu0 %v4764, 112
        %v4796 = vpop.permute.xlu0 %4795
        %4797 = vrot.lane.b32.xlu0 %v4765, 112
        %v4798 = vpop.permute.xlu0 %4797
        %4799 = vrot.lane.b32.xlu0 %v4766, 112
        %v4800 = vpop.permute.xlu0 %4799
        %4801 = vrot.lane.b32.xlu0 %v4767, 112
        %v4802 = vpop.permute.xlu0 %4801
        %4803 = vrot.lane.b32.xlu0 %v4768, 112
        %v4804 = vpop.permute.xlu0 %4803
        %v4805 = vsel %vm740, %v4782, %v4784
        %v4806 = vsel %vm740, %v4784, %v4786
        %v4807 = vsel %vm740, %v4788, %v4790
        %v4808 = vsel %vm740, %v4790, %v4792
        %v4809 = vsel %vm740, %v4794, %v4796
        %v4810 = vsel %vm740, %v4796, %v4798
        %v4811 = vsel %vm740, %v4800, %v4802
        %v4812 = vsel %vm740, %v4802, %v4804
        %v4825 = vadd.f32 %v4729, %v4782
        %v4826 = vadd.f32 %v4730, %v4805
        %v4827 = vadd.f32 %v4731, %v4806
        %v4828 = vadd.f32 %v4732, %v4788
        %v4829 = vadd.f32 %v4733, %v4807
        %v4830 = vadd.f32 %v4734, %v4808
        %v4831 = vadd.f32 %v4735, %v4794
        %v4832 = vadd.f32 %v4736, %v4809
        %v4833 = vadd.f32 %v4737, %v4810
        %v4834 = vadd.f32 %v4738, %v4800
        %v4835 = vadd.f32 %v4739, %v4811
        %v4836 = vadd.f32 %v4740, %v4812
        %4837 = vset.pattern.permute.xlu0 44
        %4838 = vperm.xlu0 %4837, %v3217
        %v4839 = vpop.permute.xlu0 %4838
        %4841 = vset.pattern.permute.xlu0 44
        %4842 = vperm.xlu0 %4841, %v3218
        %v4843 = vpop.permute.xlu0 %4842
        %4845 = vset.pattern.permute.xlu0 44
        %4846 = vperm.xlu0 %4845, %v3219
        %v4847 = vpop.permute.xlu0 %4846
        %4849 = vset.pattern.permute.xlu0 44
        %4850 = vperm.xlu0 %4849, %v3220
        %v4851 = vpop.permute.xlu0 %4850
        %v4853 = vmul.f32 %v3349, %v4839
        %v4854 = vmul.f32 %v3350, %v4839
        %v4855 = vmul.f32 %v3351, %v4839
        %v4856 = vmul.f32 %v3352, %v4843
        %v4857 = vmul.f32 %v3353, %v4843
        %v4858 = vmul.f32 %v3354, %v4843
        %v4859 = vmul.f32 %v3355, %v4847
        %v4860 = vmul.f32 %v3356, %v4847
        %v4861 = vmul.f32 %v3357, %v4847
        %v4862 = vmul.f32 %v3358, %v4851
        %v4863 = vmul.f32 %v3359, %v4851
        %v4864 = vmul.f32 %v3360, %v4851
        %4877 = vrot.lane.b32.xlu0 %v4853, 96
        %v4878 = vpop.permute.xlu0 %4877
        %4879 = vrot.lane.b32.xlu0 %v4854, 96
        %v4880 = vpop.permute.xlu0 %4879
        %4881 = vrot.lane.b32.xlu0 %v4855, 96
        %v4882 = vpop.permute.xlu0 %4881
        %4883 = vrot.lane.b32.xlu0 %v4856, 96
        %v4884 = vpop.permute.xlu0 %4883
        %4885 = vrot.lane.b32.xlu0 %v4857, 96
        %v4886 = vpop.permute.xlu0 %4885
        %4887 = vrot.lane.b32.xlu0 %v4858, 96
        %v4888 = vpop.permute.xlu0 %4887
        %4889 = vrot.lane.b32.xlu0 %v4859, 96
        %v4890 = vpop.permute.xlu0 %4889
        %4891 = vrot.lane.b32.xlu0 %v4860, 96
        %v4892 = vpop.permute.xlu0 %4891
        %4893 = vrot.lane.b32.xlu0 %v4861, 96
        %v4894 = vpop.permute.xlu0 %4893
        %4895 = vrot.lane.b32.xlu0 %v4862, 96
        %v4896 = vpop.permute.xlu0 %4895
        %4897 = vrot.lane.b32.xlu0 %v4863, 96
        %v4898 = vpop.permute.xlu0 %4897
        %4899 = vrot.lane.b32.xlu0 %v4864, 96
        %v4900 = vpop.permute.xlu0 %4899
        %v4901 = vsel %vm837, %v4878, %v4880
        %v4902 = vsel %vm837, %v4880, %v4882
        %v4903 = vsel %vm837, %v4884, %v4886
        %v4904 = vsel %vm837, %v4886, %v4888
        %v4905 = vsel %vm837, %v4890, %v4892
        %v4906 = vsel %vm837, %v4892, %v4894
        %v4907 = vsel %vm837, %v4896, %v4898
        %v4908 = vsel %vm837, %v4898, %v4900
        %v4921 = vadd.f32 %v4825, %v4878
        %v4922 = vadd.f32 %v4826, %v4901
        %v4923 = vadd.f32 %v4827, %v4902
        %v4924 = vadd.f32 %v4828, %v4884
        %v4925 = vadd.f32 %v4829, %v4903
        %v4926 = vadd.f32 %v4830, %v4904
        %v4927 = vadd.f32 %v4831, %v4890
        %v4928 = vadd.f32 %v4832, %v4905
        %v4929 = vadd.f32 %v4833, %v4906
        %v4930 = vadd.f32 %v4834, %v4896
        %v4931 = vadd.f32 %v4835, %v4907
        %v4932 = vadd.f32 %v4836, %v4908
        %v4933 = vld [vmem:[%s3007] sm:$0x3]
        %v4935 = vlaneseq
        %v4936 = vshrl.u32 %v4935, 7
        %v4937 = vsub.s32 0, %v4936
        %v4938 = vrot.slane %v4933, %v4937
        %v4939 = vlaneseq
        %v4940 = vshrl.u32 %v4939, 7
        %v4941 = vsub.s32 1, %v4940
        %v4942 = vrot.slane %v4933, %v4941
        %4943 = vrot.lane.b32.xlu0 %v4938, 114
        %v4944 = vpop.permute.xlu0 %4943
        %4945 = vrot.lane.b32.xlu0 %v4942, 114
        %v4946 = vpop.permute.xlu0 %4945
        %vm4947 = vcmask 932864
        %v4948 = vsel %vm4947, %v4944, %v4946
        %v4952 = vmul.f32 %v4921, %v4944
        %v4953 = vmul.f32 %v4922, %v4948
        %v4954 = vmul.f32 %v4923, %v4946
        %v4955 = vmul.f32 %v4924, %v4944
        %v4956 = vmul.f32 %v4925, %v4948
        %v4957 = vmul.f32 %v4926, %v4946
        %v4958 = vmul.f32 %v4927, %v4944
        %v4959 = vmul.f32 %v4928, %v4948
        %v4960 = vmul.f32 %v4929, %v4946
        %v4961 = vmul.f32 %v4930, %v4944
        %v4962 = vmul.f32 %v4931, %v4948
        %v4963 = vmul.f32 %v4932, %v4946
        %4976 = vrot.lane.b32.xlu0 %v4952, 123
        %v4977 = vpop.permute.xlu0 %4976
        %4978 = vrot.lane.b32.xlu0 %v4953, 123
        %v4979 = vpop.permute.xlu0 %4978
        %4980 = vrot.lane.b32.xlu0 %v4954, 123
        %v4981 = vpop.permute.xlu0 %4980
        %4982 = vrot.lane.b32.xlu0 %v4955, 123
        %v4983 = vpop.permute.xlu0 %4982
        %4984 = vrot.lane.b32.xlu0 %v4956, 123
        %v4985 = vpop.permute.xlu0 %4984
        %4986 = vrot.lane.b32.xlu0 %v4957, 123
        %v4987 = vpop.permute.xlu0 %4986
        %4988 = vrot.lane.b32.xlu0 %v4958, 123
        %v4989 = vpop.permute.xlu0 %4988
        %4990 = vrot.lane.b32.xlu0 %v4959, 123
        %v4991 = vpop.permute.xlu0 %4990
        %4992 = vrot.lane.b32.xlu0 %v4960, 123
        %v4993 = vpop.permute.xlu0 %4992
        %4994 = vrot.lane.b32.xlu0 %v4961, 123
        %v4995 = vpop.permute.xlu0 %4994
        %4996 = vrot.lane.b32.xlu0 %v4962, 123
        %v4997 = vpop.permute.xlu0 %4996
        %4998 = vrot.lane.b32.xlu0 %v4963, 123
        %v4999 = vpop.permute.xlu0 %4998
        %vm5000 = vcmask 1006592
        %v5001 = vsel %vm5000, %v4977, %v4979
        %v5002 = vsel %vm5000, %v4979, %v4981
        %v5003 = vsel %vm5000, %v4983, %v4985
        %v5004 = vsel %vm5000, %v4985, %v4987
        %v5005 = vsel %vm5000, %v4989, %v4991
        %v5006 = vsel %vm5000, %v4991, %v4993
        %v5007 = vsel %vm5000, %v4995, %v4997
        %v5008 = vsel %vm5000, %v4997, %v4999
        %v5021 = vadd.f32 %v4701, %v5001
        %v5022 = vadd.f32 %v4702, %v5002
        %v5023 = vadd.f32 %v4703, %v4981
        %v5024 = vadd.f32 %v4704, %v5003
        %v5025 = vadd.f32 %v4705, %v5004
        %v5026 = vadd.f32 %v4706, %v4987
        %v5027 = vadd.f32 %v4707, %v5005
        %v5028 = vadd.f32 %v4708, %v5006
        %v5029 = vadd.f32 %v4709, %v4993
        %v5030 = vadd.f32 %v4710, %v5007
        %v5031 = vadd.f32 %v4711, %v5008
        %v5032 = vadd.f32 %v4712, %v4999
        %5033 = vset.pattern.permute.xlu0 31
        %5034 = vperm.xlu0 %5033, %v3217
        %v5035 = vpop.permute.xlu0 %5034
        %5037 = vset.pattern.permute.xlu0 31
        %5038 = vperm.xlu0 %5037, %v3218
        %v5039 = vpop.permute.xlu0 %5038
        %5041 = vset.pattern.permute.xlu0 31
        %5042 = vperm.xlu0 %5041, %v3219
        %v5043 = vpop.permute.xlu0 %5042
        %5045 = vset.pattern.permute.xlu0 31
        %5046 = vperm.xlu0 %5045, %v3220
        %v5047 = vpop.permute.xlu0 %5046
        %v5049 = vmul.f32 %v3205, %v5035
        %v5050 = vmul.f32 %v3206, %v5035
        %v5051 = vmul.f32 %v3207, %v5035
        %v5052 = vmul.f32 %v3208, %v5039
        %v5053 = vmul.f32 %v3209, %v5039
        %v5054 = vmul.f32 %v3210, %v5039
        %v5055 = vmul.f32 %v3211, %v5043
        %v5056 = vmul.f32 %v3212, %v5043
        %v5057 = vmul.f32 %v3213, %v5043
        %v5058 = vmul.f32 %v3214, %v5047
        %v5059 = vmul.f32 %v3215, %v5047
        %v5060 = vmul.f32 %v3216, %v5047
        %5061 = vset.pattern.permute.xlu0 38
        %5062 = vperm.xlu0 %5061, %v3217
        %v5063 = vpop.permute.xlu0 %5062
        %5065 = vset.pattern.permute.xlu0 38
        %5066 = vperm.xlu0 %5065, %v3218
        %v5067 = vpop.permute.xlu0 %5066
        %5069 = vset.pattern.permute.xlu0 38
        %5070 = vperm.xlu0 %5069, %v3219
        %v5071 = vpop.permute.xlu0 %5070
        %5073 = vset.pattern.permute.xlu0 38
        %5074 = vperm.xlu0 %5073, %v3220
        %v5075 = vpop.permute.xlu0 %5074
        %v5077 = vmul.f32 %v3349, %v5063
        %v5078 = vmul.f32 %v3350, %v5063
        %v5079 = vmul.f32 %v3351, %v5063
        %v5080 = vmul.f32 %v3352, %v5067
        %v5081 = vmul.f32 %v3353, %v5067
        %v5082 = vmul.f32 %v3354, %v5067
        %v5083 = vmul.f32 %v3355, %v5071
        %v5084 = vmul.f32 %v3356, %v5071
        %v5085 = vmul.f32 %v3357, %v5071
        %v5086 = vmul.f32 %v3358, %v5075
        %v5087 = vmul.f32 %v3359, %v5075
        %v5088 = vmul.f32 %v3360, %v5075
        %5101 = vrot.lane.b32.xlu0 %v5077, 112
        %v5102 = vpop.permute.xlu0 %5101
        %5103 = vrot.lane.b32.xlu0 %v5078, 112
        %v5104 = vpop.permute.xlu0 %5103
        %5105 = vrot.lane.b32.xlu0 %v5079, 112
        %v5106 = vpop.permute.xlu0 %5105
        %5107 = vrot.lane.b32.xlu0 %v5080, 112
        %v5108 = vpop.permute.xlu0 %5107
        %5109 = vrot.lane.b32.xlu0 %v5081, 112
        %v5110 = vpop.permute.xlu0 %5109
        %5111 = vrot.lane.b32.xlu0 %v5082, 112
        %v5112 = vpop.permute.xlu0 %5111
        %5113 = vrot.lane.b32.xlu0 %v5083, 112
        %v5114 = vpop.permute.xlu0 %5113
        %5115 = vrot.lane.b32.xlu0 %v5084, 112
        %v5116 = vpop.permute.xlu0 %5115
        %5117 = vrot.lane.b32.xlu0 %v5085, 112
        %v5118 = vpop.permute.xlu0 %5117
        %5119 = vrot.lane.b32.xlu0 %v5086, 112
        %v5120 = vpop.permute.xlu0 %5119
        %5121 = vrot.lane.b32.xlu0 %v5087, 112
        %v5122 = vpop.permute.xlu0 %5121
        %5123 = vrot.lane.b32.xlu0 %v5088, 112
        %v5124 = vpop.permute.xlu0 %5123
        %v5125 = vsel %vm740, %v5102, %v5104
        %v5126 = vsel %vm740, %v5104, %v5106
        %v5127 = vsel %vm740, %v5108, %v5110
        %v5128 = vsel %vm740, %v5110, %v5112
        %v5129 = vsel %vm740, %v5114, %v5116
        %v5130 = vsel %vm740, %v5116, %v5118
        %v5131 = vsel %vm740, %v5120, %v5122
        %v5132 = vsel %vm740, %v5122, %v5124
        %v5145 = vadd.f32 %v5049, %v5102
        %v5146 = vadd.f32 %v5050, %v5125
        %v5147 = vadd.f32 %v5051, %v5126
        %v5148 = vadd.f32 %v5052, %v5108
        %v5149 = vadd.f32 %v5053, %v5127
        %v5150 = vadd.f32 %v5054, %v5128
        %v5151 = vadd.f32 %v5055, %v5114
        %v5152 = vadd.f32 %v5056, %v5129
        %v5153 = vadd.f32 %v5057, %v5130
        %v5154 = vadd.f32 %v5058, %v5120
        %v5155 = vadd.f32 %v5059, %v5131
        %v5156 = vadd.f32 %v5060, %v5132
        %5157 = vset.pattern.permute.xlu0 45
        %5158 = vperm.xlu0 %5157, %v3217
        %v5159 = vpop.permute.xlu0 %5158
        %5161 = vset.pattern.permute.xlu0 45
        %5162 = vperm.xlu0 %5161, %v3218
        %v5163 = vpop.permute.xlu0 %5162
        %5165 = vset.pattern.permute.xlu0 45
        %5166 = vperm.xlu0 %5165, %v3219
        %v5167 = vpop.permute.xlu0 %5166
        %5169 = vset.pattern.permute.xlu0 45
        %5170 = vperm.xlu0 %5169, %v3220
        %v5171 = vpop.permute.xlu0 %5170
        %v5173 = vmul.f32 %v3349, %v5159
        %v5174 = vmul.f32 %v3350, %v5159
        %v5175 = vmul.f32 %v3351, %v5159
        %v5176 = vmul.f32 %v3352, %v5163
        %v5177 = vmul.f32 %v3353, %v5163
        %v5178 = vmul.f32 %v3354, %v5163
        %v5179 = vmul.f32 %v3355, %v5167
        %v5180 = vmul.f32 %v3356, %v5167
        %v5181 = vmul.f32 %v3357, %v5167
        %v5182 = vmul.f32 %v3358, %v5171
        %v5183 = vmul.f32 %v3359, %v5171
        %v5184 = vmul.f32 %v3360, %v5171
        %5197 = vrot.lane.b32.xlu0 %v5173, 96
        %v5198 = vpop.permute.xlu0 %5197
        %5199 = vrot.lane.b32.xlu0 %v5174, 96
        %v5200 = vpop.permute.xlu0 %5199
        %5201 = vrot.lane.b32.xlu0 %v5175, 96
        %v5202 = vpop.permute.xlu0 %5201
        %5203 = vrot.lane.b32.xlu0 %v5176, 96
        %v5204 = vpop.permute.xlu0 %5203
        %5205 = vrot.lane.b32.xlu0 %v5177, 96
        %v5206 = vpop.permute.xlu0 %5205
        %5207 = vrot.lane.b32.xlu0 %v5178, 96
        %v5208 = vpop.permute.xlu0 %5207
        %5209 = vrot.lane.b32.xlu0 %v5179, 96
        %v5210 = vpop.permute.xlu0 %5209
        %5211 = vrot.lane.b32.xlu0 %v5180, 96
        %v5212 = vpop.permute.xlu0 %5211
        %5213 = vrot.lane.b32.xlu0 %v5181, 96
        %v5214 = vpop.permute.xlu0 %5213
        %5215 = vrot.lane.b32.xlu0 %v5182, 96
        %v5216 = vpop.permute.xlu0 %5215
        %5217 = vrot.lane.b32.xlu0 %v5183, 96
        %v5218 = vpop.permute.xlu0 %5217
        %5219 = vrot.lane.b32.xlu0 %v5184, 96
        %v5220 = vpop.permute.xlu0 %5219
        %v5221 = vsel %vm837, %v5198, %v5200
        %v5222 = vsel %vm837, %v5200, %v5202
        %v5223 = vsel %vm837, %v5204, %v5206
        %v5224 = vsel %vm837, %v5206, %v5208
        %v5225 = vsel %vm837, %v5210, %v5212
        %v5226 = vsel %vm837, %v5212, %v5214
        %v5227 = vsel %vm837, %v5216, %v5218
        %v5228 = vsel %vm837, %v5218, %v5220
        %v5241 = vadd.f32 %v5145, %v5198
        %v5242 = vadd.f32 %v5146, %v5221
        %v5243 = vadd.f32 %v5147, %v5222
        %v5244 = vadd.f32 %v5148, %v5204
        %v5245 = vadd.f32 %v5149, %v5223
        %v5246 = vadd.f32 %v5150, %v5224
        %v5247 = vadd.f32 %v5151, %v5210
        %v5248 = vadd.f32 %v5152, %v5225
        %v5249 = vadd.f32 %v5153, %v5226
        %v5250 = vadd.f32 %v5154, %v5216
        %v5251 = vadd.f32 %v5155, %v5227
        %v5252 = vadd.f32 %v5156, %v5228
        %s5253 = scalar_lea.vmem %s2, 12
        %v5254 = vld [vmem:[%s5253] sm:$0x3]
        %v5256 = vlaneseq
        %v5257 = vshrl.u32 %v5256, 7
        %v5258 = vsub.s32 0, %v5257
        %v5259 = vrot.slane %v5254, %v5258
        %v5260 = vlaneseq
        %v5261 = vshrl.u32 %v5260, 7
        %v5262 = vsub.s32 1, %v5261
        %v5263 = vrot.slane %v5254, %v5262
        %5264 = vrot.lane.b32.xlu0 %v5259, 115
        %v5265 = vpop.permute.xlu0 %5264
        %5266 = vrot.lane.b32.xlu0 %v5263, 115
        %v5267 = vpop.permute.xlu0 %5266
        %vm5268 = vcmask 941056
        %v5269 = vsel %vm5268, %v5265, %v5267
        %v5273 = vmul.f32 %v5241, %v5265
        %v5274 = vmul.f32 %v5242, %v5269
        %v5275 = vmul.f32 %v5243, %v5267
        %v5276 = vmul.f32 %v5244, %v5265
        %v5277 = vmul.f32 %v5245, %v5269
        %v5278 = vmul.f32 %v5246, %v5267
        %v5279 = vmul.f32 %v5247, %v5265
        %v5280 = vmul.f32 %v5248, %v5269
        %v5281 = vmul.f32 %v5249, %v5267
        %v5282 = vmul.f32 %v5250, %v5265
        %v5283 = vmul.f32 %v5251, %v5269
        %v5284 = vmul.f32 %v5252, %v5267
        %5297 = vrot.lane.b32.xlu0 %v5273, 122
        %v5298 = vpop.permute.xlu0 %5297
        %5299 = vrot.lane.b32.xlu0 %v5274, 122
        %v5300 = vpop.permute.xlu0 %5299
        %5301 = vrot.lane.b32.xlu0 %v5275, 122
        %v5302 = vpop.permute.xlu0 %5301
        %5303 = vrot.lane.b32.xlu0 %v5276, 122
        %v5304 = vpop.permute.xlu0 %5303
        %5305 = vrot.lane.b32.xlu0 %v5277, 122
        %v5306 = vpop.permute.xlu0 %5305
        %5307 = vrot.lane.b32.xlu0 %v5278, 122
        %v5308 = vpop.permute.xlu0 %5307
        %5309 = vrot.lane.b32.xlu0 %v5279, 122
        %v5310 = vpop.permute.xlu0 %5309
        %5311 = vrot.lane.b32.xlu0 %v5280, 122
        %v5312 = vpop.permute.xlu0 %5311
        %5313 = vrot.lane.b32.xlu0 %v5281, 122
        %v5314 = vpop.permute.xlu0 %5313
        %5315 = vrot.lane.b32.xlu0 %v5282, 122
        %v5316 = vpop.permute.xlu0 %5315
        %5317 = vrot.lane.b32.xlu0 %v5283, 122
        %v5318 = vpop.permute.xlu0 %5317
        %5319 = vrot.lane.b32.xlu0 %v5284, 122
        %v5320 = vpop.permute.xlu0 %5319
        %vm5321 = vcmask 998400
        %v5322 = vsel %vm5321, %v5298, %v5300
        %v5323 = vsel %vm5321, %v5300, %v5302
        %v5324 = vsel %vm5321, %v5304, %v5306
        %v5325 = vsel %vm5321, %v5306, %v5308
        %v5326 = vsel %vm5321, %v5310, %v5312
        %v5327 = vsel %vm5321, %v5312, %v5314
        %v5328 = vsel %vm5321, %v5316, %v5318
        %v5329 = vsel %vm5321, %v5318, %v5320
        %v5342 = vadd.f32 %v5021, %v5322
        %v5343 = vadd.f32 %v5022, %v5323
        %v5344 = vadd.f32 %v5023, %v5302
        %v5345 = vadd.f32 %v5024, %v5324
        %v5346 = vadd.f32 %v5025, %v5325
        %v5347 = vadd.f32 %v5026, %v5308
        %v5348 = vadd.f32 %v5027, %v5326
        %v5349 = vadd.f32 %v5028, %v5327
        %v5350 = vadd.f32 %v5029, %v5314
        %v5351 = vadd.f32 %v5030, %v5328
        %v5352 = vadd.f32 %v5031, %v5329
        %v5353 = vadd.f32 %v5032, %v5320
        %v5354 = vld [vmem:[%s4] sm:$0xff]
        %v5355 = vld [vmem:[%s4 + $0x8] sm:$0xff]
        %v5356 = vld [vmem:[%s4 + $0x10] sm:$0xff]
        %v5357 = vld [vmem:[%s4 + $0x18] sm:$0xff]
        %5359 = vset.pattern.permute.xlu0 2
        %5360 = vperm.xlu0 %5359, %v5354
        %v5361 = vpop.permute.xlu0 %5360
        %5364 = vset.pattern.permute.xlu0 2
        %5365 = vperm.xlu0 %5364, %v5355
        %v5366 = vpop.permute.xlu0 %5365
        %5369 = vset.pattern.permute.xlu0 2
        %5370 = vperm.xlu0 %5369, %v5356
        %v5371 = vpop.permute.xlu0 %5370
        %5374 = vset.pattern.permute.xlu0 2
        %5375 = vperm.xlu0 %5374, %v5357
        %v5376 = vpop.permute.xlu0 %5375
        %v5378 = vadd.f32 %v5342, %v5361
        %v5379 = vadd.f32 %v5343, %v5361
        %v5380 = vadd.f32 %v5344, %v5361
        %v5381 = vadd.f32 %v5345, %v5366
        %v5382 = vadd.f32 %v5346, %v5366
        %v5383 = vadd.f32 %v5347, %v5366
        %v5384 = vadd.f32 %v5348, %v5371
        %v5385 = vadd.f32 %v5349, %v5371
        %v5386 = vadd.f32 %v5350, %v5371
        %v5387 = vadd.f32 %v5351, %v5376
        %v5388 = vadd.f32 %v5352, %v5376
        %v5389 = vadd.f32 %v5353, %v5376
        %5402 = vrot.lane.b32.xlu0 %v5378, 19
        %v5403 = vpop.permute.xlu0 %5402
        %5404 = vrot.lane.b32.xlu0 %v5379, 19
        %v5405 = vpop.permute.xlu0 %5404
        %5406 = vrot.lane.b32.xlu0 %v5380, 19
        %v5407 = vpop.permute.xlu0 %5406
        %5408 = vrot.lane.b32.xlu0 %v5381, 19
        %v5409 = vpop.permute.xlu0 %5408
        %5410 = vrot.lane.b32.xlu0 %v5382, 19
        %v5411 = vpop.permute.xlu0 %5410
        %5412 = vrot.lane.b32.xlu0 %v5383, 19
        %v5413 = vpop.permute.xlu0 %5412
        %5414 = vrot.lane.b32.xlu0 %v5384, 19
        %v5415 = vpop.permute.xlu0 %5414
        %5416 = vrot.lane.b32.xlu0 %v5385, 19
        %v5417 = vpop.permute.xlu0 %5416
        %5418 = vrot.lane.b32.xlu0 %v5386, 19
        %v5419 = vpop.permute.xlu0 %5418
        %5420 = vrot.lane.b32.xlu0 %v5387, 19
        %v5421 = vpop.permute.xlu0 %5420
        %5422 = vrot.lane.b32.xlu0 %v5388, 19
        %v5423 = vpop.permute.xlu0 %5422
        %5424 = vrot.lane.b32.xlu0 %v5389, 19
        %v5425 = vpop.permute.xlu0 %5424
        %vm5426 = vcmask 154624
        %v5427 = vsel %vm5426, %v5403, %v5405
        %v5428 = vsel %vm5426, %v5405, %v5407
        %v5429 = vsel %vm5426, %v5409, %v5411
        %v5430 = vsel %vm5426, %v5411, %v5413
        %v5431 = vsel %vm5426, %v5415, %v5417
        %v5432 = vsel %vm5426, %v5417, %v5419
        %v5433 = vsel %vm5426, %v5421, %v5423
        %v5434 = vsel %vm5426, %v5423, %v5425
        %5443 = vst [vmem:[#allocation2 + $0x8] sm:$0xff] %v5427
        %5444 = vst [vmem:[#allocation2 + $0x10] sm:$0xff] %v5428
        %5445 = vst [vmem:[#allocation2 + $0x28] sm:$0xff] %v5429
        %5446 = vst [vmem:[#allocation2 + $0x30] sm:$0xff] %v5430
        %5447 = vst [vmem:[#allocation2 + $0x48] sm:$0xff] %v5431
        %5448 = vst [vmem:[#allocation2 + $0x50] sm:$0xff] %v5432
        %5449 = vst [vmem:[#allocation2 + $0x68] sm:$0xff] %v5433
        %5450 = vst [vmem:[#allocation2 + $0x70] sm:$0xff] %v5434
        %v5451 = vld [vmem:[#allocation2] sm:$0xff]
        %v5452 = vld [vmem:[#allocation2 + $0x8] sm:$0xff]
        %v5453 = vld [vmem:[#allocation2 + $0x10] sm:$0xff]
        %v5454 = vld [vmem:[#allocation2 + $0x20] sm:$0xff]
        %v5455 = vld [vmem:[#allocation2 + $0x28] sm:$0xff]
        %v5456 = vld [vmem:[#allocation2 + $0x30] sm:$0xff]
        %v5457 = vld [vmem:[#allocation2 + $0x40] sm:$0xff]
        %v5458 = vld [vmem:[#allocation2 + $0x48] sm:$0xff]
        %v5459 = vld [vmem:[#allocation2 + $0x50] sm:$0xff]
        %v5460 = vld [vmem:[#allocation2 + $0x60] sm:$0xff]
        %v5461 = vld [vmem:[#allocation2 + $0x68] sm:$0xff]
        %v5462 = vld [vmem:[#allocation2 + $0x70] sm:$0xff]
        %v5463 = vld [vmem:[%s1] sm:$0xff]
        %v5464 = vld [vmem:[%s1 + $0x8] sm:$0xff]
        %v5465 = vld [vmem:[%s1 + $0x10] sm:$0xff]
        %v5466 = vld [vmem:[%s1 + $0x18] sm:$0xff]
        %5468 = vset.pattern.permute.xlu0 46
        %5469 = vperm.xlu0 %5468, %v5463
        %v5470 = vpop.permute.xlu0 %5469
        %5473 = vset.pattern.permute.xlu0 46
        %5474 = vperm.xlu0 %5473, %v5464
        %v5475 = vpop.permute.xlu0 %5474
        %5478 = vset.pattern.permute.xlu0 46
        %5479 = vperm.xlu0 %5478, %v5465
        %v5480 = vpop.permute.xlu0 %5479
        %5483 = vset.pattern.permute.xlu0 46
        %5484 = vperm.xlu0 %5483, %v5466
        %v5485 = vpop.permute.xlu0 %5484
        %v5487 = vmul.f32 %v5451, %v5470
        %v5488 = vmul.f32 %v5452, %v5470
        %v5489 = vmul.f32 %v5453, %v5470
        %v5490 = vmul.f32 %v5454, %v5475
        %v5491 = vmul.f32 %v5455, %v5475
        %v5492 = vmul.f32 %v5456, %v5475
        %v5493 = vmul.f32 %v5457, %v5480
        %v5494 = vmul.f32 %v5458, %v5480
        %v5495 = vmul.f32 %v5459, %v5480
        %v5496 = vmul.f32 %v5460, %v5485
        %v5497 = vmul.f32 %v5461, %v5485
        %v5498 = vmul.f32 %v5462, %v5485
        %5499 = vset.pattern.permute.xlu0 49
        %5500 = vperm.xlu0 %5499, %v5463
        %v5501 = vpop.permute.xlu0 %5500
        %5503 = vset.pattern.permute.xlu0 49
        %5504 = vperm.xlu0 %5503, %v5464
        %v5505 = vpop.permute.xlu0 %5504
        %5507 = vset.pattern.permute.xlu0 49
        %5508 = vperm.xlu0 %5507, %v5465
        %v5509 = vpop.permute.xlu0 %5508
        %5511 = vset.pattern.permute.xlu0 49
        %5512 = vperm.xlu0 %5511, %v5466
        %v5513 = vpop.permute.xlu0 %5512
        %v5515 = vmul.f32 %v5451, %v5501
        %v5516 = vmul.f32 %v5452, %v5501
        %v5517 = vmul.f32 %v5453, %v5501
        %v5518 = vmul.f32 %v5454, %v5505
        %v5519 = vmul.f32 %v5455, %v5505
        %v5520 = vmul.f32 %v5456, %v5505
        %v5521 = vmul.f32 %v5457, %v5509
        %v5522 = vmul.f32 %v5458, %v5509
        %v5523 = vmul.f32 %v5459, %v5509
        %v5524 = vmul.f32 %v5460, %v5513
        %v5525 = vmul.f32 %v5461, %v5513
        %v5526 = vmul.f32 %v5462, %v5513
        %5539 = vrot.lane.b32.xlu0 %v5515, 112
        %v5540 = vpop.permute.xlu0 %5539
        %5541 = vrot.lane.b32.xlu0 %v5516, 112
        %v5542 = vpop.permute.xlu0 %5541
        %5543 = vrot.lane.b32.xlu0 %v5517, 112
        %v5544 = vpop.permute.xlu0 %5543
        %5545 = vrot.lane.b32.xlu0 %v5518, 112
        %v5546 = vpop.permute.xlu0 %5545
        %5547 = vrot.lane.b32.xlu0 %v5519, 112
        %v5548 = vpop.permute.xlu0 %5547
        %5549 = vrot.lane.b32.xlu0 %v5520, 112
        %v5550 = vpop.permute.xlu0 %5549
        %5551 = vrot.lane.b32.xlu0 %v5521, 112
        %v5552 = vpop.permute.xlu0 %5551
        %5553 = vrot.lane.b32.xlu0 %v5522, 112
        %v5554 = vpop.permute.xlu0 %5553
        %5555 = vrot.lane.b32.xlu0 %v5523, 112
        %v5556 = vpop.permute.xlu0 %5555
        %5557 = vrot.lane.b32.xlu0 %v5524, 112
        %v5558 = vpop.permute.xlu0 %5557
        %5559 = vrot.lane.b32.xlu0 %v5525, 112
        %v5560 = vpop.permute.xlu0 %5559
        %5561 = vrot.lane.b32.xlu0 %v5526, 112
        %v5562 = vpop.permute.xlu0 %5561
        %v5563 = vsel %vm740, %v5540, %v5542
        %v5564 = vsel %vm740, %v5542, %v5544
        %v5565 = vsel %vm740, %v5546, %v5548
        %v5566 = vsel %vm740, %v5548, %v5550
        %v5567 = vsel %vm740, %v5552, %v5554
        %v5568 = vsel %vm740, %v5554, %v5556
        %v5569 = vsel %vm740, %v5558, %v5560
        %v5570 = vsel %vm740, %v5560, %v5562
        %v5583 = vadd.f32 %v5487, %v5563
        %v5584 = vadd.f32 %v5488, %v5564
        %v5585 = vadd.f32 %v5489, %v5544
        %v5586 = vadd.f32 %v5490, %v5565
        %v5587 = vadd.f32 %v5491, %v5566
        %v5588 = vadd.f32 %v5492, %v5550
        %v5589 = vadd.f32 %v5493, %v5567
        %v5590 = vadd.f32 %v5494, %v5568
        %v5591 = vadd.f32 %v5495, %v5556
        %v5592 = vadd.f32 %v5496, %v5569
        %v5593 = vadd.f32 %v5497, %v5570
        %v5594 = vadd.f32 %v5498, %v5562
        %5595 = vset.pattern.permute.xlu0 52
        %5596 = vperm.xlu0 %5595, %v5463
        %v5597 = vpop.permute.xlu0 %5596
        %5599 = vset.pattern.permute.xlu0 52
        %5600 = vperm.xlu0 %5599, %v5464
        %v5601 = vpop.permute.xlu0 %5600
        %5603 = vset.pattern.permute.xlu0 52
        %5604 = vperm.xlu0 %5603, %v5465
        %v5605 = vpop.permute.xlu0 %5604
        %5607 = vset.pattern.permute.xlu0 52
        %5608 = vperm.xlu0 %5607, %v5466
        %v5609 = vpop.permute.xlu0 %5608
        %v5611 = vmul.f32 %v5451, %v5597
        %v5612 = vmul.f32 %v5452, %v5597
        %v5613 = vmul.f32 %v5453, %v5597
        %v5614 = vmul.f32 %v5454, %v5601
        %v5615 = vmul.f32 %v5455, %v5601
        %v5616 = vmul.f32 %v5456, %v5601
        %v5617 = vmul.f32 %v5457, %v5605
        %v5618 = vmul.f32 %v5458, %v5605
        %v5619 = vmul.f32 %v5459, %v5605
        %v5620 = vmul.f32 %v5460, %v5609
        %v5621 = vmul.f32 %v5461, %v5609
        %v5622 = vmul.f32 %v5462, %v5609
        %5635 = vrot.lane.b32.xlu0 %v5611, 96
        %v5636 = vpop.permute.xlu0 %5635
        %5637 = vrot.lane.b32.xlu0 %v5612, 96
        %v5638 = vpop.permute.xlu0 %5637
        %5639 = vrot.lane.b32.xlu0 %v5613, 96
        %v5640 = vpop.permute.xlu0 %5639
        %5641 = vrot.lane.b32.xlu0 %v5614, 96
        %v5642 = vpop.permute.xlu0 %5641
        %5643 = vrot.lane.b32.xlu0 %v5615, 96
        %v5644 = vpop.permute.xlu0 %5643
        %5645 = vrot.lane.b32.xlu0 %v5616, 96
        %v5646 = vpop.permute.xlu0 %5645
        %5647 = vrot.lane.b32.xlu0 %v5617, 96
        %v5648 = vpop.permute.xlu0 %5647
        %5649 = vrot.lane.b32.xlu0 %v5618, 96
        %v5650 = vpop.permute.xlu0 %5649
        %5651 = vrot.lane.b32.xlu0 %v5619, 96
        %v5652 = vpop.permute.xlu0 %5651
        %5653 = vrot.lane.b32.xlu0 %v5620, 96
        %v5654 = vpop.permute.xlu0 %5653
        %5655 = vrot.lane.b32.xlu0 %v5621, 96
        %v5656 = vpop.permute.xlu0 %5655
        %5657 = vrot.lane.b32.xlu0 %v5622, 96
        %v5658 = vpop.permute.xlu0 %5657
        %v5659 = vsel %vm837, %v5636, %v5638
        %v5660 = vsel %vm837, %v5638, %v5640
        %v5661 = vsel %vm837, %v5642, %v5644
        %v5662 = vsel %vm837, %v5644, %v5646
        %v5663 = vsel %vm837, %v5648, %v5650
        %v5664 = vsel %vm837, %v5650, %v5652
        %v5665 = vsel %vm837, %v5654, %v5656
        %v5666 = vsel %vm837, %v5656, %v5658
        %v5679 = vadd.f32 %v5583, %v5659
        %v5680 = vadd.f32 %v5584, %v5660
        %v5681 = vadd.f32 %v5585, %v5640
        %v5682 = vadd.f32 %v5586, %v5661
        %v5683 = vadd.f32 %v5587, %v5662
        %v5684 = vadd.f32 %v5588, %v5646
        %v5685 = vadd.f32 %v5589, %v5663
        %v5686 = vadd.f32 %v5590, %v5664
        %v5687 = vadd.f32 %v5591, %v5652
        %v5688 = vadd.f32 %v5592, %v5665
        %v5689 = vadd.f32 %v5593, %v5666
        %v5690 = vadd.f32 %v5594, %v5658
        %5691 = vset.pattern.permute.xlu0 55
        %5692 = vperm.xlu0 %5691, %v5463
        %v5693 = vpop.permute.xlu0 %5692
        %5695 = vset.pattern.permute.xlu0 55
        %5696 = vperm.xlu0 %5695, %v5464
        %v5697 = vpop.permute.xlu0 %5696
        %5699 = vset.pattern.permute.xlu0 55
        %5700 = vperm.xlu0 %5699, %v5465
        %v5701 = vpop.permute.xlu0 %5700
        %5703 = vset.pattern.permute.xlu0 55
        %5704 = vperm.xlu0 %5703, %v5466
        %v5705 = vpop.permute.xlu0 %5704
        %v5707 = vmul.f32 %v5451, %v5693
        %v5708 = vmul.f32 %v5452, %v5693
        %v5709 = vmul.f32 %v5453, %v5693
        %v5710 = vmul.f32 %v5454, %v5697
        %v5711 = vmul.f32 %v5455, %v5697
        %v5712 = vmul.f32 %v5456, %v5697
        %v5713 = vmul.f32 %v5457, %v5701
        %v5714 = vmul.f32 %v5458, %v5701
        %v5715 = vmul.f32 %v5459, %v5701
        %v5716 = vmul.f32 %v5460, %v5705
        %v5717 = vmul.f32 %v5461, %v5705
        %v5718 = vmul.f32 %v5462, %v5705
        %5731 = vrot.lane.b32.xlu0 %v5707, 80
        %v5732 = vpop.permute.xlu0 %5731
        %5733 = vrot.lane.b32.xlu0 %v5708, 80
        %v5734 = vpop.permute.xlu0 %5733
        %5735 = vrot.lane.b32.xlu0 %v5709, 80
        %v5736 = vpop.permute.xlu0 %5735
        %5737 = vrot.lane.b32.xlu0 %v5710, 80
        %v5738 = vpop.permute.xlu0 %5737
        %5739 = vrot.lane.b32.xlu0 %v5711, 80
        %v5740 = vpop.permute.xlu0 %5739
        %5741 = vrot.lane.b32.xlu0 %v5712, 80
        %v5742 = vpop.permute.xlu0 %5741
        %5743 = vrot.lane.b32.xlu0 %v5713, 80
        %v5744 = vpop.permute.xlu0 %5743
        %5745 = vrot.lane.b32.xlu0 %v5714, 80
        %v5746 = vpop.permute.xlu0 %5745
        %5747 = vrot.lane.b32.xlu0 %v5715, 80
        %v5748 = vpop.permute.xlu0 %5747
        %5749 = vrot.lane.b32.xlu0 %v5716, 80
        %v5750 = vpop.permute.xlu0 %5749
        %5751 = vrot.lane.b32.xlu0 %v5717, 80
        %v5752 = vpop.permute.xlu0 %5751
        %5753 = vrot.lane.b32.xlu0 %v5718, 80
        %v5754 = vpop.permute.xlu0 %5753
        %v5755 = vsel %vm946, %v5732, %v5734
        %v5756 = vsel %vm946, %v5734, %v5736
        %v5757 = vsel %vm946, %v5738, %v5740
        %v5758 = vsel %vm946, %v5740, %v5742
        %v5759 = vsel %vm946, %v5744, %v5746
        %v5760 = vsel %vm946, %v5746, %v5748
        %v5761 = vsel %vm946, %v5750, %v5752
        %v5762 = vsel %vm946, %v5752, %v5754
        %v5775 = vadd.f32 %v5679, %v5755
        %v5776 = vadd.f32 %v5680, %v5756
        %v5777 = vadd.f32 %v5681, %v5736
        %v5778 = vadd.f32 %v5682, %v5757
        %v5779 = vadd.f32 %v5683, %v5758
        %v5780 = vadd.f32 %v5684, %v5742
        %v5781 = vadd.f32 %v5685, %v5759
        %v5782 = vadd.f32 %v5686, %v5760
        %v5783 = vadd.f32 %v5687, %v5748
        %v5784 = vadd.f32 %v5688, %v5761
        %v5785 = vadd.f32 %v5689, %v5762
        %v5786 = vadd.f32 %v5690, %v5754
        %v5787 = vld [vmem:[#allocation2 + $0x8] sm:$0xff]
        %v5788 = vld [vmem:[#allocation2 + $0x10] sm:$0xff]
        %v5789 = vld [vmem:[#allocation2 + $0x18] sm:$0xff]
        %v5790 = vld [vmem:[#allocation2 + $0x28] sm:$0xff]
        %v5791 = vld [vmem:[#allocation2 + $0x30] sm:$0xff]
        %v5792 = vld [vmem:[#allocation2 + $0x38] sm:$0xff]
        %v5793 = vld [vmem:[#allocation2 + $0x48] sm:$0xff]
        %v5794 = vld [vmem:[#allocation2 + $0x50] sm:$0xff]
        %v5795 = vld [vmem:[#allocation2 + $0x58] sm:$0xff]
        %v5796 = vld [vmem:[#allocation2 + $0x68] sm:$0xff]
        %v5797 = vld [vmem:[#allocation2 + $0x70] sm:$0xff]
        %v5798 = vld [vmem:[#allocation2 + $0x78] sm:$0xff]
        %5799 = vset.pattern.permute.xlu0 58
        %5800 = vperm.xlu0 %5799, %v5463
        %v5801 = vpop.permute.xlu0 %5800
        %5803 = vset.pattern.permute.xlu0 58
        %5804 = vperm.xlu0 %5803, %v5464
        %v5805 = vpop.permute.xlu0 %5804
        %5807 = vset.pattern.permute.xlu0 58
        %5808 = vperm.xlu0 %5807, %v5465
        %v5809 = vpop.permute.xlu0 %5808
        %5811 = vset.pattern.permute.xlu0 58
        %5812 = vperm.xlu0 %5811, %v5466
        %v5813 = vpop.permute.xlu0 %5812
        %v5815 = vmul.f32 %v5787, %v5801
        %v5816 = vmul.f32 %v5788, %v5801
        %v5817 = vmul.f32 %v5789, %v5801
        %v5818 = vmul.f32 %v5790, %v5805
        %v5819 = vmul.f32 %v5791, %v5805
        %v5820 = vmul.f32 %v5792, %v5805
        %v5821 = vmul.f32 %v5793, %v5809
        %v5822 = vmul.f32 %v5794, %v5809
        %v5823 = vmul.f32 %v5795, %v5809
        %v5824 = vmul.f32 %v5796, %v5813
        %v5825 = vmul.f32 %v5797, %v5813
        %v5826 = vmul.f32 %v5798, %v5813
        %5839 = vrot.lane.b32.xlu0 %v5815, 64
        %v5840 = vpop.permute.xlu0 %5839
        %5841 = vrot.lane.b32.xlu0 %v5816, 64
        %v5842 = vpop.permute.xlu0 %5841
        %5843 = vrot.lane.b32.xlu0 %v5817, 64
        %v5844 = vpop.permute.xlu0 %5843
        %5845 = vrot.lane.b32.xlu0 %v5818, 64
        %v5846 = vpop.permute.xlu0 %5845
        %5847 = vrot.lane.b32.xlu0 %v5819, 64
        %v5848 = vpop.permute.xlu0 %5847
        %5849 = vrot.lane.b32.xlu0 %v5820, 64
        %v5850 = vpop.permute.xlu0 %5849
        %5851 = vrot.lane.b32.xlu0 %v5821, 64
        %v5852 = vpop.permute.xlu0 %5851
        %5853 = vrot.lane.b32.xlu0 %v5822, 64
        %v5854 = vpop.permute.xlu0 %5853
        %5855 = vrot.lane.b32.xlu0 %v5823, 64
        %v5856 = vpop.permute.xlu0 %5855
        %5857 = vrot.lane.b32.xlu0 %v5824, 64
        %v5858 = vpop.permute.xlu0 %5857
        %5859 = vrot.lane.b32.xlu0 %v5825, 64
        %v5860 = vpop.permute.xlu0 %5859
        %5861 = vrot.lane.b32.xlu0 %v5826, 64
        %v5862 = vpop.permute.xlu0 %5861
        %v5863 = vsel %vm1043, %v5840, %v5842
        %v5864 = vsel %vm1043, %v5842, %v5844
        %v5865 = vsel %vm1043, %v5846, %v5848
        %v5866 = vsel %vm1043, %v5848, %v5850
        %v5867 = vsel %vm1043, %v5852, %v5854
        %v5868 = vsel %vm1043, %v5854, %v5856
        %v5869 = vsel %vm1043, %v5858, %v5860
        %v5870 = vsel %vm1043, %v5860, %v5862
        %v5883 = vadd.f32 %v5775, %v5840
        %v5884 = vadd.f32 %v5776, %v5863
        %v5885 = vadd.f32 %v5777, %v5864
        %v5886 = vadd.f32 %v5778, %v5846
        %v5887 = vadd.f32 %v5779, %v5865
        %v5888 = vadd.f32 %v5780, %v5866
        %v5889 = vadd.f32 %v5781, %v5852
        %v5890 = vadd.f32 %v5782, %v5867
        %v5891 = vadd.f32 %v5783, %v5868
        %v5892 = vadd.f32 %v5784, %v5858
        %v5893 = vadd.f32 %v5785, %v5869
        %v5894 = vadd.f32 %v5786, %v5870
        %5895 = vset.pattern.permute.xlu0 61
        %5896 = vperm.xlu0 %5895, %v5463
        %v5897 = vpop.permute.xlu0 %5896
        %5899 = vset.pattern.permute.xlu0 61
        %5900 = vperm.xlu0 %5899, %v5464
        %v5901 = vpop.permute.xlu0 %5900
        %5903 = vset.pattern.permute.xlu0 61
        %5904 = vperm.xlu0 %5903, %v5465
        %v5905 = vpop.permute.xlu0 %5904
        %5907 = vset.pattern.permute.xlu0 61
        %5908 = vperm.xlu0 %5907, %v5466
        %v5909 = vpop.permute.xlu0 %5908
        %v5911 = vmul.f32 %v5787, %v5897
        %v5912 = vmul.f32 %v5788, %v5897
        %v5913 = vmul.f32 %v5789, %v5897
        %v5914 = vmul.f32 %v5790, %v5901
        %v5915 = vmul.f32 %v5791, %v5901
        %v5916 = vmul.f32 %v5792, %v5901
        %v5917 = vmul.f32 %v5793, %v5905
        %v5918 = vmul.f32 %v5794, %v5905
        %v5919 = vmul.f32 %v5795, %v5905
        %v5920 = vmul.f32 %v5796, %v5909
        %v5921 = vmul.f32 %v5797, %v5909
        %v5922 = vmul.f32 %v5798, %v5909
        %5935 = vrot.lane.b32.xlu0 %v5911, 48
        %v5936 = vpop.permute.xlu0 %5935
        %5937 = vrot.lane.b32.xlu0 %v5912, 48
        %v5938 = vpop.permute.xlu0 %5937
        %5939 = vrot.lane.b32.xlu0 %v5913, 48
        %v5940 = vpop.permute.xlu0 %5939
        %5941 = vrot.lane.b32.xlu0 %v5914, 48
        %v5942 = vpop.permute.xlu0 %5941
        %5943 = vrot.lane.b32.xlu0 %v5915, 48
        %v5944 = vpop.permute.xlu0 %5943
        %5945 = vrot.lane.b32.xlu0 %v5916, 48
        %v5946 = vpop.permute.xlu0 %5945
        %5947 = vrot.lane.b32.xlu0 %v5917, 48
        %v5948 = vpop.permute.xlu0 %5947
        %5949 = vrot.lane.b32.xlu0 %v5918, 48
        %v5950 = vpop.permute.xlu0 %5949
        %5951 = vrot.lane.b32.xlu0 %v5919, 48
        %v5952 = vpop.permute.xlu0 %5951
        %5953 = vrot.lane.b32.xlu0 %v5920, 48
        %v5954 = vpop.permute.xlu0 %5953
        %5955 = vrot.lane.b32.xlu0 %v5921, 48
        %v5956 = vpop.permute.xlu0 %5955
        %5957 = vrot.lane.b32.xlu0 %v5922, 48
        %v5958 = vpop.permute.xlu0 %5957
        %vm5959 = vcmask 392192
        %v5960 = vsel %vm5959, %v5936, %v5938
        %v5961 = vsel %vm5959, %v5938, %v5940
        %v5962 = vsel %vm5959, %v5942, %v5944
        %v5963 = vsel %vm5959, %v5944, %v5946
        %v5964 = vsel %vm5959, %v5948, %v5950
        %v5965 = vsel %vm5959, %v5950, %v5952
        %v5966 = vsel %vm5959, %v5954, %v5956
        %v5967 = vsel %vm5959, %v5956, %v5958
        %v5980 = vadd.f32 %v5883, %v5936
        %v5981 = vadd.f32 %v5884, %v5960
        %v5982 = vadd.f32 %v5885, %v5961
        %v5983 = vadd.f32 %v5886, %v5942
        %v5984 = vadd.f32 %v5887, %v5962
        %v5985 = vadd.f32 %v5888, %v5963
        %v5986 = vadd.f32 %v5889, %v5948
        %v5987 = vadd.f32 %v5890, %v5964
        %v5988 = vadd.f32 %v5891, %v5965
        %v5989 = vadd.f32 %v5892, %v5954
        %v5990 = vadd.f32 %v5893, %v5966
        %v5991 = vadd.f32 %v5894, %v5967
        %5992 = vset.pattern.permute.xlu0 64
        %5993 = vperm.xlu0 %5992, %v5463
        %v5994 = vpop.permute.xlu0 %5993
        %5996 = vset.pattern.permute.xlu0 64
        %5997 = vperm.xlu0 %5996, %v5464
        %v5998 = vpop.permute.xlu0 %5997
        %6000 = vset.pattern.permute.xlu0 64
        %6001 = vperm.xlu0 %6000, %v5465
        %v6002 = vpop.permute.xlu0 %6001
        %6004 = vset.pattern.permute.xlu0 64
        %6005 = vperm.xlu0 %6004, %v5466
        %v6006 = vpop.permute.xlu0 %6005
        %v6008 = vmul.f32 %v5787, %v5994
        %v6009 = vmul.f32 %v5788, %v5994
        %v6010 = vmul.f32 %v5789, %v5994
        %v6011 = vmul.f32 %v5790, %v5998
        %v6012 = vmul.f32 %v5791, %v5998
        %v6013 = vmul.f32 %v5792, %v5998
        %v6014 = vmul.f32 %v5793, %v6002
        %v6015 = vmul.f32 %v5794, %v6002
        %v6016 = vmul.f32 %v5795, %v6002
        %v6017 = vmul.f32 %v5796, %v6006
        %v6018 = vmul.f32 %v5797, %v6006
        %v6019 = vmul.f32 %v5798, %v6006
        %6032 = vrot.lane.b32.xlu0 %v6008, 32
        %v6033 = vpop.permute.xlu0 %6032
        %6034 = vrot.lane.b32.xlu0 %v6009, 32
        %v6035 = vpop.permute.xlu0 %6034
        %6036 = vrot.lane.b32.xlu0 %v6010, 32
        %v6037 = vpop.permute.xlu0 %6036
        %6038 = vrot.lane.b32.xlu0 %v6011, 32
        %v6039 = vpop.permute.xlu0 %6038
        %6040 = vrot.lane.b32.xlu0 %v6012, 32
        %v6041 = vpop.permute.xlu0 %6040
        %6042 = vrot.lane.b32.xlu0 %v6013, 32
        %v6043 = vpop.permute.xlu0 %6042
        %6044 = vrot.lane.b32.xlu0 %v6014, 32
        %v6045 = vpop.permute.xlu0 %6044
        %6046 = vrot.lane.b32.xlu0 %v6015, 32
        %v6047 = vpop.permute.xlu0 %6046
        %6048 = vrot.lane.b32.xlu0 %v6016, 32
        %v6049 = vpop.permute.xlu0 %6048
        %6050 = vrot.lane.b32.xlu0 %v6017, 32
        %v6051 = vpop.permute.xlu0 %6050
        %6052 = vrot.lane.b32.xlu0 %v6018, 32
        %v6053 = vpop.permute.xlu0 %6052
        %6054 = vrot.lane.b32.xlu0 %v6019, 32
        %v6055 = vpop.permute.xlu0 %6054
        %v6056 = vsel %vm302, %v6033, %v6035
        %v6057 = vsel %vm302, %v6035, %v6037
        %v6058 = vsel %vm302, %v6039, %v6041
        %v6059 = vsel %vm302, %v6041, %v6043
        %v6060 = vsel %vm302, %v6045, %v6047
        %v6061 = vsel %vm302, %v6047, %v6049
        %v6062 = vsel %vm302, %v6051, %v6053
        %v6063 = vsel %vm302, %v6053, %v6055
        %v6076 = vadd.f32 %v5980, %v6033
        %v6077 = vadd.f32 %v5981, %v6056
        %v6078 = vadd.f32 %v5982, %v6057
        %v6079 = vadd.f32 %v5983, %v6039
        %v6080 = vadd.f32 %v5984, %v6058
        %v6081 = vadd.f32 %v5985, %v6059
        %v6082 = vadd.f32 %v5986, %v6045
        %v6083 = vadd.f32 %v5987, %v6060
        %v6084 = vadd.f32 %v5988, %v6061
        %v6085 = vadd.f32 %v5989, %v6051
        %v6086 = vadd.f32 %v5990, %v6062
        %v6087 = vadd.f32 %v5991, %v6063
        %v6088 = vld [vmem:[%s1520] sm:$0x3]
        %v6090 = vlaneseq
        %v6091 = vshrl.u32 %v6090, 7
        %v6092 = vsub.s32 0, %v6091
        %v6093 = vrot.slane %v6088, %v6092
        %v6094 = vlaneseq
        %v6095 = vshrl.u32 %v6094, 7
        %v6096 = vsub.s32 1, %v6095
        %v6097 = vrot.slane %v6088, %v6096
        %6098 = vrot.lane.b32.xlu0 %v6093, 79
        %v6099 = vpop.permute.xlu0 %6098
        %6100 = vrot.lane.b32.xlu0 %v6097, 79
        %v6101 = vpop.permute.xlu0 %6100
        %vm6102 = vcmask 646144
        %v6103 = vsel %vm6102, %v6099, %v6101
        %v6107 = vmul.f32 %v6076, %v6099
        %v6108 = vmul.f32 %v6077, %v6103
        %v6109 = vmul.f32 %v6078, %v6101
        %v6110 = vmul.f32 %v6079, %v6099
        %v6111 = vmul.f32 %v6080, %v6103
        %v6112 = vmul.f32 %v6081, %v6101
        %v6113 = vmul.f32 %v6082, %v6099
        %v6114 = vmul.f32 %v6083, %v6103
        %v6115 = vmul.f32 %v6084, %v6101
        %v6116 = vmul.f32 %v6085, %v6099
        %v6117 = vmul.f32 %v6086, %v6103
        %v6118 = vmul.f32 %v6087, %v6101
        %6119 = vset.pattern.permute.xlu0 47
        %6120 = vperm.xlu0 %6119, %v5463
        %v6121 = vpop.permute.xlu0 %6120
        %6123 = vset.pattern.permute.xlu0 47
        %6124 = vperm.xlu0 %6123, %v5464
        %v6125 = vpop.permute.xlu0 %6124
        %6127 = vset.pattern.permute.xlu0 47
        %6128 = vperm.xlu0 %6127, %v5465
        %v6129 = vpop.permute.xlu0 %6128
        %6131 = vset.pattern.permute.xlu0 47
        %6132 = vperm.xlu0 %6131, %v5466
        %v6133 = vpop.permute.xlu0 %6132
        %v6135 = vmul.f32 %v5451, %v6121
        %v6136 = vmul.f32 %v5452, %v6121
        %v6137 = vmul.f32 %v5453, %v6121
        %v6138 = vmul.f32 %v5454, %v6125
        %v6139 = vmul.f32 %v5455, %v6125
        %v6140 = vmul.f32 %v5456, %v6125
        %v6141 = vmul.f32 %v5457, %v6129
        %v6142 = vmul.f32 %v5458, %v6129
        %v6143 = vmul.f32 %v5459, %v6129
        %v6144 = vmul.f32 %v5460, %v6133
        %v6145 = vmul.f32 %v5461, %v6133
        %v6146 = vmul.f32 %v5462, %v6133
        %6147 = vset.pattern.permute.xlu0 50
        %6148 = vperm.xlu0 %6147, %v5463
        %v6149 = vpop.permute.xlu0 %6148
        %6151 = vset.pattern.permute.xlu0 50
        %6152 = vperm.xlu0 %6151, %v5464
        %v6153 = vpop.permute.xlu0 %6152
        %6155 = vset.pattern.permute.xlu0 50
        %6156 = vperm.xlu0 %6155, %v5465
        %v6157 = vpop.permute.xlu0 %6156
        %6159 = vset.pattern.permute.xlu0 50
        %6160 = vperm.xlu0 %6159, %v5466
        %v6161 = vpop.permute.xlu0 %6160
        %v6163 = vmul.f32 %v5451, %v6149
        %v6164 = vmul.f32 %v5452, %v6149
        %v6165 = vmul.f32 %v5453, %v6149
        %v6166 = vmul.f32 %v5454, %v6153
        %v6167 = vmul.f32 %v5455, %v6153
        %v6168 = vmul.f32 %v5456, %v6153
        %v6169 = vmul.f32 %v5457, %v6157
        %v6170 = vmul.f32 %v5458, %v6157
        %v6171 = vmul.f32 %v5459, %v6157
        %v6172 = vmul.f32 %v5460, %v6161
        %v6173 = vmul.f32 %v5461, %v6161
        %v6174 = vmul.f32 %v5462, %v6161
        %6187 = vrot.lane.b32.xlu0 %v6163, 112
        %v6188 = vpop.permute.xlu0 %6187
        %6189 = vrot.lane.b32.xlu0 %v6164, 112
        %v6190 = vpop.permute.xlu0 %6189
        %6191 = vrot.lane.b32.xlu0 %v6165, 112
        %v6192 = vpop.permute.xlu0 %6191
        %6193 = vrot.lane.b32.xlu0 %v6166, 112
        %v6194 = vpop.permute.xlu0 %6193
        %6195 = vrot.lane.b32.xlu0 %v6167, 112
        %v6196 = vpop.permute.xlu0 %6195
        %6197 = vrot.lane.b32.xlu0 %v6168, 112
        %v6198 = vpop.permute.xlu0 %6197
        %6199 = vrot.lane.b32.xlu0 %v6169, 112
        %v6200 = vpop.permute.xlu0 %6199
        %6201 = vrot.lane.b32.xlu0 %v6170, 112
        %v6202 = vpop.permute.xlu0 %6201
        %6203 = vrot.lane.b32.xlu0 %v6171, 112
        %v6204 = vpop.permute.xlu0 %6203
        %6205 = vrot.lane.b32.xlu0 %v6172, 112
        %v6206 = vpop.permute.xlu0 %6205
        %6207 = vrot.lane.b32.xlu0 %v6173, 112
        %v6208 = vpop.permute.xlu0 %6207
        %6209 = vrot.lane.b32.xlu0 %v6174, 112
        %v6210 = vpop.permute.xlu0 %6209
        %v6211 = vsel %vm740, %v6188, %v6190
        %v6212 = vsel %vm740, %v6190, %v6192
        %v6213 = vsel %vm740, %v6194, %v6196
        %v6214 = vsel %vm740, %v6196, %v6198
        %v6215 = vsel %vm740, %v6200, %v6202
        %v6216 = vsel %vm740, %v6202, %v6204
        %v6217 = vsel %vm740, %v6206, %v6208
        %v6218 = vsel %vm740, %v6208, %v6210
        %v6231 = vadd.f32 %v6135, %v6211
        %v6232 = vadd.f32 %v6136, %v6212
        %v6233 = vadd.f32 %v6137, %v6192
        %v6234 = vadd.f32 %v6138, %v6213
        %v6235 = vadd.f32 %v6139, %v6214
        %v6236 = vadd.f32 %v6140, %v6198
        %v6237 = vadd.f32 %v6141, %v6215
        %v6238 = vadd.f32 %v6142, %v6216
        %v6239 = vadd.f32 %v6143, %v6204
        %v6240 = vadd.f32 %v6144, %v6217
        %v6241 = vadd.f32 %v6145, %v6218
        %v6242 = vadd.f32 %v6146, %v6210
        %6243 = vset.pattern.permute.xlu0 53
        %6244 = vperm.xlu0 %6243, %v5463
        %v6245 = vpop.permute.xlu0 %6244
        %6247 = vset.pattern.permute.xlu0 53
        %6248 = vperm.xlu0 %6247, %v5464
        %v6249 = vpop.permute.xlu0 %6248
        %6251 = vset.pattern.permute.xlu0 53
        %6252 = vperm.xlu0 %6251, %v5465
        %v6253 = vpop.permute.xlu0 %6252
        %6255 = vset.pattern.permute.xlu0 53
        %6256 = vperm.xlu0 %6255, %v5466
        %v6257 = vpop.permute.xlu0 %6256
        %v6259 = vmul.f32 %v5451, %v6245
        %v6260 = vmul.f32 %v5452, %v6245
        %v6261 = vmul.f32 %v5453, %v6245
        %v6262 = vmul.f32 %v5454, %v6249
        %v6263 = vmul.f32 %v5455, %v6249
        %v6264 = vmul.f32 %v5456, %v6249
        %v6265 = vmul.f32 %v5457, %v6253
        %v6266 = vmul.f32 %v5458, %v6253
        %v6267 = vmul.f32 %v5459, %v6253
        %v6268 = vmul.f32 %v5460, %v6257
        %v6269 = vmul.f32 %v5461, %v6257
        %v6270 = vmul.f32 %v5462, %v6257
        %6283 = vrot.lane.b32.xlu0 %v6259, 96
        %v6284 = vpop.permute.xlu0 %6283
        %6285 = vrot.lane.b32.xlu0 %v6260, 96
        %v6286 = vpop.permute.xlu0 %6285
        %6287 = vrot.lane.b32.xlu0 %v6261, 96
        %v6288 = vpop.permute.xlu0 %6287
        %6289 = vrot.lane.b32.xlu0 %v6262, 96
        %v6290 = vpop.permute.xlu0 %6289
        %6291 = vrot.lane.b32.xlu0 %v6263, 96
        %v6292 = vpop.permute.xlu0 %6291
        %6293 = vrot.lane.b32.xlu0 %v6264, 96
        %v6294 = vpop.permute.xlu0 %6293
        %6295 = vrot.lane.b32.xlu0 %v6265, 96
        %v6296 = vpop.permute.xlu0 %6295
        %6297 = vrot.lane.b32.xlu0 %v6266, 96
        %v6298 = vpop.permute.xlu0 %6297
        %6299 = vrot.lane.b32.xlu0 %v6267, 96
        %v6300 = vpop.permute.xlu0 %6299
        %6301 = vrot.lane.b32.xlu0 %v6268, 96
        %v6302 = vpop.permute.xlu0 %6301
        %6303 = vrot.lane.b32.xlu0 %v6269, 96
        %v6304 = vpop.permute.xlu0 %6303
        %6305 = vrot.lane.b32.xlu0 %v6270, 96
        %v6306 = vpop.permute.xlu0 %6305
        %v6307 = vsel %vm837, %v6284, %v6286
        %v6308 = vsel %vm837, %v6286, %v6288
        %v6309 = vsel %vm837, %v6290, %v6292
        %v6310 = vsel %vm837, %v6292, %v6294
        %v6311 = vsel %vm837, %v6296, %v6298
        %v6312 = vsel %vm837, %v6298, %v6300
        %v6313 = vsel %vm837, %v6302, %v6304
        %v6314 = vsel %vm837, %v6304, %v6306
        %v6327 = vadd.f32 %v6231, %v6307
        %v6328 = vadd.f32 %v6232, %v6308
        %v6329 = vadd.f32 %v6233, %v6288
        %v6330 = vadd.f32 %v6234, %v6309
        %v6331 = vadd.f32 %v6235, %v6310
        %v6332 = vadd.f32 %v6236, %v6294
        %v6333 = vadd.f32 %v6237, %v6311
        %v6334 = vadd.f32 %v6238, %v6312
        %v6335 = vadd.f32 %v6239, %v6300
        %v6336 = vadd.f32 %v6240, %v6313
        %v6337 = vadd.f32 %v6241, %v6314
        %v6338 = vadd.f32 %v6242, %v6306
        %6339 = vset.pattern.permute.xlu0 56
        %6340 = vperm.xlu0 %6339, %v5463
        %v6341 = vpop.permute.xlu0 %6340
        %6343 = vset.pattern.permute.xlu0 56
        %6344 = vperm.xlu0 %6343, %v5464
        %v6345 = vpop.permute.xlu0 %6344
        %6347 = vset.pattern.permute.xlu0 56
        %6348 = vperm.xlu0 %6347, %v5465
        %v6349 = vpop.permute.xlu0 %6348
        %6351 = vset.pattern.permute.xlu0 56
        %6352 = vperm.xlu0 %6351, %v5466
        %v6353 = vpop.permute.xlu0 %6352
        %v6355 = vmul.f32 %v5452, %v6341
        %v6356 = vmul.f32 %v5453, %v6341
        %v6357 = vmul.f32 %v5455, %v6345
        %v6358 = vmul.f32 %v5456, %v6345
        %v6359 = vmul.f32 %v5458, %v6349
        %v6360 = vmul.f32 %v5459, %v6349
        %v6361 = vmul.f32 %v5461, %v6353
        %v6362 = vmul.f32 %v5462, %v6353
        %6371 = vrot.lane.b32.xlu0 %v6355, 80
        %v6372 = vpop.permute.xlu0 %6371
        %6373 = vrot.lane.b32.xlu0 %v6356, 80
        %v6374 = vpop.permute.xlu0 %6373
        %6375 = vrot.lane.b32.xlu0 %v6357, 80
        %v6376 = vpop.permute.xlu0 %6375
        %6377 = vrot.lane.b32.xlu0 %v6358, 80
        %v6378 = vpop.permute.xlu0 %6377
        %6379 = vrot.lane.b32.xlu0 %v6359, 80
        %v6380 = vpop.permute.xlu0 %6379
        %6381 = vrot.lane.b32.xlu0 %v6360, 80
        %v6382 = vpop.permute.xlu0 %6381
        %6383 = vrot.lane.b32.xlu0 %v6361, 80
        %v6384 = vpop.permute.xlu0 %6383
        %6385 = vrot.lane.b32.xlu0 %v6362, 80
        %v6386 = vpop.permute.xlu0 %6385
        %v6387 = vsel %vm946, %v6372, %v6374
        %v6388 = vsel %vm946, %v6376, %v6378
        %v6389 = vsel %vm946, %v6380, %v6382
        %v6390 = vsel %vm946, %v6384, %v6386
        %v6403 = vadd.f32 %v6327, %v6372
        %v6404 = vadd.f32 %v6328, %v6387
        %v6405 = vadd.f32 %v6329, %v6374
        %v6406 = vadd.f32 %v6330, %v6376
        %v6407 = vadd.f32 %v6331, %v6388
        %v6408 = vadd.f32 %v6332, %v6378
        %v6409 = vadd.f32 %v6333, %v6380
        %v6410 = vadd.f32 %v6334, %v6389
        %v6411 = vadd.f32 %v6335, %v6382
        %v6412 = vadd.f32 %v6336, %v6384
        %v6413 = vadd.f32 %v6337, %v6390
        %v6414 = vadd.f32 %v6338, %v6386
        %6415 = vset.pattern.permute.xlu0 59
        %6416 = vperm.xlu0 %6415, %v5463
        %v6417 = vpop.permute.xlu0 %6416
        %6419 = vset.pattern.permute.xlu0 59
        %6420 = vperm.xlu0 %6419, %v5464
        %v6421 = vpop.permute.xlu0 %6420
        %6423 = vset.pattern.permute.xlu0 59
        %6424 = vperm.xlu0 %6423, %v5465
        %v6425 = vpop.permute.xlu0 %6424
        %6427 = vset.pattern.permute.xlu0 59
        %6428 = vperm.xlu0 %6427, %v5466
        %v6429 = vpop.permute.xlu0 %6428
        %v6431 = vmul.f32 %v5787, %v6417
        %v6432 = vmul.f32 %v5788, %v6417
        %v6433 = vmul.f32 %v5789, %v6417
        %v6434 = vmul.f32 %v5790, %v6421
        %v6435 = vmul.f32 %v5791, %v6421
        %v6436 = vmul.f32 %v5792, %v6421
        %v6437 = vmul.f32 %v5793, %v6425
        %v6438 = vmul.f32 %v5794, %v6425
        %v6439 = vmul.f32 %v5795, %v6425
        %v6440 = vmul.f32 %v5796, %v6429
        %v6441 = vmul.f32 %v5797, %v6429
        %v6442 = vmul.f32 %v5798, %v6429
        %6455 = vrot.lane.b32.xlu0 %v6431, 64
        %v6456 = vpop.permute.xlu0 %6455
        %6457 = vrot.lane.b32.xlu0 %v6432, 64
        %v6458 = vpop.permute.xlu0 %6457
        %6459 = vrot.lane.b32.xlu0 %v6433, 64
        %v6460 = vpop.permute.xlu0 %6459
        %6461 = vrot.lane.b32.xlu0 %v6434, 64
        %v6462 = vpop.permute.xlu0 %6461
        %6463 = vrot.lane.b32.xlu0 %v6435, 64
        %v6464 = vpop.permute.xlu0 %6463
        %6465 = vrot.lane.b32.xlu0 %v6436, 64
        %v6466 = vpop.permute.xlu0 %6465
        %6467 = vrot.lane.b32.xlu0 %v6437, 64
        %v6468 = vpop.permute.xlu0 %6467
        %6469 = vrot.lane.b32.xlu0 %v6438, 64
        %v6470 = vpop.permute.xlu0 %6469
        %6471 = vrot.lane.b32.xlu0 %v6439, 64
        %v6472 = vpop.permute.xlu0 %6471
        %6473 = vrot.lane.b32.xlu0 %v6440, 64
        %v6474 = vpop.permute.xlu0 %6473
        %6475 = vrot.lane.b32.xlu0 %v6441, 64
        %v6476 = vpop.permute.xlu0 %6475
        %6477 = vrot.lane.b32.xlu0 %v6442, 64
        %v6478 = vpop.permute.xlu0 %6477
        %v6479 = vsel %vm1043, %v6456, %v6458
        %v6480 = vsel %vm1043, %v6458, %v6460
        %v6481 = vsel %vm1043, %v6462, %v6464
        %v6482 = vsel %vm1043, %v6464, %v6466
        %v6483 = vsel %vm1043, %v6468, %v6470
        %v6484 = vsel %vm1043, %v6470, %v6472
        %v6485 = vsel %vm1043, %v6474, %v6476
        %v6486 = vsel %vm1043, %v6476, %v6478
        %v6499 = vadd.f32 %v6403, %v6456
        %v6500 = vadd.f32 %v6404, %v6479
        %v6501 = vadd.f32 %v6405, %v6480
        %v6502 = vadd.f32 %v6406, %v6462
        %v6503 = vadd.f32 %v6407, %v6481
        %v6504 = vadd.f32 %v6408, %v6482
        %v6505 = vadd.f32 %v6409, %v6468
        %v6506 = vadd.f32 %v6410, %v6483
        %v6507 = vadd.f32 %v6411, %v6484
        %v6508 = vadd.f32 %v6412, %v6474
        %v6509 = vadd.f32 %v6413, %v6485
        %v6510 = vadd.f32 %v6414, %v6486
        %6511 = vset.pattern.permute.xlu0 62
        %6512 = vperm.xlu0 %6511, %v5463
        %v6513 = vpop.permute.xlu0 %6512
        %6515 = vset.pattern.permute.xlu0 62
        %6516 = vperm.xlu0 %6515, %v5464
        %v6517 = vpop.permute.xlu0 %6516
        %6519 = vset.pattern.permute.xlu0 62
        %6520 = vperm.xlu0 %6519, %v5465
        %v6521 = vpop.permute.xlu0 %6520
        %6523 = vset.pattern.permute.xlu0 62
        %6524 = vperm.xlu0 %6523, %v5466
        %v6525 = vpop.permute.xlu0 %6524
        %v6527 = vmul.f32 %v5787, %v6513
        %v6528 = vmul.f32 %v5788, %v6513
        %v6529 = vmul.f32 %v5789, %v6513
        %v6530 = vmul.f32 %v5790, %v6517
        %v6531 = vmul.f32 %v5791, %v6517
        %v6532 = vmul.f32 %v5792, %v6517
        %v6533 = vmul.f32 %v5793, %v6521
        %v6534 = vmul.f32 %v5794, %v6521
        %v6535 = vmul.f32 %v5795, %v6521
        %v6536 = vmul.f32 %v5796, %v6525
        %v6537 = vmul.f32 %v5797, %v6525
        %v6538 = vmul.f32 %v5798, %v6525
        %6551 = vrot.lane.b32.xlu0 %v6527, 48
        %v6552 = vpop.permute.xlu0 %6551
        %6553 = vrot.lane.b32.xlu0 %v6528, 48
        %v6554 = vpop.permute.xlu0 %6553
        %6555 = vrot.lane.b32.xlu0 %v6529, 48
        %v6556 = vpop.permute.xlu0 %6555
        %6557 = vrot.lane.b32.xlu0 %v6530, 48
        %v6558 = vpop.permute.xlu0 %6557
        %6559 = vrot.lane.b32.xlu0 %v6531, 48
        %v6560 = vpop.permute.xlu0 %6559
        %6561 = vrot.lane.b32.xlu0 %v6532, 48
        %v6562 = vpop.permute.xlu0 %6561
        %6563 = vrot.lane.b32.xlu0 %v6533, 48
        %v6564 = vpop.permute.xlu0 %6563
        %6565 = vrot.lane.b32.xlu0 %v6534, 48
        %v6566 = vpop.permute.xlu0 %6565
        %6567 = vrot.lane.b32.xlu0 %v6535, 48
        %v6568 = vpop.permute.xlu0 %6567
        %6569 = vrot.lane.b32.xlu0 %v6536, 48
        %v6570 = vpop.permute.xlu0 %6569
        %6571 = vrot.lane.b32.xlu0 %v6537, 48
        %v6572 = vpop.permute.xlu0 %6571
        %6573 = vrot.lane.b32.xlu0 %v6538, 48
        %v6574 = vpop.permute.xlu0 %6573
        %v6575 = vsel %vm5959, %v6552, %v6554
        %v6576 = vsel %vm5959, %v6554, %v6556
        %v6577 = vsel %vm5959, %v6558, %v6560
        %v6578 = vsel %vm5959, %v6560, %v6562
        %v6579 = vsel %vm5959, %v6564, %v6566
        %v6580 = vsel %vm5959, %v6566, %v6568
        %v6581 = vsel %vm5959, %v6570, %v6572
        %v6582 = vsel %vm5959, %v6572, %v6574
        %v6595 = vadd.f32 %v6499, %v6552
        %v6596 = vadd.f32 %v6500, %v6575
        %v6597 = vadd.f32 %v6501, %v6576
        %v6598 = vadd.f32 %v6502, %v6558
        %v6599 = vadd.f32 %v6503, %v6577
        %v6600 = vadd.f32 %v6504, %v6578
        %v6601 = vadd.f32 %v6505, %v6564
        %v6602 = vadd.f32 %v6506, %v6579
        %v6603 = vadd.f32 %v6507, %v6580
        %v6604 = vadd.f32 %v6508, %v6570
        %v6605 = vadd.f32 %v6509, %v6581
        %v6606 = vadd.f32 %v6510, %v6582
        %6607 = vset.pattern.permute.xlu0 65
        %6608 = vperm.xlu0 %6607, %v5463
        %v6609 = vpop.permute.xlu0 %6608
        %6611 = vset.pattern.permute.xlu0 65
        %6612 = vperm.xlu0 %6611, %v5464
        %v6613 = vpop.permute.xlu0 %6612
        %6615 = vset.pattern.permute.xlu0 65
        %6616 = vperm.xlu0 %6615, %v5465
        %v6617 = vpop.permute.xlu0 %6616
        %6619 = vset.pattern.permute.xlu0 65
        %6620 = vperm.xlu0 %6619, %v5466
        %v6621 = vpop.permute.xlu0 %6620
        %v6623 = vmul.f32 %v5787, %v6609
        %v6624 = vmul.f32 %v5788, %v6609
        %v6625 = vmul.f32 %v5789, %v6609
        %v6626 = vmul.f32 %v5790, %v6613
        %v6627 = vmul.f32 %v5791, %v6613
        %v6628 = vmul.f32 %v5792, %v6613
        %v6629 = vmul.f32 %v5793, %v6617
        %v6630 = vmul.f32 %v5794, %v6617
        %v6631 = vmul.f32 %v5795, %v6617
        %v6632 = vmul.f32 %v5796, %v6621
        %v6633 = vmul.f32 %v5797, %v6621
        %v6634 = vmul.f32 %v5798, %v6621
        %6647 = vrot.lane.b32.xlu0 %v6623, 32
        %v6648 = vpop.permute.xlu0 %6647
        %6649 = vrot.lane.b32.xlu0 %v6624, 32
        %v6650 = vpop.permute.xlu0 %6649
        %6651 = vrot.lane.b32.xlu0 %v6625, 32
        %v6652 = vpop.permute.xlu0 %6651
        %6653 = vrot.lane.b32.xlu0 %v6626, 32
        %v6654 = vpop.permute.xlu0 %6653
        %6655 = vrot.lane.b32.xlu0 %v6627, 32
        %v6656 = vpop.permute.xlu0 %6655
        %6657 = vrot.lane.b32.xlu0 %v6628, 32
        %v6658 = vpop.permute.xlu0 %6657
        %6659 = vrot.lane.b32.xlu0 %v6629, 32
        %v6660 = vpop.permute.xlu0 %6659
        %6661 = vrot.lane.b32.xlu0 %v6630, 32
        %v6662 = vpop.permute.xlu0 %6661
        %6663 = vrot.lane.b32.xlu0 %v6631, 32
        %v6664 = vpop.permute.xlu0 %6663
        %6665 = vrot.lane.b32.xlu0 %v6632, 32
        %v6666 = vpop.permute.xlu0 %6665
        %6667 = vrot.lane.b32.xlu0 %v6633, 32
        %v6668 = vpop.permute.xlu0 %6667
        %6669 = vrot.lane.b32.xlu0 %v6634, 32
        %v6670 = vpop.permute.xlu0 %6669
        %v6671 = vsel %vm302, %v6648, %v6650
        %v6672 = vsel %vm302, %v6650, %v6652
        %v6673 = vsel %vm302, %v6654, %v6656
        %v6674 = vsel %vm302, %v6656, %v6658
        %v6675 = vsel %vm302, %v6660, %v6662
        %v6676 = vsel %vm302, %v6662, %v6664
        %v6677 = vsel %vm302, %v6666, %v6668
        %v6678 = vsel %vm302, %v6668, %v6670
        %v6691 = vadd.f32 %v6595, %v6648
        %v6692 = vadd.f32 %v6596, %v6671
        %v6693 = vadd.f32 %v6597, %v6672
        %v6694 = vadd.f32 %v6598, %v6654
        %v6695 = vadd.f32 %v6599, %v6673
        %v6696 = vadd.f32 %v6600, %v6674
        %v6697 = vadd.f32 %v6601, %v6660
        %v6698 = vadd.f32 %v6602, %v6675
        %v6699 = vadd.f32 %v6603, %v6676
        %v6700 = vadd.f32 %v6604, %v6666
        %v6701 = vadd.f32 %v6605, %v6677
        %v6702 = vadd.f32 %v6606, %v6678
        %6715 = vrot.lane.b32.xlu0 %v6691, 127
        %v6716 = vpop.permute.xlu0 %6715
        %6717 = vrot.lane.b32.xlu0 %v6692, 127
        %v6718 = vpop.permute.xlu0 %6717
        %6719 = vrot.lane.b32.xlu0 %v6693, 127
        %v6720 = vpop.permute.xlu0 %6719
        %6721 = vrot.lane.b32.xlu0 %v6694, 127
        %v6722 = vpop.permute.xlu0 %6721
        %6723 = vrot.lane.b32.xlu0 %v6695, 127
        %v6724 = vpop.permute.xlu0 %6723
        %6725 = vrot.lane.b32.xlu0 %v6696, 127
        %v6726 = vpop.permute.xlu0 %6725
        %6727 = vrot.lane.b32.xlu0 %v6697, 127
        %v6728 = vpop.permute.xlu0 %6727
        %6729 = vrot.lane.b32.xlu0 %v6698, 127
        %v6730 = vpop.permute.xlu0 %6729
        %6731 = vrot.lane.b32.xlu0 %v6699, 127
        %v6732 = vpop.permute.xlu0 %6731
        %6733 = vrot.lane.b32.xlu0 %v6700, 127
        %v6734 = vpop.permute.xlu0 %6733
        %6735 = vrot.lane.b32.xlu0 %v6701, 127
        %v6736 = vpop.permute.xlu0 %6735
        %6737 = vrot.lane.b32.xlu0 %v6702, 127
        %v6738 = vpop.permute.xlu0 %6737
        %v6739 = vsel %vm1588, %v6716, %v6718
        %v6740 = vsel %vm1588, %v6718, %v6720
        %v6741 = vsel %vm1588, %v6722, %v6724
        %v6742 = vsel %vm1588, %v6724, %v6726
        %v6743 = vsel %vm1588, %v6728, %v6730
        %v6744 = vsel %vm1588, %v6730, %v6732
        %v6745 = vsel %vm1588, %v6734, %v6736
        %v6746 = vsel %vm1588, %v6736, %v6738
        %v6759 = vadd.f32 %v6107, %v6739
        %v6760 = vadd.f32 %v6108, %v6740
        %v6761 = vadd.f32 %v6109, %v6720
        %v6762 = vadd.f32 %v6110, %v6741
        %v6763 = vadd.f32 %v6111, %v6742
        %v6764 = vadd.f32 %v6112, %v6726
        %v6765 = vadd.f32 %v6113, %v6743
        %v6766 = vadd.f32 %v6114, %v6744
        %v6767 = vadd.f32 %v6115, %v6732
        %v6768 = vadd.f32 %v6116, %v6745
        %v6769 = vadd.f32 %v6117, %v6746
        %v6770 = vadd.f32 %v6118, %v6738
        %6771 = vset.pattern.permute.xlu0 48
        %6772 = vperm.xlu0 %6771, %v5463
        %v6773 = vpop.permute.xlu0 %6772
        %6775 = vset.pattern.permute.xlu0 48
        %6776 = vperm.xlu0 %6775, %v5464
        %v6777 = vpop.permute.xlu0 %6776
        %6779 = vset.pattern.permute.xlu0 48
        %6780 = vperm.xlu0 %6779, %v5465
        %v6781 = vpop.permute.xlu0 %6780
        %6783 = vset.pattern.permute.xlu0 48
        %6784 = vperm.xlu0 %6783, %v5466
        %v6785 = vpop.permute.xlu0 %6784
        %v6787 = vmul.f32 %v5451, %v6773
        %v6788 = vmul.f32 %v5452, %v6773
        %v6789 = vmul.f32 %v5453, %v6773
        %v6790 = vmul.f32 %v5454, %v6777
        %v6791 = vmul.f32 %v5455, %v6777
        %v6792 = vmul.f32 %v5456, %v6777
        %v6793 = vmul.f32 %v5457, %v6781
        %v6794 = vmul.f32 %v5458, %v6781
        %v6795 = vmul.f32 %v5459, %v6781
        %v6796 = vmul.f32 %v5460, %v6785
        %v6797 = vmul.f32 %v5461, %v6785
        %v6798 = vmul.f32 %v5462, %v6785
        %6799 = vset.pattern.permute.xlu0 51
        %6800 = vperm.xlu0 %6799, %v5463
        %v6801 = vpop.permute.xlu0 %6800
        %6803 = vset.pattern.permute.xlu0 51
        %6804 = vperm.xlu0 %6803, %v5464
        %v6805 = vpop.permute.xlu0 %6804
        %6807 = vset.pattern.permute.xlu0 51
        %6808 = vperm.xlu0 %6807, %v5465
        %v6809 = vpop.permute.xlu0 %6808
        %6811 = vset.pattern.permute.xlu0 51
        %6812 = vperm.xlu0 %6811, %v5466
        %v6813 = vpop.permute.xlu0 %6812
        %v6815 = vmul.f32 %v5451, %v6801
        %v6816 = vmul.f32 %v5452, %v6801
        %v6817 = vmul.f32 %v5453, %v6801
        %v6818 = vmul.f32 %v5454, %v6805
        %v6819 = vmul.f32 %v5455, %v6805
        %v6820 = vmul.f32 %v5456, %v6805
        %v6821 = vmul.f32 %v5457, %v6809
        %v6822 = vmul.f32 %v5458, %v6809
        %v6823 = vmul.f32 %v5459, %v6809
        %v6824 = vmul.f32 %v5460, %v6813
        %v6825 = vmul.f32 %v5461, %v6813
        %v6826 = vmul.f32 %v5462, %v6813
        %6839 = vrot.lane.b32.xlu0 %v6815, 112
        %v6840 = vpop.permute.xlu0 %6839
        %6841 = vrot.lane.b32.xlu0 %v6816, 112
        %v6842 = vpop.permute.xlu0 %6841
        %6843 = vrot.lane.b32.xlu0 %v6817, 112
        %v6844 = vpop.permute.xlu0 %6843
        %6845 = vrot.lane.b32.xlu0 %v6818, 112
        %v6846 = vpop.permute.xlu0 %6845
        %6847 = vrot.lane.b32.xlu0 %v6819, 112
        %v6848 = vpop.permute.xlu0 %6847
        %6849 = vrot.lane.b32.xlu0 %v6820, 112
        %v6850 = vpop.permute.xlu0 %6849
        %6851 = vrot.lane.b32.xlu0 %v6821, 112
        %v6852 = vpop.permute.xlu0 %6851
        %6853 = vrot.lane.b32.xlu0 %v6822, 112
        %v6854 = vpop.permute.xlu0 %6853
        %6855 = vrot.lane.b32.xlu0 %v6823, 112
        %v6856 = vpop.permute.xlu0 %6855
        %6857 = vrot.lane.b32.xlu0 %v6824, 112
        %v6858 = vpop.permute.xlu0 %6857
        %6859 = vrot.lane.b32.xlu0 %v6825, 112
        %v6860 = vpop.permute.xlu0 %6859
        %6861 = vrot.lane.b32.xlu0 %v6826, 112
        %v6862 = vpop.permute.xlu0 %6861
        %v6863 = vsel %vm740, %v6840, %v6842
        %v6864 = vsel %vm740, %v6842, %v6844
        %v6865 = vsel %vm740, %v6846, %v6848
        %v6866 = vsel %vm740, %v6848, %v6850
        %v6867 = vsel %vm740, %v6852, %v6854
        %v6868 = vsel %vm740, %v6854, %v6856
        %v6869 = vsel %vm740, %v6858, %v6860
        %v6870 = vsel %vm740, %v6860, %v6862
        %v6883 = vadd.f32 %v6787, %v6863
        %v6884 = vadd.f32 %v6788, %v6864
        %v6885 = vadd.f32 %v6789, %v6844
        %v6886 = vadd.f32 %v6790, %v6865
        %v6887 = vadd.f32 %v6791, %v6866
        %v6888 = vadd.f32 %v6792, %v6850
        %v6889 = vadd.f32 %v6793, %v6867
        %v6890 = vadd.f32 %v6794, %v6868
        %v6891 = vadd.f32 %v6795, %v6856
        %v6892 = vadd.f32 %v6796, %v6869
        %v6893 = vadd.f32 %v6797, %v6870
        %v6894 = vadd.f32 %v6798, %v6862
        %6895 = vset.pattern.permute.xlu0 54
        %6896 = vperm.xlu0 %6895, %v5463
        %v6897 = vpop.permute.xlu0 %6896
        %6899 = vset.pattern.permute.xlu0 54
        %6900 = vperm.xlu0 %6899, %v5464
        %v6901 = vpop.permute.xlu0 %6900
        %6903 = vset.pattern.permute.xlu0 54
        %6904 = vperm.xlu0 %6903, %v5465
        %v6905 = vpop.permute.xlu0 %6904
        %6907 = vset.pattern.permute.xlu0 54
        %6908 = vperm.xlu0 %6907, %v5466
        %v6909 = vpop.permute.xlu0 %6908
        %v6911 = vmul.f32 %v5451, %v6897
        %v6912 = vmul.f32 %v5452, %v6897
        %v6913 = vmul.f32 %v5453, %v6897
        %v6914 = vmul.f32 %v5454, %v6901
        %v6915 = vmul.f32 %v5455, %v6901
        %v6916 = vmul.f32 %v5456, %v6901
        %v6917 = vmul.f32 %v5457, %v6905
        %v6918 = vmul.f32 %v5458, %v6905
        %v6919 = vmul.f32 %v5459, %v6905
        %v6920 = vmul.f32 %v5460, %v6909
        %v6921 = vmul.f32 %v5461, %v6909
        %v6922 = vmul.f32 %v5462, %v6909
        %6935 = vrot.lane.b32.xlu0 %v6911, 96
        %v6936 = vpop.permute.xlu0 %6935
        %6937 = vrot.lane.b32.xlu0 %v6912, 96
        %v6938 = vpop.permute.xlu0 %6937
        %6939 = vrot.lane.b32.xlu0 %v6913, 96
        %v6940 = vpop.permute.xlu0 %6939
        %6941 = vrot.lane.b32.xlu0 %v6914, 96
        %v6942 = vpop.permute.xlu0 %6941
        %6943 = vrot.lane.b32.xlu0 %v6915, 96
        %v6944 = vpop.permute.xlu0 %6943
        %6945 = vrot.lane.b32.xlu0 %v6916, 96
        %v6946 = vpop.permute.xlu0 %6945
        %6947 = vrot.lane.b32.xlu0 %v6917, 96
        %v6948 = vpop.permute.xlu0 %6947
        %6949 = vrot.lane.b32.xlu0 %v6918, 96
        %v6950 = vpop.permute.xlu0 %6949
        %6951 = vrot.lane.b32.xlu0 %v6919, 96
        %v6952 = vpop.permute.xlu0 %6951
        %6953 = vrot.lane.b32.xlu0 %v6920, 96
        %v6954 = vpop.permute.xlu0 %6953
        %6955 = vrot.lane.b32.xlu0 %v6921, 96
        %v6956 = vpop.permute.xlu0 %6955
        %6957 = vrot.lane.b32.xlu0 %v6922, 96
        %v6958 = vpop.permute.xlu0 %6957
        %v6959 = vsel %vm837, %v6936, %v6938
        %v6960 = vsel %vm837, %v6938, %v6940
        %v6961 = vsel %vm837, %v6942, %v6944
        %v6962 = vsel %vm837, %v6944, %v6946
        %v6963 = vsel %vm837, %v6948, %v6950
        %v6964 = vsel %vm837, %v6950, %v6952
        %v6965 = vsel %vm837, %v6954, %v6956
        %v6966 = vsel %vm837, %v6956, %v6958
        %v6979 = vadd.f32 %v6883, %v6959
        %v6980 = vadd.f32 %v6884, %v6960
        %v6981 = vadd.f32 %v6885, %v6940
        %v6982 = vadd.f32 %v6886, %v6961
        %v6983 = vadd.f32 %v6887, %v6962
        %v6984 = vadd.f32 %v6888, %v6946
        %v6985 = vadd.f32 %v6889, %v6963
        %v6986 = vadd.f32 %v6890, %v6964
        %v6987 = vadd.f32 %v6891, %v6952
        %v6988 = vadd.f32 %v6892, %v6965
        %v6989 = vadd.f32 %v6893, %v6966
        %v6990 = vadd.f32 %v6894, %v6958
        %6991 = vset.pattern.permute.xlu0 57
        %6992 = vperm.xlu0 %6991, %v5463
        %v6993 = vpop.permute.xlu0 %6992
        %6995 = vset.pattern.permute.xlu0 57
        %6996 = vperm.xlu0 %6995, %v5464
        %v6997 = vpop.permute.xlu0 %6996
        %6999 = vset.pattern.permute.xlu0 57
        %7000 = vperm.xlu0 %6999, %v5465
        %v7001 = vpop.permute.xlu0 %7000
        %7003 = vset.pattern.permute.xlu0 57
        %7004 = vperm.xlu0 %7003, %v5466
        %v7005 = vpop.permute.xlu0 %7004
        %v7007 = vmul.f32 %v5787, %v6993
        %v7008 = vmul.f32 %v5788, %v6993
        %v7009 = vmul.f32 %v5789, %v6993
        %v7010 = vmul.f32 %v5790, %v6997
        %v7011 = vmul.f32 %v5791, %v6997
        %v7012 = vmul.f32 %v5792, %v6997
        %v7013 = vmul.f32 %v5793, %v7001
        %v7014 = vmul.f32 %v5794, %v7001
        %v7015 = vmul.f32 %v5795, %v7001
        %v7016 = vmul.f32 %v5796, %v7005
        %v7017 = vmul.f32 %v5797, %v7005
        %v7018 = vmul.f32 %v5798, %v7005
        %7031 = vrot.lane.b32.xlu0 %v7007, 80
        %v7032 = vpop.permute.xlu0 %7031
        %7033 = vrot.lane.b32.xlu0 %v7008, 80
        %v7034 = vpop.permute.xlu0 %7033
        %7035 = vrot.lane.b32.xlu0 %v7009, 80
        %v7036 = vpop.permute.xlu0 %7035
        %7037 = vrot.lane.b32.xlu0 %v7010, 80
        %v7038 = vpop.permute.xlu0 %7037
        %7039 = vrot.lane.b32.xlu0 %v7011, 80
        %v7040 = vpop.permute.xlu0 %7039
        %7041 = vrot.lane.b32.xlu0 %v7012, 80
        %v7042 = vpop.permute.xlu0 %7041
        %7043 = vrot.lane.b32.xlu0 %v7013, 80
        %v7044 = vpop.permute.xlu0 %7043
        %7045 = vrot.lane.b32.xlu0 %v7014, 80
        %v7046 = vpop.permute.xlu0 %7045
        %7047 = vrot.lane.b32.xlu0 %v7015, 80
        %v7048 = vpop.permute.xlu0 %7047
        %7049 = vrot.lane.b32.xlu0 %v7016, 80
        %v7050 = vpop.permute.xlu0 %7049
        %7051 = vrot.lane.b32.xlu0 %v7017, 80
        %v7052 = vpop.permute.xlu0 %7051
        %7053 = vrot.lane.b32.xlu0 %v7018, 80
        %v7054 = vpop.permute.xlu0 %7053
        %v7055 = vsel %vm946, %v7032, %v7034
        %v7056 = vsel %vm946, %v7034, %v7036
        %v7057 = vsel %vm946, %v7038, %v7040
        %v7058 = vsel %vm946, %v7040, %v7042
        %v7059 = vsel %vm946, %v7044, %v7046
        %v7060 = vsel %vm946, %v7046, %v7048
        %v7061 = vsel %vm946, %v7050, %v7052
        %v7062 = vsel %vm946, %v7052, %v7054
        %v7075 = vadd.f32 %v6979, %v7032
        %v7076 = vadd.f32 %v6980, %v7055
        %v7077 = vadd.f32 %v6981, %v7056
        %v7078 = vadd.f32 %v6982, %v7038
        %v7079 = vadd.f32 %v6983, %v7057
        %v7080 = vadd.f32 %v6984, %v7058
        %v7081 = vadd.f32 %v6985, %v7044
        %v7082 = vadd.f32 %v6986, %v7059
        %v7083 = vadd.f32 %v6987, %v7060
        %v7084 = vadd.f32 %v6988, %v7050
        %v7085 = vadd.f32 %v6989, %v7061
        %v7086 = vadd.f32 %v6990, %v7062
        %7087 = vset.pattern.permute.xlu0 60
        %7088 = vperm.xlu0 %7087, %v5463
        %v7089 = vpop.permute.xlu0 %7088
        %7091 = vset.pattern.permute.xlu0 60
        %7092 = vperm.xlu0 %7091, %v5464
        %v7093 = vpop.permute.xlu0 %7092
        %7095 = vset.pattern.permute.xlu0 60
        %7096 = vperm.xlu0 %7095, %v5465
        %v7097 = vpop.permute.xlu0 %7096
        %7099 = vset.pattern.permute.xlu0 60
        %7100 = vperm.xlu0 %7099, %v5466
        %v7101 = vpop.permute.xlu0 %7100
        %v7103 = vmul.f32 %v5787, %v7089
        %v7104 = vmul.f32 %v5788, %v7089
        %v7105 = vmul.f32 %v5789, %v7089
        %v7106 = vmul.f32 %v5790, %v7093
        %v7107 = vmul.f32 %v5791, %v7093
        %v7108 = vmul.f32 %v5792, %v7093
        %v7109 = vmul.f32 %v5793, %v7097
        %v7110 = vmul.f32 %v5794, %v7097
        %v7111 = vmul.f32 %v5795, %v7097
        %v7112 = vmul.f32 %v5796, %v7101
        %v7113 = vmul.f32 %v5797, %v7101
        %v7114 = vmul.f32 %v5798, %v7101
        %7127 = vrot.lane.b32.xlu0 %v7103, 64
        %v7128 = vpop.permute.xlu0 %7127
        %7129 = vrot.lane.b32.xlu0 %v7104, 64
        %v7130 = vpop.permute.xlu0 %7129
        %7131 = vrot.lane.b32.xlu0 %v7105, 64
        %v7132 = vpop.permute.xlu0 %7131
        %7133 = vrot.lane.b32.xlu0 %v7106, 64
        %v7134 = vpop.permute.xlu0 %7133
        %7135 = vrot.lane.b32.xlu0 %v7107, 64
        %v7136 = vpop.permute.xlu0 %7135
        %7137 = vrot.lane.b32.xlu0 %v7108, 64
        %v7138 = vpop.permute.xlu0 %7137
        %7139 = vrot.lane.b32.xlu0 %v7109, 64
        %v7140 = vpop.permute.xlu0 %7139
        %7141 = vrot.lane.b32.xlu0 %v7110, 64
        %v7142 = vpop.permute.xlu0 %7141
        %7143 = vrot.lane.b32.xlu0 %v7111, 64
        %v7144 = vpop.permute.xlu0 %7143
        %7145 = vrot.lane.b32.xlu0 %v7112, 64
        %v7146 = vpop.permute.xlu0 %7145
        %7147 = vrot.lane.b32.xlu0 %v7113, 64
        %v7148 = vpop.permute.xlu0 %7147
        %7149 = vrot.lane.b32.xlu0 %v7114, 64
        %v7150 = vpop.permute.xlu0 %7149
        %v7151 = vsel %vm1043, %v7128, %v7130
        %v7152 = vsel %vm1043, %v7130, %v7132
        %v7153 = vsel %vm1043, %v7134, %v7136
        %v7154 = vsel %vm1043, %v7136, %v7138
        %v7155 = vsel %vm1043, %v7140, %v7142
        %v7156 = vsel %vm1043, %v7142, %v7144
        %v7157 = vsel %vm1043, %v7146, %v7148
        %v7158 = vsel %vm1043, %v7148, %v7150
        %v7171 = vadd.f32 %v7075, %v7128
        %v7172 = vadd.f32 %v7076, %v7151
        %v7173 = vadd.f32 %v7077, %v7152
        %v7174 = vadd.f32 %v7078, %v7134
        %v7175 = vadd.f32 %v7079, %v7153
        %v7176 = vadd.f32 %v7080, %v7154
        %v7177 = vadd.f32 %v7081, %v7140
        %v7178 = vadd.f32 %v7082, %v7155
        %v7179 = vadd.f32 %v7083, %v7156
        %v7180 = vadd.f32 %v7084, %v7146
        %v7181 = vadd.f32 %v7085, %v7157
        %v7182 = vadd.f32 %v7086, %v7158
        %7183 = vset.pattern.permute.xlu0 63
        %7184 = vperm.xlu0 %7183, %v5463
        %v7185 = vpop.permute.xlu0 %7184
        %7187 = vset.pattern.permute.xlu0 63
        %7188 = vperm.xlu0 %7187, %v5464
        %v7189 = vpop.permute.xlu0 %7188
        %7191 = vset.pattern.permute.xlu0 63
        %7192 = vperm.xlu0 %7191, %v5465
        %v7193 = vpop.permute.xlu0 %7192
        %7195 = vset.pattern.permute.xlu0 63
        %7196 = vperm.xlu0 %7195, %v5466
        %v7197 = vpop.permute.xlu0 %7196
        %v7199 = vmul.f32 %v5787, %v7185
        %v7200 = vmul.f32 %v5788, %v7185
        %v7201 = vmul.f32 %v5789, %v7185
        %v7202 = vmul.f32 %v5790, %v7189
        %v7203 = vmul.f32 %v5791, %v7189
        %v7204 = vmul.f32 %v5792, %v7189
        %v7205 = vmul.f32 %v5793, %v7193
        %v7206 = vmul.f32 %v5794, %v7193
        %v7207 = vmul.f32 %v5795, %v7193
        %v7208 = vmul.f32 %v5796, %v7197
        %v7209 = vmul.f32 %v5797, %v7197
        %v7210 = vmul.f32 %v5798, %v7197
        %7223 = vrot.lane.b32.xlu0 %v7199, 48
        %v7224 = vpop.permute.xlu0 %7223
        %7225 = vrot.lane.b32.xlu0 %v7200, 48
        %v7226 = vpop.permute.xlu0 %7225
        %7227 = vrot.lane.b32.xlu0 %v7201, 48
        %v7228 = vpop.permute.xlu0 %7227
        %7229 = vrot.lane.b32.xlu0 %v7202, 48
        %v7230 = vpop.permute.xlu0 %7229
        %7231 = vrot.lane.b32.xlu0 %v7203, 48
        %v7232 = vpop.permute.xlu0 %7231
        %7233 = vrot.lane.b32.xlu0 %v7204, 48
        %v7234 = vpop.permute.xlu0 %7233
        %7235 = vrot.lane.b32.xlu0 %v7205, 48
        %v7236 = vpop.permute.xlu0 %7235
        %7237 = vrot.lane.b32.xlu0 %v7206, 48
        %v7238 = vpop.permute.xlu0 %7237
        %7239 = vrot.lane.b32.xlu0 %v7207, 48
        %v7240 = vpop.permute.xlu0 %7239
        %7241 = vrot.lane.b32.xlu0 %v7208, 48
        %v7242 = vpop.permute.xlu0 %7241
        %7243 = vrot.lane.b32.xlu0 %v7209, 48
        %v7244 = vpop.permute.xlu0 %7243
        %7245 = vrot.lane.b32.xlu0 %v7210, 48
        %v7246 = vpop.permute.xlu0 %7245
        %v7247 = vsel %vm5959, %v7224, %v7226
        %v7248 = vsel %vm5959, %v7226, %v7228
        %v7249 = vsel %vm5959, %v7230, %v7232
        %v7250 = vsel %vm5959, %v7232, %v7234
        %v7251 = vsel %vm5959, %v7236, %v7238
        %v7252 = vsel %vm5959, %v7238, %v7240
        %v7253 = vsel %vm5959, %v7242, %v7244
        %v7254 = vsel %vm5959, %v7244, %v7246
        %v7267 = vadd.f32 %v7171, %v7224
        %v7268 = vadd.f32 %v7172, %v7247
        %v7269 = vadd.f32 %v7173, %v7248
        %v7270 = vadd.f32 %v7174, %v7230
        %v7271 = vadd.f32 %v7175, %v7249
        %v7272 = vadd.f32 %v7176, %v7250
        %v7273 = vadd.f32 %v7177, %v7236
        %v7274 = vadd.f32 %v7178, %v7251
        %v7275 = vadd.f32 %v7179, %v7252
        %v7276 = vadd.f32 %v7180, %v7242
        %v7277 = vadd.f32 %v7181, %v7253
        %v7278 = vadd.f32 %v7182, %v7254
        %7279 = vset.pattern.permute.xlu0 66
        %7280 = vperm.xlu0 %7279, %v5463
        %v7281 = vpop.permute.xlu0 %7280
        %7283 = vset.pattern.permute.xlu0 66
        %7284 = vperm.xlu0 %7283, %v5464
        %v7285 = vpop.permute.xlu0 %7284
        %7287 = vset.pattern.permute.xlu0 66
        %7288 = vperm.xlu0 %7287, %v5465
        %v7289 = vpop.permute.xlu0 %7288
        %7291 = vset.pattern.permute.xlu0 66
        %7292 = vperm.xlu0 %7291, %v5466
        %v7293 = vpop.permute.xlu0 %7292
        %v7295 = vmul.f32 %v5787, %v7281
        %v7296 = vmul.f32 %v5788, %v7281
        %v7297 = vmul.f32 %v5789, %v7281
        %v7298 = vmul.f32 %v5790, %v7285
        %v7299 = vmul.f32 %v5791, %v7285
        %v7300 = vmul.f32 %v5792, %v7285
        %v7301 = vmul.f32 %v5793, %v7289
        %v7302 = vmul.f32 %v5794, %v7289
        %v7303 = vmul.f32 %v5795, %v7289
        %v7304 = vmul.f32 %v5796, %v7293
        %v7305 = vmul.f32 %v5797, %v7293
        %v7306 = vmul.f32 %v5798, %v7293
        %7319 = vrot.lane.b32.xlu0 %v7295, 32
        %v7320 = vpop.permute.xlu0 %7319
        %7321 = vrot.lane.b32.xlu0 %v7296, 32
        %v7322 = vpop.permute.xlu0 %7321
        %7323 = vrot.lane.b32.xlu0 %v7297, 32
        %v7324 = vpop.permute.xlu0 %7323
        %7325 = vrot.lane.b32.xlu0 %v7298, 32
        %v7326 = vpop.permute.xlu0 %7325
        %7327 = vrot.lane.b32.xlu0 %v7299, 32
        %v7328 = vpop.permute.xlu0 %7327
        %7329 = vrot.lane.b32.xlu0 %v7300, 32
        %v7330 = vpop.permute.xlu0 %7329
        %7331 = vrot.lane.b32.xlu0 %v7301, 32
        %v7332 = vpop.permute.xlu0 %7331
        %7333 = vrot.lane.b32.xlu0 %v7302, 32
        %v7334 = vpop.permute.xlu0 %7333
        %7335 = vrot.lane.b32.xlu0 %v7303, 32
        %v7336 = vpop.permute.xlu0 %7335
        %7337 = vrot.lane.b32.xlu0 %v7304, 32
        %v7338 = vpop.permute.xlu0 %7337
        %7339 = vrot.lane.b32.xlu0 %v7305, 32
        %v7340 = vpop.permute.xlu0 %7339
        %7341 = vrot.lane.b32.xlu0 %v7306, 32
        %v7342 = vpop.permute.xlu0 %7341
        %v7343 = vsel %vm302, %v7320, %v7322
        %v7344 = vsel %vm302, %v7322, %v7324
        %v7345 = vsel %vm302, %v7326, %v7328
        %v7346 = vsel %vm302, %v7328, %v7330
        %v7347 = vsel %vm302, %v7332, %v7334
        %v7348 = vsel %vm302, %v7334, %v7336
        %v7349 = vsel %vm302, %v7338, %v7340
        %v7350 = vsel %vm302, %v7340, %v7342
        %v7363 = vadd.f32 %v7267, %v7320
        %v7364 = vadd.f32 %v7268, %v7343
        %v7365 = vadd.f32 %v7269, %v7344
        %v7366 = vadd.f32 %v7270, %v7326
        %v7367 = vadd.f32 %v7271, %v7345
        %v7368 = vadd.f32 %v7272, %v7346
        %v7369 = vadd.f32 %v7273, %v7332
        %v7370 = vadd.f32 %v7274, %v7347
        %v7371 = vadd.f32 %v7275, %v7348
        %v7372 = vadd.f32 %v7276, %v7338
        %v7373 = vadd.f32 %v7277, %v7349
        %v7374 = vadd.f32 %v7278, %v7350
        %v7375 = vld [vmem:[%s2494] sm:$0x3]
        %v7377 = vlaneseq
        %v7378 = vshrl.u32 %v7377, 7
        %v7379 = vsub.s32 0, %v7378
        %v7380 = vrot.slane %v7375, %v7379
        %v7381 = vlaneseq
        %v7382 = vshrl.u32 %v7381, 7
        %v7383 = vsub.s32 1, %v7382
        %v7384 = vrot.slane %v7375, %v7383
        %7385 = vrot.lane.b32.xlu0 %v7380, 81
        %v7386 = vpop.permute.xlu0 %7385
        %7387 = vrot.lane.b32.xlu0 %v7384, 81
        %v7388 = vpop.permute.xlu0 %7387
        %vm7389 = vcmask 662528
        %v7390 = vsel %vm7389, %v7386, %v7388
        %v7394 = vmul.f32 %v7363, %v7386
        %v7395 = vmul.f32 %v7364, %v7390
        %v7396 = vmul.f32 %v7365, %v7388
        %v7397 = vmul.f32 %v7366, %v7386
        %v7398 = vmul.f32 %v7367, %v7390
        %v7399 = vmul.f32 %v7368, %v7388
        %v7400 = vmul.f32 %v7369, %v7386
        %v7401 = vmul.f32 %v7370, %v7390
        %v7402 = vmul.f32 %v7371, %v7388
        %v7403 = vmul.f32 %v7372, %v7386
        %v7404 = vmul.f32 %v7373, %v7390
        %v7405 = vmul.f32 %v7374, %v7388
        %7418 = vrot.lane.b32.xlu0 %v7394, 126
        %v7419 = vpop.permute.xlu0 %7418
        %7420 = vrot.lane.b32.xlu0 %v7395, 126
        %v7421 = vpop.permute.xlu0 %7420
        %7422 = vrot.lane.b32.xlu0 %v7396, 126
        %v7423 = vpop.permute.xlu0 %7422
        %7424 = vrot.lane.b32.xlu0 %v7397, 126
        %v7425 = vpop.permute.xlu0 %7424
        %7426 = vrot.lane.b32.xlu0 %v7398, 126
        %v7427 = vpop.permute.xlu0 %7426
        %7428 = vrot.lane.b32.xlu0 %v7399, 126
        %v7429 = vpop.permute.xlu0 %7428
        %7430 = vrot.lane.b32.xlu0 %v7400, 126
        %v7431 = vpop.permute.xlu0 %7430
        %7432 = vrot.lane.b32.xlu0 %v7401, 126
        %v7433 = vpop.permute.xlu0 %7432
        %7434 = vrot.lane.b32.xlu0 %v7402, 126
        %v7435 = vpop.permute.xlu0 %7434
        %7436 = vrot.lane.b32.xlu0 %v7403, 126
        %v7437 = vpop.permute.xlu0 %7436
        %7438 = vrot.lane.b32.xlu0 %v7404, 126
        %v7439 = vpop.permute.xlu0 %7438
        %7440 = vrot.lane.b32.xlu0 %v7405, 126
        %v7441 = vpop.permute.xlu0 %7440
        %v7442 = vsel %vm2049, %v7419, %v7421
        %v7443 = vsel %vm2049, %v7421, %v7423
        %v7444 = vsel %vm2049, %v7425, %v7427
        %v7445 = vsel %vm2049, %v7427, %v7429
        %v7446 = vsel %vm2049, %v7431, %v7433
        %v7447 = vsel %vm2049, %v7433, %v7435
        %v7448 = vsel %vm2049, %v7437, %v7439
        %v7449 = vsel %vm2049, %v7439, %v7441
        %v7462 = vadd.f32 %v6759, %v7442
        %v7463 = vadd.f32 %v6760, %v7443
        %v7464 = vadd.f32 %v6761, %v7423
        %v7465 = vadd.f32 %v6762, %v7444
        %v7466 = vadd.f32 %v6763, %v7445
        %v7467 = vadd.f32 %v6764, %v7429
        %v7468 = vadd.f32 %v6765, %v7446
        %v7469 = vadd.f32 %v6766, %v7447
        %v7470 = vadd.f32 %v6767, %v7435
        %v7471 = vadd.f32 %v6768, %v7448
        %v7472 = vadd.f32 %v6769, %v7449
        %v7473 = vadd.f32 %v6770, %v7441
        %v7474 = vld [vmem:[%s4] sm:$0xff]
        %v7475 = vld [vmem:[%s4 + $0x8] sm:$0xff]
        %v7476 = vld [vmem:[%s4 + $0x10] sm:$0xff]
        %v7477 = vld [vmem:[%s4 + $0x18] sm:$0xff]
        %7479 = vset.pattern.permute.xlu0 3
        %7480 = vperm.xlu0 %7479, %v7474
        %v7481 = vpop.permute.xlu0 %7480
        %7484 = vset.pattern.permute.xlu0 3
        %7485 = vperm.xlu0 %7484, %v7475
        %v7486 = vpop.permute.xlu0 %7485
        %7489 = vset.pattern.permute.xlu0 3
        %7490 = vperm.xlu0 %7489, %v7476
        %v7491 = vpop.permute.xlu0 %7490
        %7494 = vset.pattern.permute.xlu0 3
        %7495 = vperm.xlu0 %7494, %v7477
        %v7496 = vpop.permute.xlu0 %7495
        %v7498 = vadd.f32 %v7462, %v7481
        %v7499 = vadd.f32 %v7463, %v7481
        %v7500 = vadd.f32 %v7464, %v7481
        %v7501 = vadd.f32 %v7465, %v7486
        %v7502 = vadd.f32 %v7466, %v7486
        %v7503 = vadd.f32 %v7467, %v7486
        %v7504 = vadd.f32 %v7468, %v7491
        %v7505 = vadd.f32 %v7469, %v7491
        %v7506 = vadd.f32 %v7470, %v7491
        %v7507 = vadd.f32 %v7471, %v7496
        %v7508 = vadd.f32 %v7472, %v7496
        %v7509 = vadd.f32 %v7473, %v7496
        %s7510 = scalar_lea.vmem [#allocation6], 32
        %v7511 = vld [vmem:[%s7510] sm:$0xff]
        %v7512 = vld [vmem:[%s7510 + $0x8] sm:$0xff]
        %v7513 = vld [vmem:[%s7510 + $0x10] sm:$0xff]
        %v7514 = vld [vmem:[%s7510 + $0x18] sm:$0xff]
        %7515 = vset.pattern.permute.xlu0 4
        %7516 = vperm.xlu0 %7515, %v7474
        %v7517 = vpop.permute.xlu0 %7516
        %7519 = vset.pattern.permute.xlu0 4
        %7520 = vperm.xlu0 %7519, %v7475
        %v7521 = vpop.permute.xlu0 %7520
        %7523 = vset.pattern.permute.xlu0 4
        %7524 = vperm.xlu0 %7523, %v7476
        %v7525 = vpop.permute.xlu0 %7524
        %7527 = vset.pattern.permute.xlu0 4
        %7528 = vperm.xlu0 %7527, %v7477
        %v7529 = vpop.permute.xlu0 %7528
        %7543 = vrot.lane.b32.xlu0 %v7498, 49
        %v7544 = vpop.permute.xlu0 %7543
        %7545 = vrot.lane.b32.xlu0 %v7499, 49
        %v7546 = vpop.permute.xlu0 %7545
        %7547 = vrot.lane.b32.xlu0 %v7500, 49
        %v7548 = vpop.permute.xlu0 %7547
        %7549 = vrot.lane.b32.xlu0 %v7501, 49
        %v7550 = vpop.permute.xlu0 %7549
        %7551 = vrot.lane.b32.xlu0 %v7502, 49
        %v7552 = vpop.permute.xlu0 %7551
        %7553 = vrot.lane.b32.xlu0 %v7503, 49
        %v7554 = vpop.permute.xlu0 %7553
        %7555 = vrot.lane.b32.xlu0 %v7504, 49
        %v7556 = vpop.permute.xlu0 %7555
        %7557 = vrot.lane.b32.xlu0 %v7505, 49
        %v7558 = vpop.permute.xlu0 %7557
        %7559 = vrot.lane.b32.xlu0 %v7506, 49
        %v7560 = vpop.permute.xlu0 %7559
        %7561 = vrot.lane.b32.xlu0 %v7507, 49
        %v7562 = vpop.permute.xlu0 %7561
        %7563 = vrot.lane.b32.xlu0 %v7508, 49
        %v7564 = vpop.permute.xlu0 %7563
        %7565 = vrot.lane.b32.xlu0 %v7509, 49
        %v7566 = vpop.permute.xlu0 %7565
        %vm7567 = vcmask 400384
        %v7568 = vsel %vm7567, %v7544, %v7546
        %v7569 = vsel %vm7567, %v7546, %v7548
        %v7570 = vsel %vm7567, %v7550, %v7552
        %v7571 = vsel %vm7567, %v7552, %v7554
        %v7572 = vsel %vm7567, %v7556, %v7558
        %v7573 = vsel %vm7567, %v7558, %v7560
        %v7574 = vsel %vm7567, %v7562, %v7564
        %v7575 = vsel %vm7567, %v7564, %v7566
        %v7585 = vsel %vm302, %v7511, 0
        %v7588 = vsel %vm302, %v7512, 0
        %v7591 = vsel %vm302, %v7513, 0
        %v7594 = vsel %vm302, %v7514, 0
        %7596 = vmatprep.subr.mxu0 %v7569
        %7597 = vmatpush1.msra.mxu0 %v7568
        %7598 = vmatprep.subr.mxu0 %v7571
        %7599 = vmatpush1.msra.mxu0 %v7570
        %7600 = vmatprep.subr.mxu0 %v7573
        %7601 = vmatpush1.msra.mxu0 %v7572
        %7602 = vmatprep.subr.mxu0 %v7575
        %7603 = vmatpush1.msra.mxu0 %v7574
        %7604 = vmatprep.subr.mxu0 0.0
        %7605 = vmatpush1.msra.mxu0 0.0
        %7606 = vmatprep.subr.mxu0 0.0
        %7607 = vmatpush1.msra.mxu0 0.0
        %7608 = vmatprep.subr.mxu0 0.0
        %7609 = vmatpush1.msra.mxu0 0.0
        %7610 = vmatprep.subr.mxu0 0.0
        %7611 = vmatpush1.msra.mxu0 0.0
        %7612 = vmatprep.subr.mxu0 0.0
        %7613 = vmatpush1.msra.mxu0 0.0
        %7614 = vmatprep.subr.mxu0 0.0
        %7615 = vmatpush1.msra.mxu0 0.0
        %7616 = vmatprep.subr.mxu0 0.0
        %7617 = vmatpush1.msra.mxu0 0.0
        %7618 = vmatprep.subr.mxu0 0.0
        %7619 = vmatpush1.msra.mxu0 0.0
        %7620 = vmatprep.subr.mxu0 0.0
        %7621 = vmatpush1.msra.mxu0 0.0
        %7622 = vmatprep.subr.mxu0 0.0
        %7623 = vmatpush1.msra.mxu0 0.0
        %7624 = vmatprep.subr.mxu0 0.0
        %7625 = vmatpush1.msra.mxu0 0.0
        %7626 = vmatprep.subr.mxu0 0.0
        %7627 = vmatpush1.msra.mxu0 0.0
        %7628 = vmatprep.subr.mxu0 0.0
        %7629 = vmatpush1.msra.mxu0 0.0
        %7630 = vmatprep.subr.mxu0 0.0
        %7631 = vmatpush1.msra.mxu0 0.0
        %7632 = vmatprep.subr.mxu0 0.0
        %7633 = vmatpush1.msra.mxu0 0.0
        %7634 = vmatprep.subr.mxu0 0.0
        %7635 = vmatpush1.msra.mxu0 0.0
        %7636 = vmatprep.subr.mxu0 0.0
        %7637 = vmatpush1.msra.mxu0 0.0
        %7638 = vmatprep.subr.mxu0 0.0
        %7639 = vmatpush1.msra.mxu0 0.0
        %7640 = vmatprep.subr.mxu0 0.0
        %7641 = vmatpush1.msra.mxu0 0.0
        %7642 = vmatprep.subr.mxu0 0.0
        %7643 = vmatpush1.msra.mxu0 0.0
        %7644 = vmatprep.subr.mxu0 0.0
        %7645 = vmatpush1.msra.mxu0 0.0
        %7646 = vmatprep.subr.mxu0 0.0
        %7647 = vmatpush1.msra.mxu0 0.0
        %7648 = vmatprep.subr.mxu0 0.0
        %7649 = vmatpush1.msra.mxu0 0.0
        %7650 = vmatprep.subr.mxu0 0.0
        %7651 = vmatpush1.msra.mxu0 0.0
        %7652 = vmatprep.subr.mxu0 0.0
        %7653 = vmatpush1.msra.mxu0 0.0
        %7654 = vmatprep.subr.mxu0 0.0
        %7655 = vmatpush1.msra.mxu0 0.0
        %7656 = vmatprep.subr.mxu0 0.0
        %7657 = vmatpush1.msra.mxu0 0.0
        %7658 = vmatprep.subr.mxu0 0.0
        %7659 = vmatpush1.msra.mxu0 0.0
        %7660 = vmatprep.mubr.f32.mxu0 0.0
        %7661 = vmatmul.mubr.f32.gmra.mrb[0].mxu0 %v7585
        %v7662 = vpop.f32.mrb[0].mxu0
        %v7663 = vadd.f32 %v7517, %v7662
        %v7664 = vpop.f32.mrb[0].mxu0
        %v7665 = vadd.f32 %v7517, %v7664
        %7666 = vmatprep.mubr.f32.mxu0 0.0
        %7667 = vmatmul.mubr.f32.gmra.mrb[0].mxu0 %v7588
        %v7668 = vpop.f32.mrb[0].mxu0
        %v7669 = vadd.f32 %v7521, %v7668
        %v7670 = vpop.f32.mrb[0].mxu0
        %v7671 = vadd.f32 %v7521, %v7670
        %7672 = vmatprep.mubr.f32.mxu0 0.0
        %7673 = vmatmul.mubr.f32.gmra.mrb[0].mxu0 %v7591
        %v7674 = vpop.f32.mrb[0].mxu0
        %v7675 = vadd.f32 %v7525, %v7674
        %v7676 = vpop.f32.mrb[0].mxu0
        %v7677 = vadd.f32 %v7525, %v7676
        %7678 = vmatprep.mubr.f32.mxu0 0.0
        %7679 = vmatmul.mubr.f32.gmra.mrb[0].mxu0 %v7594
        %v7680 = vpop.f32.mrb[0].mxu0
        %v7681 = vadd.f32 %v7529, %v7680
        %v7682 = vpop.f32.mrb[0].mxu0
        %v7683 = vadd.f32 %v7529, %v7682
        %7684 = vdwg.mxu0
        %v7685 = vmul.f32 %v612, %v7663
        %v7686 = vmul.f32 %v613, %v7665
        %v7687 = vmul.f32 %v614, %v7669
        %v7688 = vmul.f32 %v615, %v7671
        %v7689 = vmul.f32 %v616, %v7675
        %v7690 = vmul.f32 %v617, %v7677
        %v7691 = vmul.f32 %v618, %v7681
        %v7692 = vmul.f32 %v619, %v7683
        %s7693 = scalar_lea.vmem [#allocation6], 64
        %v7694 = vld [vmem:[%s7693] sm:$0xff]
        %v7695 = vld [vmem:[%s7693 + $0x8] sm:$0xff]
        %v7696 = vld [vmem:[%s7693 + $0x10] sm:$0xff]
        %v7697 = vld [vmem:[%s7693 + $0x18] sm:$0xff]
        %7698 = vset.pattern.permute.xlu0 5
        %7699 = vperm.xlu0 %7698, %v7474
        %v7700 = vpop.permute.xlu0 %7699
        %7702 = vset.pattern.permute.xlu0 5
        %7703 = vperm.xlu0 %7702, %v7475
        %v7704 = vpop.permute.xlu0 %7703
        %7706 = vset.pattern.permute.xlu0 5
        %7707 = vperm.xlu0 %7706, %v7476
        %v7708 = vpop.permute.xlu0 %7707
        %7710 = vset.pattern.permute.xlu0 5
        %7711 = vperm.xlu0 %7710, %v7477
        %v7712 = vpop.permute.xlu0 %7711
        %v7715 = vsel %vm302, %v7694, 0
        %v7718 = vsel %vm302, %v7695, 0
        %v7721 = vsel %vm302, %v7696, 0
        %v7724 = vsel %vm302, %v7697, 0
        %7726 = vmatprep.subr.mxu0 %v7686
        %7727 = vmatpush1.msra.mxu0 %v7685
        %7728 = vmatprep.subr.mxu0 %v7688
        %7729 = vmatpush1.msra.mxu0 %v7687
        %7730 = vmatprep.subr.mxu0 %v7690
        %7731 = vmatpush1.msra.mxu0 %v7689
        %7732 = vmatprep.subr.mxu0 %v7692
        %7733 = vmatpush1.msra.mxu0 %v7691
        %7734 = vmatprep.subr.mxu0 0.0
        %7735 = vmatpush1.msra.mxu0 0.0
        %7736 = vmatprep.subr.mxu0 0.0
        %7737 = vmatpush1.msra.mxu0 0.0
        %7738 = vmatprep.subr.mxu0 0.0
        %7739 = vmatpush1.msra.mxu0 0.0
        %7740 = vmatprep.subr.mxu0 0.0
        %7741 = vmatpush1.msra.mxu0 0.0
        %7742 = vmatprep.subr.mxu0 0.0
        %7743 = vmatpush1.msra.mxu0 0.0
        %7744 = vmatprep.subr.mxu0 0.0
        %7745 = vmatpush1.msra.mxu0 0.0
        %7746 = vmatprep.subr.mxu0 0.0
        %7747 = vmatpush1.msra.mxu0 0.0
        %7748 = vmatprep.subr.mxu0 0.0
        %7749 = vmatpush1.msra.mxu0 0.0
        %7750 = vmatprep.subr.mxu0 0.0
        %7751 = vmatpush1.msra.mxu0 0.0
        %7752 = vmatprep.subr.mxu0 0.0
        %7753 = vmatpush1.msra.mxu0 0.0
        %7754 = vmatprep.subr.mxu0 0.0
        %7755 = vmatpush1.msra.mxu0 0.0
        %7756 = vmatprep.subr.mxu0 0.0
        %7757 = vmatpush1.msra.mxu0 0.0
        %7758 = vmatprep.subr.mxu0 0.0
        %7759 = vmatpush1.msra.mxu0 0.0
        %7760 = vmatprep.subr.mxu0 0.0
        %7761 = vmatpush1.msra.mxu0 0.0
        %7762 = vmatprep.subr.mxu0 0.0
        %7763 = vmatpush1.msra.mxu0 0.0
        %7764 = vmatprep.subr.mxu0 0.0
        %7765 = vmatpush1.msra.mxu0 0.0
        %7766 = vmatprep.subr.mxu0 0.0
        %7767 = vmatpush1.msra.mxu0 0.0
        %7768 = vmatprep.subr.mxu0 0.0
        %7769 = vmatpush1.msra.mxu0 0.0
        %7770 = vmatprep.subr.mxu0 0.0
        %7771 = vmatpush1.msra.mxu0 0.0
        %7772 = vmatprep.subr.mxu0 0.0
        %7773 = vmatpush1.msra.mxu0 0.0
        %7774 = vmatprep.subr.mxu0 0.0
        %7775 = vmatpush1.msra.mxu0 0.0
        %7776 = vmatprep.subr.mxu0 0.0
        %7777 = vmatpush1.msra.mxu0 0.0
        %7778 = vmatprep.subr.mxu0 0.0
        %7779 = vmatpush1.msra.mxu0 0.0
        %7780 = vmatprep.subr.mxu0 0.0
        %7781 = vmatpush1.msra.mxu0 0.0
        %7782 = vmatprep.subr.mxu0 0.0
        %7783 = vmatpush1.msra.mxu0 0.0
        %7784 = vmatprep.subr.mxu0 0.0
        %7785 = vmatpush1.msra.mxu0 0.0
        %7786 = vmatprep.subr.mxu0 0.0
        %7787 = vmatpush1.msra.mxu0 0.0
        %7788 = vmatprep.subr.mxu0 0.0
        %7789 = vmatpush1.msra.mxu0 0.0
        %7790 = vmatprep.mubr.f32.mxu0 0.0
        %7791 = vmatmul.mubr.f32.gmra.mrb[0].mxu0 %v7715
        %v7792 = vpop.f32.mrb[0].mxu0
        %v7793 = vadd.f32 %v7700, %v7792
        %v7794 = vpop.f32.mrb[0].mxu0
        %v7795 = vadd.f32 %v7700, %v7794
        %7796 = vmatprep.mubr.f32.mxu0 0.0
        %7797 = vmatmul.mubr.f32.gmra.mrb[0].mxu0 %v7718
        %v7798 = vpop.f32.mrb[0].mxu0
        %v7799 = vadd.f32 %v7704, %v7798
        %v7800 = vpop.f32.mrb[0].mxu0
        %v7801 = vadd.f32 %v7704, %v7800
        %7802 = vmatprep.mubr.f32.mxu0 0.0
        %7803 = vmatmul.mubr.f32.gmra.mrb[0].mxu0 %v7721
        %v7804 = vpop.f32.mrb[0].mxu0
        %v7805 = vadd.f32 %v7708, %v7804
        %v7806 = vpop.f32.mrb[0].mxu0
        %v7807 = vadd.f32 %v7708, %v7806
        %7808 = vmatprep.mubr.f32.mxu0 0.0
        %7809 = vmatmul.mubr.f32.gmra.mrb[0].mxu0 %v7724
        %v7810 = vpop.f32.mrb[0].mxu0
        %v7811 = vadd.f32 %v7712, %v7810
        %v7812 = vpop.f32.mrb[0].mxu0
        %v7813 = vadd.f32 %v7712, %v7812
        %7814 = vdwg.mxu0
        %v7815 = vadd.f32 %v7793, %v258
        %v7816 = vadd.f32 %v7795, %v259
        %v7817 = vadd.f32 %v7799, %v260
        %v7818 = vadd.f32 %v7801, %v261
        %v7819 = vadd.f32 %v7805, %v262
        %v7820 = vadd.f32 %v7807, %v263
        %v7821 = vadd.f32 %v7811, %v264
        %v7822 = vadd.f32 %v7813, %v265
        %7823 = vst [vmem:[%s257] sm:$0xff] %v7815
        %7824 = vst [vmem:[%s257 + $0x8] sm:$0xff] %v7816
        %7825 = vst [vmem:[%s257 + $0x10] sm:$0xff] %v7817
        %7826 = vst [vmem:[%s257 + $0x18] sm:$0xff] %v7818
        %7827 = vst [vmem:[%s257 + $0x20] sm:$0xff] %v7819
        %7828 = vst [vmem:[%s257 + $0x28] sm:$0xff] %v7820
        %7829 = vst [vmem:[%s257 + $0x30] sm:$0xff] %v7821
        %7830 = vst [vmem:[%s257 + $0x38] sm:$0xff] %v7822
        %s7831 = sand.u32 %s141, 1
        %s7832 = scalar_lea.sflag [#allocation5], %s7831
        %s7833 = sand.u32 %s141, 1
        %s7834 = smul.addr %s7833, 64
        %s7835 = scalar_lea.vmem [#allocation8], %s7834
        // Predicated region
        $region49: #{tpu_custom_call.1} parent=39 // pred_check
          %p7836 = pneg %p151
        $region50: #{tpu_custom_call.1} parent=39 // pred_check_branch
          %7838 = sbr.rel (%p7836) target = $region52
        $region51: #{tpu_custom_call.1} parent=39 // pred_region
          %s7840 = ssub.s32 1024, 1024
          %7841 = vsyncadd %s7832, %s7840
          %s7842 = smul.addr %s23, 8
          %s7843 = smul.addr %s7842, 128
          %s7844 = scalar_lea.hbm %s5, %s7843
          %s7845 = sshll.u32 %s7835, 4
          %s7846 = int_to_ptr.vmem [resolvable:$true] %s7845
          %7851 = dma.vmem_to_hbm [thread:$0]  %s7846, 1024, %s7844, %s7832, 256, 256, 16
        $region52: #{tpu_custom_call.1} parent=39 // pred_fallthru
          _
      $region40: #{tpu_custom_call.1} parent=5 // pred_fallthru
        _
      %p7852 = scmp.le.s32.totalorder 2, %s18
      // Predicated region
      $region53: #{tpu_custom_call.1} parent=5 // pred_check
        %p7853 = pneg %p7852
      $region54: #{tpu_custom_call.1} parent=5 // pred_check_branch
        %7855 = sbr.rel (%p7853) target = $region56
      $region55: #{tpu_custom_call.1} parent=5 // pred_region
        %s7856 = ssub.s32 %s18, 2
        // Predicated region
        $region57: #{tpu_custom_call.1} parent=55 // pred_check
          %p7857 = pneg %p157
        $region58: #{tpu_custom_call.1} parent=55 // pred_check_branch
          %7859 = sbr.rel (%p7857) target = $region60
        $region59: #{tpu_custom_call.1} parent=55 // pred_region
          %s7860 = sand.u32 %s142, 1
          %s7861 = scalar_lea.sflag [#allocation5], %s7860
          %s7862 = sand.u32 %s142, 1
          %s7863 = smul.addr %s7862, 64
          %s7864 = scalar_lea.vmem [#allocation8], %s7863
          %7865 = dma.done %s7861, 1024
        $region60: #{tpu_custom_call.1} parent=55 // pred_fallthru
          _
      $region56: #{tpu_custom_call.1} parent=5 // pred_fallthru
        _
    $region6: #{tpu_custom_call.1} parent=1 // loop_footer
      %s22 = sadd.s32 1, %s18
    $region7: #{tpu_custom_call.1} parent=1 // loop_footer_branch
      %17 = sbr.rel target = $region3
    $region8: #{tpu_custom_call.1} parent=1 // loop_exit
      _
    %7866 = vsyncpa [#allocation4], 1
    %s7867 = scalar_lea.sflag [#allocation4], 1
    %7868 = vsyncpa %s7867, 1
    %7869 = vsyncpa [#allocation7], 1
    %7870 = vsyncpa [#allocation5], 1
    %s7871 = scalar_lea.sflag [#allocation5], 1
    %7872 = vsyncpa %s7871, 1

</llo_original>
